<compile_context>
chip_gen: v7x
topology: tpu7x:2x2x1
jax: 0.10.0
libtpu: 0.0.40
codegen_flags: <defaults>
</compile_context>

<pallas_src>
import functools
import numpy as np
import jax
import jax.numpy as jnp
from jax.experimental import pallas as pl
from jax.experimental.pallas import tpu as pltpu

NEG_SLOPE = 0.01  # PyTorch LeakyReLU default


def _leaky(x):
    return jnp.where(x > 0, x, NEG_SLOPE * x)


# ----------------------------------------------------------------------------
# Fused trunk kernel (one grid step per batch element)
# ----------------------------------------------------------------------------
def _trunk_kernel(
    # per-batch data (channels-first, HW on lanes)
    gf_ref, map_ref, te_ref, de_ref, re_ref, pe_ref, amt_ref, nq_ref, msk_ref,
    # tiny scalar params (SMEM)
    ap_w1_ref, ap_w2_ref, ap_c_ref, cr2_b_ref,
    # weights (VMEM, constant index maps)
    gfc_w_ref, gfc_b_ref,
    mc1_w_ref, mc1_b_ref, mc2_w_ref, mc2_b_ref,
    rb_c1w_ref, rb_c1b_ref, rb_c2w_ref, rb_c2b_ref,
    rb_sw1t_ref, rb_sb1_ref, rb_sw2_ref, rb_sb2_ref,
    sn_w_ref, sn_b_ref,
    cr1_w_ref, cr1_b_ref, cr2_w_ref,
    # outputs
    critic_ref,
    # scratch
    tap_ref,
    *, H, W, Q, E, n_blocks):
  f32 = jnp.float32
  bf16 = jnp.bfloat16
  HW = H * W
  PAD = 128  # lane padding for the 5x5-conv shifts (aligned slices)
  A = mc2_w_ref.shape[0]
  G = gfc_w_ref.shape[0]

  # ---- hoisted column-validity masks for the 5 horizontal taps (bf16) ----
  w_idx = jax.lax.broadcasted_iota(jnp.int32, (1, HW), 1) % W
  col_masks = [((w_idx + dw >= 0) & (w_idx + dw < W)).astype(bf16)
               for dw in range(-2, 3)]
  zpad = jnp.zeros((A, PAD), bf16)

  def conv5x5(x, w_ref, b_col):
      # 'same' 5x5 conv: 25 zero-filled shifts staged into a bf16 VMEM scratch
      # (bounded live ranges, no concat copy), then ONE MXU matmul K = 25*A.
      xb = x.astype(bf16)                                        # (A, HW)
      xpad = jnp.concatenate([zpad, xb, zpad], axis=1)           # (A, HW+2P)
      for kw in range(5):
          dw = kw - 2
          # horizontal shift + column mask, hoisted once per dw (5 mask muls)
          xs = xpad[:, PAD + dw:PAD + dw + HW] * col_masks[kw]
          xs_pad = jnp.concatenate([zpad, xs, zpad], axis=1)
          for kh in range(5):
              s = (kh - 2) * W
              t = kh * 5 + kw
              tap_ref[t * A:(t + 1) * A, :] = xs_pad[:, PAD + s:PAD + s + HW]
      acc = jnp.dot(w_ref[...], tap_ref[...], preferred_element_type=f32)
      return _leaky(acc + b_col)

  # ---- ActionPreprocess: two back-to-back (linear) Conv3d layers folded ----
  te_v, de_v, re_v, pe_v = te_ref[0], de_ref[0], re_ref[0], pe_ref[0]
  amt_v, nq_v = amt_ref[0], nq_ref[0]
  w2 = [ap_w2_ref[k] for k in range(6)]                          # SMEM scalars
  acc = jnp.zeros((E, HW), f32)
  for q in range(Q):
      sl = slice(q * E, (q + 1) * E)
      comb = (w2[0] * te_v[sl, :] + w2[1] * de_v[sl, :] + w2[2] * re_v[sl, :]
              + w2[3] * amt_v[q:q + 1, :] + w2[4] * pe_v[sl, :]
              + w2[5] * nq_v[q:q + 1, :])
      acc = acc + ap_w1_ref[q] * comb
  act_emb = _leaky(acc + ap_c_ref[0]) * msk_ref[0]               # (E, HW)

  # ---- global_fc (VPU broadcast-mul + lane reduce; no N=1 MXU matmul) ----
  g = _leaky(jnp.sum(gfc_w_ref[...] * gf_ref[0], axis=1, keepdims=True)
             + gfc_b_ref[...])                                   # (G, 1)
  g_map = jnp.broadcast_to(g, (G, HW))

  # channel order matches torch.cat([global, map, action], dim=1)
  x = jnp.concatenate([g_map, map_ref[0], act_emb], axis=0)      # (Cin, HW)

  # ---- map_conv: two 1x1 convs + LeakyReLU ----
  x = _leaky(jnp.dot(mc1_w_ref[...], x, preferred_element_type=f32)
             + mc1_b_ref[...])
  x = _leaky(jnp.dot(mc2_w_ref[...], x, preferred_element_type=f32)
             + mc2_b_ref[...])

  # ---- residual blocks: 5x5 conv x2 + SE + residual + leaky ----
  for blk in range(n_blocks):
      h = conv5x5(x, rb_c1w_ref.at[blk], rb_c1b_ref[blk])
      h = conv5x5(h, rb_c2w_ref.at[blk], rb_c2b_ref[blk])
      # SE squeeze/excite on VPU/XLU (avoids two N=1 MXU round trips)
      pooled = jnp.mean(h, axis=1, keepdims=True)                # (A, 1)
      z1 = jnp.sum(rb_sw1t_ref[blk] * pooled, axis=0, keepdims=True) \
          + rb_sb1_ref[blk]                                      # (1, Ar)
      z1 = jnp.maximum(z1, 0.0)
      z2 = jnp.sum(rb_sw2_ref[blk] * z1, axis=1, keepdims=True) \
          + rb_sb2_ref[blk]                                      # (A, 1)
      x = _leaky(h * jax.nn.sigmoid(z2) + x)

  # ---- spectral-norm 1x1 conv (weight already divided by sigma in wrapper) ----
  x = jnp.dot(sn_w_ref[...], x, preferred_element_type=f32) + sn_b_ref[...]

  # ---- critic head: 1x1 conv + leaky, then A->1 conv folded through the
  #      spatial mean (linear), producing the scalar critic value ----
  c = _leaky(jnp.dot(cr1_w_ref[...], x, preferred_element_type=f32)
             + cr1_b_ref[...])
  cmean = jnp.mean(c, axis=1, keepdims=True)                     # (A, 1)
  cval = jnp.sum(cr2_w_ref[...] * cmean) + cr2_b_ref[0]
  critic_ref[0] = jnp.full((1, 128), cval, f32)


# ----------------------------------------------------------------------------
# Parameter init (orthogonal, gain = 1/prod(shape)^(1/5); zero biases)
# ----------------------------------------------------------------------------
def _orth(key, shape):
    prod = int(np.prod(shape))
    gain = 1.0 / (prod ** 0.2)
    init = jax.nn.initializers.orthogonal(scale=gain)
    if len(shape) == 1:
        return init(key, (1, shape[0]), jnp.float32).reshape(shape)
    return init(key, shape, jnp.float32)


CFG = dict(
    all_channel=32, action_emb_dim=8, action_queue_size=4,
    global_feature_dims=16, global_emb_dim=8, map_channel=8,
    n_res_blocks=2, se_reduction=16,
    # ActDims (synthetic choices)
    robot_act=6, direction=5, resource=5, repeat=2,
)


def init_params(key, cfg):
    E, Q, A = cfg["action_emb_dim"], cfg["action_queue_size"], cfg["all_channel"]
    G, GF, CM = cfg["global_emb_dim"], cfg["global_feature_dims"], cfg["map_channel"]
    Ar = A // cfg["se_reduction"]
    Cin = G + CM + E
    ks = iter(jax.random.split(key, 64))
    p = {}
    p["type_emb"] = _orth(next(ks), (cfg["robot_act"], E))
    p["direction_emb"] = _orth(next(ks), (cfg["direction"], E))
    p["resource_emb"] = _orth(next(ks), (cfg["resource"], E))
    p["repeat_emb"] = _orth(next(ks), (cfg["repeat"], E))
    p["ap_conv1_w"] = _orth(next(ks), (Q,))   # Conv3d(1,1,(Q,1,1)) weight
    p["ap_conv1_b"] = jnp.zeros(())
    p["ap_conv2_w"] = _orth(next(ks), (6,))   # Conv3d(1,1,(1,1,6)) weight
    p["ap_conv2_b"] = jnp.zeros(())
    p["gfc_w"] = _orth(next(ks), (G, GF)); p["gfc_b"] = jnp.zeros((G,))
    p["mc1_w"] = _orth(next(ks), (A, Cin)); p["mc1_b"] = jnp.zeros((A,))
    p["mc2_w"] = _orth(next(ks), (A, A)); p["mc2_b"] = jnp.zeros((A,))
    blocks = []
    for _ in range(cfg["n_res_blocks"]):
        blocks.append(dict(
            c1_w=_orth(next(ks), (A, 25 * A)), c1_b=jnp.zeros((A,)),
            c2_w=_orth(next(ks), (A, 25 * A)), c2_b=jnp.zeros((A,)),
            se_w1=_orth(next(ks), (Ar, A)), se_b1=jnp.zeros((Ar,)),
            se_w2=_orth(next(ks), (A, Ar)), se_b2=jnp.zeros((A,)),
        ))
    p["res_blocks"] = blocks
    p["sn_w"] = _orth(next(ks), (A, A)); p["sn_b"] = jnp.zeros((A,))
    u = jax.random.normal(next(ks), (A,), jnp.float32)
    p["sn_u"] = u / (jnp.linalg.norm(u) + 1e-12)   # spectral_norm 'u' buffer
    p["cr1_w"] = _orth(next(ks), (A, A)); p["cr1_b"] = jnp.zeros((A,))
    p["cr2_w"] = _orth(next(ks), (1, A)); p["cr2_b"] = jnp.zeros((1,))
    return p


# ----------------------------------------------------------------------------
# Net.forward
# ----------------------------------------------------------------------------
def net_forward(params, cfg, global_feature, map_feature, action_feature,
                va=None, action=None, teacher_action=None):
    B, CM, H, W = map_feature.shape
    E, Q, A = cfg["action_emb_dim"], cfg["action_queue_size"], cfg["all_channel"]
    G, GF = cfg["global_emb_dim"], cfg["global_feature_dims"]
    NB = cfg["n_res_blocks"]
    Ar = A // cfg["se_reduction"]
    Cin = G + CM + E
    HW = H * W
    f32 = jnp.float32
    bf16 = jnp.bfloat16

    # --- XLA glue: embedding gathers + channels-first transposes ---
    def gather_t(table, idx):
        e = table[idx.reshape(B, HW, Q)]                       # (B, HW, Q, E)
        return e.reshape(B, HW, Q * E).transpose(0, 2, 1).astype(f32)

    te = gather_t(params["type_emb"], action_feature["type"].astype(jnp.int32))
    de = gather_t(params["direction_emb"],
                  action_feature["direction"].astype(jnp.int32))
    re_ = gather_t(params["resource_emb"],
                   action_feature["resource"].astype(jnp.int32))
    pe = gather_t(params["repeat_emb"],
                  (action_feature["repeat"] != 0).astype(jnp.int32))
    amt = action_feature["amount"].astype(f32).reshape(B, HW, Q).transpose(0, 2, 1)
    nq = action_feature["n"].astype(f32).reshape(B, HW, Q).transpose(0, 2, 1)
    mask = action_feature["unit_indicator"].astype(f32).reshape(B, 1, HW)
    gf = global_feature.astype(f32).reshape(B, 1, GF)
    mapf = map_feature.astype(f32).reshape(B, CM, HW)

    # --- XLA glue: weight packing ---
    # Tiny scalars -> SMEM (folded ActionPreprocess convs; the two Conv3d's are
    # back-to-back linear ops, so the fold + combined bias is exact).
    ap_w1 = params["ap_conv1_w"].reshape(Q).astype(f32)
    ap_w2 = params["ap_conv2_w"].reshape(6).astype(f32)
    ap_c = (params["ap_conv1_b"] * jnp.sum(params["ap_conv2_w"])
            + params["ap_conv2_b"]).reshape(1).astype(f32)
    cr2_b = params["cr2_b"].reshape(1).astype(f32)

    gfc_w = params["gfc_w"].astype(f32)
    gfc_b = params["gfc_b"].reshape(G, 1).astype(f32)
    mc1_w = params["mc1_w"].astype(f32)
    mc1_b = params["mc1_b"].reshape(A, 1).astype(f32)
    mc2_w = params["mc2_w"].astype(f32)
    mc2_b = params["mc2_b"].reshape(A, 1).astype(f32)
    rb = params["res_blocks"]
    rb_c1w = jnp.stack([b["c1_w"] for b in rb]).astype(bf16)      # bf16 MXU
    rb_c1b = jnp.stack([b["c1_b"] for b in rb]).reshape(NB, A, 1).astype(f32)
    rb_c2w = jnp.stack([b["c2_w"] for b in rb]).astype(bf16)      # bf16 MXU
    rb_c2b = jnp.stack([b["c2_b"] for b in rb]).reshape(NB, A, 1).astype(f32)
    rb_sw1t = jnp.stack([b["se_w1"].T for b in rb]).astype(f32)   # (NB, A, Ar)
    rb_sb1 = jnp.stack([b["se_b1"] for b in rb]).reshape(NB, 1, Ar).astype(f32)
    rb_sw2 = jnp.stack([b["se_w2"] for b in rb]).astype(f32)      # (NB, A, Ar)
    rb_sb2 = jnp.stack([b["se_b2"] for b in rb]).reshape(NB, A, 1).astype(f32)

    # Spectral norm: one PyTorch-style power-iteration step on the weight only
    # (batch-invariant) -> pre-scaled weight passed to the kernel.
    # TODO(synk): PyTorch updates the persistent `u` buffer in place each
    # training forward; here it is a functional one-step estimate.
    w_m = params["sn_w"].astype(f32)
    u0 = jax.lax.stop_gradient(params["sn_u"].astype(f32))
    v = jax.lax.stop_gradient(w_m.T @ u0)
    v = v / (jnp.linalg.norm(v) + 1e-12)
    u = jax.lax.stop_gradient(w_m @ v)
    u = u / (jnp.linalg.norm(u) + 1e-12)
    sigma = jnp.dot(u, w_m @ v)
    sn_w_s = w_m / sigma
    sn_b = params["sn_b"].reshape(A, 1).astype(f32)

    cr1_w = params["cr1_w"].astype(f32)
    cr1_b = params["cr1_b"].reshape(A, 1).astype(f32)
    cr2_w_col = params["cr2_w"].reshape(1, A).T.astype(f32)       # (A, 1)

    dmap = lambda b: (b, 0, 0)
    w2map = lambda b: (0, 0)
    w3map = lambda b: (0, 0, 0)
    smem = lambda: pl.BlockSpec(memory_space=pltpu.MemorySpace.SMEM)

    in_specs = [
        # per-batch data
        pl.BlockSpec((1, 1, GF), dmap),
        pl.BlockSpec((1, CM, HW), dmap),
        pl.BlockSpec((1, Q * E, HW), dmap),
        pl.BlockSpec((1, Q * E, HW), dmap),
        pl.BlockSpec((1, Q * E, HW), dmap),
        pl.BlockSpec((1, Q * E, HW), dmap),
        pl.BlockSpec((1, Q, HW), dmap),
        pl.BlockSpec((1, Q, HW), dmap),
        pl.BlockSpec((1, 1, HW), dmap),
        # SMEM scalars
        smem(), smem(), smem(), smem(),
        # weights
        pl.BlockSpec((G, GF), w2map),
        pl.BlockSpec((G, 1), w2map),
        pl.BlockSpec((A, Cin), w2map),
        pl.BlockSpec((A, 1), w2map),
        pl.BlockSpec((A, A), w2map),
        pl.BlockSpec((A, 1), w2map),
        pl.BlockSpec((NB, A, 25 * A), w3map),
        pl.BlockSpec((NB, A, 1), w3map),
        pl.BlockSpec((NB, A, 25 * A), w3map),
        pl.BlockSpec((NB, A, 1), w3map),
        pl.BlockSpec((NB, A, Ar), w3map),
        pl.BlockSpec((NB, 1, Ar), w3map),
        pl.BlockSpec((NB, A, Ar), w3map),
        pl.BlockSpec((NB, A, 1), w3map),
        pl.BlockSpec((A, A), w2map),
        pl.BlockSpec((A, 1), w2map),
        pl.BlockSpec((A, A), w2map),
        pl.BlockSpec((A, 1), w2map),
        pl.BlockSpec((A, 1), w2map),
    ]
    out_specs = pl.BlockSpec((1, 1, 128), dmap)

    critic = pl.pallas_call(
        functools.partial(_trunk_kernel, H=H, W=W, Q=Q, E=E, n_blocks=NB),
        out_shape=jax.ShapeDtypeStruct((B, 1, 128), f32),
        grid=(B,),
        in_specs=in_specs,
        out_specs=out_specs,
        scratch_shapes=[pltpu.VMEM((25 * A, HW), bf16)],
        compiler_params=pltpu.CompilerParams(
            dimension_semantics=("parallel",),
            vmem_limit_bytes=32 * 1024 * 1024),
    )(gf, mapf, te, de, re_, pe, amt, nq, mask,
      ap_w1, ap_w2, ap_c, cr2_b,
      gfc_w, gfc_b, mc1_w, mc1_b, mc2_w, mc2_b,
      rb_c1w, rb_c1b, rb_c2w, rb_c2b, rb_sw1t, rb_sb1, rb_sw2, rb_sb2,
      sn_w_s, sn_b, cr1_w, cr1_b, cr2_w_col)

    critic_value = critic[:, 0, 0]                             # (B,)

    # TODO(synk): ActorHead / SimpleActorHead class definitions are not given
    # in the reference module, so the actor path (logp / action / entropy /
    # teacher_action_logp) is not implemented and the trunk feature map is not
    # materialized as an output (it would be the actor input).
    del va, action, teacher_action
    logp = act_out = entropy = teacher_action_logp = None
    return logp, critic_value, act_out, entropy, teacher_action_logp


# ----------------------------------------------------------------------------
if __name__ == "__main__":
    cfg = CFG
    B, H, W = 2, 16, 16
    Q = cfg["action_queue_size"]

    key = jax.random.PRNGKey(0)
    pkey, dkey = jax.random.split(key)
    params = init_params(pkey, cfg)

    ks = jax.random.split(dkey, 8)
    global_feature = jax.random.normal(
        ks[0], (B, cfg["global_feature_dims"]), jnp.float32)
    map_feature = jax.random.normal(
        ks[1], (B, cfg["map_channel"], H, W), jnp.float32)       # NCHW
    action_feature = {
        "unit_indicator": jax.random.bernoulli(ks[2], 0.3, (B, H, W)),
        "type": jax.random.randint(ks[3], (B, H, W, Q), 0, cfg["robot_act"]),
        "direction": jax.random.randint(ks[4], (B, H, W, Q), 0, cfg["direction"]),
        "resource": jax.random.randint(ks[5], (B, H, W, Q), 0, cfg["resource"]),
        "repeat": jax.random.randint(ks[6], (B, H, W, Q), 0, 3),
        "amount": jax.random.uniform(ks[7], (B, H, W, Q), jnp.float32),
        "n": jax.random.uniform(jax.random.fold_in(dkey, 99), (B, H, W, Q),
                                jnp.float32),
    }

    fwd = jax.jit(lambda p, gfe, mfe, afe: net_forward(p, cfg, gfe, mfe, afe))
    logp, critic_value, act_out, entropy, t_logp = fwd(
        params, global_feature, map_feature, action_feature)
    jax.block_until_ready(critic_value)
    assert critic_value.shape == (B,)
    assert bool(jnp.all(jnp.isfinite(critic_value)))
    print("KERNEL_OK")
</pallas_src>

<mosaic_0001>
module attributes {stable_mosaic.version = 11 : i64} {
  func.func @_trunk_kernel(%arg0: i32, %arg1: memref<1x1x16xf32, #tpu.memory_space<vmem>>, %arg2: memref<1x8x256xf32, #tpu.memory_space<vmem>>, %arg3: memref<1x32x256xf32, #tpu.memory_space<vmem>>, %arg4: memref<1x32x256xf32, #tpu.memory_space<vmem>>, %arg5: memref<1x32x256xf32, #tpu.memory_space<vmem>>, %arg6: memref<1x32x256xf32, #tpu.memory_space<vmem>>, %arg7: memref<1x4x256xf32, #tpu.memory_space<vmem>>, %arg8: memref<1x4x256xf32, #tpu.memory_space<vmem>>, %arg9: memref<1x1x256xf32, #tpu.memory_space<vmem>>, %arg10: memref<4xf32, #tpu.memory_space<smem>>, %arg11: memref<6xf32, #tpu.memory_space<smem>>, %arg12: memref<1xf32, #tpu.memory_space<smem>>, %arg13: memref<1xf32, #tpu.memory_space<smem>>, %arg14: memref<8x16xf32, #tpu.memory_space<vmem>>, %arg15: memref<8x1xf32, #tpu.memory_space<vmem>>, %arg16: memref<32x24xf32, #tpu.memory_space<vmem>>, %arg17: memref<32x1xf32, #tpu.memory_space<vmem>>, %arg18: memref<32x32xf32, #tpu.memory_space<vmem>>, %arg19: memref<32x1xf32, #tpu.memory_space<vmem>>, %arg20: memref<2x32x800xbf16, #tpu.memory_space<vmem>>, %arg21: memref<2x32x1xf32, #tpu.memory_space<vmem>>, %arg22: memref<2x32x800xbf16, #tpu.memory_space<vmem>>, %arg23: memref<2x32x1xf32, #tpu.memory_space<vmem>>, %arg24: memref<2x32x2xf32, #tpu.memory_space<vmem>>, %arg25: memref<2x1x2xf32, #tpu.memory_space<vmem>>, %arg26: memref<2x32x2xf32, #tpu.memory_space<vmem>>, %arg27: memref<2x32x1xf32, #tpu.memory_space<vmem>>, %arg28: memref<32x32xf32, #tpu.memory_space<vmem>>, %arg29: memref<32x1xf32, #tpu.memory_space<vmem>>, %arg30: memref<32x32xf32, #tpu.memory_space<vmem>>, %arg31: memref<32x1xf32, #tpu.memory_space<vmem>>, %arg32: memref<32x1xf32, #tpu.memory_space<vmem>>, %arg33: memref<1x1x128xf32, #tpu.memory_space<vmem>>, %arg34: memref<800x256xbf16, #tpu.memory_space<vmem>>) attributes {dimension_semantics = [#tpu.dimension_semantics<parallel>], iteration_bounds = array<i64: 2>, scalar_prefetch = 0 : i64, scratch_operands = 1 : i64, tpu.core_type = #tpu.core_type<tc>, window_params = [{transform_indices = @transform_0, window_bounds = array<i64: 1, 1, 16>}, {transform_indices = @transform_1, window_bounds = array<i64: 1, 8, 256>}, {transform_indices = @transform_2, window_bounds = array<i64: 1, 32, 256>}, {transform_indices = @transform_3, window_bounds = array<i64: 1, 32, 256>}, {transform_indices = @transform_4, window_bounds = array<i64: 1, 32, 256>}, {transform_indices = @transform_5, window_bounds = array<i64: 1, 32, 256>}, {transform_indices = @transform_6, window_bounds = array<i64: 1, 4, 256>}, {transform_indices = @transform_7, window_bounds = array<i64: 1, 4, 256>}, {transform_indices = @transform_8, window_bounds = array<i64: 1, 1, 256>}, {transform_indices = @transform_9, window_bounds = array<i64: 4>}, {transform_indices = @transform_10, window_bounds = array<i64: 6>}, {transform_indices = @transform_11, window_bounds = array<i64: 1>}, {transform_indices = @transform_12, window_bounds = array<i64: 1>}, {pipeline_mode = #tpu.pipeline_mode<synchronous>, transform_indices = @transform_13, window_bounds = array<i64: 8, 16>}, {pipeline_mode = #tpu.pipeline_mode<synchronous>, transform_indices = @transform_14, window_bounds = array<i64: 8, 1>}, {pipeline_mode = #tpu.pipeline_mode<synchronous>, transform_indices = @transform_15, window_bounds = array<i64: 32, 24>}, {pipeline_mode = #tpu.pipeline_mode<synchronous>, transform_indices = @transform_16, window_bounds = array<i64: 32, 1>}, {pipeline_mode = #tpu.pipeline_mode<synchronous>, transform_indices = @transform_17, window_bounds = array<i64: 32, 32>}, {pipeline_mode = #tpu.pipeline_mode<synchronous>, transform_indices = @transform_18, window_bounds = array<i64: 32, 1>}, {pipeline_mode = #tpu.pipeline_mode<synchronous>, transform_indices = @transform_19, window_bounds = array<i64: 2, 32, 800>}, {pipeline_mode = #tpu.pipeline_mode<synchronous>, transform_indices = @transform_20, window_bounds = array<i64: 2, 32, 1>}, {pipeline_mode = #tpu.pipeline_mode<synchronous>, transform_indices = @transform_21, window_bounds = array<i64: 2, 32, 800>}, {pipeline_mode = #tpu.pipeline_mode<synchronous>, transform_indices = @transform_22, window_bounds = array<i64: 2, 32, 1>}, {pipeline_mode = #tpu.pipeline_mode<synchronous>, transform_indices = @transform_23, window_bounds = array<i64: 2, 32, 2>}, {pipeline_mode = #tpu.pipeline_mode<synchronous>, transform_indices = @transform_24, window_bounds = array<i64: 2, 1, 2>}, {pipeline_mode = #tpu.pipeline_mode<synchronous>, transform_indices = @transform_25, window_bounds = array<i64: 2, 32, 2>}, {pipeline_mode = #tpu.pipeline_mode<synchronous>, transform_indices = @transform_26, window_bounds = array<i64: 2, 32, 1>}, {pipeline_mode = #tpu.pipeline_mode<synchronous>, transform_indices = @transform_27, window_bounds = array<i64: 32, 32>}, {pipeline_mode = #tpu.pipeline_mode<synchronous>, transform_indices = @transform_28, window_bounds = array<i64: 32, 1>}, {pipeline_mode = #tpu.pipeline_mode<synchronous>, transform_indices = @transform_29, window_bounds = array<i64: 32, 32>}, {pipeline_mode = #tpu.pipeline_mode<synchronous>, transform_indices = @transform_30, window_bounds = array<i64: 32, 1>}, {pipeline_mode = #tpu.pipeline_mode<synchronous>, transform_indices = @transform_31, window_bounds = array<i64: 32, 1>}, {transform_indices = @transform_32, window_bounds = array<i64: 1, 1, 128>}]} {
    %0 = tpu.iota {dimensions = array<i32: 1>} : vector<1x256xi32>
    %c16_i32 = arith.constant 16 : i32
    %c0_i32 = arith.constant 0 : i32
    %1 = arith.cmpi eq, %c16_i32, %c0_i32 : i32
    %c1_i32 = arith.constant 1 : i32
    %2 = arith.select %1, %c1_i32, %c16_i32 : i32
    %3 = vector.broadcast %2 : i32 to vector<1x256xi32>
    %4 = arith.remsi %0, %3 : vector<1x256xi32>
    %c0_i32_0 = arith.constant 0 : i32
    %5 = vector.broadcast %c0_i32_0 : i32 to vector<1x256xi32>
    %6 = arith.cmpi ne, %4, %5 : vector<1x256xi32>
    %c0_i32_1 = arith.constant 0 : i32
    %7 = vector.broadcast %c0_i32_1 : i32 to vector<1x256xi32>
    %8 = arith.cmpi slt, %4, %7 : vector<1x256xi32>
    %c0_i32_2 = arith.constant 0 : i32
    %9 = arith.cmpi slt, %2, %c0_i32_2 : i32
    %10 = vector.broadcast %9 : i1 to vector<1x256xi1>
    %11 = vector.broadcast %10 : vector<1x256xi1> to vector<1x256xi1>
    %12 = arith.xori %8, %11 : vector<1x256xi1>
    %13 = arith.andi %12, %6 : vector<1x256xi1>
    %14 = vector.broadcast %2 : i32 to vector<1x256xi32>
    %15 = arith.addi %4, %14 : vector<1x256xi32>
    %16 = arith.select %13, %15, %4 : vector<1x256xi1>, vector<1x256xi32>
    %c-2_i32 = arith.constant -2 : i32
    %17 = vector.broadcast %c-2_i32 : i32 to vector<1x256xi32>
    %18 = arith.addi %16, %17 : vector<1x256xi32>
    %c0_i32_3 = arith.constant 0 : i32
    %19 = vector.broadcast %c0_i32_3 : i32 to vector<1x256xi32>
    %20 = arith.cmpi sge, %18, %19 : vector<1x256xi32>
    %c-2_i32_4 = arith.constant -2 : i32
    %21 = vector.broadcast %c-2_i32_4 : i32 to vector<1x256xi32>
    %22 = arith.addi %16, %21 : vector<1x256xi32>
    %c16_i32_5 = arith.constant 16 : i32
    %23 = vector.broadcast %c16_i32_5 : i32 to vector<1x256xi32>
    %24 = arith.cmpi slt, %22, %23 : vector<1x256xi32>
    %25 = arith.andi %20, %24 : vector<1x256xi1>
    %26 = arith.extui %25 : vector<1x256xi1> to vector<1x256xi32>
    %27 = arith.sitofp %26 : vector<1x256xi32> to vector<1x256xf32>
    %28 = arith.truncf %27 : vector<1x256xf32> to vector<1x256xbf16>
    %c-1_i32 = arith.constant -1 : i32
    %29 = vector.broadcast %c-1_i32 : i32 to vector<1x256xi32>
    %30 = arith.addi %16, %29 : vector<1x256xi32>
    %c0_i32_6 = arith.constant 0 : i32
    %31 = vector.broadcast %c0_i32_6 : i32 to vector<1x256xi32>
    %32 = arith.cmpi sge, %30, %31 : vector<1x256xi32>
    %c-1_i32_7 = arith.constant -1 : i32
    %33 = vector.broadcast %c-1_i32_7 : i32 to vector<1x256xi32>
    %34 = arith.addi %16, %33 : vector<1x256xi32>
    %c16_i32_8 = arith.constant 16 : i32
    %35 = vector.broadcast %c16_i32_8 : i32 to vector<1x256xi32>
    %36 = arith.cmpi slt, %34, %35 : vector<1x256xi32>
    %37 = arith.andi %32, %36 : vector<1x256xi1>
    %38 = arith.extui %37 : vector<1x256xi1> to vector<1x256xi32>
    %39 = arith.sitofp %38 : vector<1x256xi32> to vector<1x256xf32>
    %40 = arith.truncf %39 : vector<1x256xf32> to vector<1x256xbf16>
    %c0_i32_9 = arith.constant 0 : i32
    %41 = vector.broadcast %c0_i32_9 : i32 to vector<1x256xi32>
    %42 = arith.addi %16, %41 : vector<1x256xi32>
    %c0_i32_10 = arith.constant 0 : i32
    %43 = vector.broadcast %c0_i32_10 : i32 to vector<1x256xi32>
    %44 = arith.cmpi sge, %42, %43 : vector<1x256xi32>
    %c0_i32_11 = arith.constant 0 : i32
    %45 = vector.broadcast %c0_i32_11 : i32 to vector<1x256xi32>
    %46 = arith.addi %16, %45 : vector<1x256xi32>
    %c16_i32_12 = arith.constant 16 : i32
    %47 = vector.broadcast %c16_i32_12 : i32 to vector<1x256xi32>
    %48 = arith.cmpi slt, %46, %47 : vector<1x256xi32>
    %49 = arith.andi %44, %48 : vector<1x256xi1>
    %50 = arith.extui %49 : vector<1x256xi1> to vector<1x256xi32>
    %51 = arith.sitofp %50 : vector<1x256xi32> to vector<1x256xf32>
    %52 = arith.truncf %51 : vector<1x256xf32> to vector<1x256xbf16>
    %c1_i32_13 = arith.constant 1 : i32
    %53 = vector.broadcast %c1_i32_13 : i32 to vector<1x256xi32>
    %54 = arith.addi %16, %53 : vector<1x256xi32>
    %c0_i32_14 = arith.constant 0 : i32
    %55 = vector.broadcast %c0_i32_14 : i32 to vector<1x256xi32>
    %56 = arith.cmpi sge, %54, %55 : vector<1x256xi32>
    %c1_i32_15 = arith.constant 1 : i32
    %57 = vector.broadcast %c1_i32_15 : i32 to vector<1x256xi32>
    %58 = arith.addi %16, %57 : vector<1x256xi32>
    %c16_i32_16 = arith.constant 16 : i32
    %59 = vector.broadcast %c16_i32_16 : i32 to vector<1x256xi32>
    %60 = arith.cmpi slt, %58, %59 : vector<1x256xi32>
    %61 = arith.andi %56, %60 : vector<1x256xi1>
    %62 = arith.extui %61 : vector<1x256xi1> to vector<1x256xi32>
    %63 = arith.sitofp %62 : vector<1x256xi32> to vector<1x256xf32>
    %64 = arith.truncf %63 : vector<1x256xf32> to vector<1x256xbf16>
    %c2_i32 = arith.constant 2 : i32
    %65 = vector.broadcast %c2_i32 : i32 to vector<1x256xi32>
    %66 = arith.addi %16, %65 : vector<1x256xi32>
    %c0_i32_17 = arith.constant 0 : i32
    %67 = vector.broadcast %c0_i32_17 : i32 to vector<1x256xi32>
    %68 = arith.cmpi sge, %66, %67 : vector<1x256xi32>
    %c2_i32_18 = arith.constant 2 : i32
    %69 = vector.broadcast %c2_i32_18 : i32 to vector<1x256xi32>
    %70 = arith.addi %16, %69 : vector<1x256xi32>
    %c16_i32_19 = arith.constant 16 : i32
    %71 = vector.broadcast %c16_i32_19 : i32 to vector<1x256xi32>
    %72 = arith.cmpi slt, %70, %71 : vector<1x256xi32>
    %73 = arith.andi %68, %72 : vector<1x256xi1>
    %74 = arith.extui %73 : vector<1x256xi1> to vector<1x256xi32>
    %75 = arith.sitofp %74 : vector<1x256xi32> to vector<1x256xf32>
    %76 = arith.truncf %75 : vector<1x256xf32> to vector<1x256xbf16>
    %cst = arith.constant 0.000000e+00 : bf16
    %77 = vector.broadcast %cst : bf16 to vector<32x128xbf16>
    %c0 = arith.constant 0 : index
    %c0_20 = arith.constant 0 : index
    %c0_21 = arith.constant 0 : index
    %78 = vector.load %arg3[%c0, %c0_20, %c0_21] : memref<1x32x256xf32, #tpu.memory_space<vmem>>, vector<1x32x256xf32>
    %79 = vector.shape_cast %78 : vector<1x32x256xf32> to vector<32x256xf32>
    %c0_22 = arith.constant 0 : index
    %c0_23 = arith.constant 0 : index
    %c0_24 = arith.constant 0 : index
    %80 = vector.load %arg4[%c0_22, %c0_23, %c0_24] : memref<1x32x256xf32, #tpu.memory_space<vmem>>, vector<1x32x256xf32>
    %81 = vector.shape_cast %80 : vector<1x32x256xf32> to vector<32x256xf32>
    %c0_25 = arith.constant 0 : index
    %c0_26 = arith.constant 0 : index
    %c0_27 = arith.constant 0 : index
    %82 = vector.load %arg5[%c0_25, %c0_26, %c0_27] : memref<1x32x256xf32, #tpu.memory_space<vmem>>, vector<1x32x256xf32>
    %83 = vector.shape_cast %82 : vector<1x32x256xf32> to vector<32x256xf32>
    %c0_28 = arith.constant 0 : index
    %c0_29 = arith.constant 0 : index
    %c0_30 = arith.constant 0 : index
    %84 = vector.load %arg6[%c0_28, %c0_29, %c0_30] : memref<1x32x256xf32, #tpu.memory_space<vmem>>, vector<1x32x256xf32>
    %85 = vector.shape_cast %84 : vector<1x32x256xf32> to vector<32x256xf32>
    %c0_31 = arith.constant 0 : index
    %c0_32 = arith.constant 0 : index
    %c0_33 = arith.constant 0 : index
    %86 = vector.load %arg7[%c0_31, %c0_32, %c0_33] : memref<1x4x256xf32, #tpu.memory_space<vmem>>, vector<1x4x256xf32>
    %87 = vector.shape_cast %86 : vector<1x4x256xf32> to vector<4x256xf32>
    %c0_34 = arith.constant 0 : index
    %c0_35 = arith.constant 0 : index
    %c0_36 = arith.constant 0 : index
    %88 = vector.load %arg8[%c0_34, %c0_35, %c0_36] : memref<1x4x256xf32, #tpu.memory_space<vmem>>, vector<1x4x256xf32>
    %89 = vector.shape_cast %88 : vector<1x4x256xf32> to vector<4x256xf32>
    %c0_37 = arith.constant 0 : index
    %90 = memref.load %arg11[%c0_37] : memref<6xf32, #tpu.memory_space<smem>>
    %c1 = arith.constant 1 : index
    %91 = memref.load %arg11[%c1] : memref<6xf32, #tpu.memory_space<smem>>
    %c2 = arith.constant 2 : index
    %92 = memref.load %arg11[%c2] : memref<6xf32, #tpu.memory_space<smem>>
    %c3 = arith.constant 3 : index
    %93 = memref.load %arg11[%c3] : memref<6xf32, #tpu.memory_space<smem>>
    %c4 = arith.constant 4 : index
    %94 = memref.load %arg11[%c4] : memref<6xf32, #tpu.memory_space<smem>>
    %c5 = arith.constant 5 : index
    %95 = memref.load %arg11[%c5] : memref<6xf32, #tpu.memory_space<smem>>
    %cst_38 = arith.constant 0.000000e+00 : f32
    %96 = vector.broadcast %cst_38 : f32 to vector<8x256xf32>
    %97 = vector.extract_strided_slice %79 {offsets = [0, 0], sizes = [8, 256], strides = [1, 1]} : vector<32x256xf32> to vector<8x256xf32>
    %98 = vector.broadcast %90 : f32 to vector<8x256xf32>
    %99 = arith.mulf %98, %97 : vector<8x256xf32>
    %100 = vector.extract_strided_slice %81 {offsets = [0, 0], sizes = [8, 256], strides = [1, 1]} : vector<32x256xf32> to vector<8x256xf32>
    %101 = vector.broadcast %91 : f32 to vector<8x256xf32>
    %102 = arith.mulf %101, %100 : vector<8x256xf32>
    %103 = arith.addf %99, %102 : vector<8x256xf32>
    %104 = vector.extract_strided_slice %83 {offsets = [0, 0], sizes = [8, 256], strides = [1, 1]} : vector<32x256xf32> to vector<8x256xf32>
    %105 = vector.broadcast %92 : f32 to vector<8x256xf32>
    %106 = arith.mulf %105, %104 : vector<8x256xf32>
    %107 = arith.addf %103, %106 : vector<8x256xf32>
    %108 = vector.extract_strided_slice %87 {offsets = [0, 0], sizes = [1, 256], strides = [1, 1]} : vector<4x256xf32> to vector<1x256xf32>
    %109 = vector.broadcast %93 : f32 to vector<1x256xf32>
    %110 = arith.mulf %109, %108 : vector<1x256xf32>
    %111 = vector.broadcast %110 : vector<1x256xf32> to vector<8x256xf32>
    %112 = arith.addf %107, %111 : vector<8x256xf32>
    %113 = vector.extract_strided_slice %85 {offsets = [0, 0], sizes = [8, 256], strides = [1, 1]} : vector<32x256xf32> to vector<8x256xf32>
    %114 = vector.broadcast %94 : f32 to vector<8x256xf32>
    %115 = arith.mulf %114, %113 : vector<8x256xf32>
    %116 = arith.addf %112, %115 : vector<8x256xf32>
    %117 = vector.extract_strided_slice %89 {offsets = [0, 0], sizes = [1, 256], strides = [1, 1]} : vector<4x256xf32> to vector<1x256xf32>
    %118 = vector.broadcast %95 : f32 to vector<1x256xf32>
    %119 = arith.mulf %118, %117 : vector<1x256xf32>
    %120 = vector.broadcast %119 : vector<1x256xf32> to vector<8x256xf32>
    %121 = arith.addf %116, %120 : vector<8x256xf32>
    %c0_39 = arith.constant 0 : index
    %122 = memref.load %arg10[%c0_39] : memref<4xf32, #tpu.memory_space<smem>>
    %123 = vector.broadcast %122 : f32 to vector<8x256xf32>
    %124 = arith.mulf %123, %121 : vector<8x256xf32>
    %125 = arith.addf %96, %124 : vector<8x256xf32>
    %126 = vector.extract_strided_slice %79 {offsets = [8, 0], sizes = [8, 256], strides = [1, 1]} : vector<32x256xf32> to vector<8x256xf32>
    %127 = vector.broadcast %90 : f32 to vector<8x256xf32>
    %128 = arith.mulf %127, %126 : vector<8x256xf32>
    %129 = vector.extract_strided_slice %81 {offsets = [8, 0], sizes = [8, 256], strides = [1, 1]} : vector<32x256xf32> to vector<8x256xf32>
    %130 = vector.broadcast %91 : f32 to vector<8x256xf32>
    %131 = arith.mulf %130, %129 : vector<8x256xf32>
    %132 = arith.addf %128, %131 : vector<8x256xf32>
    %133 = vector.extract_strided_slice %83 {offsets = [8, 0], sizes = [8, 256], strides = [1, 1]} : vector<32x256xf32> to vector<8x256xf32>
    %134 = vector.broadcast %92 : f32 to vector<8x256xf32>
    %135 = arith.mulf %134, %133 : vector<8x256xf32>
    %136 = arith.addf %132, %135 : vector<8x256xf32>
    %137 = vector.extract_strided_slice %87 {offsets = [1, 0], sizes = [1, 256], strides = [1, 1]} : vector<4x256xf32> to vector<1x256xf32>
    %138 = vector.broadcast %93 : f32 to vector<1x256xf32>
    %139 = arith.mulf %138, %137 : vector<1x256xf32>
    %140 = vector.broadcast %139 : vector<1x256xf32> to vector<8x256xf32>
    %141 = arith.addf %136, %140 : vector<8x256xf32>
    %142 = vector.extract_strided_slice %85 {offsets = [8, 0], sizes = [8, 256], strides = [1, 1]} : vector<32x256xf32> to vector<8x256xf32>
    %143 = vector.broadcast %94 : f32 to vector<8x256xf32>
    %144 = arith.mulf %143, %142 : vector<8x256xf32>
    %145 = arith.addf %141, %144 : vector<8x256xf32>
    %146 = vector.extract_strided_slice %89 {offsets = [1, 0], sizes = [1, 256], strides = [1, 1]} : vector<4x256xf32> to vector<1x256xf32>
    %147 = vector.broadcast %95 : f32 to vector<1x256xf32>
    %148 = arith.mulf %147, %146 : vector<1x256xf32>
    %149 = vector.broadcast %148 : vector<1x256xf32> to vector<8x256xf32>
    %150 = arith.addf %145, %149 : vector<8x256xf32>
    %c1_40 = arith.constant 1 : index
    %151 = memref.load %arg10[%c1_40] : memref<4xf32, #tpu.memory_space<smem>>
    %152 = vector.broadcast %151 : f32 to vector<8x256xf32>
    %153 = arith.mulf %152, %150 : vector<8x256xf32>
    %154 = arith.addf %125, %153 : vector<8x256xf32>
    %155 = vector.extract_strided_slice %79 {offsets = [16, 0], sizes = [8, 256], strides = [1, 1]} : vector<32x256xf32> to vector<8x256xf32>
    %156 = vector.broadcast %90 : f32 to vector<8x256xf32>
    %157 = arith.mulf %156, %155 : vector<8x256xf32>
    %158 = vector.extract_strided_slice %81 {offsets = [16, 0], sizes = [8, 256], strides = [1, 1]} : vector<32x256xf32> to vector<8x256xf32>
    %159 = vector.broadcast %91 : f32 to vector<8x256xf32>
    %160 = arith.mulf %159, %158 : vector<8x256xf32>
    %161 = arith.addf %157, %160 : vector<8x256xf32>
    %162 = vector.extract_strided_slice %83 {offsets = [16, 0], sizes = [8, 256], strides = [1, 1]} : vector<32x256xf32> to vector<8x256xf32>
    %163 = vector.broadcast %92 : f32 to vector<8x256xf32>
    %164 = arith.mulf %163, %162 : vector<8x256xf32>
    %165 = arith.addf %161, %164 : vector<8x256xf32>
    %166 = vector.extract_strided_slice %87 {offsets = [2, 0], sizes = [1, 256], strides = [1, 1]} : vector<4x256xf32> to vector<1x256xf32>
    %167 = vector.broadcast %93 : f32 to vector<1x256xf32>
    %168 = arith.mulf %167, %166 : vector<1x256xf32>
    %169 = vector.broadcast %168 : vector<1x256xf32> to vector<8x256xf32>
    %170 = arith.addf %165, %169 : vector<8x256xf32>
    %171 = vector.extract_strided_slice %85 {offsets = [16, 0], sizes = [8, 256], strides = [1, 1]} : vector<32x256xf32> to vector<8x256xf32>
    %172 = vector.broadcast %94 : f32 to vector<8x256xf32>
    %173 = arith.mulf %172, %171 : vector<8x256xf32>
    %174 = arith.addf %170, %173 : vector<8x256xf32>
    %175 = vector.extract_strided_slice %89 {offsets = [2, 0], sizes = [1, 256], strides = [1, 1]} : vector<4x256xf32> to vector<1x256xf32>
    %176 = vector.broadcast %95 : f32 to vector<1x256xf32>
    %177 = arith.mulf %176, %175 : vector<1x256xf32>
    %178 = vector.broadcast %177 : vector<1x256xf32> to vector<8x256xf32>
    %179 = arith.addf %174, %178 : vector<8x256xf32>
    %c2_41 = arith.constant 2 : index
    %180 = memref.load %arg10[%c2_41] : memref<4xf32, #tpu.memory_space<smem>>
    %181 = vector.broadcast %180 : f32 to vector<8x256xf32>
    %182 = arith.mulf %181, %179 : vector<8x256xf32>
    %183 = arith.addf %154, %182 : vector<8x256xf32>
    %184 = vector.extract_strided_slice %79 {offsets = [24, 0], sizes = [8, 256], strides = [1, 1]} : vector<32x256xf32> to vector<8x256xf32>
    %185 = vector.broadcast %90 : f32 to vector<8x256xf32>
    %186 = arith.mulf %185, %184 : vector<8x256xf32>
    %187 = vector.extract_strided_slice %81 {offsets = [24, 0], sizes = [8, 256], strides = [1, 1]} : vector<32x256xf32> to vector<8x256xf32>
    %188 = vector.broadcast %91 : f32 to vector<8x256xf32>
    %189 = arith.mulf %188, %187 : vector<8x256xf32>
    %190 = arith.addf %186, %189 : vector<8x256xf32>
    %191 = vector.extract_strided_slice %83 {offsets = [24, 0], sizes = [8, 256], strides = [1, 1]} : vector<32x256xf32> to vector<8x256xf32>
    %192 = vector.broadcast %92 : f32 to vector<8x256xf32>
    %193 = arith.mulf %192, %191 : vector<8x256xf32>
    %194 = arith.addf %190, %193 : vector<8x256xf32>
    %195 = vector.extract_strided_slice %87 {offsets = [3, 0], sizes = [1, 256], strides = [1, 1]} : vector<4x256xf32> to vector<1x256xf32>
    %196 = vector.broadcast %93 : f32 to vector<1x256xf32>
    %197 = arith.mulf %196, %195 : vector<1x256xf32>
    %198 = vector.broadcast %197 : vector<1x256xf32> to vector<8x256xf32>
    %199 = arith.addf %194, %198 : vector<8x256xf32>
    %200 = vector.extract_strided_slice %85 {offsets = [24, 0], sizes = [8, 256], strides = [1, 1]} : vector<32x256xf32> to vector<8x256xf32>
    %201 = vector.broadcast %94 : f32 to vector<8x256xf32>
    %202 = arith.mulf %201, %200 : vector<8x256xf32>
    %203 = arith.addf %199, %202 : vector<8x256xf32>
    %204 = vector.extract_strided_slice %89 {offsets = [3, 0], sizes = [1, 256], strides = [1, 1]} : vector<4x256xf32> to vector<1x256xf32>
    %205 = vector.broadcast %95 : f32 to vector<1x256xf32>
    %206 = arith.mulf %205, %204 : vector<1x256xf32>
    %207 = vector.broadcast %206 : vector<1x256xf32> to vector<8x256xf32>
    %208 = arith.addf %203, %207 : vector<8x256xf32>
    %c3_42 = arith.constant 3 : index
    %209 = memref.load %arg10[%c3_42] : memref<4xf32, #tpu.memory_space<smem>>
    %210 = vector.broadcast %209 : f32 to vector<8x256xf32>
    %211 = arith.mulf %210, %208 : vector<8x256xf32>
    %212 = arith.addf %183, %211 : vector<8x256xf32>
    %c0_43 = arith.constant 0 : index
    %213 = memref.load %arg12[%c0_43] : memref<1xf32, #tpu.memory_space<smem>>
    %214 = vector.broadcast %213 : f32 to vector<8x256xf32>
    %215 = arith.addf %212, %214 : vector<8x256xf32>
    %cst_44 = arith.constant 0.000000e+00 : f32
    %216 = vector.broadcast %cst_44 : f32 to vector<8x256xf32>
    %217 = arith.cmpf ogt, %215, %216 : vector<8x256xf32>
    %cst_45 = arith.constant 0.00999999977 : f32
    %218 = vector.broadcast %cst_45 : f32 to vector<8x256xf32>
    %219 = arith.mulf %218, %215 : vector<8x256xf32>
    %220 = arith.select %217, %215, %219 : vector<8x256xi1>, vector<8x256xf32>
    %c0_46 = arith.constant 0 : index
    %c0_47 = arith.constant 0 : index
    %c0_48 = arith.constant 0 : index
    %221 = vector.load %arg9[%c0_46, %c0_47, %c0_48] : memref<1x1x256xf32, #tpu.memory_space<vmem>>, vector<1x1x256xf32>
    %222 = vector.shape_cast %221 : vector<1x1x256xf32> to vector<1x256xf32>
    %223 = vector.broadcast %222 : vector<1x256xf32> to vector<8x256xf32>
    %224 = arith.mulf %220, %223 : vector<8x256xf32>
    %c0_49 = arith.constant 0 : index
    %c0_50 = arith.constant 0 : index
    %225 = vector.load %arg14[%c0_49, %c0_50] : memref<8x16xf32, #tpu.memory_space<vmem>>, vector<8x16xf32>
    %c0_51 = arith.constant 0 : index
    %c0_52 = arith.constant 0 : index
    %c0_53 = arith.constant 0 : index
    %226 = vector.load %arg1[%c0_51, %c0_52, %c0_53] : memref<1x1x16xf32, #tpu.memory_space<vmem>>, vector<1x1x16xf32>
    %227 = vector.shape_cast %226 : vector<1x1x16xf32> to vector<1x16xf32>
    %228 = vector.broadcast %227 : vector<1x16xf32> to vector<8x16xf32>
    %229 = arith.mulf %225, %228 : vector<8x16xf32>
    %cst_54 = arith.constant dense<0.000000e+00> : vector<8xf32>
    %230 = vector.multi_reduction <add>, %229, %cst_54 [1] : vector<8x16xf32> to vector<8xf32>
    %231 = vector.shape_cast %230 : vector<8xf32> to vector<8x1xf32>
    %c0_55 = arith.constant 0 : index
    %c0_56 = arith.constant 0 : index
    %232 = vector.load %arg15[%c0_55, %c0_56] : memref<8x1xf32, #tpu.memory_space<vmem>>, vector<8x1xf32>
    %233 = arith.addf %231, %232 : vector<8x1xf32>
    %cst_57 = arith.constant 0.000000e+00 : f32
    %234 = vector.broadcast %cst_57 : f32 to vector<8x1xf32>
    %235 = arith.cmpf ogt, %233, %234 : vector<8x1xf32>
    %cst_58 = arith.constant 0.00999999977 : f32
    %236 = vector.broadcast %cst_58 : f32 to vector<8x1xf32>
    %237 = arith.mulf %236, %233 : vector<8x1xf32>
    %238 = arith.select %235, %233, %237 : vector<8x1xi1>, vector<8x1xf32>
    %239 = vector.shape_cast %238 : vector<8x1xf32> to vector<8x1xf32>
    %240 = vector.broadcast %239 : vector<8x1xf32> to vector<8x256xf32>
    %c0_59 = arith.constant 0 : index
    %c0_60 = arith.constant 0 : index
    %c0_61 = arith.constant 0 : index
    %241 = vector.load %arg2[%c0_59, %c0_60, %c0_61] : memref<1x8x256xf32, #tpu.memory_space<vmem>>, vector<1x8x256xf32>
    %242 = vector.shape_cast %241 : vector<1x8x256xf32> to vector<8x256xf32>
    %243 = tpu.concatenate %240, %242, %224 in 0 : vector<8x256xf32>, vector<8x256xf32>, vector<8x256xf32> -> vector<24x256xf32>
    %c0_62 = arith.constant 0 : index
    %c0_63 = arith.constant 0 : index
    %244 = vector.load %arg16[%c0_62, %c0_63] : memref<32x24xf32, #tpu.memory_space<vmem>>, vector<32x24xf32>
    %cst_64 = arith.constant dense<0.000000e+00> : vector<32x256xf32>
    %245 = tpu.matmul %244, %243, %cst_64 {dimension_numbers = #tpu.dot_dimension_numbers<[1], [0], [0], [1], [0, 0, 1, 1], [], []>} : vector<32x24xf32>, vector<24x256xf32>, vector<32x256xf32> -> vector<32x256xf32>
    %c0_65 = arith.constant 0 : index
    %c0_66 = arith.constant 0 : index
    %246 = vector.load %arg17[%c0_65, %c0_66] : memref<32x1xf32, #tpu.memory_space<vmem>>, vector<32x1xf32>
    %247 = vector.broadcast %246 : vector<32x1xf32> to vector<32x256xf32>
    %248 = arith.addf %245, %247 : vector<32x256xf32>
    %cst_67 = arith.constant 0.000000e+00 : f32
    %249 = vector.broadcast %cst_67 : f32 to vector<32x256xf32>
    %250 = arith.cmpf ogt, %248, %249 : vector<32x256xf32>
    %cst_68 = arith.constant 0.00999999977 : f32
    %251 = vector.broadcast %cst_68 : f32 to vector<32x256xf32>
    %252 = arith.mulf %251, %248 : vector<32x256xf32>
    %253 = arith.select %250, %248, %252 : vector<32x256xi1>, vector<32x256xf32>
    %c0_69 = arith.constant 0 : index
    %c0_70 = arith.constant 0 : index
    %254 = vector.load %arg18[%c0_69, %c0_70] : memref<32x32xf32, #tpu.memory_space<vmem>>, vector<32x32xf32>
    %cst_71 = arith.constant dense<0.000000e+00> : vector<32x256xf32>
    %255 = tpu.matmul %254, %253, %cst_71 {dimension_numbers = #tpu.dot_dimension_numbers<[1], [0], [0], [1], [0, 0, 1, 1], [], []>} : vector<32x32xf32>, vector<32x256xf32>, vector<32x256xf32> -> vector<32x256xf32>
    %c0_72 = arith.constant 0 : index
    %c0_73 = arith.constant 0 : index
    %256 = vector.load %arg19[%c0_72, %c0_73] : memref<32x1xf32, #tpu.memory_space<vmem>>, vector<32x1xf32>
    %257 = vector.broadcast %256 : vector<32x1xf32> to vector<32x256xf32>
    %258 = arith.addf %255, %257 : vector<32x256xf32>
    %cst_74 = arith.constant 0.000000e+00 : f32
    %259 = vector.broadcast %cst_74 : f32 to vector<32x256xf32>
    %260 = arith.cmpf ogt, %258, %259 : vector<32x256xf32>
    %cst_75 = arith.constant 0.00999999977 : f32
    %261 = vector.broadcast %cst_75 : f32 to vector<32x256xf32>
    %262 = arith.mulf %261, %258 : vector<32x256xf32>
    %263 = arith.select %260, %258, %262 : vector<32x256xi1>, vector<32x256xf32>
    %c0_76 = arith.constant 0 : index
    %c0_77 = arith.constant 0 : index
    %c0_78 = arith.constant 0 : index
    %264 = vector.load %arg21[%c0_76, %c0_77, %c0_78] : memref<2x32x1xf32, #tpu.memory_space<vmem>>, vector<1x32x1xf32>
    %265 = vector.shape_cast %264 : vector<1x32x1xf32> to vector<32x1xf32>
    %266 = arith.truncf %263 : vector<32x256xf32> to vector<32x256xbf16>
    %267 = tpu.concatenate %77, %266, %77 in 1 : vector<32x128xbf16>, vector<32x256xbf16>, vector<32x128xbf16> -> vector<32x512xbf16>
    %268 = vector.extract_strided_slice %267 {offsets = [0, 126], sizes = [32, 256], strides = [1, 1]} : vector<32x512xbf16> to vector<32x256xbf16>
    %269 = vector.broadcast %28 : vector<1x256xbf16> to vector<32x256xbf16>
    %270 = arith.mulf %268, %269 : vector<32x256xbf16>
    %271 = tpu.concatenate %77, %270, %77 in 1 : vector<32x128xbf16>, vector<32x256xbf16>, vector<32x128xbf16> -> vector<32x512xbf16>
    %272 = vector.extract_strided_slice %271 {offsets = [0, 96], sizes = [32, 256], strides = [1, 1]} : vector<32x512xbf16> to vector<32x256xbf16>
    %c0_79 = arith.constant 0 : index
    %c0_80 = arith.constant 0 : index
    %273 = vector.load %arg34[%c0_79, %c0_80] : memref<800x256xbf16, #tpu.memory_space<vmem>>, vector<32x256xbf16>
    tpu.vector_store %arg34[%c0_79, %c0_80], %272 {strides = array<i32>} : memref<800x256xbf16, #tpu.memory_space<vmem>>, vector<32x256xbf16>,
    %274 = vector.extract_strided_slice %271 {offsets = [0, 112], sizes = [32, 256], strides = [1, 1]} : vector<32x512xbf16> to vector<32x256xbf16>
    %c160 = arith.constant 160 : index
    %c0_81 = arith.constant 0 : index
    %275 = vector.load %arg34[%c160, %c0_81] : memref<800x256xbf16, #tpu.memory_space<vmem>>, vector<32x256xbf16>
    tpu.vector_store %arg34[%c160, %c0_81], %274 {strides = array<i32>} : memref<800x256xbf16, #tpu.memory_space<vmem>>, vector<32x256xbf16>,
    %276 = vector.extract_strided_slice %271 {offsets = [0, 128], sizes = [32, 256], strides = [1, 1]} : vector<32x512xbf16> to vector<32x256xbf16>
    %c320 = arith.constant 320 : index
    %c0_82 = arith.constant 0 : index
    %277 = vector.load %arg34[%c320, %c0_82] : memref<800x256xbf16, #tpu.memory_space<vmem>>, vector<32x256xbf16>
    tpu.vector_store %arg34[%c320, %c0_82], %276 {strides = array<i32>} : memref<800x256xbf16, #tpu.memory_space<vmem>>, vector<32x256xbf16>,
    %278 = vector.extract_strided_slice %271 {offsets = [0, 144], sizes = [32, 256], strides = [1, 1]} : vector<32x512xbf16> to vector<32x256xbf16>
    %c480 = arith.constant 480 : index
    %c0_83 = arith.constant 0 : index
    %279 = vector.load %arg34[%c480, %c0_83] : memref<800x256xbf16, #tpu.memory_space<vmem>>, vector<32x256xbf16>
    tpu.vector_store %arg34[%c480, %c0_83], %278 {strides = array<i32>} : memref<800x256xbf16, #tpu.memory_space<vmem>>, vector<32x256xbf16>,
    %280 = vector.extract_strided_slice %271 {offsets = [0, 160], sizes = [32, 256], strides = [1, 1]} : vector<32x512xbf16> to vector<32x256xbf16>
    %c640 = arith.constant 640 : index
    %c0_84 = arith.constant 0 : index
    %281 = vector.load %arg34[%c640, %c0_84] : memref<800x256xbf16, #tpu.memory_space<vmem>>, vector<32x256xbf16>
    tpu.vector_store %arg34[%c640, %c0_84], %280 {strides = array<i32>} : memref<800x256xbf16, #tpu.memory_space<vmem>>, vector<32x256xbf16>,
    %282 = vector.extract_strided_slice %267 {offsets = [0, 127], sizes = [32, 256], strides = [1, 1]} : vector<32x512xbf16> to vector<32x256xbf16>
    %283 = vector.broadcast %40 : vector<1x256xbf16> to vector<32x256xbf16>
    %284 = arith.mulf %282, %283 : vector<32x256xbf16>
    %285 = tpu.concatenate %77, %284, %77 in 1 : vector<32x128xbf16>, vector<32x256xbf16>, vector<32x128xbf16> -> vector<32x512xbf16>
    %286 = vector.extract_strided_slice %285 {offsets = [0, 96], sizes = [32, 256], strides = [1, 1]} : vector<32x512xbf16> to vector<32x256xbf16>
    %c32 = arith.constant 32 : index
    %c0_85 = arith.constant 0 : index
    %287 = vector.load %arg34[%c32, %c0_85] : memref<800x256xbf16, #tpu.memory_space<vmem>>, vector<32x256xbf16>
    tpu.vector_store %arg34[%c32, %c0_85], %286 {strides = array<i32>} : memref<800x256xbf16, #tpu.memory_space<vmem>>, vector<32x256xbf16>,
    %288 = vector.extract_strided_slice %285 {offsets = [0, 112], sizes = [32, 256], strides = [1, 1]} : vector<32x512xbf16> to vector<32x256xbf16>
    %c192 = arith.constant 192 : index
    %c0_86 = arith.constant 0 : index
    %289 = vector.load %arg34[%c192, %c0_86] : memref<800x256xbf16, #tpu.memory_space<vmem>>, vector<32x256xbf16>
    tpu.vector_store %arg34[%c192, %c0_86], %288 {strides = array<i32>} : memref<800x256xbf16, #tpu.memory_space<vmem>>, vector<32x256xbf16>,
    %290 = vector.extract_strided_slice %285 {offsets = [0, 128], sizes = [32, 256], strides = [1, 1]} : vector<32x512xbf16> to vector<32x256xbf16>
    %c352 = arith.constant 352 : index
    %c0_87 = arith.constant 0 : index
    %291 = vector.load %arg34[%c352, %c0_87] : memref<800x256xbf16, #tpu.memory_space<vmem>>, vector<32x256xbf16>
    tpu.vector_store %arg34[%c352, %c0_87], %290 {strides = array<i32>} : memref<800x256xbf16, #tpu.memory_space<vmem>>, vector<32x256xbf16>,
    %292 = vector.extract_strided_slice %285 {offsets = [0, 144], sizes = [32, 256], strides = [1, 1]} : vector<32x512xbf16> to vector<32x256xbf16>
    %c512 = arith.constant 512 : index
    %c0_88 = arith.constant 0 : index
    %293 = vector.load %arg34[%c512, %c0_88] : memref<800x256xbf16, #tpu.memory_space<vmem>>, vector<32x256xbf16>
    tpu.vector_store %arg34[%c512, %c0_88], %292 {strides = array<i32>} : memref<800x256xbf16, #tpu.memory_space<vmem>>, vector<32x256xbf16>,
    %294 = vector.extract_strided_slice %285 {offsets = [0, 160], sizes = [32, 256], strides = [1, 1]} : vector<32x512xbf16> to vector<32x256xbf16>
    %c672 = arith.constant 672 : index
    %c0_89 = arith.constant 0 : index
    %295 = vector.load %arg34[%c672, %c0_89] : memref<800x256xbf16, #tpu.memory_space<vmem>>, vector<32x256xbf16>
    tpu.vector_store %arg34[%c672, %c0_89], %294 {strides = array<i32>} : memref<800x256xbf16, #tpu.memory_space<vmem>>, vector<32x256xbf16>,
    %296 = vector.extract_strided_slice %267 {offsets = [0, 128], sizes = [32, 256], strides = [1, 1]} : vector<32x512xbf16> to vector<32x256xbf16>
    %297 = vector.broadcast %52 : vector<1x256xbf16> to vector<32x256xbf16>
    %298 = arith.mulf %296, %297 : vector<32x256xbf16>
    %299 = tpu.concatenate %77, %298, %77 in 1 : vector<32x128xbf16>, vector<32x256xbf16>, vector<32x128xbf16> -> vector<32x512xbf16>
    %300 = vector.extract_strided_slice %299 {offsets = [0, 96], sizes = [32, 256], strides = [1, 1]} : vector<32x512xbf16> to vector<32x256xbf16>
    %c64 = arith.constant 64 : index
    %c0_90 = arith.constant 0 : index
    %301 = vector.load %arg34[%c64, %c0_90] : memref<800x256xbf16, #tpu.memory_space<vmem>>, vector<32x256xbf16>
    tpu.vector_store %arg34[%c64, %c0_90], %300 {strides = array<i32>} : memref<800x256xbf16, #tpu.memory_space<vmem>>, vector<32x256xbf16>,
    %302 = vector.extract_strided_slice %299 {offsets = [0, 112], sizes = [32, 256], strides = [1, 1]} : vector<32x512xbf16> to vector<32x256xbf16>
    %c224 = arith.constant 224 : index
    %c0_91 = arith.constant 0 : index
    %303 = vector.load %arg34[%c224, %c0_91] : memref<800x256xbf16, #tpu.memory_space<vmem>>, vector<32x256xbf16>
    tpu.vector_store %arg34[%c224, %c0_91], %302 {strides = array<i32>} : memref<800x256xbf16, #tpu.memory_space<vmem>>, vector<32x256xbf16>,
    %304 = vector.extract_strided_slice %299 {offsets = [0, 128], sizes = [32, 256], strides = [1, 1]} : vector<32x512xbf16> to vector<32x256xbf16>
    %c384 = arith.constant 384 : index
    %c0_92 = arith.constant 0 : index
    %305 = vector.load %arg34[%c384, %c0_92] : memref<800x256xbf16, #tpu.memory_space<vmem>>, vector<32x256xbf16>
    tpu.vector_store %arg34[%c384, %c0_92], %304 {strides = array<i32>} : memref<800x256xbf16, #tpu.memory_space<vmem>>, vector<32x256xbf16>,
    %306 = vector.extract_strided_slice %299 {offsets = [0, 144], sizes = [32, 256], strides = [1, 1]} : vector<32x512xbf16> to vector<32x256xbf16>
    %c544 = arith.constant 544 : index
    %c0_93 = arith.constant 0 : index
    %307 = vector.load %arg34[%c544, %c0_93] : memref<800x256xbf16, #tpu.memory_space<vmem>>, vector<32x256xbf16>
    tpu.vector_store %arg34[%c544, %c0_93], %306 {strides = array<i32>} : memref<800x256xbf16, #tpu.memory_space<vmem>>, vector<32x256xbf16>,
    %308 = vector.extract_strided_slice %299 {offsets = [0, 160], sizes = [32, 256], strides = [1, 1]} : vector<32x512xbf16> to vector<32x256xbf16>
    %c704 = arith.constant 704 : index
    %c0_94 = arith.constant 0 : index
    %309 = vector.load %arg34[%c704, %c0_94] : memref<800x256xbf16, #tpu.memory_space<vmem>>, vector<32x256xbf16>
    tpu.vector_store %arg34[%c704, %c0_94], %308 {strides = array<i32>} : memref<800x256xbf16, #tpu.memory_space<vmem>>, vector<32x256xbf16>,
    %310 = vector.extract_strided_slice %267 {offsets = [0, 129], sizes = [32, 256], strides = [1, 1]} : vector<32x512xbf16> to vector<32x256xbf16>
    %311 = vector.broadcast %64 : vector<1x256xbf16> to vector<32x256xbf16>
    %312 = arith.mulf %310, %311 : vector<32x256xbf16>
    %313 = tpu.concatenate %77, %312, %77 in 1 : vector<32x128xbf16>, vector<32x256xbf16>, vector<32x128xbf16> -> vector<32x512xbf16>
    %314 = vector.extract_strided_slice %313 {offsets = [0, 96], sizes = [32, 256], strides = [1, 1]} : vector<32x512xbf16> to vector<32x256xbf16>
    %c96 = arith.constant 96 : index
    %c0_95 = arith.constant 0 : index
    %315 = vector.load %arg34[%c96, %c0_95] : memref<800x256xbf16, #tpu.memory_space<vmem>>, vector<32x256xbf16>
    tpu.vector_store %arg34[%c96, %c0_95], %314 {strides = array<i32>} : memref<800x256xbf16, #tpu.memory_space<vmem>>, vector<32x256xbf16>,
    %316 = vector.extract_strided_slice %313 {offsets = [0, 112], sizes = [32, 256], strides = [1, 1]} : vector<32x512xbf16> to vector<32x256xbf16>
    %c256 = arith.constant 256 : index
    %c0_96 = arith.constant 0 : index
    %317 = vector.load %arg34[%c256, %c0_96] : memref<800x256xbf16, #tpu.memory_space<vmem>>, vector<32x256xbf16>
    tpu.vector_store %arg34[%c256, %c0_96], %316 {strides = array<i32>} : memref<800x256xbf16, #tpu.memory_space<vmem>>, vector<32x256xbf16>,
    %318 = vector.extract_strided_slice %313 {offsets = [0, 128], sizes = [32, 256], strides = [1, 1]} : vector<32x512xbf16> to vector<32x256xbf16>
    %c416 = arith.constant 416 : index
    %c0_97 = arith.constant 0 : index
    %319 = vector.load %arg34[%c416, %c0_97] : memref<800x256xbf16, #tpu.memory_space<vmem>>, vector<32x256xbf16>
    tpu.vector_store %arg34[%c416, %c0_97], %318 {strides = array<i32>} : memref<800x256xbf16, #tpu.memory_space<vmem>>, vector<32x256xbf16>,
    %320 = vector.extract_strided_slice %313 {offsets = [0, 144], sizes = [32, 256], strides = [1, 1]} : vector<32x512xbf16> to vector<32x256xbf16>
    %c576 = arith.constant 576 : index
    %c0_98 = arith.constant 0 : index
    %321 = vector.load %arg34[%c576, %c0_98] : memref<800x256xbf16, #tpu.memory_space<vmem>>, vector<32x256xbf16>
    tpu.vector_store %arg34[%c576, %c0_98], %320 {strides = array<i32>} : memref<800x256xbf16, #tpu.memory_space<vmem>>, vector<32x256xbf16>,
    %322 = vector.extract_strided_slice %313 {offsets = [0, 160], sizes = [32, 256], strides = [1, 1]} : vector<32x512xbf16> to vector<32x256xbf16>
    %c736 = arith.constant 736 : index
    %c0_99 = arith.constant 0 : index
    %323 = vector.load %arg34[%c736, %c0_99] : memref<800x256xbf16, #tpu.memory_space<vmem>>, vector<32x256xbf16>
    tpu.vector_store %arg34[%c736, %c0_99], %322 {strides = array<i32>} : memref<800x256xbf16, #tpu.memory_space<vmem>>, vector<32x256xbf16>,
    %324 = vector.extract_strided_slice %267 {offsets = [0, 130], sizes = [32, 256], strides = [1, 1]} : vector<32x512xbf16> to vector<32x256xbf16>
    %325 = vector.broadcast %76 : vector<1x256xbf16> to vector<32x256xbf16>
    %326 = arith.mulf %324, %325 : vector<32x256xbf16>
    %327 = tpu.concatenate %77, %326, %77 in 1 : vector<32x128xbf16>, vector<32x256xbf16>, vector<32x128xbf16> -> vector<32x512xbf16>
    %328 = vector.extract_strided_slice %327 {offsets = [0, 96], sizes = [32, 256], strides = [1, 1]} : vector<32x512xbf16> to vector<32x256xbf16>
    %c128 = arith.constant 128 : index
    %c0_100 = arith.constant 0 : index
    %329 = vector.load %arg34[%c128, %c0_100] : memref<800x256xbf16, #tpu.memory_space<vmem>>, vector<32x256xbf16>
    tpu.vector_store %arg34[%c128, %c0_100], %328 {strides = array<i32>} : memref<800x256xbf16, #tpu.memory_space<vmem>>, vector<32x256xbf16>,
    %330 = vector.extract_strided_slice %327 {offsets = [0, 112], sizes = [32, 256], strides = [1, 1]} : vector<32x512xbf16> to vector<32x256xbf16>
    %c288 = arith.constant 288 : index
    %c0_101 = arith.constant 0 : index
    %331 = vector.load %arg34[%c288, %c0_101] : memref<800x256xbf16, #tpu.memory_space<vmem>>, vector<32x256xbf16>
    tpu.vector_store %arg34[%c288, %c0_101], %330 {strides = array<i32>} : memref<800x256xbf16, #tpu.memory_space<vmem>>, vector<32x256xbf16>,
    %332 = vector.extract_strided_slice %327 {offsets = [0, 128], sizes = [32, 256], strides = [1, 1]} : vector<32x512xbf16> to vector<32x256xbf16>
    %c448 = arith.constant 448 : index
    %c0_102 = arith.constant 0 : index
    %333 = vector.load %arg34[%c448, %c0_102] : memref<800x256xbf16, #tpu.memory_space<vmem>>, vector<32x256xbf16>
    tpu.vector_store %arg34[%c448, %c0_102], %332 {strides = array<i32>} : memref<800x256xbf16, #tpu.memory_space<vmem>>, vector<32x256xbf16>,
    %334 = vector.extract_strided_slice %327 {offsets = [0, 144], sizes = [32, 256], strides = [1, 1]} : vector<32x512xbf16> to vector<32x256xbf16>
    %c608 = arith.constant 608 : index
    %c0_103 = arith.constant 0 : index
    %335 = vector.load %arg34[%c608, %c0_103] : memref<800x256xbf16, #tpu.memory_space<vmem>>, vector<32x256xbf16>
    tpu.vector_store %arg34[%c608, %c0_103], %334 {strides = array<i32>} : memref<800x256xbf16, #tpu.memory_space<vmem>>, vector<32x256xbf16>,
    %336 = vector.extract_strided_slice %327 {offsets = [0, 160], sizes = [32, 256], strides = [1, 1]} : vector<32x512xbf16> to vector<32x256xbf16>
    %c768 = arith.constant 768 : index
    %c0_104 = arith.constant 0 : index
    %337 = vector.load %arg34[%c768, %c0_104] : memref<800x256xbf16, #tpu.memory_space<vmem>>, vector<32x256xbf16>
    tpu.vector_store %arg34[%c768, %c0_104], %336 {strides = array<i32>} : memref<800x256xbf16, #tpu.memory_space<vmem>>, vector<32x256xbf16>,
    %c0_105 = arith.constant 0 : index
    %c0_106 = arith.constant 0 : index
    %c0_107 = arith.constant 0 : index
    %338 = vector.load %arg20[%c0_105, %c0_106, %c0_107] : memref<2x32x800xbf16, #tpu.memory_space<vmem>>, vector<1x32x800xbf16>
    %339 = vector.shape_cast %338 : vector<1x32x800xbf16> to vector<32x800xbf16>
    %c0_108 = arith.constant 0 : index
    %c0_109 = arith.constant 0 : index
    %340 = vector.load %arg34[%c0_108, %c0_109] : memref<800x256xbf16, #tpu.memory_space<vmem>>, vector<800x256xbf16>
    %cst_110 = arith.constant dense<0.000000e+00> : vector<32x256xf32>
    %341 = tpu.matmul %339, %340, %cst_110 {dimension_numbers = #tpu.dot_dimension_numbers<[1], [0], [0], [1], [0, 0, 1, 1], [], []>} : vector<32x800xbf16>, vector<800x256xbf16>, vector<32x256xf32> -> vector<32x256xf32>
    %342 = vector.broadcast %265 : vector<32x1xf32> to vector<32x256xf32>
    %343 = arith.addf %341, %342 : vector<32x256xf32>
    %cst_111 = arith.constant 0.000000e+00 : f32
    %344 = vector.broadcast %cst_111 : f32 to vector<32x256xf32>
    %345 = arith.cmpf ogt, %343, %344 : vector<32x256xf32>
    %cst_112 = arith.constant 0.00999999977 : f32
    %346 = vector.broadcast %cst_112 : f32 to vector<32x256xf32>
    %347 = arith.mulf %346, %343 : vector<32x256xf32>
    %348 = arith.select %345, %343, %347 : vector<32x256xi1>, vector<32x256xf32>
    %c0_113 = arith.constant 0 : index
    %c0_114 = arith.constant 0 : index
    %c0_115 = arith.constant 0 : index
    %349 = vector.load %arg23[%c0_113, %c0_114, %c0_115] : memref<2x32x1xf32, #tpu.memory_space<vmem>>, vector<1x32x1xf32>
    %350 = vector.shape_cast %349 : vector<1x32x1xf32> to vector<32x1xf32>
    %351 = arith.truncf %348 : vector<32x256xf32> to vector<32x256xbf16>
    %352 = tpu.concatenate %77, %351, %77 in 1 : vector<32x128xbf16>, vector<32x256xbf16>, vector<32x128xbf16> -> vector<32x512xbf16>
    %353 = vector.extract_strided_slice %352 {offsets = [0, 126], sizes = [32, 256], strides = [1, 1]} : vector<32x512xbf16> to vector<32x256xbf16>
    %354 = vector.broadcast %28 : vector<1x256xbf16> to vector<32x256xbf16>
    %355 = arith.mulf %353, %354 : vector<32x256xbf16>
    %356 = tpu.concatenate %77, %355, %77 in 1 : vector<32x128xbf16>, vector<32x256xbf16>, vector<32x128xbf16> -> vector<32x512xbf16>
    %357 = vector.extract_strided_slice %356 {offsets = [0, 96], sizes = [32, 256], strides = [1, 1]} : vector<32x512xbf16> to vector<32x256xbf16>
    %c0_116 = arith.constant 0 : index
    %c0_117 = arith.constant 0 : index
    %358 = vector.load %arg34[%c0_116, %c0_117] : memref<800x256xbf16, #tpu.memory_space<vmem>>, vector<32x256xbf16>
    tpu.vector_store %arg34[%c0_116, %c0_117], %357 {strides = array<i32>} : memref<800x256xbf16, #tpu.memory_space<vmem>>, vector<32x256xbf16>,
    %359 = vector.extract_strided_slice %356 {offsets = [0, 112], sizes = [32, 256], strides = [1, 1]} : vector<32x512xbf16> to vector<32x256xbf16>
    %c160_118 = arith.constant 160 : index
    %c0_119 = arith.constant 0 : index
    %360 = vector.load %arg34[%c160_118, %c0_119] : memref<800x256xbf16, #tpu.memory_space<vmem>>, vector<32x256xbf16>
    tpu.vector_store %arg34[%c160_118, %c0_119], %359 {strides = array<i32>} : memref<800x256xbf16, #tpu.memory_space<vmem>>, vector<32x256xbf16>,
    %361 = vector.extract_strided_slice %356 {offsets = [0, 128], sizes = [32, 256], strides = [1, 1]} : vector<32x512xbf16> to vector<32x256xbf16>
    %c320_120 = arith.constant 320 : index
    %c0_121 = arith.constant 0 : index
    %362 = vector.load %arg34[%c320_120, %c0_121] : memref<800x256xbf16, #tpu.memory_space<vmem>>, vector<32x256xbf16>
    tpu.vector_store %arg34[%c320_120, %c0_121], %361 {strides = array<i32>} : memref<800x256xbf16, #tpu.memory_space<vmem>>, vector<32x256xbf16>,
    %363 = vector.extract_strided_slice %356 {offsets = [0, 144], sizes = [32, 256], strides = [1, 1]} : vector<32x512xbf16> to vector<32x256xbf16>
    %c480_122 = arith.constant 480 : index
    %c0_123 = arith.constant 0 : index
    %364 = vector.load %arg34[%c480_122, %c0_123] : memref<800x256xbf16, #tpu.memory_space<vmem>>, vector<32x256xbf16>
    tpu.vector_store %arg34[%c480_122, %c0_123], %363 {strides = array<i32>} : memref<800x256xbf16, #tpu.memory_space<vmem>>, vector<32x256xbf16>,
    %365 = vector.extract_strided_slice %356 {offsets = [0, 160], sizes = [32, 256], strides = [1, 1]} : vector<32x512xbf16> to vector<32x256xbf16>
    %c640_124 = arith.constant 640 : index
    %c0_125 = arith.constant 0 : index
    %366 = vector.load %arg34[%c640_124, %c0_125] : memref<800x256xbf16, #tpu.memory_space<vmem>>, vector<32x256xbf16>
    tpu.vector_store %arg34[%c640_124, %c0_125], %365 {strides = array<i32>} : memref<800x256xbf16, #tpu.memory_space<vmem>>, vector<32x256xbf16>,
    %367 = vector.extract_strided_slice %352 {offsets = [0, 127], sizes = [32, 256], strides = [1, 1]} : vector<32x512xbf16> to vector<32x256xbf16>
    %368 = vector.broadcast %40 : vector<1x256xbf16> to vector<32x256xbf16>
    %369 = arith.mulf %367, %368 : vector<32x256xbf16>
    %370 = tpu.concatenate %77, %369, %77 in 1 : vector<32x128xbf16>, vector<32x256xbf16>, vector<32x128xbf16> -> vector<32x512xbf16>
    %371 = vector.extract_strided_slice %370 {offsets = [0, 96], sizes = [32, 256], strides = [1, 1]} : vector<32x512xbf16> to vector<32x256xbf16>
    %c32_126 = arith.constant 32 : index
    %c0_127 = arith.constant 0 : index
    %372 = vector.load %arg34[%c32_126, %c0_127] : memref<800x256xbf16, #tpu.memory_space<vmem>>, vector<32x256xbf16>
    tpu.vector_store %arg34[%c32_126, %c0_127], %371 {strides = array<i32>} : memref<800x256xbf16, #tpu.memory_space<vmem>>, vector<32x256xbf16>,
    %373 = vector.extract_strided_slice %370 {offsets = [0, 112], sizes = [32, 256], strides = [1, 1]} : vector<32x512xbf16> to vector<32x256xbf16>
    %c192_128 = arith.constant 192 : index
    %c0_129 = arith.constant 0 : index
    %374 = vector.load %arg34[%c192_128, %c0_129] : memref<800x256xbf16, #tpu.memory_space<vmem>>, vector<32x256xbf16>
    tpu.vector_store %arg34[%c192_128, %c0_129], %373 {strides = array<i32>} : memref<800x256xbf16, #tpu.memory_space<vmem>>, vector<32x256xbf16>,
    %375 = vector.extract_strided_slice %370 {offsets = [0, 128], sizes = [32, 256], strides = [1, 1]} : vector<32x512xbf16> to vector<32x256xbf16>
    %c352_130 = arith.constant 352 : index
    %c0_131 = arith.constant 0 : index
    %376 = vector.load %arg34[%c352_130, %c0_131] : memref<800x256xbf16, #tpu.memory_space<vmem>>, vector<32x256xbf16>
    tpu.vector_store %arg34[%c352_130, %c0_131], %375 {strides = array<i32>} : memref<800x256xbf16, #tpu.memory_space<vmem>>, vector<32x256xbf16>,
    %377 = vector.extract_strided_slice %370 {offsets = [0, 144], sizes = [32, 256], strides = [1, 1]} : vector<32x512xbf16> to vector<32x256xbf16>
    %c512_132 = arith.constant 512 : index
    %c0_133 = arith.constant 0 : index
    %378 = vector.load %arg34[%c512_132, %c0_133] : memref<800x256xbf16, #tpu.memory_space<vmem>>, vector<32x256xbf16>
    tpu.vector_store %arg34[%c512_132, %c0_133], %377 {strides = array<i32>} : memref<800x256xbf16, #tpu.memory_space<vmem>>, vector<32x256xbf16>,
    %379 = vector.extract_strided_slice %370 {offsets = [0, 160], sizes = [32, 256], strides = [1, 1]} : vector<32x512xbf16> to vector<32x256xbf16>
    %c672_134 = arith.constant 672 : index
    %c0_135 = arith.constant 0 : index
    %380 = vector.load %arg34[%c672_134, %c0_135] : memref<800x256xbf16, #tpu.memory_space<vmem>>, vector<32x256xbf16>
    tpu.vector_store %arg34[%c672_134, %c0_135], %379 {strides = array<i32>} : memref<800x256xbf16, #tpu.memory_space<vmem>>, vector<32x256xbf16>,
    %381 = vector.extract_strided_slice %352 {offsets = [0, 128], sizes = [32, 256], strides = [1, 1]} : vector<32x512xbf16> to vector<32x256xbf16>
    %382 = vector.broadcast %52 : vector<1x256xbf16> to vector<32x256xbf16>
    %383 = arith.mulf %381, %382 : vector<32x256xbf16>
    %384 = tpu.concatenate %77, %383, %77 in 1 : vector<32x128xbf16>, vector<32x256xbf16>, vector<32x128xbf16> -> vector<32x512xbf16>
    %385 = vector.extract_strided_slice %384 {offsets = [0, 96], sizes = [32, 256], strides = [1, 1]} : vector<32x512xbf16> to vector<32x256xbf16>
    %c64_136 = arith.constant 64 : index
    %c0_137 = arith.constant 0 : index
    %386 = vector.load %arg34[%c64_136, %c0_137] : memref<800x256xbf16, #tpu.memory_space<vmem>>, vector<32x256xbf16>
    tpu.vector_store %arg34[%c64_136, %c0_137], %385 {strides = array<i32>} : memref<800x256xbf16, #tpu.memory_space<vmem>>, vector<32x256xbf16>,
    %387 = vector.extract_strided_slice %384 {offsets = [0, 112], sizes = [32, 256], strides = [1, 1]} : vector<32x512xbf16> to vector<32x256xbf16>
    %c224_138 = arith.constant 224 : index
    %c0_139 = arith.constant 0 : index
    %388 = vector.load %arg34[%c224_138, %c0_139] : memref<800x256xbf16, #tpu.memory_space<vmem>>, vector<32x256xbf16>
    tpu.vector_store %arg34[%c224_138, %c0_139], %387 {strides = array<i32>} : memref<800x256xbf16, #tpu.memory_space<vmem>>, vector<32x256xbf16>,
    %389 = vector.extract_strided_slice %384 {offsets = [0, 128], sizes = [32, 256], strides = [1, 1]} : vector<32x512xbf16> to vector<32x256xbf16>
    %c384_140 = arith.constant 384 : index
    %c0_141 = arith.constant 0 : index
    %390 = vector.load %arg34[%c384_140, %c0_141] : memref<800x256xbf16, #tpu.memory_space<vmem>>, vector<32x256xbf16>
    tpu.vector_store %arg34[%c384_140, %c0_141], %389 {strides = array<i32>} : memref<800x256xbf16, #tpu.memory_space<vmem>>, vector<32x256xbf16>,
    %391 = vector.extract_strided_slice %384 {offsets = [0, 144], sizes = [32, 256], strides = [1, 1]} : vector<32x512xbf16> to vector<32x256xbf16>
    %c544_142 = arith.constant 544 : index
    %c0_143 = arith.constant 0 : index
    %392 = vector.load %arg34[%c544_142, %c0_143] : memref<800x256xbf16, #tpu.memory_space<vmem>>, vector<32x256xbf16>
    tpu.vector_store %arg34[%c544_142, %c0_143], %391 {strides = array<i32>} : memref<800x256xbf16, #tpu.memory_space<vmem>>, vector<32x256xbf16>,
    %393 = vector.extract_strided_slice %384 {offsets = [0, 160], sizes = [32, 256], strides = [1, 1]} : vector<32x512xbf16> to vector<32x256xbf16>
    %c704_144 = arith.constant 704 : index
    %c0_145 = arith.constant 0 : index
    %394 = vector.load %arg34[%c704_144, %c0_145] : memref<800x256xbf16, #tpu.memory_space<vmem>>, vector<32x256xbf16>
    tpu.vector_store %arg34[%c704_144, %c0_145], %393 {strides = array<i32>} : memref<800x256xbf16, #tpu.memory_space<vmem>>, vector<32x256xbf16>,
    %395 = vector.extract_strided_slice %352 {offsets = [0, 129], sizes = [32, 256], strides = [1, 1]} : vector<32x512xbf16> to vector<32x256xbf16>
    %396 = vector.broadcast %64 : vector<1x256xbf16> to vector<32x256xbf16>
    %397 = arith.mulf %395, %396 : vector<32x256xbf16>
    %398 = tpu.concatenate %77, %397, %77 in 1 : vector<32x128xbf16>, vector<32x256xbf16>, vector<32x128xbf16> -> vector<32x512xbf16>
    %399 = vector.extract_strided_slice %398 {offsets = [0, 96], sizes = [32, 256], strides = [1, 1]} : vector<32x512xbf16> to vector<32x256xbf16>
    %c96_146 = arith.constant 96 : index
    %c0_147 = arith.constant 0 : index
    %400 = vector.load %arg34[%c96_146, %c0_147] : memref<800x256xbf16, #tpu.memory_space<vmem>>, vector<32x256xbf16>
    tpu.vector_store %arg34[%c96_146, %c0_147], %399 {strides = array<i32>} : memref<800x256xbf16, #tpu.memory_space<vmem>>, vector<32x256xbf16>,
    %401 = vector.extract_strided_slice %398 {offsets = [0, 112], sizes = [32, 256], strides = [1, 1]} : vector<32x512xbf16> to vector<32x256xbf16>
    %c256_148 = arith.constant 256 : index
    %c0_149 = arith.constant 0 : index
    %402 = vector.load %arg34[%c256_148, %c0_149] : memref<800x256xbf16, #tpu.memory_space<vmem>>, vector<32x256xbf16>
    tpu.vector_store %arg34[%c256_148, %c0_149], %401 {strides = array<i32>} : memref<800x256xbf16, #tpu.memory_space<vmem>>, vector<32x256xbf16>,
    %403 = vector.extract_strided_slice %398 {offsets = [0, 128], sizes = [32, 256], strides = [1, 1]} : vector<32x512xbf16> to vector<32x256xbf16>
    %c416_150 = arith.constant 416 : index
    %c0_151 = arith.constant 0 : index
    %404 = vector.load %arg34[%c416_150, %c0_151] : memref<800x256xbf16, #tpu.memory_space<vmem>>, vector<32x256xbf16>
    tpu.vector_store %arg34[%c416_150, %c0_151], %403 {strides = array<i32>} : memref<800x256xbf16, #tpu.memory_space<vmem>>, vector<32x256xbf16>,
    %405 = vector.extract_strided_slice %398 {offsets = [0, 144], sizes = [32, 256], strides = [1, 1]} : vector<32x512xbf16> to vector<32x256xbf16>
    %c576_152 = arith.constant 576 : index
    %c0_153 = arith.constant 0 : index
    %406 = vector.load %arg34[%c576_152, %c0_153] : memref<800x256xbf16, #tpu.memory_space<vmem>>, vector<32x256xbf16>
    tpu.vector_store %arg34[%c576_152, %c0_153], %405 {strides = array<i32>} : memref<800x256xbf16, #tpu.memory_space<vmem>>, vector<32x256xbf16>,
    %407 = vector.extract_strided_slice %398 {offsets = [0, 160], sizes = [32, 256], strides = [1, 1]} : vector<32x512xbf16> to vector<32x256xbf16>
    %c736_154 = arith.constant 736 : index
    %c0_155 = arith.constant 0 : index
    %408 = vector.load %arg34[%c736_154, %c0_155] : memref<800x256xbf16, #tpu.memory_space<vmem>>, vector<32x256xbf16>
    tpu.vector_store %arg34[%c736_154, %c0_155], %407 {strides = array<i32>} : memref<800x256xbf16, #tpu.memory_space<vmem>>, vector<32x256xbf16>,
    %409 = vector.extract_strided_slice %352 {offsets = [0, 130], sizes = [32, 256], strides = [1, 1]} : vector<32x512xbf16> to vector<32x256xbf16>
    %410 = vector.broadcast %76 : vector<1x256xbf16> to vector<32x256xbf16>
    %411 = arith.mulf %409, %410 : vector<32x256xbf16>
    %412 = tpu.concatenate %77, %411, %77 in 1 : vector<32x128xbf16>, vector<32x256xbf16>, vector<32x128xbf16> -> vector<32x512xbf16>
    %413 = vector.extract_strided_slice %412 {offsets = [0, 96], sizes = [32, 256], strides = [1, 1]} : vector<32x512xbf16> to vector<32x256xbf16>
    %c128_156 = arith.constant 128 : index
    %c0_157 = arith.constant 0 : index
    %414 = vector.load %arg34[%c128_156, %c0_157] : memref<800x256xbf16, #tpu.memory_space<vmem>>, vector<32x256xbf16>
    tpu.vector_store %arg34[%c128_156, %c0_157], %413 {strides = array<i32>} : memref<800x256xbf16, #tpu.memory_space<vmem>>, vector<32x256xbf16>,
    %415 = vector.extract_strided_slice %412 {offsets = [0, 112], sizes = [32, 256], strides = [1, 1]} : vector<32x512xbf16> to vector<32x256xbf16>
    %c288_158 = arith.constant 288 : index
    %c0_159 = arith.constant 0 : index
    %416 = vector.load %arg34[%c288_158, %c0_159] : memref<800x256xbf16, #tpu.memory_space<vmem>>, vector<32x256xbf16>
    tpu.vector_store %arg34[%c288_158, %c0_159], %415 {strides = array<i32>} : memref<800x256xbf16, #tpu.memory_space<vmem>>, vector<32x256xbf16>,
    %417 = vector.extract_strided_slice %412 {offsets = [0, 128], sizes = [32, 256], strides = [1, 1]} : vector<32x512xbf16> to vector<32x256xbf16>
    %c448_160 = arith.constant 448 : index
    %c0_161 = arith.constant 0 : index
    %418 = vector.load %arg34[%c448_160, %c0_161] : memref<800x256xbf16, #tpu.memory_space<vmem>>, vector<32x256xbf16>
    tpu.vector_store %arg34[%c448_160, %c0_161], %417 {strides = array<i32>} : memref<800x256xbf16, #tpu.memory_space<vmem>>, vector<32x256xbf16>,
    %419 = vector.extract_strided_slice %412 {offsets = [0, 144], sizes = [32, 256], strides = [1, 1]} : vector<32x512xbf16> to vector<32x256xbf16>
    %c608_162 = arith.constant 608 : index
    %c0_163 = arith.constant 0 : index
    %420 = vector.load %arg34[%c608_162, %c0_163] : memref<800x256xbf16, #tpu.memory_space<vmem>>, vector<32x256xbf16>
    tpu.vector_store %arg34[%c608_162, %c0_163], %419 {strides = array<i32>} : memref<800x256xbf16, #tpu.memory_space<vmem>>, vector<32x256xbf16>,
    %421 = vector.extract_strided_slice %412 {offsets = [0, 160], sizes = [32, 256], strides = [1, 1]} : vector<32x512xbf16> to vector<32x256xbf16>
    %c768_164 = arith.constant 768 : index
    %c0_165 = arith.constant 0 : index
    %422 = vector.load %arg34[%c768_164, %c0_165] : memref<800x256xbf16, #tpu.memory_space<vmem>>, vector<32x256xbf16>
    tpu.vector_store %arg34[%c768_164, %c0_165], %421 {strides = array<i32>} : memref<800x256xbf16, #tpu.memory_space<vmem>>, vector<32x256xbf16>,
    %c0_166 = arith.constant 0 : index
    %c0_167 = arith.constant 0 : index
    %c0_168 = arith.constant 0 : index
    %423 = vector.load %arg22[%c0_166, %c0_167, %c0_168] : memref<2x32x800xbf16, #tpu.memory_space<vmem>>, vector<1x32x800xbf16>
    %424 = vector.shape_cast %423 : vector<1x32x800xbf16> to vector<32x800xbf16>
    %c0_169 = arith.constant 0 : index
    %c0_170 = arith.constant 0 : index
    %425 = vector.load %arg34[%c0_169, %c0_170] : memref<800x256xbf16, #tpu.memory_space<vmem>>, vector<800x256xbf16>
    %cst_171 = arith.constant dense<0.000000e+00> : vector<32x256xf32>
    %426 = tpu.matmul %424, %425, %cst_171 {dimension_numbers = #tpu.dot_dimension_numbers<[1], [0], [0], [1], [0, 0, 1, 1], [], []>} : vector<32x800xbf16>, vector<800x256xbf16>, vector<32x256xf32> -> vector<32x256xf32>
    %427 = vector.broadcast %350 : vector<32x1xf32> to vector<32x256xf32>
    %428 = arith.addf %426, %427 : vector<32x256xf32>
    %cst_172 = arith.constant 0.000000e+00 : f32
    %429 = vector.broadcast %cst_172 : f32 to vector<32x256xf32>
    %430 = arith.cmpf ogt, %428, %429 : vector<32x256xf32>
    %cst_173 = arith.constant 0.00999999977 : f32
    %431 = vector.broadcast %cst_173 : f32 to vector<32x256xf32>
    %432 = arith.mulf %431, %428 : vector<32x256xf32>
    %433 = arith.select %430, %428, %432 : vector<32x256xi1>, vector<32x256xf32>
    %cst_174 = arith.constant dense<0.000000e+00> : vector<32xf32>
    %434 = vector.multi_reduction <add>, %433, %cst_174 [1] : vector<32x256xf32> to vector<32xf32>
    %435 = vector.shape_cast %434 : vector<32xf32> to vector<32x1xf32>
    %cst_175 = arith.constant 2.560000e+02 : f32
    %436 = vector.broadcast %cst_175 : f32 to vector<32x1xf32>
    %437 = arith.divf %435, %436 : vector<32x1xf32>
    %c0_176 = arith.constant 0 : index
    %c0_177 = arith.constant 0 : index
    %c0_178 = arith.constant 0 : index
    %438 = vector.load %arg24[%c0_176, %c0_177, %c0_178] : memref<2x32x2xf32, #tpu.memory_space<vmem>>, vector<1x32x2xf32>
    %439 = vector.shape_cast %438 : vector<1x32x2xf32> to vector<32x2xf32>
    %440 = vector.broadcast %437 : vector<32x1xf32> to vector<32x2xf32>
    %441 = arith.mulf %439, %440 : vector<32x2xf32>
    %cst_179 = arith.constant dense<0.000000e+00> : vector<2xf32>
    %442 = vector.multi_reduction <add>, %441, %cst_179 [0] : vector<32x2xf32> to vector<2xf32>
    %443 = vector.shape_cast %442 : vector<2xf32> to vector<1x2xf32>
    %c0_180 = arith.constant 0 : index
    %c0_181 = arith.constant 0 : index
    %c0_182 = arith.constant 0 : index
    %444 = vector.load %arg25[%c0_180, %c0_181, %c0_182] : memref<2x1x2xf32, #tpu.memory_space<vmem>>, vector<1x1x2xf32>
    %445 = vector.shape_cast %444 : vector<1x1x2xf32> to vector<1x2xf32>
    %446 = arith.addf %443, %445 : vector<1x2xf32>
    %cst_183 = arith.constant 0.000000e+00 : f32
    %447 = vector.broadcast %cst_183 : f32 to vector<1x2xf32>
    %448 = arith.maximumf %446, %447 : vector<1x2xf32>
    %c0_184 = arith.constant 0 : index
    %c0_185 = arith.constant 0 : index
    %c0_186 = arith.constant 0 : index
    %449 = vector.load %arg26[%c0_184, %c0_185, %c0_186] : memref<2x32x2xf32, #tpu.memory_space<vmem>>, vector<1x32x2xf32>
    %450 = vector.shape_cast %449 : vector<1x32x2xf32> to vector<32x2xf32>
    %451 = vector.broadcast %448 : vector<1x2xf32> to vector<32x2xf32>
    %452 = arith.mulf %450, %451 : vector<32x2xf32>
    %cst_187 = arith.constant dense<0.000000e+00> : vector<32xf32>
    %453 = vector.multi_reduction <add>, %452, %cst_187 [1] : vector<32x2xf32> to vector<32xf32>
    %454 = vector.shape_cast %453 : vector<32xf32> to vector<32x1xf32>
    %c0_188 = arith.constant 0 : index
    %c0_189 = arith.constant 0 : index
    %c0_190 = arith.constant 0 : index
    %455 = vector.load %arg27[%c0_188, %c0_189, %c0_190] : memref<2x32x1xf32, #tpu.memory_space<vmem>>, vector<1x32x1xf32>
    %456 = vector.shape_cast %455 : vector<1x32x1xf32> to vector<32x1xf32>
    %457 = arith.addf %454, %456 : vector<32x1xf32>
    %458 = arith.negf %457 : vector<32x1xf32>
    %459 = math.exp %458 : vector<32x1xf32>
    %cst_191 = arith.constant 1.000000e+00 : f32
    %460 = vector.broadcast %cst_191 : f32 to vector<32x1xf32>
    %461 = arith.addf %460, %459 : vector<32x1xf32>
    %462 = arith.divf %460, %461 : vector<32x1xf32>
    %463 = vector.broadcast %462 : vector<32x1xf32> to vector<32x256xf32>
    %464 = arith.mulf %433, %463 : vector<32x256xf32>
    %465 = arith.addf %464, %263 : vector<32x256xf32>
    %cst_192 = arith.constant 0.000000e+00 : f32
    %466 = vector.broadcast %cst_192 : f32 to vector<32x256xf32>
    %467 = arith.cmpf ogt, %465, %466 : vector<32x256xf32>
    %cst_193 = arith.constant 0.00999999977 : f32
    %468 = vector.broadcast %cst_193 : f32 to vector<32x256xf32>
    %469 = arith.mulf %468, %465 : vector<32x256xf32>
    %470 = arith.select %467, %465, %469 : vector<32x256xi1>, vector<32x256xf32>
    %c1_194 = arith.constant 1 : index
    %c0_195 = arith.constant 0 : index
    %c0_196 = arith.constant 0 : index
    %471 = vector.load %arg21[%c1_194, %c0_195, %c0_196] : memref<2x32x1xf32, #tpu.memory_space<vmem>>, vector<1x32x1xf32>
    %472 = vector.shape_cast %471 : vector<1x32x1xf32> to vector<32x1xf32>
    %473 = arith.truncf %470 : vector<32x256xf32> to vector<32x256xbf16>
    %474 = tpu.concatenate %77, %473, %77 in 1 : vector<32x128xbf16>, vector<32x256xbf16>, vector<32x128xbf16> -> vector<32x512xbf16>
    %475 = vector.extract_strided_slice %474 {offsets = [0, 126], sizes = [32, 256], strides = [1, 1]} : vector<32x512xbf16> to vector<32x256xbf16>
    %476 = vector.broadcast %28 : vector<1x256xbf16> to vector<32x256xbf16>
    %477 = arith.mulf %475, %476 : vector<32x256xbf16>
    %478 = tpu.concatenate %77, %477, %77 in 1 : vector<32x128xbf16>, vector<32x256xbf16>, vector<32x128xbf16> -> vector<32x512xbf16>
    %479 = vector.extract_strided_slice %478 {offsets = [0, 96], sizes = [32, 256], strides = [1, 1]} : vector<32x512xbf16> to vector<32x256xbf16>
    %c0_197 = arith.constant 0 : index
    %c0_198 = arith.constant 0 : index
    %480 = vector.load %arg34[%c0_197, %c0_198] : memref<800x256xbf16, #tpu.memory_space<vmem>>, vector<32x256xbf16>
    tpu.vector_store %arg34[%c0_197, %c0_198], %479 {strides = array<i32>} : memref<800x256xbf16, #tpu.memory_space<vmem>>, vector<32x256xbf16>,
    %481 = vector.extract_strided_slice %478 {offsets = [0, 112], sizes = [32, 256], strides = [1, 1]} : vector<32x512xbf16> to vector<32x256xbf16>
    %c160_199 = arith.constant 160 : index
    %c0_200 = arith.constant 0 : index
    %482 = vector.load %arg34[%c160_199, %c0_200] : memref<800x256xbf16, #tpu.memory_space<vmem>>, vector<32x256xbf16>
    tpu.vector_store %arg34[%c160_199, %c0_200], %481 {strides = array<i32>} : memref<800x256xbf16, #tpu.memory_space<vmem>>, vector<32x256xbf16>,
    %483 = vector.extract_strided_slice %478 {offsets = [0, 128], sizes = [32, 256], strides = [1, 1]} : vector<32x512xbf16> to vector<32x256xbf16>
    %c320_201 = arith.constant 320 : index
    %c0_202 = arith.constant 0 : index
    %484 = vector.load %arg34[%c320_201, %c0_202] : memref<800x256xbf16, #tpu.memory_space<vmem>>, vector<32x256xbf16>
    tpu.vector_store %arg34[%c320_201, %c0_202], %483 {strides = array<i32>} : memref<800x256xbf16, #tpu.memory_space<vmem>>, vector<32x256xbf16>,
    %485 = vector.extract_strided_slice %478 {offsets = [0, 144], sizes = [32, 256], strides = [1, 1]} : vector<32x512xbf16> to vector<32x256xbf16>
    %c480_203 = arith.constant 480 : index
    %c0_204 = arith.constant 0 : index
    %486 = vector.load %arg34[%c480_203, %c0_204] : memref<800x256xbf16, #tpu.memory_space<vmem>>, vector<32x256xbf16>
    tpu.vector_store %arg34[%c480_203, %c0_204], %485 {strides = array<i32>} : memref<800x256xbf16, #tpu.memory_space<vmem>>, vector<32x256xbf16>,
    %487 = vector.extract_strided_slice %478 {offsets = [0, 160], sizes = [32, 256], strides = [1, 1]} : vector<32x512xbf16> to vector<32x256xbf16>
    %c640_205 = arith.constant 640 : index
    %c0_206 = arith.constant 0 : index
    %488 = vector.load %arg34[%c640_205, %c0_206] : memref<800x256xbf16, #tpu.memory_space<vmem>>, vector<32x256xbf16>
    tpu.vector_store %arg34[%c640_205, %c0_206], %487 {strides = array<i32>} : memref<800x256xbf16, #tpu.memory_space<vmem>>, vector<32x256xbf16>,
    %489 = vector.extract_strided_slice %474 {offsets = [0, 127], sizes = [32, 256], strides = [1, 1]} : vector<32x512xbf16> to vector<32x256xbf16>
    %490 = vector.broadcast %40 : vector<1x256xbf16> to vector<32x256xbf16>
    %491 = arith.mulf %489, %490 : vector<32x256xbf16>
    %492 = tpu.concatenate %77, %491, %77 in 1 : vector<32x128xbf16>, vector<32x256xbf16>, vector<32x128xbf16> -> vector<32x512xbf16>
    %493 = vector.extract_strided_slice %492 {offsets = [0, 96], sizes = [32, 256], strides = [1, 1]} : vector<32x512xbf16> to vector<32x256xbf16>
    %c32_207 = arith.constant 32 : index
    %c0_208 = arith.constant 0 : index
    %494 = vector.load %arg34[%c32_207, %c0_208] : memref<800x256xbf16, #tpu.memory_space<vmem>>, vector<32x256xbf16>
    tpu.vector_store %arg34[%c32_207, %c0_208], %493 {strides = array<i32>} : memref<800x256xbf16, #tpu.memory_space<vmem>>, vector<32x256xbf16>,
    %495 = vector.extract_strided_slice %492 {offsets = [0, 112], sizes = [32, 256], strides = [1, 1]} : vector<32x512xbf16> to vector<32x256xbf16>
    %c192_209 = arith.constant 192 : index
    %c0_210 = arith.constant 0 : index
    %496 = vector.load %arg34[%c192_209, %c0_210] : memref<800x256xbf16, #tpu.memory_space<vmem>>, vector<32x256xbf16>
    tpu.vector_store %arg34[%c192_209, %c0_210], %495 {strides = array<i32>} : memref<800x256xbf16, #tpu.memory_space<vmem>>, vector<32x256xbf16>,
    %497 = vector.extract_strided_slice %492 {offsets = [0, 128], sizes = [32, 256], strides = [1, 1]} : vector<32x512xbf16> to vector<32x256xbf16>
    %c352_211 = arith.constant 352 : index
    %c0_212 = arith.constant 0 : index
    %498 = vector.load %arg34[%c352_211, %c0_212] : memref<800x256xbf16, #tpu.memory_space<vmem>>, vector<32x256xbf16>
    tpu.vector_store %arg34[%c352_211, %c0_212], %497 {strides = array<i32>} : memref<800x256xbf16, #tpu.memory_space<vmem>>, vector<32x256xbf16>,
    %499 = vector.extract_strided_slice %492 {offsets = [0, 144], sizes = [32, 256], strides = [1, 1]} : vector<32x512xbf16> to vector<32x256xbf16>
    %c512_213 = arith.constant 512 : index
    %c0_214 = arith.constant 0 : index
    %500 = vector.load %arg34[%c512_213, %c0_214] : memref<800x256xbf16, #tpu.memory_space<vmem>>, vector<32x256xbf16>
    tpu.vector_store %arg34[%c512_213, %c0_214], %499 {strides = array<i32>} : memref<800x256xbf16, #tpu.memory_space<vmem>>, vector<32x256xbf16>,
    %501 = vector.extract_strided_slice %492 {offsets = [0, 160], sizes = [32, 256], strides = [1, 1]} : vector<32x512xbf16> to vector<32x256xbf16>
    %c672_215 = arith.constant 672 : index
    %c0_216 = arith.constant 0 : index
    %502 = vector.load %arg34[%c672_215, %c0_216] : memref<800x256xbf16, #tpu.memory_space<vmem>>, vector<32x256xbf16>
    tpu.vector_store %arg34[%c672_215, %c0_216], %501 {strides = array<i32>} : memref<800x256xbf16, #tpu.memory_space<vmem>>, vector<32x256xbf16>,
    %503 = vector.extract_strided_slice %474 {offsets = [0, 128], sizes = [32, 256], strides = [1, 1]} : vector<32x512xbf16> to vector<32x256xbf16>
    %504 = vector.broadcast %52 : vector<1x256xbf16> to vector<32x256xbf16>
    %505 = arith.mulf %503, %504 : vector<32x256xbf16>
    %506 = tpu.concatenate %77, %505, %77 in 1 : vector<32x128xbf16>, vector<32x256xbf16>, vector<32x128xbf16> -> vector<32x512xbf16>
    %507 = vector.extract_strided_slice %506 {offsets = [0, 96], sizes = [32, 256], strides = [1, 1]} : vector<32x512xbf16> to vector<32x256xbf16>
    %c64_217 = arith.constant 64 : index
    %c0_218 = arith.constant 0 : index
    %508 = vector.load %arg34[%c64_217, %c0_218] : memref<800x256xbf16, #tpu.memory_space<vmem>>, vector<32x256xbf16>
    tpu.vector_store %arg34[%c64_217, %c0_218], %507 {strides = array<i32>} : memref<800x256xbf16, #tpu.memory_space<vmem>>, vector<32x256xbf16>,
    %509 = vector.extract_strided_slice %506 {offsets = [0, 112], sizes = [32, 256], strides = [1, 1]} : vector<32x512xbf16> to vector<32x256xbf16>
    %c224_219 = arith.constant 224 : index
    %c0_220 = arith.constant 0 : index
    %510 = vector.load %arg34[%c224_219, %c0_220] : memref<800x256xbf16, #tpu.memory_space<vmem>>, vector<32x256xbf16>
    tpu.vector_store %arg34[%c224_219, %c0_220], %509 {strides = array<i32>} : memref<800x256xbf16, #tpu.memory_space<vmem>>, vector<32x256xbf16>,
    %511 = vector.extract_strided_slice %506 {offsets = [0, 128], sizes = [32, 256], strides = [1, 1]} : vector<32x512xbf16> to vector<32x256xbf16>
    %c384_221 = arith.constant 384 : index
    %c0_222 = arith.constant 0 : index
    %512 = vector.load %arg34[%c384_221, %c0_222] : memref<800x256xbf16, #tpu.memory_space<vmem>>, vector<32x256xbf16>
    tpu.vector_store %arg34[%c384_221, %c0_222], %511 {strides = array<i32>} : memref<800x256xbf16, #tpu.memory_space<vmem>>, vector<32x256xbf16>,
    %513 = vector.extract_strided_slice %506 {offsets = [0, 144], sizes = [32, 256], strides = [1, 1]} : vector<32x512xbf16> to vector<32x256xbf16>
    %c544_223 = arith.constant 544 : index
    %c0_224 = arith.constant 0 : index
    %514 = vector.load %arg34[%c544_223, %c0_224] : memref<800x256xbf16, #tpu.memory_space<vmem>>, vector<32x256xbf16>
    tpu.vector_store %arg34[%c544_223, %c0_224], %513 {strides = array<i32>} : memref<800x256xbf16, #tpu.memory_space<vmem>>, vector<32x256xbf16>,
    %515 = vector.extract_strided_slice %506 {offsets = [0, 160], sizes = [32, 256], strides = [1, 1]} : vector<32x512xbf16> to vector<32x256xbf16>
    %c704_225 = arith.constant 704 : index
    %c0_226 = arith.constant 0 : index
    %516 = vector.load %arg34[%c704_225, %c0_226] : memref<800x256xbf16, #tpu.memory_space<vmem>>, vector<32x256xbf16>
    tpu.vector_store %arg34[%c704_225, %c0_226], %515 {strides = array<i32>} : memref<800x256xbf16, #tpu.memory_space<vmem>>, vector<32x256xbf16>,
    %517 = vector.extract_strided_slice %474 {offsets = [0, 129], sizes = [32, 256], strides = [1, 1]} : vector<32x512xbf16> to vector<32x256xbf16>
    %518 = vector.broadcast %64 : vector<1x256xbf16> to vector<32x256xbf16>
    %519 = arith.mulf %517, %518 : vector<32x256xbf16>
    %520 = tpu.concatenate %77, %519, %77 in 1 : vector<32x128xbf16>, vector<32x256xbf16>, vector<32x128xbf16> -> vector<32x512xbf16>
    %521 = vector.extract_strided_slice %520 {offsets = [0, 96], sizes = [32, 256], strides = [1, 1]} : vector<32x512xbf16> to vector<32x256xbf16>
    %c96_227 = arith.constant 96 : index
    %c0_228 = arith.constant 0 : index
    %522 = vector.load %arg34[%c96_227, %c0_228] : memref<800x256xbf16, #tpu.memory_space<vmem>>, vector<32x256xbf16>
    tpu.vector_store %arg34[%c96_227, %c0_228], %521 {strides = array<i32>} : memref<800x256xbf16, #tpu.memory_space<vmem>>, vector<32x256xbf16>,
    %523 = vector.extract_strided_slice %520 {offsets = [0, 112], sizes = [32, 256], strides = [1, 1]} : vector<32x512xbf16> to vector<32x256xbf16>
    %c256_229 = arith.constant 256 : index
    %c0_230 = arith.constant 0 : index
    %524 = vector.load %arg34[%c256_229, %c0_230] : memref<800x256xbf16, #tpu.memory_space<vmem>>, vector<32x256xbf16>
    tpu.vector_store %arg34[%c256_229, %c0_230], %523 {strides = array<i32>} : memref<800x256xbf16, #tpu.memory_space<vmem>>, vector<32x256xbf16>,
    %525 = vector.extract_strided_slice %520 {offsets = [0, 128], sizes = [32, 256], strides = [1, 1]} : vector<32x512xbf16> to vector<32x256xbf16>
    %c416_231 = arith.constant 416 : index
    %c0_232 = arith.constant 0 : index
    %526 = vector.load %arg34[%c416_231, %c0_232] : memref<800x256xbf16, #tpu.memory_space<vmem>>, vector<32x256xbf16>
    tpu.vector_store %arg34[%c416_231, %c0_232], %525 {strides = array<i32>} : memref<800x256xbf16, #tpu.memory_space<vmem>>, vector<32x256xbf16>,
    %527 = vector.extract_strided_slice %520 {offsets = [0, 144], sizes = [32, 256], strides = [1, 1]} : vector<32x512xbf16> to vector<32x256xbf16>
    %c576_233 = arith.constant 576 : index
    %c0_234 = arith.constant 0 : index
    %528 = vector.load %arg34[%c576_233, %c0_234] : memref<800x256xbf16, #tpu.memory_space<vmem>>, vector<32x256xbf16>
    tpu.vector_store %arg34[%c576_233, %c0_234], %527 {strides = array<i32>} : memref<800x256xbf16, #tpu.memory_space<vmem>>, vector<32x256xbf16>,
    %529 = vector.extract_strided_slice %520 {offsets = [0, 160], sizes = [32, 256], strides = [1, 1]} : vector<32x512xbf16> to vector<32x256xbf16>
    %c736_235 = arith.constant 736 : index
    %c0_236 = arith.constant 0 : index
    %530 = vector.load %arg34[%c736_235, %c0_236] : memref<800x256xbf16, #tpu.memory_space<vmem>>, vector<32x256xbf16>
    tpu.vector_store %arg34[%c736_235, %c0_236], %529 {strides = array<i32>} : memref<800x256xbf16, #tpu.memory_space<vmem>>, vector<32x256xbf16>,
    %531 = vector.extract_strided_slice %474 {offsets = [0, 130], sizes = [32, 256], strides = [1, 1]} : vector<32x512xbf16> to vector<32x256xbf16>
    %532 = vector.broadcast %76 : vector<1x256xbf16> to vector<32x256xbf16>
    %533 = arith.mulf %531, %532 : vector<32x256xbf16>
    %534 = tpu.concatenate %77, %533, %77 in 1 : vector<32x128xbf16>, vector<32x256xbf16>, vector<32x128xbf16> -> vector<32x512xbf16>
    %535 = vector.extract_strided_slice %534 {offsets = [0, 96], sizes = [32, 256], strides = [1, 1]} : vector<32x512xbf16> to vector<32x256xbf16>
    %c128_237 = arith.constant 128 : index
    %c0_238 = arith.constant 0 : index
    %536 = vector.load %arg34[%c128_237, %c0_238] : memref<800x256xbf16, #tpu.memory_space<vmem>>, vector<32x256xbf16>
    tpu.vector_store %arg34[%c128_237, %c0_238], %535 {strides = array<i32>} : memref<800x256xbf16, #tpu.memory_space<vmem>>, vector<32x256xbf16>,
    %537 = vector.extract_strided_slice %534 {offsets = [0, 112], sizes = [32, 256], strides = [1, 1]} : vector<32x512xbf16> to vector<32x256xbf16>
    %c288_239 = arith.constant 288 : index
    %c0_240 = arith.constant 0 : index
    %538 = vector.load %arg34[%c288_239, %c0_240] : memref<800x256xbf16, #tpu.memory_space<vmem>>, vector<32x256xbf16>
    tpu.vector_store %arg34[%c288_239, %c0_240], %537 {strides = array<i32>} : memref<800x256xbf16, #tpu.memory_space<vmem>>, vector<32x256xbf16>,
    %539 = vector.extract_strided_slice %534 {offsets = [0, 128], sizes = [32, 256], strides = [1, 1]} : vector<32x512xbf16> to vector<32x256xbf16>
    %c448_241 = arith.constant 448 : index
    %c0_242 = arith.constant 0 : index
    %540 = vector.load %arg34[%c448_241, %c0_242] : memref<800x256xbf16, #tpu.memory_space<vmem>>, vector<32x256xbf16>
    tpu.vector_store %arg34[%c448_241, %c0_242], %539 {strides = array<i32>} : memref<800x256xbf16, #tpu.memory_space<vmem>>, vector<32x256xbf16>,
    %541 = vector.extract_strided_slice %534 {offsets = [0, 144], sizes = [32, 256], strides = [1, 1]} : vector<32x512xbf16> to vector<32x256xbf16>
    %c608_243 = arith.constant 608 : index
    %c0_244 = arith.constant 0 : index
    %542 = vector.load %arg34[%c608_243, %c0_244] : memref<800x256xbf16, #tpu.memory_space<vmem>>, vector<32x256xbf16>
    tpu.vector_store %arg34[%c608_243, %c0_244], %541 {strides = array<i32>} : memref<800x256xbf16, #tpu.memory_space<vmem>>, vector<32x256xbf16>,
    %543 = vector.extract_strided_slice %534 {offsets = [0, 160], sizes = [32, 256], strides = [1, 1]} : vector<32x512xbf16> to vector<32x256xbf16>
    %c768_245 = arith.constant 768 : index
    %c0_246 = arith.constant 0 : index
    %544 = vector.load %arg34[%c768_245, %c0_246] : memref<800x256xbf16, #tpu.memory_space<vmem>>, vector<32x256xbf16>
    tpu.vector_store %arg34[%c768_245, %c0_246], %543 {strides = array<i32>} : memref<800x256xbf16, #tpu.memory_space<vmem>>, vector<32x256xbf16>,
    %c1_247 = arith.constant 1 : index
    %c0_248 = arith.constant 0 : index
    %c0_249 = arith.constant 0 : index
    %545 = vector.load %arg20[%c1_247, %c0_248, %c0_249] : memref<2x32x800xbf16, #tpu.memory_space<vmem>>, vector<1x32x800xbf16>
    %546 = vector.shape_cast %545 : vector<1x32x800xbf16> to vector<32x800xbf16>
    %c0_250 = arith.constant 0 : index
    %c0_251 = arith.constant 0 : index
    %547 = vector.load %arg34[%c0_250, %c0_251] : memref<800x256xbf16, #tpu.memory_space<vmem>>, vector<800x256xbf16>
    %cst_252 = arith.constant dense<0.000000e+00> : vector<32x256xf32>
    %548 = tpu.matmul %546, %547, %cst_252 {dimension_numbers = #tpu.dot_dimension_numbers<[1], [0], [0], [1], [0, 0, 1, 1], [], []>} : vector<32x800xbf16>, vector<800x256xbf16>, vector<32x256xf32> -> vector<32x256xf32>
    %549 = vector.broadcast %472 : vector<32x1xf32> to vector<32x256xf32>
    %550 = arith.addf %548, %549 : vector<32x256xf32>
    %cst_253 = arith.constant 0.000000e+00 : f32
    %551 = vector.broadcast %cst_253 : f32 to vector<32x256xf32>
    %552 = arith.cmpf ogt, %550, %551 : vector<32x256xf32>
    %cst_254 = arith.constant 0.00999999977 : f32
    %553 = vector.broadcast %cst_254 : f32 to vector<32x256xf32>
    %554 = arith.mulf %553, %550 : vector<32x256xf32>
    %555 = arith.select %552, %550, %554 : vector<32x256xi1>, vector<32x256xf32>
    %c1_255 = arith.constant 1 : index
    %c0_256 = arith.constant 0 : index
    %c0_257 = arith.constant 0 : index
    %556 = vector.load %arg23[%c1_255, %c0_256, %c0_257] : memref<2x32x1xf32, #tpu.memory_space<vmem>>, vector<1x32x1xf32>
    %557 = vector.shape_cast %556 : vector<1x32x1xf32> to vector<32x1xf32>
    %558 = arith.truncf %555 : vector<32x256xf32> to vector<32x256xbf16>
    %559 = tpu.concatenate %77, %558, %77 in 1 : vector<32x128xbf16>, vector<32x256xbf16>, vector<32x128xbf16> -> vector<32x512xbf16>
    %560 = vector.extract_strided_slice %559 {offsets = [0, 126], sizes = [32, 256], strides = [1, 1]} : vector<32x512xbf16> to vector<32x256xbf16>
    %561 = vector.broadcast %28 : vector<1x256xbf16> to vector<32x256xbf16>
    %562 = arith.mulf %560, %561 : vector<32x256xbf16>
    %563 = tpu.concatenate %77, %562, %77 in 1 : vector<32x128xbf16>, vector<32x256xbf16>, vector<32x128xbf16> -> vector<32x512xbf16>
    %564 = vector.extract_strided_slice %563 {offsets = [0, 96], sizes = [32, 256], strides = [1, 1]} : vector<32x512xbf16> to vector<32x256xbf16>
    %c0_258 = arith.constant 0 : index
    %c0_259 = arith.constant 0 : index
    %565 = vector.load %arg34[%c0_258, %c0_259] : memref<800x256xbf16, #tpu.memory_space<vmem>>, vector<32x256xbf16>
    tpu.vector_store %arg34[%c0_258, %c0_259], %564 {strides = array<i32>} : memref<800x256xbf16, #tpu.memory_space<vmem>>, vector<32x256xbf16>,
    %566 = vector.extract_strided_slice %563 {offsets = [0, 112], sizes = [32, 256], strides = [1, 1]} : vector<32x512xbf16> to vector<32x256xbf16>
    %c160_260 = arith.constant 160 : index
    %c0_261 = arith.constant 0 : index
    %567 = vector.load %arg34[%c160_260, %c0_261] : memref<800x256xbf16, #tpu.memory_space<vmem>>, vector<32x256xbf16>
    tpu.vector_store %arg34[%c160_260, %c0_261], %566 {strides = array<i32>} : memref<800x256xbf16, #tpu.memory_space<vmem>>, vector<32x256xbf16>,
    %568 = vector.extract_strided_slice %563 {offsets = [0, 128], sizes = [32, 256], strides = [1, 1]} : vector<32x512xbf16> to vector<32x256xbf16>
    %c320_262 = arith.constant 320 : index
    %c0_263 = arith.constant 0 : index
    %569 = vector.load %arg34[%c320_262, %c0_263] : memref<800x256xbf16, #tpu.memory_space<vmem>>, vector<32x256xbf16>
    tpu.vector_store %arg34[%c320_262, %c0_263], %568 {strides = array<i32>} : memref<800x256xbf16, #tpu.memory_space<vmem>>, vector<32x256xbf16>,
    %570 = vector.extract_strided_slice %563 {offsets = [0, 144], sizes = [32, 256], strides = [1, 1]} : vector<32x512xbf16> to vector<32x256xbf16>
    %c480_264 = arith.constant 480 : index
    %c0_265 = arith.constant 0 : index
    %571 = vector.load %arg34[%c480_264, %c0_265] : memref<800x256xbf16, #tpu.memory_space<vmem>>, vector<32x256xbf16>
    tpu.vector_store %arg34[%c480_264, %c0_265], %570 {strides = array<i32>} : memref<800x256xbf16, #tpu.memory_space<vmem>>, vector<32x256xbf16>,
    %572 = vector.extract_strided_slice %563 {offsets = [0, 160], sizes = [32, 256], strides = [1, 1]} : vector<32x512xbf16> to vector<32x256xbf16>
    %c640_266 = arith.constant 640 : index
    %c0_267 = arith.constant 0 : index
    %573 = vector.load %arg34[%c640_266, %c0_267] : memref<800x256xbf16, #tpu.memory_space<vmem>>, vector<32x256xbf16>
    tpu.vector_store %arg34[%c640_266, %c0_267], %572 {strides = array<i32>} : memref<800x256xbf16, #tpu.memory_space<vmem>>, vector<32x256xbf16>,
    %574 = vector.extract_strided_slice %559 {offsets = [0, 127], sizes = [32, 256], strides = [1, 1]} : vector<32x512xbf16> to vector<32x256xbf16>
    %575 = vector.broadcast %40 : vector<1x256xbf16> to vector<32x256xbf16>
    %576 = arith.mulf %574, %575 : vector<32x256xbf16>
    %577 = tpu.concatenate %77, %576, %77 in 1 : vector<32x128xbf16>, vector<32x256xbf16>, vector<32x128xbf16> -> vector<32x512xbf16>
    %578 = vector.extract_strided_slice %577 {offsets = [0, 96], sizes = [32, 256], strides = [1, 1]} : vector<32x512xbf16> to vector<32x256xbf16>
    %c32_268 = arith.constant 32 : index
    %c0_269 = arith.constant 0 : index
    %579 = vector.load %arg34[%c32_268, %c0_269] : memref<800x256xbf16, #tpu.memory_space<vmem>>, vector<32x256xbf16>
    tpu.vector_store %arg34[%c32_268, %c0_269], %578 {strides = array<i32>} : memref<800x256xbf16, #tpu.memory_space<vmem>>, vector<32x256xbf16>,
    %580 = vector.extract_strided_slice %577 {offsets = [0, 112], sizes = [32, 256], strides = [1, 1]} : vector<32x512xbf16> to vector<32x256xbf16>
    %c192_270 = arith.constant 192 : index
    %c0_271 = arith.constant 0 : index
    %581 = vector.load %arg34[%c192_270, %c0_271] : memref<800x256xbf16, #tpu.memory_space<vmem>>, vector<32x256xbf16>
    tpu.vector_store %arg34[%c192_270, %c0_271], %580 {strides = array<i32>} : memref<800x256xbf16, #tpu.memory_space<vmem>>, vector<32x256xbf16>,
    %582 = vector.extract_strided_slice %577 {offsets = [0, 128], sizes = [32, 256], strides = [1, 1]} : vector<32x512xbf16> to vector<32x256xbf16>
    %c352_272 = arith.constant 352 : index
    %c0_273 = arith.constant 0 : index
    %583 = vector.load %arg34[%c352_272, %c0_273] : memref<800x256xbf16, #tpu.memory_space<vmem>>, vector<32x256xbf16>
    tpu.vector_store %arg34[%c352_272, %c0_273], %582 {strides = array<i32>} : memref<800x256xbf16, #tpu.memory_space<vmem>>, vector<32x256xbf16>,
    %584 = vector.extract_strided_slice %577 {offsets = [0, 144], sizes = [32, 256], strides = [1, 1]} : vector<32x512xbf16> to vector<32x256xbf16>
    %c512_274 = arith.constant 512 : index
    %c0_275 = arith.constant 0 : index
    %585 = vector.load %arg34[%c512_274, %c0_275] : memref<800x256xbf16, #tpu.memory_space<vmem>>, vector<32x256xbf16>
    tpu.vector_store %arg34[%c512_274, %c0_275], %584 {strides = array<i32>} : memref<800x256xbf16, #tpu.memory_space<vmem>>, vector<32x256xbf16>,
    %586 = vector.extract_strided_slice %577 {offsets = [0, 160], sizes = [32, 256], strides = [1, 1]} : vector<32x512xbf16> to vector<32x256xbf16>
    %c672_276 = arith.constant 672 : index
    %c0_277 = arith.constant 0 : index
    %587 = vector.load %arg34[%c672_276, %c0_277] : memref<800x256xbf16, #tpu.memory_space<vmem>>, vector<32x256xbf16>
    tpu.vector_store %arg34[%c672_276, %c0_277], %586 {strides = array<i32>} : memref<800x256xbf16, #tpu.memory_space<vmem>>, vector<32x256xbf16>,
    %588 = vector.extract_strided_slice %559 {offsets = [0, 128], sizes = [32, 256], strides = [1, 1]} : vector<32x512xbf16> to vector<32x256xbf16>
    %589 = vector.broadcast %52 : vector<1x256xbf16> to vector<32x256xbf16>
    %590 = arith.mulf %588, %589 : vector<32x256xbf16>
    %591 = tpu.concatenate %77, %590, %77 in 1 : vector<32x128xbf16>, vector<32x256xbf16>, vector<32x128xbf16> -> vector<32x512xbf16>
    %592 = vector.extract_strided_slice %591 {offsets = [0, 96], sizes = [32, 256], strides = [1, 1]} : vector<32x512xbf16> to vector<32x256xbf16>
    %c64_278 = arith.constant 64 : index
    %c0_279 = arith.constant 0 : index
    %593 = vector.load %arg34[%c64_278, %c0_279] : memref<800x256xbf16, #tpu.memory_space<vmem>>, vector<32x256xbf16>
    tpu.vector_store %arg34[%c64_278, %c0_279], %592 {strides = array<i32>} : memref<800x256xbf16, #tpu.memory_space<vmem>>, vector<32x256xbf16>,
    %594 = vector.extract_strided_slice %591 {offsets = [0, 112], sizes = [32, 256], strides = [1, 1]} : vector<32x512xbf16> to vector<32x256xbf16>
    %c224_280 = arith.constant 224 : index
    %c0_281 = arith.constant 0 : index
    %595 = vector.load %arg34[%c224_280, %c0_281] : memref<800x256xbf16, #tpu.memory_space<vmem>>, vector<32x256xbf16>
    tpu.vector_store %arg34[%c224_280, %c0_281], %594 {strides = array<i32>} : memref<800x256xbf16, #tpu.memory_space<vmem>>, vector<32x256xbf16>,
    %596 = vector.extract_strided_slice %591 {offsets = [0, 128], sizes = [32, 256], strides = [1, 1]} : vector<32x512xbf16> to vector<32x256xbf16>
    %c384_282 = arith.constant 384 : index
    %c0_283 = arith.constant 0 : index
    %597 = vector.load %arg34[%c384_282, %c0_283] : memref<800x256xbf16, #tpu.memory_space<vmem>>, vector<32x256xbf16>
    tpu.vector_store %arg34[%c384_282, %c0_283], %596 {strides = array<i32>} : memref<800x256xbf16, #tpu.memory_space<vmem>>, vector<32x256xbf16>,
    %598 = vector.extract_strided_slice %591 {offsets = [0, 144], sizes = [32, 256], strides = [1, 1]} : vector<32x512xbf16> to vector<32x256xbf16>
    %c544_284 = arith.constant 544 : index
    %c0_285 = arith.constant 0 : index
    %599 = vector.load %arg34[%c544_284, %c0_285] : memref<800x256xbf16, #tpu.memory_space<vmem>>, vector<32x256xbf16>
    tpu.vector_store %arg34[%c544_284, %c0_285], %598 {strides = array<i32>} : memref<800x256xbf16, #tpu.memory_space<vmem>>, vector<32x256xbf16>,
    %600 = vector.extract_strided_slice %591 {offsets = [0, 160], sizes = [32, 256], strides = [1, 1]} : vector<32x512xbf16> to vector<32x256xbf16>
    %c704_286 = arith.constant 704 : index
    %c0_287 = arith.constant 0 : index
    %601 = vector.load %arg34[%c704_286, %c0_287] : memref<800x256xbf16, #tpu.memory_space<vmem>>, vector<32x256xbf16>
    tpu.vector_store %arg34[%c704_286, %c0_287], %600 {strides = array<i32>} : memref<800x256xbf16, #tpu.memory_space<vmem>>, vector<32x256xbf16>,
    %602 = vector.extract_strided_slice %559 {offsets = [0, 129], sizes = [32, 256], strides = [1, 1]} : vector<32x512xbf16> to vector<32x256xbf16>
    %603 = vector.broadcast %64 : vector<1x256xbf16> to vector<32x256xbf16>
    %604 = arith.mulf %602, %603 : vector<32x256xbf16>
    %605 = tpu.concatenate %77, %604, %77 in 1 : vector<32x128xbf16>, vector<32x256xbf16>, vector<32x128xbf16> -> vector<32x512xbf16>
    %606 = vector.extract_strided_slice %605 {offsets = [0, 96], sizes = [32, 256], strides = [1, 1]} : vector<32x512xbf16> to vector<32x256xbf16>
    %c96_288 = arith.constant 96 : index
    %c0_289 = arith.constant 0 : index
    %607 = vector.load %arg34[%c96_288, %c0_289] : memref<800x256xbf16, #tpu.memory_space<vmem>>, vector<32x256xbf16>
    tpu.vector_store %arg34[%c96_288, %c0_289], %606 {strides = array<i32>} : memref<800x256xbf16, #tpu.memory_space<vmem>>, vector<32x256xbf16>,
    %608 = vector.extract_strided_slice %605 {offsets = [0, 112], sizes = [32, 256], strides = [1, 1]} : vector<32x512xbf16> to vector<32x256xbf16>
    %c256_290 = arith.constant 256 : index
    %c0_291 = arith.constant 0 : index
    %609 = vector.load %arg34[%c256_290, %c0_291] : memref<800x256xbf16, #tpu.memory_space<vmem>>, vector<32x256xbf16>
    tpu.vector_store %arg34[%c256_290, %c0_291], %608 {strides = array<i32>} : memref<800x256xbf16, #tpu.memory_space<vmem>>, vector<32x256xbf16>,
    %610 = vector.extract_strided_slice %605 {offsets = [0, 128], sizes = [32, 256], strides = [1, 1]} : vector<32x512xbf16> to vector<32x256xbf16>
    %c416_292 = arith.constant 416 : index
    %c0_293 = arith.constant 0 : index
    %611 = vector.load %arg34[%c416_292, %c0_293] : memref<800x256xbf16, #tpu.memory_space<vmem>>, vector<32x256xbf16>
    tpu.vector_store %arg34[%c416_292, %c0_293], %610 {strides = array<i32>} : memref<800x256xbf16, #tpu.memory_space<vmem>>, vector<32x256xbf16>,
    %612 = vector.extract_strided_slice %605 {offsets = [0, 144], sizes = [32, 256], strides = [1, 1]} : vector<32x512xbf16> to vector<32x256xbf16>
    %c576_294 = arith.constant 576 : index
    %c0_295 = arith.constant 0 : index
    %613 = vector.load %arg34[%c576_294, %c0_295] : memref<800x256xbf16, #tpu.memory_space<vmem>>, vector<32x256xbf16>
    tpu.vector_store %arg34[%c576_294, %c0_295], %612 {strides = array<i32>} : memref<800x256xbf16, #tpu.memory_space<vmem>>, vector<32x256xbf16>,
    %614 = vector.extract_strided_slice %605 {offsets = [0, 160], sizes = [32, 256], strides = [1, 1]} : vector<32x512xbf16> to vector<32x256xbf16>
    %c736_296 = arith.constant 736 : index
    %c0_297 = arith.constant 0 : index
    %615 = vector.load %arg34[%c736_296, %c0_297] : memref<800x256xbf16, #tpu.memory_space<vmem>>, vector<32x256xbf16>
    tpu.vector_store %arg34[%c736_296, %c0_297], %614 {strides = array<i32>} : memref<800x256xbf16, #tpu.memory_space<vmem>>, vector<32x256xbf16>,
    %616 = vector.extract_strided_slice %559 {offsets = [0, 130], sizes = [32, 256], strides = [1, 1]} : vector<32x512xbf16> to vector<32x256xbf16>
    %617 = vector.broadcast %76 : vector<1x256xbf16> to vector<32x256xbf16>
    %618 = arith.mulf %616, %617 : vector<32x256xbf16>
    %619 = tpu.concatenate %77, %618, %77 in 1 : vector<32x128xbf16>, vector<32x256xbf16>, vector<32x128xbf16> -> vector<32x512xbf16>
    %620 = vector.extract_strided_slice %619 {offsets = [0, 96], sizes = [32, 256], strides = [1, 1]} : vector<32x512xbf16> to vector<32x256xbf16>
    %c128_298 = arith.constant 128 : index
    %c0_299 = arith.constant 0 : index
    %621 = vector.load %arg34[%c128_298, %c0_299] : memref<800x256xbf16, #tpu.memory_space<vmem>>, vector<32x256xbf16>
    tpu.vector_store %arg34[%c128_298, %c0_299], %620 {strides = array<i32>} : memref<800x256xbf16, #tpu.memory_space<vmem>>, vector<32x256xbf16>,
    %622 = vector.extract_strided_slice %619 {offsets = [0, 112], sizes = [32, 256], strides = [1, 1]} : vector<32x512xbf16> to vector<32x256xbf16>
    %c288_300 = arith.constant 288 : index
    %c0_301 = arith.constant 0 : index
    %623 = vector.load %arg34[%c288_300, %c0_301] : memref<800x256xbf16, #tpu.memory_space<vmem>>, vector<32x256xbf16>
    tpu.vector_store %arg34[%c288_300, %c0_301], %622 {strides = array<i32>} : memref<800x256xbf16, #tpu.memory_space<vmem>>, vector<32x256xbf16>,
    %624 = vector.extract_strided_slice %619 {offsets = [0, 128], sizes = [32, 256], strides = [1, 1]} : vector<32x512xbf16> to vector<32x256xbf16>
    %c448_302 = arith.constant 448 : index
    %c0_303 = arith.constant 0 : index
    %625 = vector.load %arg34[%c448_302, %c0_303] : memref<800x256xbf16, #tpu.memory_space<vmem>>, vector<32x256xbf16>
    tpu.vector_store %arg34[%c448_302, %c0_303], %624 {strides = array<i32>} : memref<800x256xbf16, #tpu.memory_space<vmem>>, vector<32x256xbf16>,
    %626 = vector.extract_strided_slice %619 {offsets = [0, 144], sizes = [32, 256], strides = [1, 1]} : vector<32x512xbf16> to vector<32x256xbf16>
    %c608_304 = arith.constant 608 : index
    %c0_305 = arith.constant 0 : index
    %627 = vector.load %arg34[%c608_304, %c0_305] : memref<800x256xbf16, #tpu.memory_space<vmem>>, vector<32x256xbf16>
    tpu.vector_store %arg34[%c608_304, %c0_305], %626 {strides = array<i32>} : memref<800x256xbf16, #tpu.memory_space<vmem>>, vector<32x256xbf16>,
    %628 = vector.extract_strided_slice %619 {offsets = [0, 160], sizes = [32, 256], strides = [1, 1]} : vector<32x512xbf16> to vector<32x256xbf16>
    %c768_306 = arith.constant 768 : index
    %c0_307 = arith.constant 0 : index
    %629 = vector.load %arg34[%c768_306, %c0_307] : memref<800x256xbf16, #tpu.memory_space<vmem>>, vector<32x256xbf16>
    tpu.vector_store %arg34[%c768_306, %c0_307], %628 {strides = array<i32>} : memref<800x256xbf16, #tpu.memory_space<vmem>>, vector<32x256xbf16>,
    %c1_308 = arith.constant 1 : index
    %c0_309 = arith.constant 0 : index
    %c0_310 = arith.constant 0 : index
    %630 = vector.load %arg22[%c1_308, %c0_309, %c0_310] : memref<2x32x800xbf16, #tpu.memory_space<vmem>>, vector<1x32x800xbf16>
    %631 = vector.shape_cast %630 : vector<1x32x800xbf16> to vector<32x800xbf16>
    %c0_311 = arith.constant 0 : index
    %c0_312 = arith.constant 0 : index
    %632 = vector.load %arg34[%c0_311, %c0_312] : memref<800x256xbf16, #tpu.memory_space<vmem>>, vector<800x256xbf16>
    %cst_313 = arith.constant dense<0.000000e+00> : vector<32x256xf32>
    %633 = tpu.matmul %631, %632, %cst_313 {dimension_numbers = #tpu.dot_dimension_numbers<[1], [0], [0], [1], [0, 0, 1, 1], [], []>} : vector<32x800xbf16>, vector<800x256xbf16>, vector<32x256xf32> -> vector<32x256xf32>
    %634 = vector.broadcast %557 : vector<32x1xf32> to vector<32x256xf32>
    %635 = arith.addf %633, %634 : vector<32x256xf32>
    %cst_314 = arith.constant 0.000000e+00 : f32
    %636 = vector.broadcast %cst_314 : f32 to vector<32x256xf32>
    %637 = arith.cmpf ogt, %635, %636 : vector<32x256xf32>
    %cst_315 = arith.constant 0.00999999977 : f32
    %638 = vector.broadcast %cst_315 : f32 to vector<32x256xf32>
    %639 = arith.mulf %638, %635 : vector<32x256xf32>
    %640 = arith.select %637, %635, %639 : vector<32x256xi1>, vector<32x256xf32>
    %cst_316 = arith.constant dense<0.000000e+00> : vector<32xf32>
    %641 = vector.multi_reduction <add>, %640, %cst_316 [1] : vector<32x256xf32> to vector<32xf32>
    %642 = vector.shape_cast %641 : vector<32xf32> to vector<32x1xf32>
    %cst_317 = arith.constant 2.560000e+02 : f32
    %643 = vector.broadcast %cst_317 : f32 to vector<32x1xf32>
    %644 = arith.divf %642, %643 : vector<32x1xf32>
    %c1_318 = arith.constant 1 : index
    %c0_319 = arith.constant 0 : index
    %c0_320 = arith.constant 0 : index
    %645 = vector.load %arg24[%c1_318, %c0_319, %c0_320] : memref<2x32x2xf32, #tpu.memory_space<vmem>>, vector<1x32x2xf32>
    %646 = vector.shape_cast %645 : vector<1x32x2xf32> to vector<32x2xf32>
    %647 = vector.broadcast %644 : vector<32x1xf32> to vector<32x2xf32>
    %648 = arith.mulf %646, %647 : vector<32x2xf32>
    %cst_321 = arith.constant dense<0.000000e+00> : vector<2xf32>
    %649 = vector.multi_reduction <add>, %648, %cst_321 [0] : vector<32x2xf32> to vector<2xf32>
    %650 = vector.shape_cast %649 : vector<2xf32> to vector<1x2xf32>
    %c1_322 = arith.constant 1 : index
    %c0_323 = arith.constant 0 : index
    %c0_324 = arith.constant 0 : index
    %651 = vector.load %arg25[%c1_322, %c0_323, %c0_324] : memref<2x1x2xf32, #tpu.memory_space<vmem>>, vector<1x1x2xf32>
    %652 = vector.shape_cast %651 : vector<1x1x2xf32> to vector<1x2xf32>
    %653 = arith.addf %650, %652 : vector<1x2xf32>
    %cst_325 = arith.constant 0.000000e+00 : f32
    %654 = vector.broadcast %cst_325 : f32 to vector<1x2xf32>
    %655 = arith.maximumf %653, %654 : vector<1x2xf32>
    %c1_326 = arith.constant 1 : index
    %c0_327 = arith.constant 0 : index
    %c0_328 = arith.constant 0 : index
    %656 = vector.load %arg26[%c1_326, %c0_327, %c0_328] : memref<2x32x2xf32, #tpu.memory_space<vmem>>, vector<1x32x2xf32>
    %657 = vector.shape_cast %656 : vector<1x32x2xf32> to vector<32x2xf32>
    %658 = vector.broadcast %655 : vector<1x2xf32> to vector<32x2xf32>
    %659 = arith.mulf %657, %658 : vector<32x2xf32>
    %cst_329 = arith.constant dense<0.000000e+00> : vector<32xf32>
    %660 = vector.multi_reduction <add>, %659, %cst_329 [1] : vector<32x2xf32> to vector<32xf32>
    %661 = vector.shape_cast %660 : vector<32xf32> to vector<32x1xf32>
    %c1_330 = arith.constant 1 : index
    %c0_331 = arith.constant 0 : index
    %c0_332 = arith.constant 0 : index
    %662 = vector.load %arg27[%c1_330, %c0_331, %c0_332] : memref<2x32x1xf32, #tpu.memory_space<vmem>>, vector<1x32x1xf32>
    %663 = vector.shape_cast %662 : vector<1x32x1xf32> to vector<32x1xf32>
    %664 = arith.addf %661, %663 : vector<32x1xf32>
    %665 = arith.negf %664 : vector<32x1xf32>
    %666 = math.exp %665 : vector<32x1xf32>
    %cst_333 = arith.constant 1.000000e+00 : f32
    %667 = vector.broadcast %cst_333 : f32 to vector<32x1xf32>
    %668 = arith.addf %667, %666 : vector<32x1xf32>
    %669 = arith.divf %667, %668 : vector<32x1xf32>
    %670 = vector.broadcast %669 : vector<32x1xf32> to vector<32x256xf32>
    %671 = arith.mulf %640, %670 : vector<32x256xf32>
    %672 = arith.addf %671, %470 : vector<32x256xf32>
    %cst_334 = arith.constant 0.000000e+00 : f32
    %673 = vector.broadcast %cst_334 : f32 to vector<32x256xf32>
    %674 = arith.cmpf ogt, %672, %673 : vector<32x256xf32>
    %cst_335 = arith.constant 0.00999999977 : f32
    %675 = vector.broadcast %cst_335 : f32 to vector<32x256xf32>
    %676 = arith.mulf %675, %672 : vector<32x256xf32>
    %677 = arith.select %674, %672, %676 : vector<32x256xi1>, vector<32x256xf32>
    %c0_336 = arith.constant 0 : index
    %c0_337 = arith.constant 0 : index
    %678 = vector.load %arg28[%c0_336, %c0_337] : memref<32x32xf32, #tpu.memory_space<vmem>>, vector<32x32xf32>
    %cst_338 = arith.constant dense<0.000000e+00> : vector<32x256xf32>
    %679 = tpu.matmul %678, %677, %cst_338 {dimension_numbers = #tpu.dot_dimension_numbers<[1], [0], [0], [1], [0, 0, 1, 1], [], []>} : vector<32x32xf32>, vector<32x256xf32>, vector<32x256xf32> -> vector<32x256xf32>
    %c0_339 = arith.constant 0 : index
    %c0_340 = arith.constant 0 : index
    %680 = vector.load %arg29[%c0_339, %c0_340] : memref<32x1xf32, #tpu.memory_space<vmem>>, vector<32x1xf32>
    %681 = vector.broadcast %680 : vector<32x1xf32> to vector<32x256xf32>
    %682 = arith.addf %679, %681 : vector<32x256xf32>
    %c0_341 = arith.constant 0 : index
    %c0_342 = arith.constant 0 : index
    %683 = vector.load %arg30[%c0_341, %c0_342] : memref<32x32xf32, #tpu.memory_space<vmem>>, vector<32x32xf32>
    %cst_343 = arith.constant dense<0.000000e+00> : vector<32x256xf32>
    %684 = tpu.matmul %683, %682, %cst_343 {dimension_numbers = #tpu.dot_dimension_numbers<[1], [0], [0], [1], [0, 0, 1, 1], [], []>} : vector<32x32xf32>, vector<32x256xf32>, vector<32x256xf32> -> vector<32x256xf32>
    %c0_344 = arith.constant 0 : index
    %c0_345 = arith.constant 0 : index
    %685 = vector.load %arg31[%c0_344, %c0_345] : memref<32x1xf32, #tpu.memory_space<vmem>>, vector<32x1xf32>
    %686 = vector.broadcast %685 : vector<32x1xf32> to vector<32x256xf32>
    %687 = arith.addf %684, %686 : vector<32x256xf32>
    %cst_346 = arith.constant 0.000000e+00 : f32
    %688 = vector.broadcast %cst_346 : f32 to vector<32x256xf32>
    %689 = arith.cmpf ogt, %687, %688 : vector<32x256xf32>
    %cst_347 = arith.constant 0.00999999977 : f32
    %690 = vector.broadcast %cst_347 : f32 to vector<32x256xf32>
    %691 = arith.mulf %690, %687 : vector<32x256xf32>
    %692 = arith.select %689, %687, %691 : vector<32x256xi1>, vector<32x256xf32>
    %cst_348 = arith.constant dense<0.000000e+00> : vector<32xf32>
    %693 = vector.multi_reduction <add>, %692, %cst_348 [1] : vector<32x256xf32> to vector<32xf32>
    %694 = vector.shape_cast %693 : vector<32xf32> to vector<32x1xf32>
    %cst_349 = arith.constant 2.560000e+02 : f32
    %695 = vector.broadcast %cst_349 : f32 to vector<32x1xf32>
    %696 = arith.divf %694, %695 : vector<32x1xf32>
    %c0_350 = arith.constant 0 : index
    %c0_351 = arith.constant 0 : index
    %697 = vector.load %arg32[%c0_350, %c0_351] : memref<32x1xf32, #tpu.memory_space<vmem>>, vector<32x1xf32>
    %698 = arith.mulf %697, %696 : vector<32x1xf32>
    %699 = vector.shape_cast %698 : vector<32x1xf32> to vector<1x32x1xf32>
    %cst_352 = arith.constant dense<0.000000e+00> : vector<1xf32>
    %700 = vector.multi_reduction <add>, %699, %cst_352 [1, 2] : vector<1x32x1xf32> to vector<1xf32>
    %701 = vector.shape_cast %700 : vector<1xf32> to vector<1x1x1xf32>
    %702 = vector.extract %701[0, 0, 0] : f32 from vector<1x1x1xf32>
    %c0_353 = arith.constant 0 : index
    %703 = memref.load %arg13[%c0_353] : memref<1xf32, #tpu.memory_space<smem>>
    %704 = arith.addf %702, %703 : f32
    %705 = vector.broadcast %704 : f32 to vector<1x128xf32>
    %c0_354 = arith.constant 0 : index
    %c0_355 = arith.constant 0 : index
    %c0_356 = arith.constant 0 : index
    %706 = vector.load %arg33[%c0_354, %c0_355, %c0_356] : memref<1x1x128xf32, #tpu.memory_space<vmem>>, vector<1x1x128xf32>
    %707 = vector.shape_cast %706 : vector<1x1x128xf32> to vector<1x128xf32>
    %708 = vector.shape_cast %705 : vector<1x128xf32> to vector<1x1x128xf32>
    tpu.vector_store %arg33[%c0_354, %c0_355, %c0_356], %708 {strides = array<i32>} : memref<1x1x128xf32, #tpu.memory_space<vmem>>, vector<1x1x128xf32>,
    return
  }
  func.func @transform_0(%arg0: i32) -> (i32, i32, i32) {
    %c0_i32 = arith.constant 0 : i32
    %c0_i32_0 = arith.constant 0 : i32
    %c0_i32_1 = arith.constant 0 : i32
    return %arg0, %c0_i32, %c0_i32_0 : i32, i32, i32
  }
  func.func @transform_1(%arg0: i32) -> (i32, i32, i32) {
    %c0_i32 = arith.constant 0 : i32
    %c0_i32_0 = arith.constant 0 : i32
    %c0_i32_1 = arith.constant 0 : i32
    return %arg0, %c0_i32, %c0_i32_0 : i32, i32, i32
  }
  func.func @transform_2(%arg0: i32) -> (i32, i32, i32) {
    %c0_i32 = arith.constant 0 : i32
    %c0_i32_0 = arith.constant 0 : i32
    %c0_i32_1 = arith.constant 0 : i32
    return %arg0, %c0_i32, %c0_i32_0 : i32, i32, i32
  }
  func.func @transform_3(%arg0: i32) -> (i32, i32, i32) {
    %c0_i32 = arith.constant 0 : i32
    %c0_i32_0 = arith.constant 0 : i32
    %c0_i32_1 = arith.constant 0 : i32
    return %arg0, %c0_i32, %c0_i32_0 : i32, i32, i32
  }
  func.func @transform_4(%arg0: i32) -> (i32, i32, i32) {
    %c0_i32 = arith.constant 0 : i32
    %c0_i32_0 = arith.constant 0 : i32
    %c0_i32_1 = arith.constant 0 : i32
    return %arg0, %c0_i32, %c0_i32_0 : i32, i32, i32
  }
  func.func @transform_5(%arg0: i32) -> (i32, i32, i32) {
    %c0_i32 = arith.constant 0 : i32
    %c0_i32_0 = arith.constant 0 : i32
    %c0_i32_1 = arith.constant 0 : i32
    return %arg0, %c0_i32, %c0_i32_0 : i32, i32, i32
  }
  func.func @transform_6(%arg0: i32) -> (i32, i32, i32) {
    %c0_i32 = arith.constant 0 : i32
    %c0_i32_0 = arith.constant 0 : i32
    %c0_i32_1 = arith.constant 0 : i32
    return %arg0, %c0_i32, %c0_i32_0 : i32, i32, i32
  }
  func.func @transform_7(%arg0: i32) -> (i32, i32, i32) {
    %c0_i32 = arith.constant 0 : i32
    %c0_i32_0 = arith.constant 0 : i32
    %c0_i32_1 = arith.constant 0 : i32
    return %arg0, %c0_i32, %c0_i32_0 : i32, i32, i32
  }
  func.func @transform_8(%arg0: i32) -> (i32, i32, i32) {
    %c0_i32 = arith.constant 0 : i32
    %c0_i32_0 = arith.constant 0 : i32
    %c0_i32_1 = arith.constant 0 : i32
    return %arg0, %c0_i32, %c0_i32_0 : i32, i32, i32
  }
  func.func @transform_9(%arg0: i32) -> i32 {
    %c0_i32 = arith.constant 0 : i32
    %c0_i32_0 = arith.constant 0 : i32
    return %c0_i32 : i32
  }
  func.func @transform_10(%arg0: i32) -> i32 {
    %c0_i32 = arith.constant 0 : i32
    %c0_i32_0 = arith.constant 0 : i32
    return %c0_i32 : i32
  }
  func.func @transform_11(%arg0: i32) -> i32 {
    %c0_i32 = arith.constant 0 : i32
    %c0_i32_0 = arith.constant 0 : i32
    return %c0_i32 : i32
  }
  func.func @transform_12(%arg0: i32) -> i32 {
    %c0_i32 = arith.constant 0 : i32
    %c0_i32_0 = arith.constant 0 : i32
    return %c0_i32 : i32
  }
  func.func @transform_13(%arg0: i32) -> (i32, i32) {
    %c0_i32 = arith.constant 0 : i32
    %c0_i32_0 = arith.constant 0 : i32
    %c0_i32_1 = arith.constant 0 : i32
    return %c0_i32, %c0_i32_0 : i32, i32
  }
  func.func @transform_14(%arg0: i32) -> (i32, i32) {
    %c0_i32 = arith.constant 0 : i32
    %c0_i32_0 = arith.constant 0 : i32
    %c0_i32_1 = arith.constant 0 : i32
    return %c0_i32, %c0_i32_0 : i32, i32
  }
  func.func @transform_15(%arg0: i32) -> (i32, i32) {
    %c0_i32 = arith.constant 0 : i32
    %c0_i32_0 = arith.constant 0 : i32
    %c0_i32_1 = arith.constant 0 : i32
    return %c0_i32, %c0_i32_0 : i32, i32
  }
  func.func @transform_16(%arg0: i32) -> (i32, i32) {
    %c0_i32 = arith.constant 0 : i32
    %c0_i32_0 = arith.constant 0 : i32
    %c0_i32_1 = arith.constant 0 : i32
    return %c0_i32, %c0_i32_0 : i32, i32
  }
  func.func @transform_17(%arg0: i32) -> (i32, i32) {
    %c0_i32 = arith.constant 0 : i32
    %c0_i32_0 = arith.constant 0 : i32
    %c0_i32_1 = arith.constant 0 : i32
    return %c0_i32, %c0_i32_0 : i32, i32
  }
  func.func @transform_18(%arg0: i32) -> (i32, i32) {
    %c0_i32 = arith.constant 0 : i32
    %c0_i32_0 = arith.constant 0 : i32
    %c0_i32_1 = arith.constant 0 : i32
    return %c0_i32, %c0_i32_0 : i32, i32
  }
  func.func @transform_19(%arg0: i32) -> (i32, i32, i32) {
    %c0_i32 = arith.constant 0 : i32
    %c0_i32_0 = arith.constant 0 : i32
    %c0_i32_1 = arith.constant 0 : i32
    %c0_i32_2 = arith.constant 0 : i32
    return %c0_i32, %c0_i32_0, %c0_i32_1 : i32, i32, i32
  }
  func.func @transform_20(%arg0: i32) -> (i32, i32, i32) {
    %c0_i32 = arith.constant 0 : i32
    %c0_i32_0 = arith.constant 0 : i32
    %c0_i32_1 = arith.constant 0 : i32
    %c0_i32_2 = arith.constant 0 : i32
    return %c0_i32, %c0_i32_0, %c0_i32_1 : i32, i32, i32
  }
  func.func @transform_21(%arg0: i32) -> (i32, i32, i32) {
    %c0_i32 = arith.constant 0 : i32
    %c0_i32_0 = arith.constant 0 : i32
    %c0_i32_1 = arith.constant 0 : i32
    %c0_i32_2 = arith.constant 0 : i32
    return %c0_i32, %c0_i32_0, %c0_i32_1 : i32, i32, i32
  }
  func.func @transform_22(%arg0: i32) -> (i32, i32, i32) {
    %c0_i32 = arith.constant 0 : i32
    %c0_i32_0 = arith.constant 0 : i32
    %c0_i32_1 = arith.constant 0 : i32
    %c0_i32_2 = arith.constant 0 : i32
    return %c0_i32, %c0_i32_0, %c0_i32_1 : i32, i32, i32
  }
  func.func @transform_23(%arg0: i32) -> (i32, i32, i32) {
    %c0_i32 = arith.constant 0 : i32
    %c0_i32_0 = arith.constant 0 : i32
    %c0_i32_1 = arith.constant 0 : i32
    %c0_i32_2 = arith.constant 0 : i32
    return %c0_i32, %c0_i32_0, %c0_i32_1 : i32, i32, i32
  }
  func.func @transform_24(%arg0: i32) -> (i32, i32, i32) {
    %c0_i32 = arith.constant 0 : i32
    %c0_i32_0 = arith.constant 0 : i32
    %c0_i32_1 = arith.constant 0 : i32
    %c0_i32_2 = arith.constant 0 : i32
    return %c0_i32, %c0_i32_0, %c0_i32_1 : i32, i32, i32
  }
  func.func @transform_25(%arg0: i32) -> (i32, i32, i32) {
    %c0_i32 = arith.constant 0 : i32
    %c0_i32_0 = arith.constant 0 : i32
    %c0_i32_1 = arith.constant 0 : i32
    %c0_i32_2 = arith.constant 0 : i32
    return %c0_i32, %c0_i32_0, %c0_i32_1 : i32, i32, i32
  }
  func.func @transform_26(%arg0: i32) -> (i32, i32, i32) {
    %c0_i32 = arith.constant 0 : i32
    %c0_i32_0 = arith.constant 0 : i32
    %c0_i32_1 = arith.constant 0 : i32
    %c0_i32_2 = arith.constant 0 : i32
    return %c0_i32, %c0_i32_0, %c0_i32_1 : i32, i32, i32
  }
  func.func @transform_27(%arg0: i32) -> (i32, i32) {
    %c0_i32 = arith.constant 0 : i32
    %c0_i32_0 = arith.constant 0 : i32
    %c0_i32_1 = arith.constant 0 : i32
    return %c0_i32, %c0_i32_0 : i32, i32
  }
  func.func @transform_28(%arg0: i32) -> (i32, i32) {
    %c0_i32 = arith.constant 0 : i32
    %c0_i32_0 = arith.constant 0 : i32
    %c0_i32_1 = arith.constant 0 : i32
    return %c0_i32, %c0_i32_0 : i32, i32
  }
  func.func @transform_29(%arg0: i32) -> (i32, i32) {
    %c0_i32 = arith.constant 0 : i32
    %c0_i32_0 = arith.constant 0 : i32
    %c0_i32_1 = arith.constant 0 : i32
    return %c0_i32, %c0_i32_0 : i32, i32
  }
  func.func @transform_30(%arg0: i32) -> (i32, i32) {
    %c0_i32 = arith.constant 0 : i32
    %c0_i32_0 = arith.constant 0 : i32
    %c0_i32_1 = arith.constant 0 : i32
    return %c0_i32, %c0_i32_0 : i32, i32
  }
  func.func @transform_31(%arg0: i32) -> (i32, i32) {
    %c0_i32 = arith.constant 0 : i32
    %c0_i32_0 = arith.constant 0 : i32
    %c0_i32_1 = arith.constant 0 : i32
    return %c0_i32, %c0_i32_0 : i32, i32
  }
  func.func @transform_32(%arg0: i32) -> (i32, i32, i32) {
    %c0_i32 = arith.constant 0 : i32
    %c0_i32_0 = arith.constant 0 : i32
    %c0_i32_1 = arith.constant 0 : i32
    return %arg0, %c0_i32, %c0_i32_0 : i32, i32, i32
  }
}

</mosaic_0001>

<llo_original>
// kernel: _lambda_.1
$region0: #{_lambda_.1}
  #allocation0 [shape = 'u32[]', space=smem, size = 0x4, offset = 0x4, fixed_abs, tag = 'smem constant byte address 0x4 - core index']
  #allocation1 [shape = 'u32[144,128]{1,0:T(1,128)}', space=vmem, size = 0x12000, scoped, tag = 'internal scratch']
  #allocation2 [shape = 'bf16[800,256]{1,0:T(16,128)(2,1)}', space=vmem, size = 0x64000, scoped, tag = 'scratch operand']
  #allocation3 [shape = 'f32[1]{0:T(128)S(6)}', space=smem, size = 0x200, scoped, tag = 'scoped memory for _lambda_.1']
  #allocation4 [shape = 'f32[1]{0:T(128)S(6)}', space=smem, size = 0x200, scoped, tag = 'scoped memory for _lambda_.1']
  %s0 = inlined_call_operand.smem [shape: u32[33], index: -1, kind: input, shape index: {}]
  %s1 = sld [smem:[%s0]]
  %s2 = scalar_lea.smem %s0, 1
  %s3 = sld [smem:[%s2]]
  %s4 = scalar_lea.smem %s0, 2
  %s5 = sld [smem:[%s4]]
  %s6 = scalar_lea.smem %s0, 3
  %s7 = sld [smem:[%s6]]
  %s8 = scalar_lea.smem %s0, 4
  %s9 = sld [smem:[%s8]]
  %s10 = scalar_lea.smem %s0, 5
  %s11 = sld [smem:[%s10]]
  %s12 = scalar_lea.smem %s0, 6
  %s13 = sld [smem:[%s12]]
  %s14 = scalar_lea.smem %s0, 7
  %s15 = sld [smem:[%s14]]
  %s16 = scalar_lea.smem %s0, 8
  %s17 = sld [smem:[%s16]]
  %s18 = scalar_lea.smem %s0, 9
  %s19 = sld [smem:[%s18]]
  %s20 = scalar_lea.smem %s0, 10
  %s21 = sld [smem:[%s20]]
  %s22 = scalar_lea.smem %s0, 11
  %s23 = sld [smem:[%s22]]
  %s24 = scalar_lea.smem %s0, 12
  %s25 = sld [smem:[%s24]]
  %s26 = scalar_lea.smem %s0, 13
  %s27 = sld [smem:[%s26]]
  %s28 = scalar_lea.smem %s0, 14
  %s29 = sld [smem:[%s28]]
  %s30 = scalar_lea.smem %s0, 15
  %s31 = sld [smem:[%s30]]
  %s32 = scalar_lea.smem %s0, 16
  %s33 = sld [smem:[%s32]]
  %s34 = scalar_lea.smem %s0, 17
  %s35 = sld [smem:[%s34]]
  %s36 = scalar_lea.smem %s0, 18
  %s37 = sld [smem:[%s36]]
  %s38 = scalar_lea.smem %s0, 19
  %s39 = sld [smem:[%s38]]
  %s40 = scalar_lea.smem %s0, 20
  %s41 = sld [smem:[%s40]]
  %s42 = scalar_lea.smem %s0, 21
  %s43 = sld [smem:[%s42]]
  %s44 = scalar_lea.smem %s0, 22
  %s45 = sld [smem:[%s44]]
  %s46 = scalar_lea.smem %s0, 23
  %s47 = sld [smem:[%s46]]
  %s48 = scalar_lea.smem %s0, 24
  %s49 = sld [smem:[%s48]]
  %s50 = scalar_lea.smem %s0, 25
  %s51 = sld [smem:[%s50]]
  %s52 = scalar_lea.smem %s0, 26
  %s53 = sld [smem:[%s52]]
  %s54 = scalar_lea.smem %s0, 27
  %s55 = sld [smem:[%s54]]
  %s56 = scalar_lea.smem %s0, 28
  %s57 = sld [smem:[%s56]]
  %s58 = scalar_lea.smem %s0, 29
  %s59 = sld [smem:[%s58]]
  %s60 = scalar_lea.smem %s0, 30
  %s61 = sld [smem:[%s60]]
  %s62 = scalar_lea.smem %s0, 31
  %s63 = sld [smem:[%s62]]
  %s64 = scalar_lea.smem %s0, 32
  %s65 = sld [smem:[%s64]]
  %s66 = sld [smem:[#allocation0]]
  $region169: #{_lambda_.1} parent=0
    _
  %s68 = ssub.s32 1, %s66
  %s69 = scalar_select 0, %s68, %s66
  %70 = sst [smem:[#allocation3]] %s23
  %71 = sst [smem:[#allocation4]] %s25
  $region1: #{_lambda_.1} parent=0
    #allocation5 [shape = 'u8[512]{0}', space=smem, size = 0x200, scoped, tag = 'input window, operand 9, single buffered']
    #allocation6 [shape = 's32[2]{0}', space=sflag, size = 0x8, scoped, tag = 'scoped memory for _lambda_.1']
    #allocation7 [shape = 'u8[512]{0}', space=smem, size = 0x200, scoped, tag = 'input window, operand 10, single buffered']
    #allocation8 [shape = 's32[1]{0}', space=sflag, size = 0x4, scoped, tag = 'scoped memory for _lambda_.1']
    %72 = vsyncpa [#allocation6], 0
    %73 = vsyncpa [#allocation8], 0
    loop: start=0, step=1, limit=4
    $region2: #{_lambda_.1} parent=1 // loop_pre_header
      _
    $region3: #{_lambda_.1} parent=1 // loop_header
      %s75 = sphi 0, %s79
      %p76 = scmp.ge.s32.totalorder %s75, 4
      %s85 = sphi 0, %s87
      %s88 = sphi 0, %s85
      %s89 = sphi 0, %s88
      %s105 = sphi 0, %s89
      %s111 = sphi 0, %s113
      %s114 = sphi 0, %s111
      %s115 = sphi 0, %s114
      %s131 = sphi 0, %s115
      %s137 = sphi 0, %s139
      %s140 = sphi 0, %s137
      %s141 = sphi 0, %s140
      %s157 = sphi 0, %s141
      %s163 = sphi 0, %s165
      %s166 = sphi 0, %s163
      %s167 = sphi 0, %s166
      %s183 = sphi 0, %s167
      %s189 = sphi 0, %s191
      %s192 = sphi 0, %s189
      %s193 = sphi 0, %s192
      %s209 = sphi 0, %s193
      %s215 = sphi 0, %s217
      %s218 = sphi 0, %s215
      %s219 = sphi 0, %s218
      %s235 = sphi 0, %s219
      %s241 = sphi 0, %s243
      %s244 = sphi 0, %s241
      %s245 = sphi 0, %s244
      %s261 = sphi 0, %s245
      %s267 = sphi 0, %s269
      %s270 = sphi 0, %s267
      %s271 = sphi 0, %s270
      %s287 = sphi 0, %s271
      %s293 = sphi 0, %s295
      %s296 = sphi 0, %s293
      %s297 = sphi 0, %s296
      %s313 = sphi 0, %s297
      %s317 = sphi 0, %s317
      %s319 = sphi 0, %s317
      %s320 = sphi 0, %s319
      %s334 = sphi 0, %s320
      %s338 = sphi 0, %s338
      %s340 = sphi 0, %s338
      %s341 = sphi 0, %s340
      %s355 = sphi 0, %s341
      %s359 = sphi 0, %s359
      %s361 = sphi 0, %s359
      %s362 = sphi 0, %s361
      %s376 = sphi 0, %s362
      %s380 = sphi 0, %s380
      %s382 = sphi 0, %s380
      %s383 = sphi 0, %s382
      %s397 = sphi 0, %s383
      %s401 = sphi 0, %s401
      %s403 = sphi 0, %s401
      %s404 = sphi 0, %s403
      %s418 = sphi 0, %s404
      %s422 = sphi 0, %s422
      %s424 = sphi 0, %s422
      %s425 = sphi 0, %s424
      %s439 = sphi 0, %s425
      %s443 = sphi 0, %s443
      %s445 = sphi 0, %s443
      %s446 = sphi 0, %s445
      %s460 = sphi 0, %s446
      %s464 = sphi 0, %s464
      %s466 = sphi 0, %s464
      %s467 = sphi 0, %s466
      %s481 = sphi 0, %s467
      %s485 = sphi 0, %s485
      %s487 = sphi 0, %s485
      %s488 = sphi 0, %s487
      %s502 = sphi 0, %s488
      %s506 = sphi 0, %s506
      %s508 = sphi 0, %s506
      %s509 = sphi 0, %s508
      %s523 = sphi 0, %s509
      %s527 = sphi 0, %s527
      %s529 = sphi 0, %s527
      %s530 = sphi 0, %s529
      %s544 = sphi 0, %s530
      %s548 = sphi 0, %s548
      %s550 = sphi 0, %s548
      %s551 = sphi 0, %s550
      %s565 = sphi 0, %s551
      %s569 = sphi 0, %s569
      %s571 = sphi 0, %s569
      %s572 = sphi 0, %s571
      %s586 = sphi 0, %s572
      %s590 = sphi 0, %s590
      %s592 = sphi 0, %s590
      %s593 = sphi 0, %s592
      %s607 = sphi 0, %s593
      %s611 = sphi 0, %s611
      %s613 = sphi 0, %s611
      %s614 = sphi 0, %s613
      %s628 = sphi 0, %s614
      %s632 = sphi 0, %s632
      %s634 = sphi 0, %s632
      %s635 = sphi 0, %s634
      %s649 = sphi 0, %s635
      %s653 = sphi 0, %s653
      %s655 = sphi 0, %s653
      %s656 = sphi 0, %s655
      %s670 = sphi 0, %s656
      %s674 = sphi 0, %s674
      %s676 = sphi 0, %s674
      %s677 = sphi 0, %s676
      %s691 = sphi 0, %s677
      %s695 = sphi 0, %s695
      %s697 = sphi 0, %s695
      %s698 = sphi 0, %s697
      %s712 = sphi 0, %s698
      %s716 = sphi 0, %s716
      %s718 = sphi 0, %s716
      %s719 = sphi 0, %s718
      %s733 = sphi 0, %s719
      %s737 = sphi 0, %s737
      %s739 = sphi 0, %s737
      %s740 = sphi 0, %s739
      %s754 = sphi 0, %s740
      %s758 = sphi 0, %s758
      %s760 = sphi 0, %s758
      %s761 = sphi 0, %s760
      %s775 = sphi 0, %s761
      %s779 = sphi 0, %s779
      %s781 = sphi 0, %s779
      %s782 = sphi 0, %s781
      %s796 = sphi 0, %s782
      %s802 = sphi 0, %s804
      %s805 = sphi 0, %s802
      %s806 = sphi 0, %s805
      %s822 = sphi 0, %s806
    $region4: #{_lambda_.1} parent=1 // loop_header_branch
      %78 = sbr.rel (%p76) target = $region8
    $region5: #{_lambda_.1} parent=1 // loop_body
      %s80 = ssub.s32 %s75, 1
      %s81 = ssub.s32 %s75, 2
      %s82 = sadd.s32 %s75, 1
      %s83 = ssub.s32 %s75, %s82
      %p84 = scmp.eq.s32.totalorder %s83, 0
      %s86 = sadd.s32 %s85, 1
      %s87 = scalar_select %p84, %s85, %s86
      %p90 = pneg %p84
      %p91 = scmp.eq.s32.totalorder %s75, 1
      %p92 = por %p90, %p91
      %p93 = scmp.ne.s32.totalorder %s85, %s88
      %p94 = scmp.eq.s32.totalorder %s75, 0
      %p95 = por %p93, %p94
      %p96 = scmp.ne.s32.totalorder %s85, %s88
      %p97 = scmp.eq.s32.totalorder %s80, 1
      %p98 = por %p96, %p97
      %p99 = scmp.ne.s32.totalorder %s88, %s89
      %p100 = scmp.eq.s32.totalorder %s80, 0
      %p101 = por %p99, %p100
      %p102 = scmp.ne.s32.totalorder %s88, %s89
      %p103 = scmp.eq.s32.totalorder %s81, 1
      %p104 = por %p102, %p103
      %p106 = scmp.ne.s32.totalorder %s89, %s105
      %p107 = scmp.eq.s32.totalorder %s81, 0
      %p108 = por %p106, %p107
      %s109 = ssub.s32 %s75, %s82
      %p110 = scmp.eq.s32.totalorder %s109, 0
      %s112 = sadd.s32 %s111, 1
      %s113 = scalar_select %p110, %s111, %s112
      %p116 = pneg %p110
      %p117 = scmp.eq.s32.totalorder %s75, 1
      %p118 = por %p116, %p117
      %p119 = scmp.ne.s32.totalorder %s111, %s114
      %p120 = scmp.eq.s32.totalorder %s75, 0
      %p121 = por %p119, %p120
      %p122 = scmp.ne.s32.totalorder %s111, %s114
      %p123 = scmp.eq.s32.totalorder %s80, 1
      %p124 = por %p122, %p123
      %p125 = scmp.ne.s32.totalorder %s114, %s115
      %p126 = scmp.eq.s32.totalorder %s80, 0
      %p127 = por %p125, %p126
      %p128 = scmp.ne.s32.totalorder %s114, %s115
      %p129 = scmp.eq.s32.totalorder %s81, 1
      %p130 = por %p128, %p129
      %p132 = scmp.ne.s32.totalorder %s115, %s131
      %p133 = scmp.eq.s32.totalorder %s81, 0
      %p134 = por %p132, %p133
      %s135 = ssub.s32 %s75, %s82
      %p136 = scmp.eq.s32.totalorder %s135, 0
      %s138 = sadd.s32 %s137, 1
      %s139 = scalar_select %p136, %s137, %s138
      %p142 = pneg %p136
      %p143 = scmp.eq.s32.totalorder %s75, 1
      %p144 = por %p142, %p143
      %p145 = scmp.ne.s32.totalorder %s137, %s140
      %p146 = scmp.eq.s32.totalorder %s75, 0
      %p147 = por %p145, %p146
      %p148 = scmp.ne.s32.totalorder %s137, %s140
      %p149 = scmp.eq.s32.totalorder %s80, 1
      %p150 = por %p148, %p149
      %p151 = scmp.ne.s32.totalorder %s140, %s141
      %p152 = scmp.eq.s32.totalorder %s80, 0
      %p153 = por %p151, %p152
      %p154 = scmp.ne.s32.totalorder %s140, %s141
      %p155 = scmp.eq.s32.totalorder %s81, 1
      %p156 = por %p154, %p155
      %p158 = scmp.ne.s32.totalorder %s141, %s157
      %p159 = scmp.eq.s32.totalorder %s81, 0
      %p160 = por %p158, %p159
      %s161 = ssub.s32 %s75, %s82
      %p162 = scmp.eq.s32.totalorder %s161, 0
      %s164 = sadd.s32 %s163, 1
      %s165 = scalar_select %p162, %s163, %s164
      %p168 = pneg %p162
      %p169 = scmp.eq.s32.totalorder %s75, 1
      %p170 = por %p168, %p169
      %p171 = scmp.ne.s32.totalorder %s163, %s166
      %p172 = scmp.eq.s32.totalorder %s75, 0
      %p173 = por %p171, %p172
      %p174 = scmp.ne.s32.totalorder %s163, %s166
      %p175 = scmp.eq.s32.totalorder %s80, 1
      %p176 = por %p174, %p175
      %p177 = scmp.ne.s32.totalorder %s166, %s167
      %p178 = scmp.eq.s32.totalorder %s80, 0
      %p179 = por %p177, %p178
      %p180 = scmp.ne.s32.totalorder %s166, %s167
      %p181 = scmp.eq.s32.totalorder %s81, 1
      %p182 = por %p180, %p181
      %p184 = scmp.ne.s32.totalorder %s167, %s183
      %p185 = scmp.eq.s32.totalorder %s81, 0
      %p186 = por %p184, %p185
      %s187 = ssub.s32 %s75, %s82
      %p188 = scmp.eq.s32.totalorder %s187, 0
      %s190 = sadd.s32 %s189, 1
      %s191 = scalar_select %p188, %s189, %s190
      %p194 = pneg %p188
      %p195 = scmp.eq.s32.totalorder %s75, 1
      %p196 = por %p194, %p195
      %p197 = scmp.ne.s32.totalorder %s189, %s192
      %p198 = scmp.eq.s32.totalorder %s75, 0
      %p199 = por %p197, %p198
      %p200 = scmp.ne.s32.totalorder %s189, %s192
      %p201 = scmp.eq.s32.totalorder %s80, 1
      %p202 = por %p200, %p201
      %p203 = scmp.ne.s32.totalorder %s192, %s193
      %p204 = scmp.eq.s32.totalorder %s80, 0
      %p205 = por %p203, %p204
      %p206 = scmp.ne.s32.totalorder %s192, %s193
      %p207 = scmp.eq.s32.totalorder %s81, 1
      %p208 = por %p206, %p207
      %p210 = scmp.ne.s32.totalorder %s193, %s209
      %p211 = scmp.eq.s32.totalorder %s81, 0
      %p212 = por %p210, %p211
      %s213 = ssub.s32 %s75, %s82
      %p214 = scmp.eq.s32.totalorder %s213, 0
      %s216 = sadd.s32 %s215, 1
      %s217 = scalar_select %p214, %s215, %s216
      %p220 = pneg %p214
      %p221 = scmp.eq.s32.totalorder %s75, 1
      %p222 = por %p220, %p221
      %p223 = scmp.ne.s32.totalorder %s215, %s218
      %p224 = scmp.eq.s32.totalorder %s75, 0
      %p225 = por %p223, %p224
      %p226 = scmp.ne.s32.totalorder %s215, %s218
      %p227 = scmp.eq.s32.totalorder %s80, 1
      %p228 = por %p226, %p227
      %p229 = scmp.ne.s32.totalorder %s218, %s219
      %p230 = scmp.eq.s32.totalorder %s80, 0
      %p231 = por %p229, %p230
      %p232 = scmp.ne.s32.totalorder %s218, %s219
      %p233 = scmp.eq.s32.totalorder %s81, 1
      %p234 = por %p232, %p233
      %p236 = scmp.ne.s32.totalorder %s219, %s235
      %p237 = scmp.eq.s32.totalorder %s81, 0
      %p238 = por %p236, %p237
      %s239 = ssub.s32 %s75, %s82
      %p240 = scmp.eq.s32.totalorder %s239, 0
      %s242 = sadd.s32 %s241, 1
      %s243 = scalar_select %p240, %s241, %s242
      %p246 = pneg %p240
      %p247 = scmp.eq.s32.totalorder %s75, 1
      %p248 = por %p246, %p247
      %p249 = scmp.ne.s32.totalorder %s241, %s244
      %p250 = scmp.eq.s32.totalorder %s75, 0
      %p251 = por %p249, %p250
      %p252 = scmp.ne.s32.totalorder %s241, %s244
      %p253 = scmp.eq.s32.totalorder %s80, 1
      %p254 = por %p252, %p253
      %p255 = scmp.ne.s32.totalorder %s244, %s245
      %p256 = scmp.eq.s32.totalorder %s80, 0
      %p257 = por %p255, %p256
      %p258 = scmp.ne.s32.totalorder %s244, %s245
      %p259 = scmp.eq.s32.totalorder %s81, 1
      %p260 = por %p258, %p259
      %p262 = scmp.ne.s32.totalorder %s245, %s261
      %p263 = scmp.eq.s32.totalorder %s81, 0
      %p264 = por %p262, %p263
      %s265 = ssub.s32 %s75, %s82
      %p266 = scmp.eq.s32.totalorder %s265, 0
      %s268 = sadd.s32 %s267, 1
      %s269 = scalar_select %p266, %s267, %s268
      %p272 = pneg %p266
      %p273 = scmp.eq.s32.totalorder %s75, 1
      %p274 = por %p272, %p273
      %p275 = scmp.ne.s32.totalorder %s267, %s270
      %p276 = scmp.eq.s32.totalorder %s75, 0
      %p277 = por %p275, %p276
      %p278 = scmp.ne.s32.totalorder %s267, %s270
      %p279 = scmp.eq.s32.totalorder %s80, 1
      %p280 = por %p278, %p279
      %p281 = scmp.ne.s32.totalorder %s270, %s271
      %p282 = scmp.eq.s32.totalorder %s80, 0
      %p283 = por %p281, %p282
      %p284 = scmp.ne.s32.totalorder %s270, %s271
      %p285 = scmp.eq.s32.totalorder %s81, 1
      %p286 = por %p284, %p285
      %p288 = scmp.ne.s32.totalorder %s271, %s287
      %p289 = scmp.eq.s32.totalorder %s81, 0
      %p290 = por %p288, %p289
      %s291 = ssub.s32 %s75, %s82
      %p292 = scmp.eq.s32.totalorder %s291, 0
      %s294 = sadd.s32 %s293, 1
      %s295 = scalar_select %p292, %s293, %s294
      %p298 = pneg %p292
      %p299 = scmp.eq.s32.totalorder %s75, 1
      %p300 = por %p298, %p299
      %p301 = scmp.ne.s32.totalorder %s293, %s296
      %p302 = scmp.eq.s32.totalorder %s75, 0
      %p303 = por %p301, %p302
      %p304 = scmp.ne.s32.totalorder %s293, %s296
      %p305 = scmp.eq.s32.totalorder %s80, 1
      %p306 = por %p304, %p305
      %p307 = scmp.ne.s32.totalorder %s296, %s297
      %p308 = scmp.eq.s32.totalorder %s80, 0
      %p309 = por %p307, %p308
      %p310 = scmp.ne.s32.totalorder %s296, %s297
      %p311 = scmp.eq.s32.totalorder %s81, 1
      %p312 = por %p310, %p311
      %p314 = scmp.ne.s32.totalorder %s297, %s313
      %p315 = scmp.eq.s32.totalorder %s81, 0
      %p316 = por %p314, %p315
      %s318 = sadd.s32 %s317, 1
      %p321 = scmp.eq.s32.totalorder %s75, 1
      %p322 = scmp.ne.s32.totalorder %s317, %s319
      %p323 = scmp.eq.s32.totalorder %s75, 0
      %p324 = por %p322, %p323
      %p325 = scmp.ne.s32.totalorder %s317, %s319
      %p326 = scmp.eq.s32.totalorder %s80, 1
      %p327 = por %p325, %p326
      %p328 = scmp.ne.s32.totalorder %s319, %s320
      %p329 = scmp.eq.s32.totalorder %s80, 0
      %p330 = por %p328, %p329
      %p331 = scmp.ne.s32.totalorder %s319, %s320
      %p332 = scmp.eq.s32.totalorder %s81, 1
      %p333 = por %p331, %p332
      %p335 = scmp.ne.s32.totalorder %s320, %s334
      %p336 = scmp.eq.s32.totalorder %s81, 0
      %p337 = por %p335, %p336
      %s339 = sadd.s32 %s338, 1
      %p342 = scmp.eq.s32.totalorder %s75, 1
      %p343 = scmp.ne.s32.totalorder %s338, %s340
      %p344 = scmp.eq.s32.totalorder %s75, 0
      %p345 = por %p343, %p344
      %p346 = scmp.ne.s32.totalorder %s338, %s340
      %p347 = scmp.eq.s32.totalorder %s80, 1
      %p348 = por %p346, %p347
      %p349 = scmp.ne.s32.totalorder %s340, %s341
      %p350 = scmp.eq.s32.totalorder %s80, 0
      %p351 = por %p349, %p350
      %p352 = scmp.ne.s32.totalorder %s340, %s341
      %p353 = scmp.eq.s32.totalorder %s81, 1
      %p354 = por %p352, %p353
      %p356 = scmp.ne.s32.totalorder %s341, %s355
      %p357 = scmp.eq.s32.totalorder %s81, 0
      %p358 = por %p356, %p357
      %s360 = sadd.s32 %s359, 1
      %p363 = scmp.eq.s32.totalorder %s75, 1
      %p364 = scmp.ne.s32.totalorder %s359, %s361
      %p365 = scmp.eq.s32.totalorder %s75, 0
      %p366 = por %p364, %p365
      %p367 = scmp.ne.s32.totalorder %s359, %s361
      %p368 = scmp.eq.s32.totalorder %s80, 1
      %p369 = por %p367, %p368
      %p370 = scmp.ne.s32.totalorder %s361, %s362
      %p371 = scmp.eq.s32.totalorder %s80, 0
      %p372 = por %p370, %p371
      %p373 = scmp.ne.s32.totalorder %s361, %s362
      %p374 = scmp.eq.s32.totalorder %s81, 1
      %p375 = por %p373, %p374
      %p377 = scmp.ne.s32.totalorder %s362, %s376
      %p378 = scmp.eq.s32.totalorder %s81, 0
      %p379 = por %p377, %p378
      %s381 = sadd.s32 %s380, 1
      %p384 = scmp.eq.s32.totalorder %s75, 1
      %p385 = scmp.ne.s32.totalorder %s380, %s382
      %p386 = scmp.eq.s32.totalorder %s75, 0
      %p387 = por %p385, %p386
      %p388 = scmp.ne.s32.totalorder %s380, %s382
      %p389 = scmp.eq.s32.totalorder %s80, 1
      %p390 = por %p388, %p389
      %p391 = scmp.ne.s32.totalorder %s382, %s383
      %p392 = scmp.eq.s32.totalorder %s80, 0
      %p393 = por %p391, %p392
      %p394 = scmp.ne.s32.totalorder %s382, %s383
      %p395 = scmp.eq.s32.totalorder %s81, 1
      %p396 = por %p394, %p395
      %p398 = scmp.ne.s32.totalorder %s383, %s397
      %p399 = scmp.eq.s32.totalorder %s81, 0
      %p400 = por %p398, %p399
      %s402 = sadd.s32 %s401, 1
      %p405 = scmp.eq.s32.totalorder %s75, 1
      %p406 = scmp.ne.s32.totalorder %s401, %s403
      %p407 = scmp.eq.s32.totalorder %s75, 0
      %p408 = por %p406, %p407
      %p409 = scmp.ne.s32.totalorder %s401, %s403
      %p410 = scmp.eq.s32.totalorder %s80, 1
      %p411 = por %p409, %p410
      %p412 = scmp.ne.s32.totalorder %s403, %s404
      %p413 = scmp.eq.s32.totalorder %s80, 0
      %p414 = por %p412, %p413
      %p415 = scmp.ne.s32.totalorder %s403, %s404
      %p416 = scmp.eq.s32.totalorder %s81, 1
      %p417 = por %p415, %p416
      %p419 = scmp.ne.s32.totalorder %s404, %s418
      %p420 = scmp.eq.s32.totalorder %s81, 0
      %p421 = por %p419, %p420
      %s423 = sadd.s32 %s422, 1
      %p426 = scmp.eq.s32.totalorder %s75, 1
      %p427 = scmp.ne.s32.totalorder %s422, %s424
      %p428 = scmp.eq.s32.totalorder %s75, 0
      %p429 = por %p427, %p428
      %p430 = scmp.ne.s32.totalorder %s422, %s424
      %p431 = scmp.eq.s32.totalorder %s80, 1
      %p432 = por %p430, %p431
      %p433 = scmp.ne.s32.totalorder %s424, %s425
      %p434 = scmp.eq.s32.totalorder %s80, 0
      %p435 = por %p433, %p434
      %p436 = scmp.ne.s32.totalorder %s424, %s425
      %p437 = scmp.eq.s32.totalorder %s81, 1
      %p438 = por %p436, %p437
      %p440 = scmp.ne.s32.totalorder %s425, %s439
      %p441 = scmp.eq.s32.totalorder %s81, 0
      %p442 = por %p440, %p441
      %s444 = sadd.s32 %s443, 1
      %p447 = scmp.eq.s32.totalorder %s75, 1
      %p448 = scmp.ne.s32.totalorder %s443, %s445
      %p449 = scmp.eq.s32.totalorder %s75, 0
      %p450 = por %p448, %p449
      %p451 = scmp.ne.s32.totalorder %s443, %s445
      %p452 = scmp.eq.s32.totalorder %s80, 1
      %p453 = por %p451, %p452
      %p454 = scmp.ne.s32.totalorder %s445, %s446
      %p455 = scmp.eq.s32.totalorder %s80, 0
      %p456 = por %p454, %p455
      %p457 = scmp.ne.s32.totalorder %s445, %s446
      %p458 = scmp.eq.s32.totalorder %s81, 1
      %p459 = por %p457, %p458
      %p461 = scmp.ne.s32.totalorder %s446, %s460
      %p462 = scmp.eq.s32.totalorder %s81, 0
      %p463 = por %p461, %p462
      %s465 = sadd.s32 %s464, 1
      %p468 = scmp.eq.s32.totalorder %s75, 1
      %p469 = scmp.ne.s32.totalorder %s464, %s466
      %p470 = scmp.eq.s32.totalorder %s75, 0
      %p471 = por %p469, %p470
      %p472 = scmp.ne.s32.totalorder %s464, %s466
      %p473 = scmp.eq.s32.totalorder %s80, 1
      %p474 = por %p472, %p473
      %p475 = scmp.ne.s32.totalorder %s466, %s467
      %p476 = scmp.eq.s32.totalorder %s80, 0
      %p477 = por %p475, %p476
      %p478 = scmp.ne.s32.totalorder %s466, %s467
      %p479 = scmp.eq.s32.totalorder %s81, 1
      %p480 = por %p478, %p479
      %p482 = scmp.ne.s32.totalorder %s467, %s481
      %p483 = scmp.eq.s32.totalorder %s81, 0
      %p484 = por %p482, %p483
      %s486 = sadd.s32 %s485, 1
      %p489 = scmp.eq.s32.totalorder %s75, 1
      %p490 = scmp.ne.s32.totalorder %s485, %s487
      %p491 = scmp.eq.s32.totalorder %s75, 0
      %p492 = por %p490, %p491
      %p493 = scmp.ne.s32.totalorder %s485, %s487
      %p494 = scmp.eq.s32.totalorder %s80, 1
      %p495 = por %p493, %p494
      %p496 = scmp.ne.s32.totalorder %s487, %s488
      %p497 = scmp.eq.s32.totalorder %s80, 0
      %p498 = por %p496, %p497
      %p499 = scmp.ne.s32.totalorder %s487, %s488
      %p500 = scmp.eq.s32.totalorder %s81, 1
      %p501 = por %p499, %p500
      %p503 = scmp.ne.s32.totalorder %s488, %s502
      %p504 = scmp.eq.s32.totalorder %s81, 0
      %p505 = por %p503, %p504
      %s507 = sadd.s32 %s506, 1
      %p510 = scmp.eq.s32.totalorder %s75, 1
      %p511 = scmp.ne.s32.totalorder %s506, %s508
      %p512 = scmp.eq.s32.totalorder %s75, 0
      %p513 = por %p511, %p512
      %p514 = scmp.ne.s32.totalorder %s506, %s508
      %p515 = scmp.eq.s32.totalorder %s80, 1
      %p516 = por %p514, %p515
      %p517 = scmp.ne.s32.totalorder %s508, %s509
      %p518 = scmp.eq.s32.totalorder %s80, 0
      %p519 = por %p517, %p518
      %p520 = scmp.ne.s32.totalorder %s508, %s509
      %p521 = scmp.eq.s32.totalorder %s81, 1
      %p522 = por %p520, %p521
      %p524 = scmp.ne.s32.totalorder %s509, %s523
      %p525 = scmp.eq.s32.totalorder %s81, 0
      %p526 = por %p524, %p525
      %s528 = sadd.s32 %s527, 1
      %p531 = scmp.eq.s32.totalorder %s75, 1
      %p532 = scmp.ne.s32.totalorder %s527, %s529
      %p533 = scmp.eq.s32.totalorder %s75, 0
      %p534 = por %p532, %p533
      %p535 = scmp.ne.s32.totalorder %s527, %s529
      %p536 = scmp.eq.s32.totalorder %s80, 1
      %p537 = por %p535, %p536
      %p538 = scmp.ne.s32.totalorder %s529, %s530
      %p539 = scmp.eq.s32.totalorder %s80, 0
      %p540 = por %p538, %p539
      %p541 = scmp.ne.s32.totalorder %s529, %s530
      %p542 = scmp.eq.s32.totalorder %s81, 1
      %p543 = por %p541, %p542
      %p545 = scmp.ne.s32.totalorder %s530, %s544
      %p546 = scmp.eq.s32.totalorder %s81, 0
      %p547 = por %p545, %p546
      %s549 = sadd.s32 %s548, 1
      %p552 = scmp.eq.s32.totalorder %s75, 1
      %p553 = scmp.ne.s32.totalorder %s548, %s550
      %p554 = scmp.eq.s32.totalorder %s75, 0
      %p555 = por %p553, %p554
      %p556 = scmp.ne.s32.totalorder %s548, %s550
      %p557 = scmp.eq.s32.totalorder %s80, 1
      %p558 = por %p556, %p557
      %p559 = scmp.ne.s32.totalorder %s550, %s551
      %p560 = scmp.eq.s32.totalorder %s80, 0
      %p561 = por %p559, %p560
      %p562 = scmp.ne.s32.totalorder %s550, %s551
      %p563 = scmp.eq.s32.totalorder %s81, 1
      %p564 = por %p562, %p563
      %p566 = scmp.ne.s32.totalorder %s551, %s565
      %p567 = scmp.eq.s32.totalorder %s81, 0
      %p568 = por %p566, %p567
      %s570 = sadd.s32 %s569, 1
      %p573 = scmp.eq.s32.totalorder %s75, 1
      %p574 = scmp.ne.s32.totalorder %s569, %s571
      %p575 = scmp.eq.s32.totalorder %s75, 0
      %p576 = por %p574, %p575
      %p577 = scmp.ne.s32.totalorder %s569, %s571
      %p578 = scmp.eq.s32.totalorder %s80, 1
      %p579 = por %p577, %p578
      %p580 = scmp.ne.s32.totalorder %s571, %s572
      %p581 = scmp.eq.s32.totalorder %s80, 0
      %p582 = por %p580, %p581
      %p583 = scmp.ne.s32.totalorder %s571, %s572
      %p584 = scmp.eq.s32.totalorder %s81, 1
      %p585 = por %p583, %p584
      %p587 = scmp.ne.s32.totalorder %s572, %s586
      %p588 = scmp.eq.s32.totalorder %s81, 0
      %p589 = por %p587, %p588
      %s591 = sadd.s32 %s590, 1
      %p594 = scmp.eq.s32.totalorder %s75, 1
      %p595 = scmp.ne.s32.totalorder %s590, %s592
      %p596 = scmp.eq.s32.totalorder %s75, 0
      %p597 = por %p595, %p596
      %p598 = scmp.ne.s32.totalorder %s590, %s592
      %p599 = scmp.eq.s32.totalorder %s80, 1
      %p600 = por %p598, %p599
      %p601 = scmp.ne.s32.totalorder %s592, %s593
      %p602 = scmp.eq.s32.totalorder %s80, 0
      %p603 = por %p601, %p602
      %p604 = scmp.ne.s32.totalorder %s592, %s593
      %p605 = scmp.eq.s32.totalorder %s81, 1
      %p606 = por %p604, %p605
      %p608 = scmp.ne.s32.totalorder %s593, %s607
      %p609 = scmp.eq.s32.totalorder %s81, 0
      %p610 = por %p608, %p609
      %s612 = sadd.s32 %s611, 1
      %p615 = scmp.eq.s32.totalorder %s75, 1
      %p616 = scmp.ne.s32.totalorder %s611, %s613
      %p617 = scmp.eq.s32.totalorder %s75, 0
      %p618 = por %p616, %p617
      %p619 = scmp.ne.s32.totalorder %s611, %s613
      %p620 = scmp.eq.s32.totalorder %s80, 1
      %p621 = por %p619, %p620
      %p622 = scmp.ne.s32.totalorder %s613, %s614
      %p623 = scmp.eq.s32.totalorder %s80, 0
      %p624 = por %p622, %p623
      %p625 = scmp.ne.s32.totalorder %s613, %s614
      %p626 = scmp.eq.s32.totalorder %s81, 1
      %p627 = por %p625, %p626
      %p629 = scmp.ne.s32.totalorder %s614, %s628
      %p630 = scmp.eq.s32.totalorder %s81, 0
      %p631 = por %p629, %p630
      %s633 = sadd.s32 %s632, 1
      %p636 = scmp.eq.s32.totalorder %s75, 1
      %p637 = scmp.ne.s32.totalorder %s632, %s634
      %p638 = scmp.eq.s32.totalorder %s75, 0
      %p639 = por %p637, %p638
      %p640 = scmp.ne.s32.totalorder %s632, %s634
      %p641 = scmp.eq.s32.totalorder %s80, 1
      %p642 = por %p640, %p641
      %p643 = scmp.ne.s32.totalorder %s634, %s635
      %p644 = scmp.eq.s32.totalorder %s80, 0
      %p645 = por %p643, %p644
      %p646 = scmp.ne.s32.totalorder %s634, %s635
      %p647 = scmp.eq.s32.totalorder %s81, 1
      %p648 = por %p646, %p647
      %p650 = scmp.ne.s32.totalorder %s635, %s649
      %p651 = scmp.eq.s32.totalorder %s81, 0
      %p652 = por %p650, %p651
      %s654 = sadd.s32 %s653, 1
      %p657 = scmp.eq.s32.totalorder %s75, 1
      %p658 = scmp.ne.s32.totalorder %s653, %s655
      %p659 = scmp.eq.s32.totalorder %s75, 0
      %p660 = por %p658, %p659
      %p661 = scmp.ne.s32.totalorder %s653, %s655
      %p662 = scmp.eq.s32.totalorder %s80, 1
      %p663 = por %p661, %p662
      %p664 = scmp.ne.s32.totalorder %s655, %s656
      %p665 = scmp.eq.s32.totalorder %s80, 0
      %p666 = por %p664, %p665
      %p667 = scmp.ne.s32.totalorder %s655, %s656
      %p668 = scmp.eq.s32.totalorder %s81, 1
      %p669 = por %p667, %p668
      %p671 = scmp.ne.s32.totalorder %s656, %s670
      %p672 = scmp.eq.s32.totalorder %s81, 0
      %p673 = por %p671, %p672
      %s675 = sadd.s32 %s674, 1
      %p678 = scmp.eq.s32.totalorder %s75, 1
      %p679 = scmp.ne.s32.totalorder %s674, %s676
      %p680 = scmp.eq.s32.totalorder %s75, 0
      %p681 = por %p679, %p680
      %p682 = scmp.ne.s32.totalorder %s674, %s676
      %p683 = scmp.eq.s32.totalorder %s80, 1
      %p684 = por %p682, %p683
      %p685 = scmp.ne.s32.totalorder %s676, %s677
      %p686 = scmp.eq.s32.totalorder %s80, 0
      %p687 = por %p685, %p686
      %p688 = scmp.ne.s32.totalorder %s676, %s677
      %p689 = scmp.eq.s32.totalorder %s81, 1
      %p690 = por %p688, %p689
      %p692 = scmp.ne.s32.totalorder %s677, %s691
      %p693 = scmp.eq.s32.totalorder %s81, 0
      %p694 = por %p692, %p693
      %s696 = sadd.s32 %s695, 1
      %p699 = scmp.eq.s32.totalorder %s75, 1
      %p700 = scmp.ne.s32.totalorder %s695, %s697
      %p701 = scmp.eq.s32.totalorder %s75, 0
      %p702 = por %p700, %p701
      %p703 = scmp.ne.s32.totalorder %s695, %s697
      %p704 = scmp.eq.s32.totalorder %s80, 1
      %p705 = por %p703, %p704
      %p706 = scmp.ne.s32.totalorder %s697, %s698
      %p707 = scmp.eq.s32.totalorder %s80, 0
      %p708 = por %p706, %p707
      %p709 = scmp.ne.s32.totalorder %s697, %s698
      %p710 = scmp.eq.s32.totalorder %s81, 1
      %p711 = por %p709, %p710
      %p713 = scmp.ne.s32.totalorder %s698, %s712
      %p714 = scmp.eq.s32.totalorder %s81, 0
      %p715 = por %p713, %p714
      %s717 = sadd.s32 %s716, 1
      %p720 = scmp.eq.s32.totalorder %s75, 1
      %p721 = scmp.ne.s32.totalorder %s716, %s718
      %p722 = scmp.eq.s32.totalorder %s75, 0
      %p723 = por %p721, %p722
      %p724 = scmp.ne.s32.totalorder %s716, %s718
      %p725 = scmp.eq.s32.totalorder %s80, 1
      %p726 = por %p724, %p725
      %p727 = scmp.ne.s32.totalorder %s718, %s719
      %p728 = scmp.eq.s32.totalorder %s80, 0
      %p729 = por %p727, %p728
      %p730 = scmp.ne.s32.totalorder %s718, %s719
      %p731 = scmp.eq.s32.totalorder %s81, 1
      %p732 = por %p730, %p731
      %p734 = scmp.ne.s32.totalorder %s719, %s733
      %p735 = scmp.eq.s32.totalorder %s81, 0
      %p736 = por %p734, %p735
      %s738 = sadd.s32 %s737, 1
      %p741 = scmp.eq.s32.totalorder %s75, 1
      %p742 = scmp.ne.s32.totalorder %s737, %s739
      %p743 = scmp.eq.s32.totalorder %s75, 0
      %p744 = por %p742, %p743
      %p745 = scmp.ne.s32.totalorder %s737, %s739
      %p746 = scmp.eq.s32.totalorder %s80, 1
      %p747 = por %p745, %p746
      %p748 = scmp.ne.s32.totalorder %s739, %s740
      %p749 = scmp.eq.s32.totalorder %s80, 0
      %p750 = por %p748, %p749
      %p751 = scmp.ne.s32.totalorder %s739, %s740
      %p752 = scmp.eq.s32.totalorder %s81, 1
      %p753 = por %p751, %p752
      %p755 = scmp.ne.s32.totalorder %s740, %s754
      %p756 = scmp.eq.s32.totalorder %s81, 0
      %p757 = por %p755, %p756
      %s759 = sadd.s32 %s758, 1
      %p762 = scmp.eq.s32.totalorder %s75, 1
      %p763 = scmp.ne.s32.totalorder %s758, %s760
      %p764 = scmp.eq.s32.totalorder %s75, 0
      %p765 = por %p763, %p764
      %p766 = scmp.ne.s32.totalorder %s758, %s760
      %p767 = scmp.eq.s32.totalorder %s80, 1
      %p768 = por %p766, %p767
      %p769 = scmp.ne.s32.totalorder %s760, %s761
      %p770 = scmp.eq.s32.totalorder %s80, 0
      %p771 = por %p769, %p770
      %p772 = scmp.ne.s32.totalorder %s760, %s761
      %p773 = scmp.eq.s32.totalorder %s81, 1
      %p774 = por %p772, %p773
      %p776 = scmp.ne.s32.totalorder %s761, %s775
      %p777 = scmp.eq.s32.totalorder %s81, 0
      %p778 = por %p776, %p777
      %s780 = sadd.s32 %s779, 1
      %p783 = scmp.eq.s32.totalorder %s75, 1
      %p784 = scmp.ne.s32.totalorder %s779, %s781
      %p785 = scmp.eq.s32.totalorder %s75, 0
      %p786 = por %p784, %p785
      %p787 = scmp.ne.s32.totalorder %s779, %s781
      %p788 = scmp.eq.s32.totalorder %s80, 1
      %p789 = por %p787, %p788
      %p790 = scmp.ne.s32.totalorder %s781, %s782
      %p791 = scmp.eq.s32.totalorder %s80, 0
      %p792 = por %p790, %p791
      %p793 = scmp.ne.s32.totalorder %s781, %s782
      %p794 = scmp.eq.s32.totalorder %s81, 1
      %p795 = por %p793, %p794
      %p797 = scmp.ne.s32.totalorder %s782, %s796
      %p798 = scmp.eq.s32.totalorder %s81, 0
      %p799 = por %p797, %p798
      %s800 = ssub.s32 %s75, %s82
      %p801 = scmp.eq.s32.totalorder %s800, 0
      %s803 = sadd.s32 %s802, 1
      %s804 = scalar_select %p801, %s802, %s803
      %p807 = pneg %p801
      %p808 = scmp.eq.s32.totalorder %s75, 1
      %p809 = por %p807, %p808
      %p810 = scmp.ne.s32.totalorder %s802, %s805
      %p811 = scmp.eq.s32.totalorder %s75, 0
      %p812 = por %p810, %p811
      %p813 = scmp.ne.s32.totalorder %s802, %s805
      %p814 = scmp.eq.s32.totalorder %s80, 1
      %p815 = por %p813, %p814
      %p816 = scmp.ne.s32.totalorder %s805, %s806
      %p817 = scmp.eq.s32.totalorder %s80, 0
      %p818 = por %p816, %p817
      %p819 = scmp.ne.s32.totalorder %s805, %s806
      %p820 = scmp.eq.s32.totalorder %s81, 1
      %p821 = por %p819, %p820
      %p823 = scmp.ne.s32.totalorder %s806, %s822
      %p824 = scmp.eq.s32.totalorder %s81, 0
      %p825 = por %p823, %p824
      %p826 = scmp.le.s32.totalorder 1, %s75
      %p827 = scmp.lt.s32.totalorder %s75, 3
      %p828 = pnand %p826, %p827
      %p829 = pneg %p828
      // Predicated region
      $region9: #{_lambda_.1} parent=5 // pred_check
        _
      $region10: #{_lambda_.1} parent=5 // pred_check_branch
        %831 = sbr.rel (%p828) target = $region12
      $region11: #{_lambda_.1} parent=5 // pred_region
        %s832 = ssub.s32 %s75, 1
        // Predicated region
        $region13: #{_lambda_.1} parent=11 // pred_check
          %p833 = pneg %p330
        $region14: #{_lambda_.1} parent=11 // pred_check_branch
          %835 = sbr.rel (%p833) target = $region16
        $region15: #{_lambda_.1} parent=11 // pred_region
          %s837 = ssub.s32 16, 16
          %838 = vsyncadd [#allocation6], %s837
          %s840 = sshll.u32 %s19, 4
          %s841 = int_to_ptr.vmem [resolvable:$true] %s840
          %843 = dma.vmem_to_smem %s841, 16, [#allocation5], [#allocation6]
        $region16: #{_lambda_.1} parent=11 // pred_fallthru
          _
        // Predicated region
        $region17: #{_lambda_.1} parent=11 // pred_check
          %p844 = pneg %p351
        $region18: #{_lambda_.1} parent=11 // pred_check_branch
          %846 = sbr.rel (%p844) target = $region20
        $region19: #{_lambda_.1} parent=11 // pred_region
          %s848 = ssub.s32 16, 16
          %849 = vsyncadd [#allocation8], %s848
          %s851 = sshll.u32 %s21, 4
          %s852 = int_to_ptr.vmem [resolvable:$true] %s851
          %854 = dma.vmem_to_smem %s852, 16, [#allocation7], [#allocation8]
        $region20: #{_lambda_.1} parent=11 // pred_fallthru
          _
        // Predicated region
        $region21: #{_lambda_.1} parent=11 // pred_check
          %p855 = pneg %p372
        $region22: #{_lambda_.1} parent=11 // pred_check_branch
          %857 = sbr.rel (%p855) target = $region24
        $region23: #{_lambda_.1} parent=11 // pred_region
          _
        $region24: #{_lambda_.1} parent=11 // pred_fallthru
          _
        // Predicated region
        $region25: #{_lambda_.1} parent=11 // pred_check
          %p858 = pneg %p393
        $region26: #{_lambda_.1} parent=11 // pred_check_branch
          %860 = sbr.rel (%p858) target = $region28
        $region27: #{_lambda_.1} parent=11 // pred_region
          _
        $region28: #{_lambda_.1} parent=11 // pred_fallthru
          _
        // Predicated region
        $region29: #{_lambda_.1} parent=11 // pred_check
          %p861 = pneg %p414
        $region30: #{_lambda_.1} parent=11 // pred_check_branch
          %863 = sbr.rel (%p861) target = $region32
        $region31: #{_lambda_.1} parent=11 // pred_region
          _
        $region32: #{_lambda_.1} parent=11 // pred_fallthru
          _
        // Predicated region
        $region33: #{_lambda_.1} parent=11 // pred_check
          %p864 = pneg %p435
        $region34: #{_lambda_.1} parent=11 // pred_check_branch
          %866 = sbr.rel (%p864) target = $region36
        $region35: #{_lambda_.1} parent=11 // pred_region
          _
        $region36: #{_lambda_.1} parent=11 // pred_fallthru
          _
        // Predicated region
        $region37: #{_lambda_.1} parent=11 // pred_check
          %p867 = pneg %p456
        $region38: #{_lambda_.1} parent=11 // pred_check_branch
          %869 = sbr.rel (%p867) target = $region40
        $region39: #{_lambda_.1} parent=11 // pred_region
          _
        $region40: #{_lambda_.1} parent=11 // pred_fallthru
          _
        // Predicated region
        $region41: #{_lambda_.1} parent=11 // pred_check
          %p870 = pneg %p477
        $region42: #{_lambda_.1} parent=11 // pred_check_branch
          %872 = sbr.rel (%p870) target = $region44
        $region43: #{_lambda_.1} parent=11 // pred_region
          _
        $region44: #{_lambda_.1} parent=11 // pred_fallthru
          _
        // Predicated region
        $region45: #{_lambda_.1} parent=11 // pred_check
          %p873 = pneg %p498
        $region46: #{_lambda_.1} parent=11 // pred_check_branch
          %875 = sbr.rel (%p873) target = $region48
        $region47: #{_lambda_.1} parent=11 // pred_region
          _
        $region48: #{_lambda_.1} parent=11 // pred_fallthru
          _
        // Predicated region
        $region49: #{_lambda_.1} parent=11 // pred_check
          %p876 = pneg %p519
        $region50: #{_lambda_.1} parent=11 // pred_check_branch
          %878 = sbr.rel (%p876) target = $region52
        $region51: #{_lambda_.1} parent=11 // pred_region
          _
        $region52: #{_lambda_.1} parent=11 // pred_fallthru
          _
        // Predicated region
        $region53: #{_lambda_.1} parent=11 // pred_check
          %p879 = pneg %p540
        $region54: #{_lambda_.1} parent=11 // pred_check_branch
          %881 = sbr.rel (%p879) target = $region56
        $region55: #{_lambda_.1} parent=11 // pred_region
          _
        $region56: #{_lambda_.1} parent=11 // pred_fallthru
          _
        // Predicated region
        $region57: #{_lambda_.1} parent=11 // pred_check
          %p882 = pneg %p561
        $region58: #{_lambda_.1} parent=11 // pred_check_branch
          %884 = sbr.rel (%p882) target = $region60
        $region59: #{_lambda_.1} parent=11 // pred_region
          _
        $region60: #{_lambda_.1} parent=11 // pred_fallthru
          _
        // Predicated region
        $region61: #{_lambda_.1} parent=11 // pred_check
          %p885 = pneg %p582
        $region62: #{_lambda_.1} parent=11 // pred_check_branch
          %887 = sbr.rel (%p885) target = $region64
        $region63: #{_lambda_.1} parent=11 // pred_region
          _
        $region64: #{_lambda_.1} parent=11 // pred_fallthru
          _
        // Predicated region
        $region65: #{_lambda_.1} parent=11 // pred_check
          %p888 = pneg %p603
        $region66: #{_lambda_.1} parent=11 // pred_check_branch
          %890 = sbr.rel (%p888) target = $region68
        $region67: #{_lambda_.1} parent=11 // pred_region
          _
        $region68: #{_lambda_.1} parent=11 // pred_fallthru
          _
        // Predicated region
        $region69: #{_lambda_.1} parent=11 // pred_check
          %p891 = pneg %p624
        $region70: #{_lambda_.1} parent=11 // pred_check_branch
          %893 = sbr.rel (%p891) target = $region72
        $region71: #{_lambda_.1} parent=11 // pred_region
          _
        $region72: #{_lambda_.1} parent=11 // pred_fallthru
          _
        // Predicated region
        $region73: #{_lambda_.1} parent=11 // pred_check
          %p894 = pneg %p645
        $region74: #{_lambda_.1} parent=11 // pred_check_branch
          %896 = sbr.rel (%p894) target = $region76
        $region75: #{_lambda_.1} parent=11 // pred_region
          _
        $region76: #{_lambda_.1} parent=11 // pred_fallthru
          _
        // Predicated region
        $region77: #{_lambda_.1} parent=11 // pred_check
          %p897 = pneg %p666
        $region78: #{_lambda_.1} parent=11 // pred_check_branch
          %899 = sbr.rel (%p897) target = $region80
        $region79: #{_lambda_.1} parent=11 // pred_region
          _
        $region80: #{_lambda_.1} parent=11 // pred_fallthru
          _
        // Predicated region
        $region81: #{_lambda_.1} parent=11 // pred_check
          %p900 = pneg %p687
        $region82: #{_lambda_.1} parent=11 // pred_check_branch
          %902 = sbr.rel (%p900) target = $region84
        $region83: #{_lambda_.1} parent=11 // pred_region
          _
        $region84: #{_lambda_.1} parent=11 // pred_fallthru
          _
        // Predicated region
        $region85: #{_lambda_.1} parent=11 // pred_check
          %p903 = pneg %p708
        $region86: #{_lambda_.1} parent=11 // pred_check_branch
          %905 = sbr.rel (%p903) target = $region88
        $region87: #{_lambda_.1} parent=11 // pred_region
          _
        $region88: #{_lambda_.1} parent=11 // pred_fallthru
          _
        // Predicated region
        $region89: #{_lambda_.1} parent=11 // pred_check
          %p906 = pneg %p729
        $region90: #{_lambda_.1} parent=11 // pred_check_branch
          %908 = sbr.rel (%p906) target = $region92
        $region91: #{_lambda_.1} parent=11 // pred_region
          _
        $region92: #{_lambda_.1} parent=11 // pred_fallthru
          _
        // Predicated region
        $region93: #{_lambda_.1} parent=11 // pred_check
          %p909 = pneg %p750
        $region94: #{_lambda_.1} parent=11 // pred_check_branch
          %911 = sbr.rel (%p909) target = $region96
        $region95: #{_lambda_.1} parent=11 // pred_region
          _
        $region96: #{_lambda_.1} parent=11 // pred_fallthru
          _
        // Predicated region
        $region97: #{_lambda_.1} parent=11 // pred_check
          %p912 = pneg %p771
        $region98: #{_lambda_.1} parent=11 // pred_check_branch
          %914 = sbr.rel (%p912) target = $region100
        $region99: #{_lambda_.1} parent=11 // pred_region
          _
        $region100: #{_lambda_.1} parent=11 // pred_fallthru
          _
        // Predicated region
        $region101: #{_lambda_.1} parent=11 // pred_check
          %p915 = pneg %p792
        $region102: #{_lambda_.1} parent=11 // pred_check_branch
          %917 = sbr.rel (%p915) target = $region104
        $region103: #{_lambda_.1} parent=11 // pred_region
          _
        $region104: #{_lambda_.1} parent=11 // pred_fallthru
          _
      $region12: #{_lambda_.1} parent=5 // pred_fallthru
        _
      %p918 = scmp.lt.s32.totalorder %s75, 2
      // Predicated region
      $region105: #{_lambda_.1} parent=5 // pred_check
        %p919 = pneg %p918
      $region106: #{_lambda_.1} parent=5 // pred_check_branch
        %921 = sbr.rel (%p919) target = $region108
      $region107: #{_lambda_.1} parent=5 // pred_region
        // Predicated region
        $region109: #{_lambda_.1} parent=107 // pred_check
          %p922 = pneg %p95
        $region110: #{_lambda_.1} parent=107 // pred_check_branch
          %924 = sbr.rel (%p922) target = $region112
        $region111: #{_lambda_.1} parent=107 // pred_region
          %p925 = scmp.lt.s32.totalorder %s75, 1
          %s926 = scalar_select %p925, %s75, 1
          %s927 = scalar_lea.vmem %s1, %s926
        $region112: #{_lambda_.1} parent=107 // pred_fallthru
          _
        // Predicated region
        $region113: #{_lambda_.1} parent=107 // pred_check
          %p928 = pneg %p121
        $region114: #{_lambda_.1} parent=107 // pred_check_branch
          %930 = sbr.rel (%p928) target = $region116
        $region115: #{_lambda_.1} parent=107 // pred_region
          %p931 = scmp.lt.s32.totalorder %s75, 1
          %s932 = scalar_select %p931, %s75, 1
          %s933 = smul.addr %s932, 2
          %s934 = smul.addr %s933, 8
          %s935 = scalar_lea.vmem %s3, %s934
        $region116: #{_lambda_.1} parent=107 // pred_fallthru
          _
        // Predicated region
        $region117: #{_lambda_.1} parent=107 // pred_check
          %p936 = pneg %p147
        $region118: #{_lambda_.1} parent=107 // pred_check_branch
          %938 = sbr.rel (%p936) target = $region120
        $region119: #{_lambda_.1} parent=107 // pred_region
          %p939 = scmp.lt.s32.totalorder %s75, 1
          %s940 = scalar_select %p939, %s75, 1
          %s941 = smul.addr %s940, 8
          %s942 = smul.addr %s941, 8
          %s943 = scalar_lea.vmem %s5, %s942
        $region120: #{_lambda_.1} parent=107 // pred_fallthru
          _
        // Predicated region
        $region121: #{_lambda_.1} parent=107 // pred_check
          %p944 = pneg %p173
        $region122: #{_lambda_.1} parent=107 // pred_check_branch
          %946 = sbr.rel (%p944) target = $region124
        $region123: #{_lambda_.1} parent=107 // pred_region
          %p947 = scmp.lt.s32.totalorder %s75, 1
          %s948 = scalar_select %p947, %s75, 1
          %s949 = smul.addr %s948, 8
          %s950 = smul.addr %s949, 8
          %s951 = scalar_lea.vmem %s7, %s950
        $region124: #{_lambda_.1} parent=107 // pred_fallthru
          _
        // Predicated region
        $region125: #{_lambda_.1} parent=107 // pred_check
          %p952 = pneg %p199
        $region126: #{_lambda_.1} parent=107 // pred_check_branch
          %954 = sbr.rel (%p952) target = $region128
        $region127: #{_lambda_.1} parent=107 // pred_region
          %p955 = scmp.lt.s32.totalorder %s75, 1
          %s956 = scalar_select %p955, %s75, 1
          %s957 = smul.addr %s956, 8
          %s958 = smul.addr %s957, 8
          %s959 = scalar_lea.vmem %s9, %s958
        $region128: #{_lambda_.1} parent=107 // pred_fallthru
          _
        // Predicated region
        $region129: #{_lambda_.1} parent=107 // pred_check
          %p960 = pneg %p225
        $region130: #{_lambda_.1} parent=107 // pred_check_branch
          %962 = sbr.rel (%p960) target = $region132
        $region131: #{_lambda_.1} parent=107 // pred_region
          %p963 = scmp.lt.s32.totalorder %s75, 1
          %s964 = scalar_select %p963, %s75, 1
          %s965 = smul.addr %s964, 8
          %s966 = smul.addr %s965, 8
          %s967 = scalar_lea.vmem %s11, %s966
        $region132: #{_lambda_.1} parent=107 // pred_fallthru
          _
        // Predicated region
        $region133: #{_lambda_.1} parent=107 // pred_check
          %p968 = pneg %p251
        $region134: #{_lambda_.1} parent=107 // pred_check_branch
          %970 = sbr.rel (%p968) target = $region136
        $region135: #{_lambda_.1} parent=107 // pred_region
          %p971 = scmp.lt.s32.totalorder %s75, 1
          %s972 = scalar_select %p971, %s75, 1
          %s973 = smul.addr %s972, 2
          %s974 = smul.addr %s973, 4
          %s975 = scalar_lea.vmem %s13, %s974
        $region136: #{_lambda_.1} parent=107 // pred_fallthru
          _
        // Predicated region
        $region137: #{_lambda_.1} parent=107 // pred_check
          %p976 = pneg %p277
        $region138: #{_lambda_.1} parent=107 // pred_check_branch
          %978 = sbr.rel (%p976) target = $region140
        $region139: #{_lambda_.1} parent=107 // pred_region
          %p979 = scmp.lt.s32.totalorder %s75, 1
          %s980 = scalar_select %p979, %s75, 1
          %s981 = smul.addr %s980, 2
          %s982 = smul.addr %s981, 4
          %s983 = scalar_lea.vmem %s15, %s982
        $region140: #{_lambda_.1} parent=107 // pred_fallthru
          _
        // Predicated region
        $region141: #{_lambda_.1} parent=107 // pred_check
          %p984 = pneg %p303
        $region142: #{_lambda_.1} parent=107 // pred_check_branch
          %986 = sbr.rel (%p984) target = $region144
        $region143: #{_lambda_.1} parent=107 // pred_region
          %p987 = scmp.lt.s32.totalorder %s75, 1
          %s988 = scalar_select %p987, %s75, 1
          %s989 = smul.addr %s988, 2
          %s990 = scalar_lea.vmem %s17, %s989
        $region144: #{_lambda_.1} parent=107 // pred_fallthru
          _
      $region108: #{_lambda_.1} parent=5 // pred_fallthru
        _
      %p991 = scmp.le.s32.totalorder 1, %s75
      %p992 = scmp.lt.s32.totalorder %s75, 3
      %p993 = pnand %p991, %p992
      %p994 = pneg %p993
      // Predicated region
      $region145: #{_lambda_.1} parent=5 // pred_check
        _
      $region146: #{_lambda_.1} parent=5 // pred_check_branch
        %996 = sbr.rel (%p993) target = $region148
      $region147: #{_lambda_.1} parent=5 // pred_region
        %s997 = ssub.s32 %s75, 1
        // Predicated region
        $region149: #{_lambda_.1} parent=147 // pred_check
          %p998 = pneg %p330
        $region150: #{_lambda_.1} parent=147 // pred_check_branch
          %1000 = sbr.rel (%p998) target = $region152
        $region151: #{_lambda_.1} parent=147 // pred_region
          %1001 = dma.done [#allocation6], 16
        $region152: #{_lambda_.1} parent=147 // pred_fallthru
          _
        // Predicated region
        $region153: #{_lambda_.1} parent=147 // pred_check
          %p1002 = pneg %p351
        $region154: #{_lambda_.1} parent=147 // pred_check_branch
          %1004 = sbr.rel (%p1002) target = $region156
        $region155: #{_lambda_.1} parent=147 // pred_region
          %1005 = dma.done [#allocation8], 16
        $region156: #{_lambda_.1} parent=147 // pred_fallthru
          _
        %1006 = sfence
        %p1007 = scmp.lt.s32.totalorder %s80, 1
        %s1008 = scalar_select %p1007, %s80, 1
        %s1009 = scalar_lea.vmem %s1, %s1008
        %p1010 = pneg %p101
        %p1011 = pneg %p98
        %p1012 = scmp.lt.s32.totalorder %s80, 1
        %s1013 = scalar_select %p1012, %s80, 1
        %s1014 = smul.addr %s1013, 2
        %s1015 = smul.addr %s1014, 8
        %s1016 = scalar_lea.vmem %s3, %s1015
        %p1017 = pneg %p127
        %p1018 = pneg %p124
        %p1019 = scmp.lt.s32.totalorder %s80, 1
        %s1020 = scalar_select %p1019, %s80, 1
        %s1021 = smul.addr %s1020, 8
        %s1022 = smul.addr %s1021, 8
        %s1023 = scalar_lea.vmem %s5, %s1022
        %p1024 = pneg %p153
        %p1025 = pneg %p150
        %p1026 = scmp.lt.s32.totalorder %s80, 1
        %s1027 = scalar_select %p1026, %s80, 1
        %s1028 = smul.addr %s1027, 8
        %s1029 = smul.addr %s1028, 8
        %s1030 = scalar_lea.vmem %s7, %s1029
        %p1031 = pneg %p179
        %p1032 = pneg %p176
        %p1033 = scmp.lt.s32.totalorder %s80, 1
        %s1034 = scalar_select %p1033, %s80, 1
        %s1035 = smul.addr %s1034, 8
        %s1036 = smul.addr %s1035, 8
        %s1037 = scalar_lea.vmem %s9, %s1036
        %p1038 = pneg %p205
        %p1039 = pneg %p202
        %p1040 = scmp.lt.s32.totalorder %s80, 1
        %s1041 = scalar_select %p1040, %s80, 1
        %s1042 = smul.addr %s1041, 8
        %s1043 = smul.addr %s1042, 8
        %s1044 = scalar_lea.vmem %s11, %s1043
        %p1045 = pneg %p231
        %p1046 = pneg %p228
        %p1047 = scmp.lt.s32.totalorder %s80, 1
        %s1048 = scalar_select %p1047, %s80, 1
        %s1049 = smul.addr %s1048, 2
        %s1050 = smul.addr %s1049, 4
        %s1051 = scalar_lea.vmem %s13, %s1050
        %p1052 = pneg %p257
        %p1053 = pneg %p254
        %p1054 = scmp.lt.s32.totalorder %s80, 1
        %s1055 = scalar_select %p1054, %s80, 1
        %s1056 = smul.addr %s1055, 2
        %s1057 = smul.addr %s1056, 4
        %s1058 = scalar_lea.vmem %s15, %s1057
        %p1059 = pneg %p283
        %p1060 = pneg %p280
        %p1061 = scmp.lt.s32.totalorder %s80, 1
        %s1062 = scalar_select %p1061, %s80, 1
        %s1063 = smul.addr %s1062, 2
        %s1064 = scalar_lea.vmem %s17, %s1063
        %p1065 = pneg %p309
        %p1066 = pneg %p306
        %p1067 = pneg %p330
        %p1068 = pneg %p327
        %p1069 = pneg %p351
        %p1070 = pneg %p348
        %p1071 = pneg %p372
        %p1072 = pneg %p369
        %p1073 = pneg %p393
        %p1074 = pneg %p390
        %p1075 = pneg %p414
        %p1076 = pneg %p411
        %p1077 = pneg %p435
        %p1078 = pneg %p432
        %p1079 = pneg %p456
        %p1080 = pneg %p453
        %p1081 = pneg %p477
        %p1082 = pneg %p474
        %p1083 = pneg %p498
        %p1084 = pneg %p495
        %p1085 = pneg %p519
        %p1086 = pneg %p516
        %p1087 = pneg %p540
        %p1088 = pneg %p537
        %p1089 = pneg %p561
        %p1090 = pneg %p558
        %p1091 = pneg %p582
        %p1092 = pneg %p579
        %p1093 = pneg %p603
        %p1094 = pneg %p600
        %p1095 = pneg %p624
        %p1096 = pneg %p621
        %p1097 = pneg %p645
        %p1098 = pneg %p642
        %p1099 = pneg %p666
        %p1100 = pneg %p663
        %p1101 = pneg %p687
        %p1102 = pneg %p684
        %p1103 = pneg %p708
        %p1104 = pneg %p705
        %p1105 = pneg %p729
        %p1106 = pneg %p726
        %p1107 = pneg %p750
        %p1108 = pneg %p747
        %p1109 = pneg %p771
        %p1110 = pneg %p768
        %p1111 = pneg %p792
        %p1112 = pneg %p789
        %p1113 = pneg %p818
        %p1114 = pneg %p815
        %p1115 = scmp.lt.s32.totalorder %s80, 1
        %s1116 = scalar_select %p1115, %s80, 1
        %s1117 = scalar_lea.vmem %s65, %s1116
        %p1118 = scmp.lt.s32.totalorder %s80, 1
        %s1119 = scalar_select %p1118, %s80, 1
        %s1120 = scalar_lea.vmem %s1, %s1119
        %p1121 = scmp.lt.s32.totalorder %s80, 1
        %s1122 = scalar_select %p1121, %s80, 1
        %s1123 = smul.addr %s1122, 2
        %s1124 = smul.addr %s1123, 8
        %s1125 = scalar_lea.vmem %s3, %s1124
        %p1126 = scmp.lt.s32.totalorder %s80, 1
        %s1127 = scalar_select %p1126, %s80, 1
        %s1128 = smul.addr %s1127, 8
        %s1129 = smul.addr %s1128, 8
        %s1130 = scalar_lea.vmem %s5, %s1129
        %p1131 = scmp.lt.s32.totalorder %s80, 1
        %s1132 = scalar_select %p1131, %s80, 1
        %s1133 = smul.addr %s1132, 8
        %s1134 = smul.addr %s1133, 8
        %s1135 = scalar_lea.vmem %s7, %s1134
        %p1136 = scmp.lt.s32.totalorder %s80, 1
        %s1137 = scalar_select %p1136, %s80, 1
        %s1138 = smul.addr %s1137, 8
        %s1139 = smul.addr %s1138, 8
        %s1140 = scalar_lea.vmem %s9, %s1139
        %p1141 = scmp.lt.s32.totalorder %s80, 1
        %s1142 = scalar_select %p1141, %s80, 1
        %s1143 = smul.addr %s1142, 8
        %s1144 = smul.addr %s1143, 8
        %s1145 = scalar_lea.vmem %s11, %s1144
        %p1146 = scmp.lt.s32.totalorder %s80, 1
        %s1147 = scalar_select %p1146, %s80, 1
        %s1148 = smul.addr %s1147, 2
        %s1149 = smul.addr %s1148, 4
        %s1150 = scalar_lea.vmem %s13, %s1149
        %p1151 = scmp.lt.s32.totalorder %s80, 1
        %s1152 = scalar_select %p1151, %s80, 1
        %s1153 = smul.addr %s1152, 2
        %s1154 = smul.addr %s1153, 4
        %s1155 = scalar_lea.vmem %s15, %s1154
        %p1156 = scmp.lt.s32.totalorder %s80, 1
        %s1157 = scalar_select %p1156, %s80, 1
        %s1158 = smul.addr %s1157, 2
        %s1159 = scalar_lea.vmem %s17, %s1158
        %p1160 = scmp.lt.s32.totalorder %s80, 1
        %s1161 = scalar_select %p1160, %s80, 1
        %s1162 = scalar_lea.vmem %s65, %s1161
        %v1164 = vlaneseq
        %v1165 = vand.u32 %v1164, 127
        %v1166 = vadd.s32 %v1165, 128
        %vm1167 = vcmp.lt.s32.totalorder %v1165, 0
        %v1168 = vsub.s32 0, %v1165
        %v1169 = vsel %vm1167, %v1168, %v1165
        %v1170 = vshrl.u32 %v1169, 4
        %v1171 = vand.u32 %v1169, 15
        %v1172 = vsub.s32 0, %v1171
        %v1173 = vsel %vm1167, %v1172, %v1171
        %vm1174 = vcmp.lt.s32.totalorder %v1166, 0
        %v1175 = vsub.s32 0, %v1166
        %v1176 = vsel %vm1174, %v1175, %v1166
        %v1177 = vshrl.u32 %v1176, 4
        %v1178 = vand.u32 %v1176, 15
        %v1179 = vsub.s32 0, %v1178
        %v1180 = vsel %vm1174, %v1179, %v1178
        %vm1181 = vcmp.ne.s32.totalorder %v1173, 0
        %vm1182 = vcmp.ne.s32.totalorder %v1180, 0
        %vm1183 = vcmp.lt.s32.totalorder %v1173, 0
        %vm1184 = vcmp.lt.s32.totalorder %v1180, 0
        %vm1185 = vmand %vm1183, %vm1181
        %vm1186 = vmand %vm1184, %vm1182
        %v1187 = vadd.s32 %v1173, 16
        %v1188 = vadd.s32 %v1180, 16
        %v1189 = vsel %vm1185, %v1187, %v1173
        %v1190 = vsel %vm1186, %v1188, %v1180
        %v1191 = vadd.s32 %v1189, 4294967294
        %v1192 = vadd.s32 %v1190, 4294967294
        %vm1193 = vcmp.ge.s32.totalorder %v1191, 0
        %vm1194 = vcmp.ge.s32.totalorder %v1192, 0
        %vm1195 = vcmp.lt.s32.totalorder %v1191, 16
        %vm1196 = vcmp.lt.s32.totalorder %v1192, 16
        %vm1197 = vmand %vm1193, %vm1195
        %vm1198 = vmand %vm1194, %vm1196
        %v1199 = vsel %vm1197, 1, 0
        %v1200 = vsel %vm1198, 1, 0
        %v1201 = vcvt.s32.f32 %v1199
        %v1202 = vcvt.s32.f32 %v1200
        %v1203 = vpack.c.bf16 %v1201, %v1201
        %v1204 = vpack.c.bf16 %v1202, %v1202
        %v1205 = vadd.s32 %v1189, 4294967295
        %v1206 = vadd.s32 %v1190, 4294967295
        %vm1207 = vcmp.ge.s32.totalorder %v1205, 0
        %vm1208 = vcmp.ge.s32.totalorder %v1206, 0
        %vm1209 = vcmp.lt.s32.totalorder %v1205, 16
        %vm1210 = vcmp.lt.s32.totalorder %v1206, 16
        %vm1211 = vmand %vm1207, %vm1209
        %vm1212 = vmand %vm1208, %vm1210
        %v1213 = vsel %vm1211, 1, 0
        %v1214 = vsel %vm1212, 1, 0
        %v1215 = vcvt.s32.f32 %v1213
        %v1216 = vcvt.s32.f32 %v1214
        %v1217 = vpack.c.bf16 %v1215, %v1215
        %v1218 = vpack.c.bf16 %v1216, %v1216
        %vm1219 = vcmp.ge.s32.totalorder %v1189, 0
        %vm1220 = vcmp.ge.s32.totalorder %v1190, 0
        %vm1221 = vcmp.lt.s32.totalorder %v1189, 16
        %vm1222 = vcmp.lt.s32.totalorder %v1190, 16
        %vm1223 = vmand %vm1219, %vm1221
        %vm1224 = vmand %vm1220, %vm1222
        %v1225 = vsel %vm1223, 1, 0
        %v1226 = vsel %vm1224, 1, 0
        %v1227 = vcvt.s32.f32 %v1225
        %v1228 = vcvt.s32.f32 %v1226
        %v1229 = vpack.c.bf16 %v1227, %v1227
        %v1230 = vpack.c.bf16 %v1228, %v1228
        %v1231 = vadd.s32 %v1189, 1
        %v1232 = vadd.s32 %v1190, 1
        %vm1233 = vcmp.ge.s32.totalorder %v1231, 0
        %vm1234 = vcmp.ge.s32.totalorder %v1232, 0
        %vm1235 = vcmp.lt.s32.totalorder %v1231, 16
        %vm1236 = vcmp.lt.s32.totalorder %v1232, 16
        %vm1237 = vmand %vm1233, %vm1235
        %vm1238 = vmand %vm1234, %vm1236
        %v1239 = vsel %vm1237, 1, 0
        %v1240 = vsel %vm1238, 1, 0
        %v1241 = vcvt.s32.f32 %v1239
        %v1242 = vcvt.s32.f32 %v1240
        %v1243 = vpack.c.bf16 %v1241, %v1241
        %v1244 = vpack.c.bf16 %v1242, %v1242
        %v1245 = vadd.s32 %v1189, 2
        %v1246 = vadd.s32 %v1190, 2
        %vm1247 = vcmp.ge.s32.totalorder %v1245, 0
        %vm1248 = vcmp.ge.s32.totalorder %v1246, 0
        %vm1249 = vcmp.lt.s32.totalorder %v1245, 16
        %vm1250 = vcmp.lt.s32.totalorder %v1246, 16
        %vm1251 = vmand %vm1247, %vm1249
        %vm1252 = vmand %vm1248, %vm1250
        %v1253 = vsel %vm1251, 1, 0
        %v1254 = vsel %vm1252, 1, 0
        %v1255 = vcvt.s32.f32 %v1253
        %v1256 = vcvt.s32.f32 %v1254
        %v1257 = vpack.c.bf16 %v1255, %v1255
        %v1258 = vpack.c.bf16 %v1256, %v1256
        %v1259 = vld [vmem:[%s1130] sm:$0xff]
        %v1260 = vld [vmem:[%s1130 + $0x8] sm:$0xff]
        %v1261 = vld [vmem:[%s1130 + $0x10] sm:$0xff]
        %v1262 = vld [vmem:[%s1130 + $0x18] sm:$0xff]
        %v1263 = vld [vmem:[%s1130 + $0x20] sm:$0xff]
        %v1264 = vld [vmem:[%s1130 + $0x28] sm:$0xff]
        %v1265 = vld [vmem:[%s1130 + $0x30] sm:$0xff]
        %v1266 = vld [vmem:[%s1130 + $0x38] sm:$0xff]
        %v1267 = vld [vmem:[%s1135] sm:$0xff]
        %v1268 = vld [vmem:[%s1135 + $0x8] sm:$0xff]
        %v1269 = vld [vmem:[%s1135 + $0x10] sm:$0xff]
        %v1270 = vld [vmem:[%s1135 + $0x18] sm:$0xff]
        %v1271 = vld [vmem:[%s1135 + $0x20] sm:$0xff]
        %v1272 = vld [vmem:[%s1135 + $0x28] sm:$0xff]
        %v1273 = vld [vmem:[%s1135 + $0x30] sm:$0xff]
        %v1274 = vld [vmem:[%s1135 + $0x38] sm:$0xff]
        %v1275 = vld [vmem:[%s1140] sm:$0xff]
        %v1276 = vld [vmem:[%s1140 + $0x8] sm:$0xff]
        %v1277 = vld [vmem:[%s1140 + $0x10] sm:$0xff]
        %v1278 = vld [vmem:[%s1140 + $0x18] sm:$0xff]
        %v1279 = vld [vmem:[%s1140 + $0x20] sm:$0xff]
        %v1280 = vld [vmem:[%s1140 + $0x28] sm:$0xff]
        %v1281 = vld [vmem:[%s1140 + $0x30] sm:$0xff]
        %v1282 = vld [vmem:[%s1140 + $0x38] sm:$0xff]
        %v1283 = vld [vmem:[%s1145] sm:$0xff]
        %v1284 = vld [vmem:[%s1145 + $0x8] sm:$0xff]
        %v1285 = vld [vmem:[%s1145 + $0x10] sm:$0xff]
        %v1286 = vld [vmem:[%s1145 + $0x18] sm:$0xff]
        %v1287 = vld [vmem:[%s1145 + $0x20] sm:$0xff]
        %v1288 = vld [vmem:[%s1145 + $0x28] sm:$0xff]
        %v1289 = vld [vmem:[%s1145 + $0x30] sm:$0xff]
        %v1290 = vld [vmem:[%s1145 + $0x38] sm:$0xff]
        %v1291 = vld [vmem:[%s1150] sm:$0xff]
        %v1292 = vld [vmem:[%s1155] sm:$0xff]
        %s1293 = sld [smem:[#allocation7]]
        %s1294 = sld [smem:[#allocation7 + $0x1]]
        %s1295 = sld [smem:[#allocation7 + $0x2]]
        %s1296 = sld [smem:[#allocation7 + $0x3]]
        %s1297 = sld [smem:[#allocation7 + $0x4]]
        %s1298 = sld [smem:[#allocation7 + $0x5]]
        %v1299 = vstv %s1293
        %v1300 = vmul.f32 %v1299, %v1259
        %v1301 = vmul.f32 %v1299, %v1260
        %v1302 = vstv %s1294
        %v1303 = vmul.f32 %v1302, %v1267
        %v1304 = vmul.f32 %v1302, %v1268
        %v1305 = vadd.f32 %v1300, %v1303
        %v1306 = vadd.f32 %v1301, %v1304
        %v1307 = vstv %s1295
        %v1308 = vmul.f32 %v1307, %v1275
        %v1309 = vmul.f32 %v1307, %v1276
        %v1310 = vadd.f32 %v1305, %v1308
        %v1311 = vadd.f32 %v1306, %v1309
        %v1312 = vstv %s1296
        %v1313 = vmul.f32 %v1312, %v1291
        %v1315 = vlaneseq
        %v1316 = vshrl.u32 %v1315, 7
        %v1317 = vsub.s32 0, %v1316
        %v1318 = vrot.slane %v1313, %v1317
        %v1319 = vlaneseq
        %v1320 = vshrl.u32 %v1319, 7
        %v1321 = vsub.s32 4, %v1320
        %v1322 = vrot.slane %v1313, %v1321
        %v1325 = vlaneseq
        %v1326 = vshrl.u32 %v1325, 7
        %v1327 = vsub.s32 0, %v1326
        %v1328 = vrot.slane %v1318, %v1327
        %v1329 = vlaneseq
        %v1330 = vshrl.u32 %v1329, 7
        %v1331 = vsub.s32 0, %v1330
        %v1332 = vrot.slane %v1322, %v1331
        %v1333 = vadd.f32 %v1310, %v1328
        %v1334 = vadd.f32 %v1311, %v1332
        %v1335 = vstv %s1297
        %v1336 = vmul.f32 %v1335, %v1283
        %v1337 = vmul.f32 %v1335, %v1284
        %v1338 = vadd.f32 %v1333, %v1336
        %v1339 = vadd.f32 %v1334, %v1337
        %v1340 = vstv %s1298
        %v1341 = vmul.f32 %v1340, %v1292
        %v1343 = vlaneseq
        %v1344 = vshrl.u32 %v1343, 7
        %v1345 = vsub.s32 0, %v1344
        %v1346 = vrot.slane %v1341, %v1345
        %v1347 = vlaneseq
        %v1348 = vshrl.u32 %v1347, 7
        %v1349 = vsub.s32 4, %v1348
        %v1350 = vrot.slane %v1341, %v1349
        %v1353 = vlaneseq
        %v1354 = vshrl.u32 %v1353, 7
        %v1355 = vsub.s32 0, %v1354
        %v1356 = vrot.slane %v1346, %v1355
        %v1357 = vlaneseq
        %v1358 = vshrl.u32 %v1357, 7
        %v1359 = vsub.s32 0, %v1358
        %v1360 = vrot.slane %v1350, %v1359
        %v1361 = vadd.f32 %v1338, %v1356
        %v1362 = vadd.f32 %v1339, %v1360
        %s1363 = sld [smem:[#allocation5]]
        %v1364 = vstv %s1363
        %v1365 = vmul.f32 %v1364, %v1361
        %v1366 = vmul.f32 %v1364, %v1362
        %v1367 = vadd.f32 %v1365, 0.0
        %v1368 = vadd.f32 %v1366, 0.0
        %v1369 = vmul.f32 %v1299, %v1261
        %v1370 = vmul.f32 %v1299, %v1262
        %v1371 = vmul.f32 %v1302, %v1269
        %v1372 = vmul.f32 %v1302, %v1270
        %v1373 = vadd.f32 %v1369, %v1371
        %v1374 = vadd.f32 %v1370, %v1372
        %v1375 = vmul.f32 %v1307, %v1277
        %v1376 = vmul.f32 %v1307, %v1278
        %v1377 = vadd.f32 %v1373, %v1375
        %v1378 = vadd.f32 %v1374, %v1376
        %v1379 = vlaneseq
        %v1380 = vshrl.u32 %v1379, 7
        %v1381 = vsub.s32 1, %v1380
        %v1382 = vrot.slane %v1313, %v1381
        %v1383 = vlaneseq
        %v1384 = vshrl.u32 %v1383, 7
        %v1385 = vsub.s32 5, %v1384
        %v1386 = vrot.slane %v1313, %v1385
        %v1389 = vlaneseq
        %v1390 = vshrl.u32 %v1389, 7
        %v1391 = vsub.s32 1, %v1390
        %v1392 = vrot.slane %v1382, %v1391
        %v1393 = vlaneseq
        %v1394 = vshrl.u32 %v1393, 7
        %v1395 = vsub.s32 1, %v1394
        %v1396 = vrot.slane %v1386, %v1395
        %v1397 = vadd.f32 %v1377, %v1392
        %v1398 = vadd.f32 %v1378, %v1396
        %v1399 = vmul.f32 %v1335, %v1285
        %v1400 = vmul.f32 %v1335, %v1286
        %v1401 = vadd.f32 %v1397, %v1399
        %v1402 = vadd.f32 %v1398, %v1400
        %v1403 = vlaneseq
        %v1404 = vshrl.u32 %v1403, 7
        %v1405 = vsub.s32 1, %v1404
        %v1406 = vrot.slane %v1341, %v1405
        %v1407 = vlaneseq
        %v1408 = vshrl.u32 %v1407, 7
        %v1409 = vsub.s32 5, %v1408
        %v1410 = vrot.slane %v1341, %v1409
        %v1413 = vlaneseq
        %v1414 = vshrl.u32 %v1413, 7
        %v1415 = vsub.s32 1, %v1414
        %v1416 = vrot.slane %v1406, %v1415
        %v1417 = vlaneseq
        %v1418 = vshrl.u32 %v1417, 7
        %v1419 = vsub.s32 1, %v1418
        %v1420 = vrot.slane %v1410, %v1419
        %v1421 = vadd.f32 %v1401, %v1416
        %v1422 = vadd.f32 %v1402, %v1420
        %s1423 = sld [smem:[#allocation5 + $0x1]]
        %v1424 = vstv %s1423
        %v1425 = vmul.f32 %v1424, %v1421
        %v1426 = vmul.f32 %v1424, %v1422
        %v1427 = vadd.f32 %v1367, %v1425
        %v1428 = vadd.f32 %v1368, %v1426
        %v1429 = vmul.f32 %v1299, %v1263
        %v1430 = vmul.f32 %v1299, %v1264
        %v1431 = vmul.f32 %v1302, %v1271
        %v1432 = vmul.f32 %v1302, %v1272
        %v1433 = vadd.f32 %v1429, %v1431
        %v1434 = vadd.f32 %v1430, %v1432
        %v1435 = vmul.f32 %v1307, %v1279
        %v1436 = vmul.f32 %v1307, %v1280
        %v1437 = vadd.f32 %v1433, %v1435
        %v1438 = vadd.f32 %v1434, %v1436
        %v1439 = vlaneseq
        %v1440 = vshrl.u32 %v1439, 7
        %v1441 = vsub.s32 2, %v1440
        %v1442 = vrot.slane %v1313, %v1441
        %v1443 = vlaneseq
        %v1444 = vshrl.u32 %v1443, 7
        %v1445 = vsub.s32 6, %v1444
        %v1446 = vrot.slane %v1313, %v1445
        %v1449 = vlaneseq
        %v1450 = vshrl.u32 %v1449, 7
        %v1451 = vsub.s32 2, %v1450
        %v1452 = vrot.slane %v1442, %v1451
        %v1453 = vlaneseq
        %v1454 = vshrl.u32 %v1453, 7
        %v1455 = vsub.s32 2, %v1454
        %v1456 = vrot.slane %v1446, %v1455
        %v1457 = vadd.f32 %v1437, %v1452
        %v1458 = vadd.f32 %v1438, %v1456
        %v1459 = vmul.f32 %v1335, %v1287
        %v1460 = vmul.f32 %v1335, %v1288
        %v1461 = vadd.f32 %v1457, %v1459
        %v1462 = vadd.f32 %v1458, %v1460
        %v1463 = vlaneseq
        %v1464 = vshrl.u32 %v1463, 7
        %v1465 = vsub.s32 2, %v1464
        %v1466 = vrot.slane %v1341, %v1465
        %v1467 = vlaneseq
        %v1468 = vshrl.u32 %v1467, 7
        %v1469 = vsub.s32 6, %v1468
        %v1470 = vrot.slane %v1341, %v1469
        %v1473 = vlaneseq
        %v1474 = vshrl.u32 %v1473, 7
        %v1475 = vsub.s32 2, %v1474
        %v1476 = vrot.slane %v1466, %v1475
        %v1477 = vlaneseq
        %v1478 = vshrl.u32 %v1477, 7
        %v1479 = vsub.s32 2, %v1478
        %v1480 = vrot.slane %v1470, %v1479
        %v1481 = vadd.f32 %v1461, %v1476
        %v1482 = vadd.f32 %v1462, %v1480
        %s1483 = sld [smem:[#allocation5 + $0x2]]
        %v1484 = vstv %s1483
        %v1485 = vmul.f32 %v1484, %v1481
        %v1486 = vmul.f32 %v1484, %v1482
        %v1487 = vadd.f32 %v1427, %v1485
        %v1488 = vadd.f32 %v1428, %v1486
        %v1489 = vmul.f32 %v1299, %v1265
        %v1490 = vmul.f32 %v1299, %v1266
        %v1491 = vmul.f32 %v1302, %v1273
        %v1492 = vmul.f32 %v1302, %v1274
        %v1493 = vadd.f32 %v1489, %v1491
        %v1494 = vadd.f32 %v1490, %v1492
        %v1495 = vmul.f32 %v1307, %v1281
        %v1496 = vmul.f32 %v1307, %v1282
        %v1497 = vadd.f32 %v1493, %v1495
        %v1498 = vadd.f32 %v1494, %v1496
        %v1499 = vlaneseq
        %v1500 = vshrl.u32 %v1499, 7
        %v1501 = vsub.s32 3, %v1500
        %v1502 = vrot.slane %v1313, %v1501
        %v1503 = vlaneseq
        %v1504 = vshrl.u32 %v1503, 7
        %v1505 = vsub.s32 7, %v1504
        %v1506 = vrot.slane %v1313, %v1505
        %v1509 = vlaneseq
        %v1510 = vshrl.u32 %v1509, 7
        %v1511 = vsub.s32 3, %v1510
        %v1512 = vrot.slane %v1502, %v1511
        %v1513 = vlaneseq
        %v1514 = vshrl.u32 %v1513, 7
        %v1515 = vsub.s32 3, %v1514
        %v1516 = vrot.slane %v1506, %v1515
        %v1517 = vadd.f32 %v1497, %v1512
        %v1518 = vadd.f32 %v1498, %v1516
        %v1519 = vmul.f32 %v1335, %v1289
        %v1520 = vmul.f32 %v1335, %v1290
        %v1521 = vadd.f32 %v1517, %v1519
        %v1522 = vadd.f32 %v1518, %v1520
        %v1523 = vlaneseq
        %v1524 = vshrl.u32 %v1523, 7
        %v1525 = vsub.s32 3, %v1524
        %v1526 = vrot.slane %v1341, %v1525
        %v1527 = vlaneseq
        %v1528 = vshrl.u32 %v1527, 7
        %v1529 = vsub.s32 7, %v1528
        %v1530 = vrot.slane %v1341, %v1529
        %v1533 = vlaneseq
        %v1534 = vshrl.u32 %v1533, 7
        %v1535 = vsub.s32 3, %v1534
        %v1536 = vrot.slane %v1526, %v1535
        %v1537 = vlaneseq
        %v1538 = vshrl.u32 %v1537, 7
        %v1539 = vsub.s32 3, %v1538
        %v1540 = vrot.slane %v1530, %v1539
        %v1541 = vadd.f32 %v1521, %v1536
        %v1542 = vadd.f32 %v1522, %v1540
        %s1543 = sld [smem:[#allocation5 + $0x3]]
        %v1544 = vstv %s1543
        %v1545 = vmul.f32 %v1544, %v1541
        %v1546 = vmul.f32 %v1544, %v1542
        %v1547 = vadd.f32 %v1487, %v1545
        %v1548 = vadd.f32 %v1488, %v1546
        %s1549 = sld [smem:[#allocation3]]
        %v1550 = vstv %s1549
        %v1551 = vadd.f32 %v1547, %v1550
        %v1552 = vadd.f32 %v1548, %v1550
        %vm1553 = vcmp.gt.f32.partialorder %v1551, 0.0
        %vm1554 = vcmp.gt.f32.partialorder %v1552, 0.0
        %v1555 = vmul.f32 %v1551, 0.01
        %v1556 = vmul.f32 %v1552, 0.01
        %v1557 = vsel %vm1553, %v1551, %v1555
        %v1558 = vsel %vm1554, %v1552, %v1556
        %v1559 = vld [vmem:[%s1159] sm:$0x3]
        %v1561 = vlaneseq
        %v1562 = vshrl.u32 %v1561, 7
        %v1563 = vsub.s32 0, %v1562
        %v1564 = vrot.slane %v1559, %v1563
        %v1565 = vlaneseq
        %v1566 = vshrl.u32 %v1565, 7
        %v1567 = vsub.s32 1, %v1566
        %v1568 = vrot.slane %v1559, %v1567
        %v1571 = vmul.f32 %v1557, %v1564
        %v1572 = vmul.f32 %v1558, %v1568
        %v1573 = vld [vmem:[%s27] sm:$0xff]
        %v1574 = vld [vmem:[%s1120] sm:$0x1]
        %v1576 = vlaneseq
        %v1577 = vshrl.u32 %v1576, 7
        %v1578 = vsub.s32 0, %v1577
        %v1579 = vrot.slane %v1574, %v1578
        %v1581 = vmul.f32 %v1573, %v1579
        %vm1582 = vcmask 130048
        %v1583 = vsel %vm1582, %v1581, 0.0
        %1584 = vadd.xlane.f32.xlu0 %v1583
        %v1585 = vpop.xlane.xlu0 %1584
        %v1586 = vld [vmem:[%s29] sm:$0xff]
        %v1587 = vadd.f32 %v1585, %v1586
        %vm1588 = vcmp.gt.f32.partialorder %v1587, 0.0
        %v1589 = vmul.f32 %v1587, 0.01
        %v1590 = vsel %vm1588, %v1587, %v1589
        %1592 = vset.pattern.permute.xlu0 0
        %1593 = vperm.xlu0 %1592, %v1590
        %v1594 = vpop.permute.xlu0 %1593
        %v1596 = vld [vmem:[%s1125] sm:$0xff]
        %v1597 = vld [vmem:[%s1125 + $0x8] sm:$0xff]
        %v1598 = vld [vmem:[%s31] sm:$0xff]
        %v1599 = vld [vmem:[%s31 + $0x8] sm:$0xff]
        %v1600 = vld [vmem:[%s31 + $0x10] sm:$0xff]
        %v1601 = vld [vmem:[%s31 + $0x18] sm:$0xff]
        %v1602 = vld [vmem:[%s33] sm:$0xff]
        %v1603 = vld [vmem:[%s33 + $0x8] sm:$0xff]
        %v1604 = vld [vmem:[%s33 + $0x10] sm:$0xff]
        %v1605 = vld [vmem:[%s33 + $0x18] sm:$0xff]
        %1607 = vset.pattern.permute.xlu0 0
        %1608 = vperm.xlu0 %1607, %v1602
        %v1609 = vpop.permute.xlu0 %1608
        %1612 = vset.pattern.permute.xlu0 0
        %1613 = vperm.xlu0 %1612, %v1603
        %v1614 = vpop.permute.xlu0 %1613
        %1617 = vset.pattern.permute.xlu0 0
        %1618 = vperm.xlu0 %1617, %v1604
        %v1619 = vpop.permute.xlu0 %1618
        %1622 = vset.pattern.permute.xlu0 0
        %1623 = vperm.xlu0 %1622, %v1605
        %v1624 = vpop.permute.xlu0 %1623
        %vm1626 = vcmask 195584
        %v1628 = vsel %vm1626, %v1598, 0
        %v1631 = vsel %vm1626, %v1599, 0
        %v1634 = vsel %vm1626, %v1600, 0
        %v1637 = vsel %vm1626, %v1601, 0
        %1639 = vmatprep.subr.mxu0 %v1594
        %1640 = vmatpush1.msra.mxu0 %v1594
        %1641 = vmatprep.subr.mxu0 %v1597
        %1642 = vmatpush1.msra.mxu0 %v1596
        %1643 = vmatprep.subr.mxu0 %v1572
        %1644 = vmatpush1.msra.mxu0 %v1571
        %1645 = vmatprep.subr.mxu0 0.0
        %1646 = vmatpush1.msra.mxu0 0.0
        %1647 = vmatprep.subr.mxu0 0.0
        %1648 = vmatpush1.msra.mxu0 0.0
        %1649 = vmatprep.subr.mxu0 0.0
        %1650 = vmatpush1.msra.mxu0 0.0
        %1651 = vmatprep.subr.mxu0 0.0
        %1652 = vmatpush1.msra.mxu0 0.0
        %1653 = vmatprep.subr.mxu0 0.0
        %1654 = vmatpush1.msra.mxu0 0.0
        %1655 = vmatprep.subr.mxu0 0.0
        %1656 = vmatpush1.msra.mxu0 0.0
        %1657 = vmatprep.subr.mxu0 0.0
        %1658 = vmatpush1.msra.mxu0 0.0
        %1659 = vmatprep.subr.mxu0 0.0
        %1660 = vmatpush1.msra.mxu0 0.0
        %1661 = vmatprep.subr.mxu0 0.0
        %1662 = vmatpush1.msra.mxu0 0.0
        %1663 = vmatprep.subr.mxu0 0.0
        %1664 = vmatpush1.msra.mxu0 0.0
        %1665 = vmatprep.subr.mxu0 0.0
        %1666 = vmatpush1.msra.mxu0 0.0
        %1667 = vmatprep.subr.mxu0 0.0
        %1668 = vmatpush1.msra.mxu0 0.0
        %1669 = vmatprep.subr.mxu0 0.0
        %1670 = vmatpush1.msra.mxu0 0.0
        %1671 = vmatprep.subr.mxu0 0.0
        %1672 = vmatpush1.msra.mxu0 0.0
        %1673 = vmatprep.subr.mxu0 0.0
        %1674 = vmatpush1.msra.mxu0 0.0
        %1675 = vmatprep.subr.mxu0 0.0
        %1676 = vmatpush1.msra.mxu0 0.0
        %1677 = vmatprep.subr.mxu0 0.0
        %1678 = vmatpush1.msra.mxu0 0.0
        %1679 = vmatprep.subr.mxu0 0.0
        %1680 = vmatpush1.msra.mxu0 0.0
        %1681 = vmatprep.subr.mxu0 0.0
        %1682 = vmatpush1.msra.mxu0 0.0
        %1683 = vmatprep.subr.mxu0 0.0
        %1684 = vmatpush1.msra.mxu0 0.0
        %1685 = vmatprep.subr.mxu0 0.0
        %1686 = vmatpush1.msra.mxu0 0.0
        %1687 = vmatprep.subr.mxu0 0.0
        %1688 = vmatpush1.msra.mxu0 0.0
        %1689 = vmatprep.subr.mxu0 0.0
        %1690 = vmatpush1.msra.mxu0 0.0
        %1691 = vmatprep.subr.mxu0 0.0
        %1692 = vmatpush1.msra.mxu0 0.0
        %1693 = vmatprep.subr.mxu0 0.0
        %1694 = vmatpush1.msra.mxu0 0.0
        %1695 = vmatprep.subr.mxu0 0.0
        %1696 = vmatpush1.msra.mxu0 0.0
        %1697 = vmatprep.subr.mxu0 0.0
        %1698 = vmatpush1.msra.mxu0 0.0
        %1699 = vmatprep.subr.mxu0 0.0
        %1700 = vmatpush1.msra.mxu0 0.0
        %1701 = vmatprep.subr.mxu0 0.0
        %1702 = vmatpush1.msra.mxu0 0.0
        %1703 = vmatprep.mubr.f32.mxu0 0.0
        %1704 = vmatmul.mubr.f32.gmra.mrb[0].mxu0 %v1628
        %v1705 = vpop.f32.mrb[0].mxu0
        %v1706 = vadd.f32 %v1609, %v1705
        %v1707 = vpop.f32.mrb[0].mxu0
        %v1708 = vadd.f32 %v1609, %v1707
        %1709 = vmatprep.mubr.f32.mxu0 0.0
        %1710 = vmatmul.mubr.f32.gmra.mrb[0].mxu0 %v1631
        %v1711 = vpop.f32.mrb[0].mxu0
        %v1712 = vadd.f32 %v1614, %v1711
        %v1713 = vpop.f32.mrb[0].mxu0
        %v1714 = vadd.f32 %v1614, %v1713
        %1715 = vmatprep.mubr.f32.mxu0 0.0
        %1716 = vmatmul.mubr.f32.gmra.mrb[0].mxu0 %v1634
        %v1717 = vpop.f32.mrb[0].mxu0
        %v1718 = vadd.f32 %v1619, %v1717
        %v1719 = vpop.f32.mrb[0].mxu0
        %v1720 = vadd.f32 %v1619, %v1719
        %1721 = vmatprep.mubr.f32.mxu0 0.0
        %1722 = vmatmul.mubr.f32.gmra.mrb[0].mxu0 %v1637
        %v1723 = vpop.f32.mrb[0].mxu0
        %v1724 = vadd.f32 %v1624, %v1723
        %v1725 = vpop.f32.mrb[0].mxu0
        %v1726 = vadd.f32 %v1624, %v1725
        %1727 = vdwg.mxu0
        %vm1728 = vcmp.gt.f32.partialorder %v1706, 0.0
        %vm1729 = vcmp.gt.f32.partialorder %v1708, 0.0
        %vm1730 = vcmp.gt.f32.partialorder %v1712, 0.0
        %vm1731 = vcmp.gt.f32.partialorder %v1714, 0.0
        %vm1732 = vcmp.gt.f32.partialorder %v1718, 0.0
        %vm1733 = vcmp.gt.f32.partialorder %v1720, 0.0
        %vm1734 = vcmp.gt.f32.partialorder %v1724, 0.0
        %vm1735 = vcmp.gt.f32.partialorder %v1726, 0.0
        %v1736 = vmul.f32 %v1706, 0.01
        %v1737 = vmul.f32 %v1708, 0.01
        %v1738 = vmul.f32 %v1712, 0.01
        %v1739 = vmul.f32 %v1714, 0.01
        %v1740 = vmul.f32 %v1718, 0.01
        %v1741 = vmul.f32 %v1720, 0.01
        %v1742 = vmul.f32 %v1724, 0.01
        %v1743 = vmul.f32 %v1726, 0.01
        %v1744 = vsel %vm1728, %v1706, %v1736
        %v1745 = vsel %vm1729, %v1708, %v1737
        %v1746 = vsel %vm1730, %v1712, %v1738
        %v1747 = vsel %vm1731, %v1714, %v1739
        %v1748 = vsel %vm1732, %v1718, %v1740
        %v1749 = vsel %vm1733, %v1720, %v1741
        %v1750 = vsel %vm1734, %v1724, %v1742
        %v1751 = vsel %vm1735, %v1726, %v1743
        %v1752 = vld [vmem:[%s35] sm:$0xff]
        %v1753 = vld [vmem:[%s35 + $0x8] sm:$0xff]
        %v1754 = vld [vmem:[%s35 + $0x10] sm:$0xff]
        %v1755 = vld [vmem:[%s35 + $0x18] sm:$0xff]
        %v1756 = vld [vmem:[%s37] sm:$0xff]
        %v1757 = vld [vmem:[%s37 + $0x8] sm:$0xff]
        %v1758 = vld [vmem:[%s37 + $0x10] sm:$0xff]
        %v1759 = vld [vmem:[%s37 + $0x18] sm:$0xff]
        %1761 = vset.pattern.permute.xlu0 0
        %1762 = vperm.xlu0 %1761, %v1756
        %v1763 = vpop.permute.xlu0 %1762
        %1766 = vset.pattern.permute.xlu0 0
        %1767 = vperm.xlu0 %1766, %v1757
        %v1768 = vpop.permute.xlu0 %1767
        %1771 = vset.pattern.permute.xlu0 0
        %1772 = vperm.xlu0 %1771, %v1758
        %v1773 = vpop.permute.xlu0 %1772
        %1776 = vset.pattern.permute.xlu0 0
        %1777 = vperm.xlu0 %1776, %v1759
        %v1778 = vpop.permute.xlu0 %1777
        %vm1780 = vcmask 261120
        %v1782 = vsel %vm1780, %v1752, 0
        %v1785 = vsel %vm1780, %v1753, 0
        %v1788 = vsel %vm1780, %v1754, 0
        %v1791 = vsel %vm1780, %v1755, 0
        %1793 = vmatprep.subr.mxu0 %v1745
        %1794 = vmatpush1.msra.mxu0 %v1744
        %1795 = vmatprep.subr.mxu0 %v1747
        %1796 = vmatpush1.msra.mxu0 %v1746
        %1797 = vmatprep.subr.mxu0 %v1749
        %1798 = vmatpush1.msra.mxu0 %v1748
        %1799 = vmatprep.subr.mxu0 %v1751
        %1800 = vmatpush1.msra.mxu0 %v1750
        %1801 = vmatprep.subr.mxu0 0.0
        %1802 = vmatpush1.msra.mxu0 0.0
        %1803 = vmatprep.subr.mxu0 0.0
        %1804 = vmatpush1.msra.mxu0 0.0
        %1805 = vmatprep.subr.mxu0 0.0
        %1806 = vmatpush1.msra.mxu0 0.0
        %1807 = vmatprep.subr.mxu0 0.0
        %1808 = vmatpush1.msra.mxu0 0.0
        %1809 = vmatprep.subr.mxu0 0.0
        %1810 = vmatpush1.msra.mxu0 0.0
        %1811 = vmatprep.subr.mxu0 0.0
        %1812 = vmatpush1.msra.mxu0 0.0
        %1813 = vmatprep.subr.mxu0 0.0
        %1814 = vmatpush1.msra.mxu0 0.0
        %1815 = vmatprep.subr.mxu0 0.0
        %1816 = vmatpush1.msra.mxu0 0.0
        %1817 = vmatprep.subr.mxu0 0.0
        %1818 = vmatpush1.msra.mxu0 0.0
        %1819 = vmatprep.subr.mxu0 0.0
        %1820 = vmatpush1.msra.mxu0 0.0
        %1821 = vmatprep.subr.mxu0 0.0
        %1822 = vmatpush1.msra.mxu0 0.0
        %1823 = vmatprep.subr.mxu0 0.0
        %1824 = vmatpush1.msra.mxu0 0.0
        %1825 = vmatprep.subr.mxu0 0.0
        %1826 = vmatpush1.msra.mxu0 0.0
        %1827 = vmatprep.subr.mxu0 0.0
        %1828 = vmatpush1.msra.mxu0 0.0
        %1829 = vmatprep.subr.mxu0 0.0
        %1830 = vmatpush1.msra.mxu0 0.0
        %1831 = vmatprep.subr.mxu0 0.0
        %1832 = vmatpush1.msra.mxu0 0.0
        %1833 = vmatprep.subr.mxu0 0.0
        %1834 = vmatpush1.msra.mxu0 0.0
        %1835 = vmatprep.subr.mxu0 0.0
        %1836 = vmatpush1.msra.mxu0 0.0
        %1837 = vmatprep.subr.mxu0 0.0
        %1838 = vmatpush1.msra.mxu0 0.0
        %1839 = vmatprep.subr.mxu0 0.0
        %1840 = vmatpush1.msra.mxu0 0.0
        %1841 = vmatprep.subr.mxu0 0.0
        %1842 = vmatpush1.msra.mxu0 0.0
        %1843 = vmatprep.subr.mxu0 0.0
        %1844 = vmatpush1.msra.mxu0 0.0
        %1845 = vmatprep.subr.mxu0 0.0
        %1846 = vmatpush1.msra.mxu0 0.0
        %1847 = vmatprep.subr.mxu0 0.0
        %1848 = vmatpush1.msra.mxu0 0.0
        %1849 = vmatprep.subr.mxu0 0.0
        %1850 = vmatpush1.msra.mxu0 0.0
        %1851 = vmatprep.subr.mxu0 0.0
        %1852 = vmatpush1.msra.mxu0 0.0
        %1853 = vmatprep.subr.mxu0 0.0
        %1854 = vmatpush1.msra.mxu0 0.0
        %1855 = vmatprep.subr.mxu0 0.0
        %1856 = vmatpush1.msra.mxu0 0.0
        %1857 = vmatprep.mubr.f32.mxu0 0.0
        %1858 = vmatmul.mubr.f32.gmra.mrb[0].mxu0 %v1782
        %v1859 = vpop.f32.mrb[0].mxu0
        %v1860 = vadd.f32 %v1763, %v1859
        %v1861 = vpop.f32.mrb[0].mxu0
        %v1862 = vadd.f32 %v1763, %v1861
        %1863 = vmatprep.mubr.f32.mxu0 0.0
        %1864 = vmatmul.mubr.f32.gmra.mrb[0].mxu0 %v1785
        %v1865 = vpop.f32.mrb[0].mxu0
        %v1866 = vadd.f32 %v1768, %v1865
        %v1867 = vpop.f32.mrb[0].mxu0
        %v1868 = vadd.f32 %v1768, %v1867
        %1869 = vmatprep.mubr.f32.mxu0 0.0
        %1870 = vmatmul.mubr.f32.gmra.mrb[0].mxu0 %v1788
        %v1871 = vpop.f32.mrb[0].mxu0
        %v1872 = vadd.f32 %v1773, %v1871
        %v1873 = vpop.f32.mrb[0].mxu0
        %v1874 = vadd.f32 %v1773, %v1873
        %1875 = vmatprep.mubr.f32.mxu0 0.0
        %1876 = vmatmul.mubr.f32.gmra.mrb[0].mxu0 %v1791
        %v1877 = vpop.f32.mrb[0].mxu0
        %v1878 = vadd.f32 %v1778, %v1877
        %v1879 = vpop.f32.mrb[0].mxu0
        %v1880 = vadd.f32 %v1778, %v1879
        %1881 = vdwg.mxu0
        %vm1882 = vcmp.gt.f32.partialorder %v1860, 0.0
        %vm1883 = vcmp.gt.f32.partialorder %v1862, 0.0
        %vm1884 = vcmp.gt.f32.partialorder %v1866, 0.0
        %vm1885 = vcmp.gt.f32.partialorder %v1868, 0.0
        %vm1886 = vcmp.gt.f32.partialorder %v1872, 0.0
        %vm1887 = vcmp.gt.f32.partialorder %v1874, 0.0
        %vm1888 = vcmp.gt.f32.partialorder %v1878, 0.0
        %vm1889 = vcmp.gt.f32.partialorder %v1880, 0.0
        %v1890 = vmul.f32 %v1860, 0.01
        %v1891 = vmul.f32 %v1862, 0.01
        %v1892 = vmul.f32 %v1866, 0.01
        %v1893 = vmul.f32 %v1868, 0.01
        %v1894 = vmul.f32 %v1872, 0.01
        %v1895 = vmul.f32 %v1874, 0.01
        %v1896 = vmul.f32 %v1878, 0.01
        %v1897 = vmul.f32 %v1880, 0.01
        %v1898 = vsel %vm1882, %v1860, %v1890
        %v1899 = vsel %vm1883, %v1862, %v1891
        %v1900 = vsel %vm1884, %v1866, %v1892
        %v1901 = vsel %vm1885, %v1868, %v1893
        %v1902 = vsel %vm1886, %v1872, %v1894
        %v1903 = vsel %vm1887, %v1874, %v1895
        %v1904 = vsel %vm1888, %v1878, %v1896
        %v1905 = vsel %vm1889, %v1880, %v1897
        %v1906 = vld [vmem:[%s41] sm:$0xff]
        %v1907 = vld [vmem:[%s41 + $0x8] sm:$0xff]
        %v1908 = vld [vmem:[%s41 + $0x10] sm:$0xff]
        %v1909 = vld [vmem:[%s41 + $0x18] sm:$0xff]
        %v1910 = vpack.c.bf16 %v1900, %v1898
        %v1911 = vpack.c.bf16 %v1901, %v1899
        %v1912 = vpack.c.bf16 %v1904, %v1902
        %v1913 = vpack.c.bf16 %v1905, %v1903
        %1916 = vrot.lane.b32.xlu0 %v1203, 126
        %v1917 = vpop.permute.xlu0 %1916
        %1918 = vrot.lane.b32.xlu0 %v1204, 126
        %v1919 = vpop.permute.xlu0 %1918
        %vm1920 = vcmask 1031168
        %v1921 = vsel %vm1920, %v1917, %v1919
        %v1925 = vmul.bf16 %v1917, 0
        %v1926 = vmul.bf16 %v1910, %v1921
        %v1927 = vmul.bf16 %v1911, %v1919
        %v1928 = vmul.bf16 %v1912, %v1921
        %v1929 = vmul.bf16 %v1913, %v1919
        %1935 = vrot.lane.b32.xlu0 %v1925, 2
        %v1936 = vpop.permute.xlu0 %1935
        %1937 = vrot.lane.b32.xlu0 %v1926, 2
        %v1938 = vpop.permute.xlu0 %1937
        %1939 = vrot.lane.b32.xlu0 %v1927, 2
        %v1940 = vpop.permute.xlu0 %1939
        %1941 = vrot.lane.b32.xlu0 %v1928, 2
        %v1942 = vpop.permute.xlu0 %1941
        %1943 = vrot.lane.b32.xlu0 %v1929, 2
        %v1944 = vpop.permute.xlu0 %1943
        %vm1945 = vcmask 15360
        %v1946 = vsel %vm1945, %v1936, %v1938
        %v1947 = vsel %vm1945, %v1938, %v1940
        %v1948 = vsel %vm1945, %v1936, %v1942
        %v1949 = vsel %vm1945, %v1942, %v1944
        %1955 = vrot.lane.b32.xlu0 0, 32
        %v1956 = vpop.permute.xlu0 %1955
        %1957 = vrot.lane.b32.xlu0 %v1946, 32
        %v1958 = vpop.permute.xlu0 %1957
        %1959 = vrot.lane.b32.xlu0 %v1947, 32
        %v1960 = vpop.permute.xlu0 %1959
        %1961 = vrot.lane.b32.xlu0 %v1948, 32
        %v1962 = vpop.permute.xlu0 %1961
        %1963 = vrot.lane.b32.xlu0 %v1949, 32
        %v1964 = vpop.permute.xlu0 %1963
        %vm1965 = vcmask 261120
        %v1966 = vsel %vm1965, %v1956, %v1958
        %v1967 = vsel %vm1965, %v1958, %v1960
        %v1968 = vsel %vm1965, %v1956, %v1962
        %v1969 = vsel %vm1965, %v1962, %v1964
        %1974 = vst [vmem:[#allocation2] sm:$0xff] %v1966
        %1975 = vst [vmem:[#allocation2 + $0x8] sm:$0xff] %v1967
        %1976 = vst [vmem:[#allocation2 + $0x10] sm:$0xff] %v1968
        %1977 = vst [vmem:[#allocation2 + $0x18] sm:$0xff] %v1969
        %1978 = vrot.lane.b32.xlu0 0, 16
        %v1979 = vpop.permute.xlu0 %1978
        %1980 = vrot.lane.b32.xlu0 %v1946, 16
        %v1981 = vpop.permute.xlu0 %1980
        %1982 = vrot.lane.b32.xlu0 %v1947, 16
        %v1983 = vpop.permute.xlu0 %1982
        %1984 = vrot.lane.b32.xlu0 %v1948, 16
        %v1985 = vpop.permute.xlu0 %1984
        %1986 = vrot.lane.b32.xlu0 %v1949, 16
        %v1987 = vpop.permute.xlu0 %1986
        %vm1988 = vcmask 130048
        %v1989 = vsel %vm1988, %v1979, %v1981
        %v1990 = vsel %vm1988, %v1981, %v1983
        %v1991 = vsel %vm1988, %v1979, %v1985
        %v1992 = vsel %vm1988, %v1985, %v1987
        %1997 = vst [vmem:[#allocation2 + $0xa0] sm:$0xff] %v1989
        %1998 = vst [vmem:[#allocation2 + $0xa8] sm:$0xff] %v1990
        %1999 = vst [vmem:[#allocation2 + $0xb0] sm:$0xff] %v1991
        %2000 = vst [vmem:[#allocation2 + $0xb8] sm:$0xff] %v1992
        %2001 = vst [vmem:[#allocation2 + $0x140] sm:$0xff] %v1946
        %2002 = vst [vmem:[#allocation2 + $0x148] sm:$0xff] %v1947
        %2003 = vst [vmem:[#allocation2 + $0x150] sm:$0xff] %v1948
        %2004 = vst [vmem:[#allocation2 + $0x158] sm:$0xff] %v1949
        %2005 = vrot.lane.b32.xlu0 %v1946, 112
        %v2006 = vpop.permute.xlu0 %2005
        %2007 = vrot.lane.b32.xlu0 %v1947, 112
        %v2008 = vpop.permute.xlu0 %2007
        %2009 = vrot.lane.b32.xlu0 0, 112
        %v2010 = vpop.permute.xlu0 %2009
        %2011 = vrot.lane.b32.xlu0 %v1948, 112
        %v2012 = vpop.permute.xlu0 %2011
        %2013 = vrot.lane.b32.xlu0 %v1949, 112
        %v2014 = vpop.permute.xlu0 %2013
        %vm2015 = vcmask 916480
        %v2016 = vsel %vm2015, %v2006, %v2008
        %v2017 = vsel %vm2015, %v2008, %v2010
        %v2018 = vsel %vm2015, %v2012, %v2014
        %v2019 = vsel %vm2015, %v2014, %v2010
        %2024 = vst [vmem:[#allocation2 + $0x1e0] sm:$0xff] %v2016
        %2025 = vst [vmem:[#allocation2 + $0x1e8] sm:$0xff] %v2017
        %2026 = vst [vmem:[#allocation2 + $0x1f0] sm:$0xff] %v2018
        %2027 = vst [vmem:[#allocation2 + $0x1f8] sm:$0xff] %v2019
        %2028 = vrot.lane.b32.xlu0 %v1946, 96
        %v2029 = vpop.permute.xlu0 %2028
        %2030 = vrot.lane.b32.xlu0 %v1947, 96
        %v2031 = vpop.permute.xlu0 %2030
        %2032 = vrot.lane.b32.xlu0 0, 96
        %v2033 = vpop.permute.xlu0 %2032
        %2034 = vrot.lane.b32.xlu0 %v1948, 96
        %v2035 = vpop.permute.xlu0 %2034
        %2036 = vrot.lane.b32.xlu0 %v1949, 96
        %v2037 = vpop.permute.xlu0 %2036
        %vm2038 = vcmask 785408
        %v2039 = vsel %vm2038, %v2029, %v2031
        %v2040 = vsel %vm2038, %v2031, %v2033
        %v2041 = vsel %vm2038, %v2035, %v2037
        %v2042 = vsel %vm2038, %v2037, %v2033
        %2047 = vst [vmem:[#allocation2 + $0x280] sm:$0xff] %v2039
        %2048 = vst [vmem:[#allocation2 + $0x288] sm:$0xff] %v2040
        %2049 = vst [vmem:[#allocation2 + $0x290] sm:$0xff] %v2041
        %2050 = vst [vmem:[#allocation2 + $0x298] sm:$0xff] %v2042
        %2053 = vrot.lane.b32.xlu0 %v1217, 127
        %v2054 = vpop.permute.xlu0 %2053
        %2055 = vrot.lane.b32.xlu0 %v1218, 127
        %v2056 = vpop.permute.xlu0 %2055
        %vm2057 = vcmask 1039360
        %v2058 = vsel %vm2057, %v2054, %v2056
        %v2062 = vmul.bf16 %v2054, 0
        %v2063 = vmul.bf16 %v1910, %v2058
        %v2064 = vmul.bf16 %v1911, %v2056
        %v2065 = vmul.bf16 %v1912, %v2058
        %v2066 = vmul.bf16 %v1913, %v2056
        %2072 = vrot.lane.b32.xlu0 %v2062, 1
        %v2073 = vpop.permute.xlu0 %2072
        %2074 = vrot.lane.b32.xlu0 %v2063, 1
        %v2075 = vpop.permute.xlu0 %2074
        %2076 = vrot.lane.b32.xlu0 %v2064, 1
        %v2077 = vpop.permute.xlu0 %2076
        %2078 = vrot.lane.b32.xlu0 %v2065, 1
        %v2079 = vpop.permute.xlu0 %2078
        %2080 = vrot.lane.b32.xlu0 %v2066, 1
        %v2081 = vpop.permute.xlu0 %2080
        %vm2082 = vcmask 7168
        %v2083 = vsel %vm2082, %v2073, %v2075
        %v2084 = vsel %vm2082, %v2075, %v2077
        %v2085 = vsel %vm2082, %v2073, %v2079
        %v2086 = vsel %vm2082, %v2079, %v2081
        %2091 = vrot.lane.b32.xlu0 %v2083, 32
        %v2092 = vpop.permute.xlu0 %2091
        %2093 = vrot.lane.b32.xlu0 %v2084, 32
        %v2094 = vpop.permute.xlu0 %2093
        %2095 = vrot.lane.b32.xlu0 %v2085, 32
        %v2096 = vpop.permute.xlu0 %2095
        %2097 = vrot.lane.b32.xlu0 %v2086, 32
        %v2098 = vpop.permute.xlu0 %2097
        %v2099 = vsel %vm1965, %v1956, %v2092
        %v2100 = vsel %vm1965, %v2092, %v2094
        %v2101 = vsel %vm1965, %v1956, %v2096
        %v2102 = vsel %vm1965, %v2096, %v2098
        %2107 = vst [vmem:[#allocation2 + $0x20] sm:$0xff] %v2099
        %2108 = vst [vmem:[#allocation2 + $0x28] sm:$0xff] %v2100
        %2109 = vst [vmem:[#allocation2 + $0x30] sm:$0xff] %v2101
        %2110 = vst [vmem:[#allocation2 + $0x38] sm:$0xff] %v2102
        %2111 = vrot.lane.b32.xlu0 %v2083, 16
        %v2112 = vpop.permute.xlu0 %2111
        %2113 = vrot.lane.b32.xlu0 %v2084, 16
        %v2114 = vpop.permute.xlu0 %2113
        %2115 = vrot.lane.b32.xlu0 %v2085, 16
        %v2116 = vpop.permute.xlu0 %2115
        %2117 = vrot.lane.b32.xlu0 %v2086, 16
        %v2118 = vpop.permute.xlu0 %2117
        %v2119 = vsel %vm1988, %v1979, %v2112
        %v2120 = vsel %vm1988, %v2112, %v2114
        %v2121 = vsel %vm1988, %v1979, %v2116
        %v2122 = vsel %vm1988, %v2116, %v2118
        %2127 = vst [vmem:[#allocation2 + $0xc0] sm:$0xff] %v2119
        %2128 = vst [vmem:[#allocation2 + $0xc8] sm:$0xff] %v2120
        %2129 = vst [vmem:[#allocation2 + $0xd0] sm:$0xff] %v2121
        %2130 = vst [vmem:[#allocation2 + $0xd8] sm:$0xff] %v2122
        %2131 = vst [vmem:[#allocation2 + $0x160] sm:$0xff] %v2083
        %2132 = vst [vmem:[#allocation2 + $0x168] sm:$0xff] %v2084
        %2133 = vst [vmem:[#allocation2 + $0x170] sm:$0xff] %v2085
        %2134 = vst [vmem:[#allocation2 + $0x178] sm:$0xff] %v2086
        %2135 = vrot.lane.b32.xlu0 %v2083, 112
        %v2136 = vpop.permute.xlu0 %2135
        %2137 = vrot.lane.b32.xlu0 %v2084, 112
        %v2138 = vpop.permute.xlu0 %2137
        %2139 = vrot.lane.b32.xlu0 %v2085, 112
        %v2140 = vpop.permute.xlu0 %2139
        %2141 = vrot.lane.b32.xlu0 %v2086, 112
        %v2142 = vpop.permute.xlu0 %2141
        %v2143 = vsel %vm2015, %v2136, %v2138
        %v2144 = vsel %vm2015, %v2138, %v2010
        %v2145 = vsel %vm2015, %v2140, %v2142
        %v2146 = vsel %vm2015, %v2142, %v2010
        %2151 = vst [vmem:[#allocation2 + $0x200] sm:$0xff] %v2143
        %2152 = vst [vmem:[#allocation2 + $0x208] sm:$0xff] %v2144
        %2153 = vst [vmem:[#allocation2 + $0x210] sm:$0xff] %v2145
        %2154 = vst [vmem:[#allocation2 + $0x218] sm:$0xff] %v2146
        %2155 = vrot.lane.b32.xlu0 %v2083, 96
        %v2156 = vpop.permute.xlu0 %2155
        %2157 = vrot.lane.b32.xlu0 %v2084, 96
        %v2158 = vpop.permute.xlu0 %2157
        %2159 = vrot.lane.b32.xlu0 %v2085, 96
        %v2160 = vpop.permute.xlu0 %2159
        %2161 = vrot.lane.b32.xlu0 %v2086, 96
        %v2162 = vpop.permute.xlu0 %2161
        %v2163 = vsel %vm2038, %v2156, %v2158
        %v2164 = vsel %vm2038, %v2158, %v2033
        %v2165 = vsel %vm2038, %v2160, %v2162
        %v2166 = vsel %vm2038, %v2162, %v2033
        %2171 = vst [vmem:[#allocation2 + $0x2a0] sm:$0xff] %v2163
        %2172 = vst [vmem:[#allocation2 + $0x2a8] sm:$0xff] %v2164
        %2173 = vst [vmem:[#allocation2 + $0x2b0] sm:$0xff] %v2165
        %2174 = vst [vmem:[#allocation2 + $0x2b8] sm:$0xff] %v2166
        %v2175 = vmul.bf16 %v1910, %v1229
        %v2176 = vmul.bf16 %v1911, %v1230
        %v2177 = vmul.bf16 %v1912, %v1229
        %v2178 = vmul.bf16 %v1913, %v1230
        %2183 = vrot.lane.b32.xlu0 %v2175, 32
        %v2184 = vpop.permute.xlu0 %2183
        %2185 = vrot.lane.b32.xlu0 %v2176, 32
        %v2186 = vpop.permute.xlu0 %2185
        %2187 = vrot.lane.b32.xlu0 %v2177, 32
        %v2188 = vpop.permute.xlu0 %2187
        %2189 = vrot.lane.b32.xlu0 %v2178, 32
        %v2190 = vpop.permute.xlu0 %2189
        %v2191 = vsel %vm1965, %v1956, %v2184
        %v2192 = vsel %vm1965, %v2184, %v2186
        %v2193 = vsel %vm1965, %v1956, %v2188
        %v2194 = vsel %vm1965, %v2188, %v2190
        %2199 = vst [vmem:[#allocation2 + $0x40] sm:$0xff] %v2191
        %2200 = vst [vmem:[#allocation2 + $0x48] sm:$0xff] %v2192
        %2201 = vst [vmem:[#allocation2 + $0x50] sm:$0xff] %v2193
        %2202 = vst [vmem:[#allocation2 + $0x58] sm:$0xff] %v2194
        %2203 = vrot.lane.b32.xlu0 %v2175, 16
        %v2204 = vpop.permute.xlu0 %2203
        %2205 = vrot.lane.b32.xlu0 %v2176, 16
        %v2206 = vpop.permute.xlu0 %2205
        %2207 = vrot.lane.b32.xlu0 %v2177, 16
        %v2208 = vpop.permute.xlu0 %2207
        %2209 = vrot.lane.b32.xlu0 %v2178, 16
        %v2210 = vpop.permute.xlu0 %2209
        %v2211 = vsel %vm1988, %v1979, %v2204
        %v2212 = vsel %vm1988, %v2204, %v2206
        %v2213 = vsel %vm1988, %v1979, %v2208
        %v2214 = vsel %vm1988, %v2208, %v2210
        %2219 = vst [vmem:[#allocation2 + $0xe0] sm:$0xff] %v2211
        %2220 = vst [vmem:[#allocation2 + $0xe8] sm:$0xff] %v2212
        %2221 = vst [vmem:[#allocation2 + $0xf0] sm:$0xff] %v2213
        %2222 = vst [vmem:[#allocation2 + $0xf8] sm:$0xff] %v2214
        %2223 = vst [vmem:[#allocation2 + $0x180] sm:$0xff] %v2175
        %2224 = vst [vmem:[#allocation2 + $0x188] sm:$0xff] %v2176
        %2225 = vst [vmem:[#allocation2 + $0x190] sm:$0xff] %v2177
        %2226 = vst [vmem:[#allocation2 + $0x198] sm:$0xff] %v2178
        %2227 = vrot.lane.b32.xlu0 %v2175, 112
        %v2228 = vpop.permute.xlu0 %2227
        %2229 = vrot.lane.b32.xlu0 %v2176, 112
        %v2230 = vpop.permute.xlu0 %2229
        %2231 = vrot.lane.b32.xlu0 %v2177, 112
        %v2232 = vpop.permute.xlu0 %2231
        %2233 = vrot.lane.b32.xlu0 %v2178, 112
        %v2234 = vpop.permute.xlu0 %2233
        %v2235 = vsel %vm2015, %v2228, %v2230
        %v2236 = vsel %vm2015, %v2230, %v2010
        %v2237 = vsel %vm2015, %v2232, %v2234
        %v2238 = vsel %vm2015, %v2234, %v2010
        %2243 = vst [vmem:[#allocation2 + $0x220] sm:$0xff] %v2235
        %2244 = vst [vmem:[#allocation2 + $0x228] sm:$0xff] %v2236
        %2245 = vst [vmem:[#allocation2 + $0x230] sm:$0xff] %v2237
        %2246 = vst [vmem:[#allocation2 + $0x238] sm:$0xff] %v2238
        %2247 = vrot.lane.b32.xlu0 %v2175, 96
        %v2248 = vpop.permute.xlu0 %2247
        %2249 = vrot.lane.b32.xlu0 %v2176, 96
        %v2250 = vpop.permute.xlu0 %2249
        %2251 = vrot.lane.b32.xlu0 %v2177, 96
        %v2252 = vpop.permute.xlu0 %2251
        %2253 = vrot.lane.b32.xlu0 %v2178, 96
        %v2254 = vpop.permute.xlu0 %2253
        %v2255 = vsel %vm2038, %v2248, %v2250
        %v2256 = vsel %vm2038, %v2250, %v2033
        %v2257 = vsel %vm2038, %v2252, %v2254
        %v2258 = vsel %vm2038, %v2254, %v2033
        %2263 = vst [vmem:[#allocation2 + $0x2c0] sm:$0xff] %v2255
        %2264 = vst [vmem:[#allocation2 + $0x2c8] sm:$0xff] %v2256
        %2265 = vst [vmem:[#allocation2 + $0x2d0] sm:$0xff] %v2257
        %2266 = vst [vmem:[#allocation2 + $0x2d8] sm:$0xff] %v2258
        %2269 = vrot.lane.b32.xlu0 %v1243, 1
        %v2270 = vpop.permute.xlu0 %2269
        %2271 = vrot.lane.b32.xlu0 %v1244, 1
        %v2272 = vpop.permute.xlu0 %2271
        %v2273 = vsel %vm2082, %v2270, %v2272
        %v2277 = vmul.bf16 %v1910, %v2270
        %v2278 = vmul.bf16 %v1911, %v2273
        %v2279 = vmul.bf16 %v2272, 0
        %v2280 = vmul.bf16 %v1912, %v2270
        %v2281 = vmul.bf16 %v1913, %v2273
        %2287 = vrot.lane.b32.xlu0 %v2277, 127
        %v2288 = vpop.permute.xlu0 %2287
        %2289 = vrot.lane.b32.xlu0 %v2278, 127
        %v2290 = vpop.permute.xlu0 %2289
        %2291 = vrot.lane.b32.xlu0 %v2279, 127
        %v2292 = vpop.permute.xlu0 %2291
        %2293 = vrot.lane.b32.xlu0 %v2280, 127
        %v2294 = vpop.permute.xlu0 %2293
        %2295 = vrot.lane.b32.xlu0 %v2281, 127
        %v2296 = vpop.permute.xlu0 %2295
        %v2297 = vsel %vm2057, %v2288, %v2290
        %v2298 = vsel %vm2057, %v2290, %v2292
        %v2299 = vsel %vm2057, %v2294, %v2296
        %v2300 = vsel %vm2057, %v2296, %v2292
        %2305 = vrot.lane.b32.xlu0 %v2297, 32
        %v2306 = vpop.permute.xlu0 %2305
        %2307 = vrot.lane.b32.xlu0 %v2298, 32
        %v2308 = vpop.permute.xlu0 %2307
        %2309 = vrot.lane.b32.xlu0 %v2299, 32
        %v2310 = vpop.permute.xlu0 %2309
        %2311 = vrot.lane.b32.xlu0 %v2300, 32
        %v2312 = vpop.permute.xlu0 %2311
        %v2313 = vsel %vm1965, %v1956, %v2306
        %v2314 = vsel %vm1965, %v2306, %v2308
        %v2315 = vsel %vm1965, %v1956, %v2310
        %v2316 = vsel %vm1965, %v2310, %v2312
        %2321 = vst [vmem:[#allocation2 + $0x60] sm:$0xff] %v2313
        %2322 = vst [vmem:[#allocation2 + $0x68] sm:$0xff] %v2314
        %2323 = vst [vmem:[#allocation2 + $0x70] sm:$0xff] %v2315
        %2324 = vst [vmem:[#allocation2 + $0x78] sm:$0xff] %v2316
        %2325 = vrot.lane.b32.xlu0 %v2297, 16
        %v2326 = vpop.permute.xlu0 %2325
        %2327 = vrot.lane.b32.xlu0 %v2298, 16
        %v2328 = vpop.permute.xlu0 %2327
        %2329 = vrot.lane.b32.xlu0 %v2299, 16
        %v2330 = vpop.permute.xlu0 %2329
        %2331 = vrot.lane.b32.xlu0 %v2300, 16
        %v2332 = vpop.permute.xlu0 %2331
        %v2333 = vsel %vm1988, %v1979, %v2326
        %v2334 = vsel %vm1988, %v2326, %v2328
        %v2335 = vsel %vm1988, %v1979, %v2330
        %v2336 = vsel %vm1988, %v2330, %v2332
        %2341 = vst [vmem:[#allocation2 + $0x100] sm:$0xff] %v2333
        %2342 = vst [vmem:[#allocation2 + $0x108] sm:$0xff] %v2334
        %2343 = vst [vmem:[#allocation2 + $0x110] sm:$0xff] %v2335
        %2344 = vst [vmem:[#allocation2 + $0x118] sm:$0xff] %v2336
        %2345 = vst [vmem:[#allocation2 + $0x1a0] sm:$0xff] %v2297
        %2346 = vst [vmem:[#allocation2 + $0x1a8] sm:$0xff] %v2298
        %2347 = vst [vmem:[#allocation2 + $0x1b0] sm:$0xff] %v2299
        %2348 = vst [vmem:[#allocation2 + $0x1b8] sm:$0xff] %v2300
        %2349 = vrot.lane.b32.xlu0 %v2297, 112
        %v2350 = vpop.permute.xlu0 %2349
        %2351 = vrot.lane.b32.xlu0 %v2298, 112
        %v2352 = vpop.permute.xlu0 %2351
        %2353 = vrot.lane.b32.xlu0 %v2299, 112
        %v2354 = vpop.permute.xlu0 %2353
        %2355 = vrot.lane.b32.xlu0 %v2300, 112
        %v2356 = vpop.permute.xlu0 %2355
        %v2357 = vsel %vm2015, %v2350, %v2352
        %v2358 = vsel %vm2015, %v2352, %v2010
        %v2359 = vsel %vm2015, %v2354, %v2356
        %v2360 = vsel %vm2015, %v2356, %v2010
        %2365 = vst [vmem:[#allocation2 + $0x240] sm:$0xff] %v2357
        %2366 = vst [vmem:[#allocation2 + $0x248] sm:$0xff] %v2358
        %2367 = vst [vmem:[#allocation2 + $0x250] sm:$0xff] %v2359
        %2368 = vst [vmem:[#allocation2 + $0x258] sm:$0xff] %v2360
        %2369 = vrot.lane.b32.xlu0 %v2297, 96
        %v2370 = vpop.permute.xlu0 %2369
        %2371 = vrot.lane.b32.xlu0 %v2298, 96
        %v2372 = vpop.permute.xlu0 %2371
        %2373 = vrot.lane.b32.xlu0 %v2299, 96
        %v2374 = vpop.permute.xlu0 %2373
        %2375 = vrot.lane.b32.xlu0 %v2300, 96
        %v2376 = vpop.permute.xlu0 %2375
        %v2377 = vsel %vm2038, %v2370, %v2372
        %v2378 = vsel %vm2038, %v2372, %v2033
        %v2379 = vsel %vm2038, %v2374, %v2376
        %v2380 = vsel %vm2038, %v2376, %v2033
        %2385 = vst [vmem:[#allocation2 + $0x2e0] sm:$0xff] %v2377
        %2386 = vst [vmem:[#allocation2 + $0x2e8] sm:$0xff] %v2378
        %2387 = vst [vmem:[#allocation2 + $0x2f0] sm:$0xff] %v2379
        %2388 = vst [vmem:[#allocation2 + $0x2f8] sm:$0xff] %v2380
        %2391 = vrot.lane.b32.xlu0 %v1257, 2
        %v2392 = vpop.permute.xlu0 %2391
        %2393 = vrot.lane.b32.xlu0 %v1258, 2
        %v2394 = vpop.permute.xlu0 %2393
        %v2395 = vsel %vm1945, %v2392, %v2394
        %v2399 = vmul.bf16 %v1910, %v2392
        %v2400 = vmul.bf16 %v1911, %v2395
        %v2401 = vmul.bf16 %v2394, 0
        %v2402 = vmul.bf16 %v1912, %v2392
        %v2403 = vmul.bf16 %v1913, %v2395
        %2409 = vrot.lane.b32.xlu0 %v2399, 126
        %v2410 = vpop.permute.xlu0 %2409
        %2411 = vrot.lane.b32.xlu0 %v2400, 126
        %v2412 = vpop.permute.xlu0 %2411
        %2413 = vrot.lane.b32.xlu0 %v2401, 126
        %v2414 = vpop.permute.xlu0 %2413
        %2415 = vrot.lane.b32.xlu0 %v2402, 126
        %v2416 = vpop.permute.xlu0 %2415
        %2417 = vrot.lane.b32.xlu0 %v2403, 126
        %v2418 = vpop.permute.xlu0 %2417
        %v2419 = vsel %vm1920, %v2410, %v2412
        %v2420 = vsel %vm1920, %v2412, %v2414
        %v2421 = vsel %vm1920, %v2416, %v2418
        %v2422 = vsel %vm1920, %v2418, %v2414
        %2427 = vrot.lane.b32.xlu0 %v2419, 32
        %v2428 = vpop.permute.xlu0 %2427
        %2429 = vrot.lane.b32.xlu0 %v2420, 32
        %v2430 = vpop.permute.xlu0 %2429
        %2431 = vrot.lane.b32.xlu0 %v2421, 32
        %v2432 = vpop.permute.xlu0 %2431
        %2433 = vrot.lane.b32.xlu0 %v2422, 32
        %v2434 = vpop.permute.xlu0 %2433
        %v2435 = vsel %vm1965, %v1956, %v2428
        %v2436 = vsel %vm1965, %v2428, %v2430
        %v2437 = vsel %vm1965, %v1956, %v2432
        %v2438 = vsel %vm1965, %v2432, %v2434
        %2443 = vst [vmem:[#allocation2 + $0x80] sm:$0xff] %v2435
        %2444 = vst [vmem:[#allocation2 + $0x88] sm:$0xff] %v2436
        %2445 = vst [vmem:[#allocation2 + $0x90] sm:$0xff] %v2437
        %2446 = vst [vmem:[#allocation2 + $0x98] sm:$0xff] %v2438
        %2447 = vrot.lane.b32.xlu0 %v2419, 16
        %v2448 = vpop.permute.xlu0 %2447
        %2449 = vrot.lane.b32.xlu0 %v2420, 16
        %v2450 = vpop.permute.xlu0 %2449
        %2451 = vrot.lane.b32.xlu0 %v2421, 16
        %v2452 = vpop.permute.xlu0 %2451
        %2453 = vrot.lane.b32.xlu0 %v2422, 16
        %v2454 = vpop.permute.xlu0 %2453
        %v2455 = vsel %vm1988, %v1979, %v2448
        %v2456 = vsel %vm1988, %v2448, %v2450
        %v2457 = vsel %vm1988, %v1979, %v2452
        %v2458 = vsel %vm1988, %v2452, %v2454
        %2463 = vst [vmem:[#allocation2 + $0x120] sm:$0xff] %v2455
        %2464 = vst [vmem:[#allocation2 + $0x128] sm:$0xff] %v2456
        %2465 = vst [vmem:[#allocation2 + $0x130] sm:$0xff] %v2457
        %2466 = vst [vmem:[#allocation2 + $0x138] sm:$0xff] %v2458
        %2467 = vst [vmem:[#allocation2 + $0x1c0] sm:$0xff] %v2419
        %2468 = vst [vmem:[#allocation2 + $0x1c8] sm:$0xff] %v2420
        %2469 = vst [vmem:[#allocation2 + $0x1d0] sm:$0xff] %v2421
        %2470 = vst [vmem:[#allocation2 + $0x1d8] sm:$0xff] %v2422
        %2471 = vrot.lane.b32.xlu0 %v2419, 112
        %v2472 = vpop.permute.xlu0 %2471
        %2473 = vrot.lane.b32.xlu0 %v2420, 112
        %v2474 = vpop.permute.xlu0 %2473
        %2475 = vrot.lane.b32.xlu0 %v2421, 112
        %v2476 = vpop.permute.xlu0 %2475
        %2477 = vrot.lane.b32.xlu0 %v2422, 112
        %v2478 = vpop.permute.xlu0 %2477
        %v2479 = vsel %vm2015, %v2472, %v2474
        %v2480 = vsel %vm2015, %v2474, %v2010
        %v2481 = vsel %vm2015, %v2476, %v2478
        %v2482 = vsel %vm2015, %v2478, %v2010
        %2487 = vst [vmem:[#allocation2 + $0x260] sm:$0xff] %v2479
        %2488 = vst [vmem:[#allocation2 + $0x268] sm:$0xff] %v2480
        %2489 = vst [vmem:[#allocation2 + $0x270] sm:$0xff] %v2481
        %2490 = vst [vmem:[#allocation2 + $0x278] sm:$0xff] %v2482
        %2491 = vrot.lane.b32.xlu0 %v2419, 96
        %v2492 = vpop.permute.xlu0 %2491
        %2493 = vrot.lane.b32.xlu0 %v2420, 96
        %v2494 = vpop.permute.xlu0 %2493
        %2495 = vrot.lane.b32.xlu0 %v2421, 96
        %v2496 = vpop.permute.xlu0 %2495
        %2497 = vrot.lane.b32.xlu0 %v2422, 96
        %v2498 = vpop.permute.xlu0 %2497
        %v2499 = vsel %vm2038, %v2492, %v2494
        %v2500 = vsel %vm2038, %v2494, %v2033
        %v2501 = vsel %vm2038, %v2496, %v2498
        %v2502 = vsel %vm2038, %v2498, %v2033
        %2507 = vst [vmem:[#allocation2 + $0x300] sm:$0xff] %v2499
        %2508 = vst [vmem:[#allocation2 + $0x308] sm:$0xff] %v2500
        %2509 = vst [vmem:[#allocation2 + $0x310] sm:$0xff] %v2501
        %2510 = vst [vmem:[#allocation2 + $0x318] sm:$0xff] %v2502
        %v2511 = vld [vmem:[%s39] sm:$0xff]
        %v2512 = vld [vmem:[%s39 + $0x8] sm:$0xff]
        %v2513 = vld [vmem:[%s39 + $0x10] sm:$0xff]
        %v2514 = vld [vmem:[%s39 + $0x18] sm:$0xf]
        %v2515 = vld [vmem:[%s39 + $0x1c] sm:$0xff]
        %v2516 = vld [vmem:[%s39 + $0x24] sm:$0xff]
        %v2517 = vld [vmem:[%s39 + $0x2c] sm:$0xff]
        %v2518 = vld [vmem:[%s39 + $0x34] sm:$0xf]
        %v2519 = vld [vmem:[%s39 + $0x38] sm:$0xff]
        %v2520 = vld [vmem:[%s39 + $0x40] sm:$0xff]
        %v2521 = vld [vmem:[%s39 + $0x48] sm:$0xff]
        %v2522 = vld [vmem:[%s39 + $0x50] sm:$0xf]
        %v2523 = vld [vmem:[%s39 + $0x54] sm:$0xff]
        %v2524 = vld [vmem:[%s39 + $0x5c] sm:$0xff]
        %v2525 = vld [vmem:[%s39 + $0x64] sm:$0xff]
        %v2526 = vld [vmem:[%s39 + $0x6c] sm:$0xf]
        %v2527 = vld [vmem:[#allocation2] sm:$0xff]
        %v2528 = vld [vmem:[#allocation2 + $0x8] sm:$0xff]
        %v2529 = vld [vmem:[#allocation2 + $0x10] sm:$0xff]
        %v2530 = vld [vmem:[#allocation2 + $0x18] sm:$0xff]
        %v2531 = vld [vmem:[#allocation2 + $0x20] sm:$0xff]
        %v2532 = vld [vmem:[#allocation2 + $0x28] sm:$0xff]
        %v2533 = vld [vmem:[#allocation2 + $0x30] sm:$0xff]
        %v2534 = vld [vmem:[#allocation2 + $0x38] sm:$0xff]
        %v2535 = vld [vmem:[#allocation2 + $0x40] sm:$0xff]
        %v2536 = vld [vmem:[#allocation2 + $0x48] sm:$0xff]
        %v2537 = vld [vmem:[#allocation2 + $0x50] sm:$0xff]
        %v2538 = vld [vmem:[#allocation2 + $0x58] sm:$0xff]
        %v2539 = vld [vmem:[#allocation2 + $0x60] sm:$0xff]
        %v2540 = vld [vmem:[#allocation2 + $0x68] sm:$0xff]
        %v2541 = vld [vmem:[#allocation2 + $0x70] sm:$0xff]
        %v2542 = vld [vmem:[#allocation2 + $0x78] sm:$0xff]
        %v2543 = vld [vmem:[#allocation2 + $0x80] sm:$0xff]
        %v2544 = vld [vmem:[#allocation2 + $0x88] sm:$0xff]
        %v2545 = vld [vmem:[#allocation2 + $0x90] sm:$0xff]
        %v2546 = vld [vmem:[#allocation2 + $0x98] sm:$0xff]
        %v2547 = vld [vmem:[#allocation2 + $0xa0] sm:$0xff]
        %v2548 = vld [vmem:[#allocation2 + $0xa8] sm:$0xff]
        %v2549 = vld [vmem:[#allocation2 + $0xb0] sm:$0xff]
        %v2550 = vld [vmem:[#allocation2 + $0xb8] sm:$0xff]
        %v2551 = vld [vmem:[#allocation2 + $0xc0] sm:$0xff]
        %v2552 = vld [vmem:[#allocation2 + $0xc8] sm:$0xff]
        %v2553 = vld [vmem:[#allocation2 + $0xd0] sm:$0xff]
        %v2554 = vld [vmem:[#allocation2 + $0xd8] sm:$0xff]
        %v2555 = vld [vmem:[#allocation2 + $0xe0] sm:$0xff]
        %v2556 = vld [vmem:[#allocation2 + $0xe8] sm:$0xff]
        %v2557 = vld [vmem:[#allocation2 + $0xf0] sm:$0xff]
        %v2558 = vld [vmem:[#allocation2 + $0xf8] sm:$0xff]
        %v2559 = vld [vmem:[#allocation2 + $0x100] sm:$0xff]
        %v2560 = vld [vmem:[#allocation2 + $0x108] sm:$0xff]
        %v2561 = vld [vmem:[#allocation2 + $0x110] sm:$0xff]
        %v2562 = vld [vmem:[#allocation2 + $0x118] sm:$0xff]
        %v2563 = vld [vmem:[#allocation2 + $0x120] sm:$0xff]
        %v2564 = vld [vmem:[#allocation2 + $0x128] sm:$0xff]
        %v2565 = vld [vmem:[#allocation2 + $0x130] sm:$0xff]
        %v2566 = vld [vmem:[#allocation2 + $0x138] sm:$0xff]
        %v2567 = vld [vmem:[#allocation2 + $0x140] sm:$0xff]
        %v2568 = vld [vmem:[#allocation2 + $0x148] sm:$0xff]
        %v2569 = vld [vmem:[#allocation2 + $0x150] sm:$0xff]
        %v2570 = vld [vmem:[#allocation2 + $0x158] sm:$0xff]
        %v2571 = vld [vmem:[#allocation2 + $0x160] sm:$0xff]
        %v2572 = vld [vmem:[#allocation2 + $0x168] sm:$0xff]
        %v2573 = vld [vmem:[#allocation2 + $0x170] sm:$0xff]
        %v2574 = vld [vmem:[#allocation2 + $0x178] sm:$0xff]
        %v2575 = vld [vmem:[#allocation2 + $0x180] sm:$0xff]
        %v2576 = vld [vmem:[#allocation2 + $0x188] sm:$0xff]
        %v2577 = vld [vmem:[#allocation2 + $0x190] sm:$0xff]
        %v2578 = vld [vmem:[#allocation2 + $0x198] sm:$0xff]
        %v2579 = vld [vmem:[#allocation2 + $0x1a0] sm:$0xff]
        %v2580 = vld [vmem:[#allocation2 + $0x1a8] sm:$0xff]
        %v2581 = vld [vmem:[#allocation2 + $0x1b0] sm:$0xff]
        %v2582 = vld [vmem:[#allocation2 + $0x1b8] sm:$0xff]
        %v2583 = vld [vmem:[#allocation2 + $0x1c0] sm:$0xff]
        %v2584 = vld [vmem:[#allocation2 + $0x1c8] sm:$0xff]
        %v2585 = vld [vmem:[#allocation2 + $0x1d0] sm:$0xff]
        %v2586 = vld [vmem:[#allocation2 + $0x1d8] sm:$0xff]
        %v2587 = vld [vmem:[#allocation2 + $0x1e0] sm:$0xff]
        %v2588 = vld [vmem:[#allocation2 + $0x1e8] sm:$0xff]
        %v2589 = vld [vmem:[#allocation2 + $0x1f0] sm:$0xff]
        %v2590 = vld [vmem:[#allocation2 + $0x1f8] sm:$0xff]
        %v2591 = vld [vmem:[#allocation2 + $0x200] sm:$0xff]
        %v2592 = vld [vmem:[#allocation2 + $0x208] sm:$0xff]
        %v2593 = vld [vmem:[#allocation2 + $0x210] sm:$0xff]
        %v2594 = vld [vmem:[#allocation2 + $0x218] sm:$0xff]
        %v2595 = vld [vmem:[#allocation2 + $0x220] sm:$0xff]
        %v2596 = vld [vmem:[#allocation2 + $0x228] sm:$0xff]
        %v2597 = vld [vmem:[#allocation2 + $0x230] sm:$0xff]
        %v2598 = vld [vmem:[#allocation2 + $0x238] sm:$0xff]
        %v2599 = vld [vmem:[#allocation2 + $0x240] sm:$0xff]
        %v2600 = vld [vmem:[#allocation2 + $0x248] sm:$0xff]
        %v2601 = vld [vmem:[#allocation2 + $0x250] sm:$0xff]
        %v2602 = vld [vmem:[#allocation2 + $0x258] sm:$0xff]
        %v2603 = vld [vmem:[#allocation2 + $0x260] sm:$0xff]
        %v2604 = vld [vmem:[#allocation2 + $0x268] sm:$0xff]
        %v2605 = vld [vmem:[#allocation2 + $0x270] sm:$0xff]
        %v2606 = vld [vmem:[#allocation2 + $0x278] sm:$0xff]
        %v2607 = vld [vmem:[#allocation2 + $0x280] sm:$0xff]
        %v2608 = vld [vmem:[#allocation2 + $0x288] sm:$0xff]
        %v2609 = vld [vmem:[#allocation2 + $0x290] sm:$0xff]
        %v2610 = vld [vmem:[#allocation2 + $0x298] sm:$0xff]
        %v2611 = vld [vmem:[#allocation2 + $0x2a0] sm:$0xff]
        %v2612 = vld [vmem:[#allocation2 + $0x2a8] sm:$0xff]
        %v2613 = vld [vmem:[#allocation2 + $0x2b0] sm:$0xff]
        %v2614 = vld [vmem:[#allocation2 + $0x2b8] sm:$0xff]
        %v2615 = vld [vmem:[#allocation2 + $0x2c0] sm:$0xff]
        %v2616 = vld [vmem:[#allocation2 + $0x2c8] sm:$0xff]
        %v2617 = vld [vmem:[#allocation2 + $0x2d0] sm:$0xff]
        %v2618 = vld [vmem:[#allocation2 + $0x2d8] sm:$0xff]
        %v2619 = vld [vmem:[#allocation2 + $0x2e0] sm:$0xff]
        %v2620 = vld [vmem:[#allocation2 + $0x2e8] sm:$0xff]
        %v2621 = vld [vmem:[#allocation2 + $0x2f0] sm:$0xff]
        %v2622 = vld [vmem:[#allocation2 + $0x2f8] sm:$0xff]
        %v2623 = vld [vmem:[#allocation2 + $0x300] sm:$0xff]
        %v2624 = vld [vmem:[#allocation2 + $0x308] sm:$0xff]
        %v2625 = vld [vmem:[#allocation2 + $0x310] sm:$0xff]
        %v2626 = vld [vmem:[#allocation2 + $0x318] sm:$0xff]
        %2628 = vset.pattern.permute.xlu0 0
        %2629 = vperm.xlu0 %2628, %v1906
        %v2630 = vpop.permute.xlu0 %2629
        %2633 = vset.pattern.permute.xlu0 0
        %2634 = vperm.xlu0 %2633, %v1907
        %v2635 = vpop.permute.xlu0 %2634
        %2638 = vset.pattern.permute.xlu0 0
        %2639 = vperm.xlu0 %2638, %v1908
        %v2640 = vpop.permute.xlu0 %2639
        %2643 = vset.pattern.permute.xlu0 0
        %2644 = vperm.xlu0 %2643, %v1909
        %v2645 = vpop.permute.xlu0 %2644
        %v2663 = vunpack.c.l.b16 %v2511
        %v2664 = vunpack.c.h.b16 %v2511
        %v2665 = vunpack.c.l.b16 %v2512
        %v2666 = vunpack.c.h.b16 %v2512
        %v2667 = vunpack.c.l.b16 %v2513
        %v2668 = vunpack.c.h.b16 %v2513
        %v2669 = vunpack.c.l.b16 %v2514
        %v2670 = vunpack.c.l.b16 %v2515
        %v2671 = vunpack.c.h.b16 %v2515
        %v2672 = vunpack.c.l.b16 %v2516
        %v2673 = vunpack.c.h.b16 %v2516
        %v2674 = vunpack.c.l.b16 %v2517
        %v2675 = vunpack.c.h.b16 %v2517
        %v2676 = vunpack.c.l.b16 %v2518
        %v2677 = vunpack.c.l.b16 %v2519
        %v2678 = vunpack.c.h.b16 %v2519
        %v2679 = vunpack.c.l.b16 %v2520
        %v2680 = vunpack.c.h.b16 %v2520
        %v2681 = vunpack.c.l.b16 %v2521
        %v2682 = vunpack.c.h.b16 %v2521
        %v2683 = vunpack.c.l.b16 %v2522
        %v2684 = vunpack.c.l.b16 %v2523
        %v2685 = vunpack.c.h.b16 %v2523
        %v2686 = vunpack.c.l.b16 %v2524
        %v2687 = vunpack.c.h.b16 %v2524
        %v2688 = vunpack.c.l.b16 %v2525
        %v2689 = vunpack.c.h.b16 %v2525
        %v2690 = vunpack.c.l.b16 %v2526
        %v2691 = vpack.c.b16 %v2670, %v2663
        %v2692 = vpack.c.b16 %v2671, %v2664
        %v2693 = vpack.c.b16 %v2672, %v2665
        %v2694 = vpack.c.b16 %v2673, %v2666
        %v2695 = vpack.c.b16 %v2674, %v2667
        %v2696 = vpack.c.b16 %v2675, %v2668
        %v2697 = vpack.c.b16 %v2676, %v2669
        %v2698 = vpack.c.b16 %v2684, %v2677
        %v2699 = vpack.c.b16 %v2685, %v2678
        %v2700 = vpack.c.b16 %v2686, %v2679
        %v2701 = vpack.c.b16 %v2687, %v2680
        %v2702 = vpack.c.b16 %v2688, %v2681
        %v2703 = vpack.c.b16 %v2689, %v2682
        %v2704 = vpack.c.b16 %v2690, %v2683
        %v2718 = vsel %vm1780, %v2697, 0
        %v2721 = vsel %vm1780, %v2704, 0
        %2723 = vmatprep.subr.bf16.mxu0 %v2528
        %2724 = vmatpush1.bf16.msra.mxu0 %v2527
        %2725 = vmatprep.subr.bf16.mxu0 %v2530
        %2726 = vmatpush1.bf16.msra.mxu0 %v2529
        %2727 = vmatprep.subr.bf16.mxu0 %v2532
        %2728 = vmatpush1.bf16.msra.mxu0 %v2531
        %2729 = vmatprep.subr.bf16.mxu0 %v2534
        %2730 = vmatpush1.bf16.msra.mxu0 %v2533
        %2731 = vmatprep.subr.bf16.mxu0 %v2536
        %2732 = vmatpush1.bf16.msra.mxu0 %v2535
        %2733 = vmatprep.subr.bf16.mxu0 %v2538
        %2734 = vmatpush1.bf16.msra.mxu0 %v2537
        %2735 = vmatprep.subr.bf16.mxu0 %v2540
        %2736 = vmatpush1.bf16.msra.mxu0 %v2539
        %2737 = vmatprep.subr.bf16.mxu0 %v2542
        %2738 = vmatpush1.bf16.msra.mxu0 %v2541
        %2739 = vmatprep.subr.bf16.mxu0 %v2544
        %2740 = vmatpush1.bf16.msra.mxu0 %v2543
        %2741 = vmatprep.subr.bf16.mxu0 %v2546
        %2742 = vmatpush1.bf16.msra.mxu0 %v2545
        %2743 = vmatprep.subr.bf16.mxu0 %v2548
        %2744 = vmatpush1.bf16.msra.mxu0 %v2547
        %2745 = vmatprep.subr.bf16.mxu0 %v2550
        %2746 = vmatpush1.bf16.msra.mxu0 %v2549
        %2747 = vmatprep.subr.bf16.mxu0 %v2552
        %2748 = vmatpush1.bf16.msra.mxu0 %v2551
        %2749 = vmatprep.subr.bf16.mxu0 %v2554
        %2750 = vmatpush1.bf16.msra.mxu0 %v2553
        %2751 = vmatprep.subr.bf16.mxu0 %v2556
        %2752 = vmatpush1.bf16.msra.mxu0 %v2555
        %2753 = vmatprep.subr.bf16.mxu0 %v2558
        %2754 = vmatpush1.bf16.msra.mxu0 %v2557
        %2755 = vmatprep.mubr.bf16.mxu0 %v2692
        %2756 = vmatmul.mubr.bf16.gmra.mrb[0].mxu0 %v2691
        %v2757 = vpop.f32.mrb[0].mxu0
        %v2758 = vadd.f32 %v2630, %v2757
        %v2759 = vpop.f32.mrb[0].mxu0
        %v2760 = vadd.f32 %v2630, %v2759
        %v2761 = vpop.f32.mrb[0].mxu0
        %v2762 = vadd.f32 %v2635, %v2761
        %v2763 = vpop.f32.mrb[0].mxu0
        %v2764 = vadd.f32 %v2635, %v2763
        %2765 = vmatprep.mubr.bf16.mxu0 %v2699
        %2766 = vmatmul.mubr.bf16.gmra.mrb[0].mxu0 %v2698
        %v2767 = vpop.f32.mrb[0].mxu0
        %v2768 = vadd.f32 %v2640, %v2767
        %v2769 = vpop.f32.mrb[0].mxu0
        %v2770 = vadd.f32 %v2640, %v2769
        %v2771 = vpop.f32.mrb[0].mxu0
        %v2772 = vadd.f32 %v2645, %v2771
        %v2773 = vpop.f32.mrb[0].mxu0
        %v2774 = vadd.f32 %v2645, %v2773
        %2775 = vdwg.mxu0
        %2776 = vmatprep.subr.bf16.mxu0 %v2560
        %2777 = vmatpush1.bf16.msra.mxu0 %v2559
        %2778 = vmatprep.subr.bf16.mxu0 %v2562
        %2779 = vmatpush1.bf16.msra.mxu0 %v2561
        %2780 = vmatprep.subr.bf16.mxu0 %v2564
        %2781 = vmatpush1.bf16.msra.mxu0 %v2563
        %2782 = vmatprep.subr.bf16.mxu0 %v2566
        %2783 = vmatpush1.bf16.msra.mxu0 %v2565
        %2784 = vmatprep.subr.bf16.mxu0 %v2568
        %2785 = vmatpush1.bf16.msra.mxu0 %v2567
        %2786 = vmatprep.subr.bf16.mxu0 %v2570
        %2787 = vmatpush1.bf16.msra.mxu0 %v2569
        %2788 = vmatprep.subr.bf16.mxu0 %v2572
        %2789 = vmatpush1.bf16.msra.mxu0 %v2571
        %2790 = vmatprep.subr.bf16.mxu0 %v2574
        %2791 = vmatpush1.bf16.msra.mxu0 %v2573
        %2792 = vmatprep.subr.bf16.mxu0 %v2576
        %2793 = vmatpush1.bf16.msra.mxu0 %v2575
        %2794 = vmatprep.subr.bf16.mxu0 %v2578
        %2795 = vmatpush1.bf16.msra.mxu0 %v2577
        %2796 = vmatprep.subr.bf16.mxu0 %v2580
        %2797 = vmatpush1.bf16.msra.mxu0 %v2579
        %2798 = vmatprep.subr.bf16.mxu0 %v2582
        %2799 = vmatpush1.bf16.msra.mxu0 %v2581
        %2800 = vmatprep.subr.bf16.mxu0 %v2584
        %2801 = vmatpush1.bf16.msra.mxu0 %v2583
        %2802 = vmatprep.subr.bf16.mxu0 %v2586
        %2803 = vmatpush1.bf16.msra.mxu0 %v2585
        %2804 = vmatprep.subr.bf16.mxu0 %v2588
        %2805 = vmatpush1.bf16.msra.mxu0 %v2587
        %2806 = vmatprep.subr.bf16.mxu0 %v2590
        %2807 = vmatpush1.bf16.msra.mxu0 %v2589
        %2808 = vmatprep.mubr.bf16.mxu0 %v2694
        %2809 = vmatmul.mubr.bf16.gmra.mrb[0].mxu0 %v2693
        %v2810 = vpop.f32.mrb[0].mxu0
        %v2811 = vadd.f32 %v2758, %v2810
        %v2812 = vpop.f32.mrb[0].mxu0
        %v2813 = vadd.f32 %v2760, %v2812
        %v2814 = vpop.f32.mrb[0].mxu0
        %v2815 = vadd.f32 %v2762, %v2814
        %v2816 = vpop.f32.mrb[0].mxu0
        %v2817 = vadd.f32 %v2764, %v2816
        %2818 = vmatprep.mubr.bf16.mxu0 %v2701
        %2819 = vmatmul.mubr.bf16.gmra.mrb[0].mxu0 %v2700
        %v2820 = vpop.f32.mrb[0].mxu0
        %v2821 = vadd.f32 %v2768, %v2820
        %v2822 = vpop.f32.mrb[0].mxu0
        %v2823 = vadd.f32 %v2770, %v2822
        %v2824 = vpop.f32.mrb[0].mxu0
        %v2825 = vadd.f32 %v2772, %v2824
        %v2826 = vpop.f32.mrb[0].mxu0
        %v2827 = vadd.f32 %v2774, %v2826
        %2828 = vdwg.mxu0
        %2829 = vmatprep.subr.bf16.mxu0 %v2592
        %2830 = vmatpush1.bf16.msra.mxu0 %v2591
        %2831 = vmatprep.subr.bf16.mxu0 %v2594
        %2832 = vmatpush1.bf16.msra.mxu0 %v2593
        %2833 = vmatprep.subr.bf16.mxu0 %v2596
        %2834 = vmatpush1.bf16.msra.mxu0 %v2595
        %2835 = vmatprep.subr.bf16.mxu0 %v2598
        %2836 = vmatpush1.bf16.msra.mxu0 %v2597
        %2837 = vmatprep.subr.bf16.mxu0 %v2600
        %2838 = vmatpush1.bf16.msra.mxu0 %v2599
        %2839 = vmatprep.subr.bf16.mxu0 %v2602
        %2840 = vmatpush1.bf16.msra.mxu0 %v2601
        %2841 = vmatprep.subr.bf16.mxu0 %v2604
        %2842 = vmatpush1.bf16.msra.mxu0 %v2603
        %2843 = vmatprep.subr.bf16.mxu0 %v2606
        %2844 = vmatpush1.bf16.msra.mxu0 %v2605
        %2845 = vmatprep.subr.bf16.mxu0 %v2608
        %2846 = vmatpush1.bf16.msra.mxu0 %v2607
        %2847 = vmatprep.subr.bf16.mxu0 %v2610
        %2848 = vmatpush1.bf16.msra.mxu0 %v2609
        %2849 = vmatprep.subr.bf16.mxu0 %v2612
        %2850 = vmatpush1.bf16.msra.mxu0 %v2611
        %2851 = vmatprep.subr.bf16.mxu0 %v2614
        %2852 = vmatpush1.bf16.msra.mxu0 %v2613
        %2853 = vmatprep.subr.bf16.mxu0 %v2616
        %2854 = vmatpush1.bf16.msra.mxu0 %v2615
        %2855 = vmatprep.subr.bf16.mxu0 %v2618
        %2856 = vmatpush1.bf16.msra.mxu0 %v2617
        %2857 = vmatprep.subr.bf16.mxu0 %v2620
        %2858 = vmatpush1.bf16.msra.mxu0 %v2619
        %2859 = vmatprep.subr.bf16.mxu0 %v2622
        %2860 = vmatpush1.bf16.msra.mxu0 %v2621
        %2861 = vmatprep.mubr.bf16.mxu0 %v2696
        %2862 = vmatmul.mubr.bf16.gmra.mrb[0].mxu0 %v2695
        %v2863 = vpop.f32.mrb[0].mxu0
        %v2864 = vadd.f32 %v2811, %v2863
        %v2865 = vpop.f32.mrb[0].mxu0
        %v2866 = vadd.f32 %v2813, %v2865
        %v2867 = vpop.f32.mrb[0].mxu0
        %v2868 = vadd.f32 %v2815, %v2867
        %v2869 = vpop.f32.mrb[0].mxu0
        %v2870 = vadd.f32 %v2817, %v2869
        %2871 = vmatprep.mubr.bf16.mxu0 %v2703
        %2872 = vmatmul.mubr.bf16.gmra.mrb[0].mxu0 %v2702
        %v2873 = vpop.f32.mrb[0].mxu0
        %v2874 = vadd.f32 %v2821, %v2873
        %v2875 = vpop.f32.mrb[0].mxu0
        %v2876 = vadd.f32 %v2823, %v2875
        %v2877 = vpop.f32.mrb[0].mxu0
        %v2878 = vadd.f32 %v2825, %v2877
        %v2879 = vpop.f32.mrb[0].mxu0
        %v2880 = vadd.f32 %v2827, %v2879
        %2881 = vdwg.mxu0
        %2882 = vmatprep.subr.bf16.mxu0 %v2624
        %2883 = vmatpush1.bf16.msra.mxu0 %v2623
        %2884 = vmatprep.subr.bf16.mxu0 %v2626
        %2885 = vmatpush1.bf16.msra.mxu0 %v2625
        %2886 = vmatprep.subr.bf16.mxu0 0
        %2887 = vmatpush1.bf16.msra.mxu0 0
        %2888 = vmatprep.subr.bf16.mxu0 0
        %2889 = vmatpush1.bf16.msra.mxu0 0
        %2890 = vmatprep.subr.bf16.mxu0 0
        %2891 = vmatpush1.bf16.msra.mxu0 0
        %2892 = vmatprep.subr.bf16.mxu0 0
        %2893 = vmatpush1.bf16.msra.mxu0 0
        %2894 = vmatprep.subr.bf16.mxu0 0
        %2895 = vmatpush1.bf16.msra.mxu0 0
        %2896 = vmatprep.subr.bf16.mxu0 0
        %2897 = vmatpush1.bf16.msra.mxu0 0
        %2898 = vmatprep.subr.bf16.mxu0 0
        %2899 = vmatpush1.bf16.msra.mxu0 0
        %2900 = vmatprep.subr.bf16.mxu0 0
        %2901 = vmatpush1.bf16.msra.mxu0 0
        %2902 = vmatprep.subr.bf16.mxu0 0
        %2903 = vmatpush1.bf16.msra.mxu0 0
        %2904 = vmatprep.subr.bf16.mxu0 0
        %2905 = vmatpush1.bf16.msra.mxu0 0
        %2906 = vmatprep.subr.bf16.mxu0 0
        %2907 = vmatpush1.bf16.msra.mxu0 0
        %2908 = vmatprep.subr.bf16.mxu0 0
        %2909 = vmatpush1.bf16.msra.mxu0 0
        %2910 = vmatprep.subr.bf16.mxu0 0
        %2911 = vmatpush1.bf16.msra.mxu0 0
        %2912 = vmatprep.subr.bf16.mxu0 0
        %2913 = vmatpush1.bf16.msra.mxu0 0
        %2914 = vmatprep.mubr.bf16.mxu0 0
        %2915 = vmatmul.mubr.bf16.gmra.mrb[0].mxu0 %v2718
        %v2916 = vpop.f32.mrb[0].mxu0
        %v2917 = vadd.f32 %v2864, %v2916
        %v2918 = vpop.f32.mrb[0].mxu0
        %v2919 = vadd.f32 %v2866, %v2918
        %v2920 = vpop.f32.mrb[0].mxu0
        %v2921 = vadd.f32 %v2868, %v2920
        %v2922 = vpop.f32.mrb[0].mxu0
        %v2923 = vadd.f32 %v2870, %v2922
        %2924 = vmatprep.mubr.bf16.mxu0 0
        %2925 = vmatmul.mubr.bf16.gmra.mrb[0].mxu0 %v2721
        %v2926 = vpop.f32.mrb[0].mxu0
        %v2927 = vadd.f32 %v2874, %v2926
        %v2928 = vpop.f32.mrb[0].mxu0
        %v2929 = vadd.f32 %v2876, %v2928
        %v2930 = vpop.f32.mrb[0].mxu0
        %v2931 = vadd.f32 %v2878, %v2930
        %v2932 = vpop.f32.mrb[0].mxu0
        %v2933 = vadd.f32 %v2880, %v2932
        %2934 = vdwg.mxu0
        %vm2935 = vcmp.gt.f32.partialorder %v2917, 0.0
        %vm2936 = vcmp.gt.f32.partialorder %v2919, 0.0
        %vm2937 = vcmp.gt.f32.partialorder %v2921, 0.0
        %vm2938 = vcmp.gt.f32.partialorder %v2923, 0.0
        %vm2939 = vcmp.gt.f32.partialorder %v2927, 0.0
        %vm2940 = vcmp.gt.f32.partialorder %v2929, 0.0
        %vm2941 = vcmp.gt.f32.partialorder %v2931, 0.0
        %vm2942 = vcmp.gt.f32.partialorder %v2933, 0.0
        %v2943 = vmul.f32 %v2917, 0.01
        %v2944 = vmul.f32 %v2919, 0.01
        %v2945 = vmul.f32 %v2921, 0.01
        %v2946 = vmul.f32 %v2923, 0.01
        %v2947 = vmul.f32 %v2927, 0.01
        %v2948 = vmul.f32 %v2929, 0.01
        %v2949 = vmul.f32 %v2931, 0.01
        %v2950 = vmul.f32 %v2933, 0.01
        %v2951 = vsel %vm2935, %v2917, %v2943
        %v2952 = vsel %vm2936, %v2919, %v2944
        %v2953 = vsel %vm2937, %v2921, %v2945
        %v2954 = vsel %vm2938, %v2923, %v2946
        %v2955 = vsel %vm2939, %v2927, %v2947
        %v2956 = vsel %vm2940, %v2929, %v2948
        %v2957 = vsel %vm2941, %v2931, %v2949
        %v2958 = vsel %vm2942, %v2933, %v2950
        %v2959 = vld [vmem:[%s45] sm:$0xff]
        %v2960 = vld [vmem:[%s45 + $0x8] sm:$0xff]
        %v2961 = vld [vmem:[%s45 + $0x10] sm:$0xff]
        %v2962 = vld [vmem:[%s45 + $0x18] sm:$0xff]
        %v2963 = vpack.c.bf16 %v2953, %v2951
        %v2964 = vpack.c.bf16 %v2954, %v2952
        %v2965 = vpack.c.bf16 %v2957, %v2955
        %v2966 = vpack.c.bf16 %v2958, %v2956
        %v2967 = vmul.bf16 %v2963, %v1921
        %v2968 = vmul.bf16 %v2964, %v1919
        %v2969 = vmul.bf16 %v2965, %v1921
        %v2970 = vmul.bf16 %v2966, %v1919
        %2975 = vrot.lane.b32.xlu0 %v2967, 2
        %v2976 = vpop.permute.xlu0 %2975
        %2977 = vrot.lane.b32.xlu0 %v2968, 2
        %v2978 = vpop.permute.xlu0 %2977
        %2979 = vrot.lane.b32.xlu0 %v2969, 2
        %v2980 = vpop.permute.xlu0 %2979
        %2981 = vrot.lane.b32.xlu0 %v2970, 2
        %v2982 = vpop.permute.xlu0 %2981
        %v2983 = vsel %vm1945, %v1936, %v2976
        %v2984 = vsel %vm1945, %v2976, %v2978
        %v2985 = vsel %vm1945, %v1936, %v2980
        %v2986 = vsel %vm1945, %v2980, %v2982
        %2991 = vrot.lane.b32.xlu0 %v2983, 32
        %v2992 = vpop.permute.xlu0 %2991
        %2993 = vrot.lane.b32.xlu0 %v2984, 32
        %v2994 = vpop.permute.xlu0 %2993
        %2995 = vrot.lane.b32.xlu0 %v2985, 32
        %v2996 = vpop.permute.xlu0 %2995
        %2997 = vrot.lane.b32.xlu0 %v2986, 32
        %v2998 = vpop.permute.xlu0 %2997
        %v2999 = vsel %vm1965, %v1956, %v2992
        %v3000 = vsel %vm1965, %v2992, %v2994
        %v3001 = vsel %vm1965, %v1956, %v2996
        %v3002 = vsel %vm1965, %v2996, %v2998
        %3007 = vst [vmem:[#allocation2] sm:$0xff] %v2999
        %3008 = vst [vmem:[#allocation2 + $0x8] sm:$0xff] %v3000
        %3009 = vst [vmem:[#allocation2 + $0x10] sm:$0xff] %v3001
        %3010 = vst [vmem:[#allocation2 + $0x18] sm:$0xff] %v3002
        %3011 = vrot.lane.b32.xlu0 %v2983, 16
        %v3012 = vpop.permute.xlu0 %3011
        %3013 = vrot.lane.b32.xlu0 %v2984, 16
        %v3014 = vpop.permute.xlu0 %3013
        %3015 = vrot.lane.b32.xlu0 %v2985, 16
        %v3016 = vpop.permute.xlu0 %3015
        %3017 = vrot.lane.b32.xlu0 %v2986, 16
        %v3018 = vpop.permute.xlu0 %3017
        %v3019 = vsel %vm1988, %v1979, %v3012
        %v3020 = vsel %vm1988, %v3012, %v3014
        %v3021 = vsel %vm1988, %v1979, %v3016
        %v3022 = vsel %vm1988, %v3016, %v3018
        %3027 = vst [vmem:[#allocation2 + $0xa0] sm:$0xff] %v3019
        %3028 = vst [vmem:[#allocation2 + $0xa8] sm:$0xff] %v3020
        %3029 = vst [vmem:[#allocation2 + $0xb0] sm:$0xff] %v3021
        %3030 = vst [vmem:[#allocation2 + $0xb8] sm:$0xff] %v3022
        %3031 = vst [vmem:[#allocation2 + $0x140] sm:$0xff] %v2983
        %3032 = vst [vmem:[#allocation2 + $0x148] sm:$0xff] %v2984
        %3033 = vst [vmem:[#allocation2 + $0x150] sm:$0xff] %v2985
        %3034 = vst [vmem:[#allocation2 + $0x158] sm:$0xff] %v2986
        %3035 = vrot.lane.b32.xlu0 %v2983, 112
        %v3036 = vpop.permute.xlu0 %3035
        %3037 = vrot.lane.b32.xlu0 %v2984, 112
        %v3038 = vpop.permute.xlu0 %3037
        %3039 = vrot.lane.b32.xlu0 %v2985, 112
        %v3040 = vpop.permute.xlu0 %3039
        %3041 = vrot.lane.b32.xlu0 %v2986, 112
        %v3042 = vpop.permute.xlu0 %3041
        %v3043 = vsel %vm2015, %v3036, %v3038
        %v3044 = vsel %vm2015, %v3038, %v2010
        %v3045 = vsel %vm2015, %v3040, %v3042
        %v3046 = vsel %vm2015, %v3042, %v2010
        %3051 = vst [vmem:[#allocation2 + $0x1e0] sm:$0xff] %v3043
        %3052 = vst [vmem:[#allocation2 + $0x1e8] sm:$0xff] %v3044
        %3053 = vst [vmem:[#allocation2 + $0x1f0] sm:$0xff] %v3045
        %3054 = vst [vmem:[#allocation2 + $0x1f8] sm:$0xff] %v3046
        %3055 = vrot.lane.b32.xlu0 %v2983, 96
        %v3056 = vpop.permute.xlu0 %3055
        %3057 = vrot.lane.b32.xlu0 %v2984, 96
        %v3058 = vpop.permute.xlu0 %3057
        %3059 = vrot.lane.b32.xlu0 %v2985, 96
        %v3060 = vpop.permute.xlu0 %3059
        %3061 = vrot.lane.b32.xlu0 %v2986, 96
        %v3062 = vpop.permute.xlu0 %3061
        %v3063 = vsel %vm2038, %v3056, %v3058
        %v3064 = vsel %vm2038, %v3058, %v2033
        %v3065 = vsel %vm2038, %v3060, %v3062
        %v3066 = vsel %vm2038, %v3062, %v2033
        %3071 = vst [vmem:[#allocation2 + $0x280] sm:$0xff] %v3063
        %3072 = vst [vmem:[#allocation2 + $0x288] sm:$0xff] %v3064
        %3073 = vst [vmem:[#allocation2 + $0x290] sm:$0xff] %v3065
        %3074 = vst [vmem:[#allocation2 + $0x298] sm:$0xff] %v3066
        %v3075 = vmul.bf16 %v2963, %v2058
        %v3076 = vmul.bf16 %v2964, %v2056
        %v3077 = vmul.bf16 %v2965, %v2058
        %v3078 = vmul.bf16 %v2966, %v2056
        %3083 = vrot.lane.b32.xlu0 %v3075, 1
        %v3084 = vpop.permute.xlu0 %3083
        %3085 = vrot.lane.b32.xlu0 %v3076, 1
        %v3086 = vpop.permute.xlu0 %3085
        %3087 = vrot.lane.b32.xlu0 %v3077, 1
        %v3088 = vpop.permute.xlu0 %3087
        %3089 = vrot.lane.b32.xlu0 %v3078, 1
        %v3090 = vpop.permute.xlu0 %3089
        %v3091 = vsel %vm2082, %v2073, %v3084
        %v3092 = vsel %vm2082, %v3084, %v3086
        %v3093 = vsel %vm2082, %v2073, %v3088
        %v3094 = vsel %vm2082, %v3088, %v3090
        %3099 = vrot.lane.b32.xlu0 %v3091, 32
        %v3100 = vpop.permute.xlu0 %3099
        %3101 = vrot.lane.b32.xlu0 %v3092, 32
        %v3102 = vpop.permute.xlu0 %3101
        %3103 = vrot.lane.b32.xlu0 %v3093, 32
        %v3104 = vpop.permute.xlu0 %3103
        %3105 = vrot.lane.b32.xlu0 %v3094, 32
        %v3106 = vpop.permute.xlu0 %3105
        %v3107 = vsel %vm1965, %v1956, %v3100
        %v3108 = vsel %vm1965, %v3100, %v3102
        %v3109 = vsel %vm1965, %v1956, %v3104
        %v3110 = vsel %vm1965, %v3104, %v3106
        %3115 = vst [vmem:[#allocation2 + $0x20] sm:$0xff] %v3107
        %3116 = vst [vmem:[#allocation2 + $0x28] sm:$0xff] %v3108
        %3117 = vst [vmem:[#allocation2 + $0x30] sm:$0xff] %v3109
        %3118 = vst [vmem:[#allocation2 + $0x38] sm:$0xff] %v3110
        %3119 = vrot.lane.b32.xlu0 %v3091, 16
        %v3120 = vpop.permute.xlu0 %3119
        %3121 = vrot.lane.b32.xlu0 %v3092, 16
        %v3122 = vpop.permute.xlu0 %3121
        %3123 = vrot.lane.b32.xlu0 %v3093, 16
        %v3124 = vpop.permute.xlu0 %3123
        %3125 = vrot.lane.b32.xlu0 %v3094, 16
        %v3126 = vpop.permute.xlu0 %3125
        %v3127 = vsel %vm1988, %v1979, %v3120
        %v3128 = vsel %vm1988, %v3120, %v3122
        %v3129 = vsel %vm1988, %v1979, %v3124
        %v3130 = vsel %vm1988, %v3124, %v3126
        %3135 = vst [vmem:[#allocation2 + $0xc0] sm:$0xff] %v3127
        %3136 = vst [vmem:[#allocation2 + $0xc8] sm:$0xff] %v3128
        %3137 = vst [vmem:[#allocation2 + $0xd0] sm:$0xff] %v3129
        %3138 = vst [vmem:[#allocation2 + $0xd8] sm:$0xff] %v3130
        %3139 = vst [vmem:[#allocation2 + $0x160] sm:$0xff] %v3091
        %3140 = vst [vmem:[#allocation2 + $0x168] sm:$0xff] %v3092
        %3141 = vst [vmem:[#allocation2 + $0x170] sm:$0xff] %v3093
        %3142 = vst [vmem:[#allocation2 + $0x178] sm:$0xff] %v3094
        %3143 = vrot.lane.b32.xlu0 %v3091, 112
        %v3144 = vpop.permute.xlu0 %3143
        %3145 = vrot.lane.b32.xlu0 %v3092, 112
        %v3146 = vpop.permute.xlu0 %3145
        %3147 = vrot.lane.b32.xlu0 %v3093, 112
        %v3148 = vpop.permute.xlu0 %3147
        %3149 = vrot.lane.b32.xlu0 %v3094, 112
        %v3150 = vpop.permute.xlu0 %3149
        %v3151 = vsel %vm2015, %v3144, %v3146
        %v3152 = vsel %vm2015, %v3146, %v2010
        %v3153 = vsel %vm2015, %v3148, %v3150
        %v3154 = vsel %vm2015, %v3150, %v2010
        %3159 = vst [vmem:[#allocation2 + $0x200] sm:$0xff] %v3151
        %3160 = vst [vmem:[#allocation2 + $0x208] sm:$0xff] %v3152
        %3161 = vst [vmem:[#allocation2 + $0x210] sm:$0xff] %v3153
        %3162 = vst [vmem:[#allocation2 + $0x218] sm:$0xff] %v3154
        %3163 = vrot.lane.b32.xlu0 %v3091, 96
        %v3164 = vpop.permute.xlu0 %3163
        %3165 = vrot.lane.b32.xlu0 %v3092, 96
        %v3166 = vpop.permute.xlu0 %3165
        %3167 = vrot.lane.b32.xlu0 %v3093, 96
        %v3168 = vpop.permute.xlu0 %3167
        %3169 = vrot.lane.b32.xlu0 %v3094, 96
        %v3170 = vpop.permute.xlu0 %3169
        %v3171 = vsel %vm2038, %v3164, %v3166
        %v3172 = vsel %vm2038, %v3166, %v2033
        %v3173 = vsel %vm2038, %v3168, %v3170
        %v3174 = vsel %vm2038, %v3170, %v2033
        %3179 = vst [vmem:[#allocation2 + $0x2a0] sm:$0xff] %v3171
        %3180 = vst [vmem:[#allocation2 + $0x2a8] sm:$0xff] %v3172
        %3181 = vst [vmem:[#allocation2 + $0x2b0] sm:$0xff] %v3173
        %3182 = vst [vmem:[#allocation2 + $0x2b8] sm:$0xff] %v3174
        %v3183 = vmul.bf16 %v2963, %v1229
        %v3184 = vmul.bf16 %v2964, %v1230
        %v3185 = vmul.bf16 %v2965, %v1229
        %v3186 = vmul.bf16 %v2966, %v1230
        %3191 = vrot.lane.b32.xlu0 %v3183, 32
        %v3192 = vpop.permute.xlu0 %3191
        %3193 = vrot.lane.b32.xlu0 %v3184, 32
        %v3194 = vpop.permute.xlu0 %3193
        %3195 = vrot.lane.b32.xlu0 %v3185, 32
        %v3196 = vpop.permute.xlu0 %3195
        %3197 = vrot.lane.b32.xlu0 %v3186, 32
        %v3198 = vpop.permute.xlu0 %3197
        %v3199 = vsel %vm1965, %v1956, %v3192
        %v3200 = vsel %vm1965, %v3192, %v3194
        %v3201 = vsel %vm1965, %v1956, %v3196
        %v3202 = vsel %vm1965, %v3196, %v3198
        %3207 = vst [vmem:[#allocation2 + $0x40] sm:$0xff] %v3199
        %3208 = vst [vmem:[#allocation2 + $0x48] sm:$0xff] %v3200
        %3209 = vst [vmem:[#allocation2 + $0x50] sm:$0xff] %v3201
        %3210 = vst [vmem:[#allocation2 + $0x58] sm:$0xff] %v3202
        %3211 = vrot.lane.b32.xlu0 %v3183, 16
        %v3212 = vpop.permute.xlu0 %3211
        %3213 = vrot.lane.b32.xlu0 %v3184, 16
        %v3214 = vpop.permute.xlu0 %3213
        %3215 = vrot.lane.b32.xlu0 %v3185, 16
        %v3216 = vpop.permute.xlu0 %3215
        %3217 = vrot.lane.b32.xlu0 %v3186, 16
        %v3218 = vpop.permute.xlu0 %3217
        %v3219 = vsel %vm1988, %v1979, %v3212
        %v3220 = vsel %vm1988, %v3212, %v3214
        %v3221 = vsel %vm1988, %v1979, %v3216
        %v3222 = vsel %vm1988, %v3216, %v3218
        %3227 = vst [vmem:[#allocation2 + $0xe0] sm:$0xff] %v3219
        %3228 = vst [vmem:[#allocation2 + $0xe8] sm:$0xff] %v3220
        %3229 = vst [vmem:[#allocation2 + $0xf0] sm:$0xff] %v3221
        %3230 = vst [vmem:[#allocation2 + $0xf8] sm:$0xff] %v3222
        %3231 = vst [vmem:[#allocation2 + $0x180] sm:$0xff] %v3183
        %3232 = vst [vmem:[#allocation2 + $0x188] sm:$0xff] %v3184
        %3233 = vst [vmem:[#allocation2 + $0x190] sm:$0xff] %v3185
        %3234 = vst [vmem:[#allocation2 + $0x198] sm:$0xff] %v3186
        %3235 = vrot.lane.b32.xlu0 %v3183, 112
        %v3236 = vpop.permute.xlu0 %3235
        %3237 = vrot.lane.b32.xlu0 %v3184, 112
        %v3238 = vpop.permute.xlu0 %3237
        %3239 = vrot.lane.b32.xlu0 %v3185, 112
        %v3240 = vpop.permute.xlu0 %3239
        %3241 = vrot.lane.b32.xlu0 %v3186, 112
        %v3242 = vpop.permute.xlu0 %3241
        %v3243 = vsel %vm2015, %v3236, %v3238
        %v3244 = vsel %vm2015, %v3238, %v2010
        %v3245 = vsel %vm2015, %v3240, %v3242
        %v3246 = vsel %vm2015, %v3242, %v2010
        %3251 = vst [vmem:[#allocation2 + $0x220] sm:$0xff] %v3243
        %3252 = vst [vmem:[#allocation2 + $0x228] sm:$0xff] %v3244
        %3253 = vst [vmem:[#allocation2 + $0x230] sm:$0xff] %v3245
        %3254 = vst [vmem:[#allocation2 + $0x238] sm:$0xff] %v3246
        %3255 = vrot.lane.b32.xlu0 %v3183, 96
        %v3256 = vpop.permute.xlu0 %3255
        %3257 = vrot.lane.b32.xlu0 %v3184, 96
        %v3258 = vpop.permute.xlu0 %3257
        %3259 = vrot.lane.b32.xlu0 %v3185, 96
        %v3260 = vpop.permute.xlu0 %3259
        %3261 = vrot.lane.b32.xlu0 %v3186, 96
        %v3262 = vpop.permute.xlu0 %3261
        %v3263 = vsel %vm2038, %v3256, %v3258
        %v3264 = vsel %vm2038, %v3258, %v2033
        %v3265 = vsel %vm2038, %v3260, %v3262
        %v3266 = vsel %vm2038, %v3262, %v2033
        %3271 = vst [vmem:[#allocation2 + $0x2c0] sm:$0xff] %v3263
        %3272 = vst [vmem:[#allocation2 + $0x2c8] sm:$0xff] %v3264
        %3273 = vst [vmem:[#allocation2 + $0x2d0] sm:$0xff] %v3265
        %3274 = vst [vmem:[#allocation2 + $0x2d8] sm:$0xff] %v3266
        %v3275 = vmul.bf16 %v2963, %v2270
        %v3276 = vmul.bf16 %v2964, %v2273
        %v3277 = vmul.bf16 %v2965, %v2270
        %v3278 = vmul.bf16 %v2966, %v2273
        %3283 = vrot.lane.b32.xlu0 %v3275, 127
        %v3284 = vpop.permute.xlu0 %3283
        %3285 = vrot.lane.b32.xlu0 %v3276, 127
        %v3286 = vpop.permute.xlu0 %3285
        %3287 = vrot.lane.b32.xlu0 %v3277, 127
        %v3288 = vpop.permute.xlu0 %3287
        %3289 = vrot.lane.b32.xlu0 %v3278, 127
        %v3290 = vpop.permute.xlu0 %3289
        %v3291 = vsel %vm2057, %v3284, %v3286
        %v3292 = vsel %vm2057, %v3286, %v2292
        %v3293 = vsel %vm2057, %v3288, %v3290
        %v3294 = vsel %vm2057, %v3290, %v2292
        %3299 = vrot.lane.b32.xlu0 %v3291, 32
        %v3300 = vpop.permute.xlu0 %3299
        %3301 = vrot.lane.b32.xlu0 %v3292, 32
        %v3302 = vpop.permute.xlu0 %3301
        %3303 = vrot.lane.b32.xlu0 %v3293, 32
        %v3304 = vpop.permute.xlu0 %3303
        %3305 = vrot.lane.b32.xlu0 %v3294, 32
        %v3306 = vpop.permute.xlu0 %3305
        %v3307 = vsel %vm1965, %v1956, %v3300
        %v3308 = vsel %vm1965, %v3300, %v3302
        %v3309 = vsel %vm1965, %v1956, %v3304
        %v3310 = vsel %vm1965, %v3304, %v3306
        %3315 = vst [vmem:[#allocation2 + $0x60] sm:$0xff] %v3307
        %3316 = vst [vmem:[#allocation2 + $0x68] sm:$0xff] %v3308
        %3317 = vst [vmem:[#allocation2 + $0x70] sm:$0xff] %v3309
        %3318 = vst [vmem:[#allocation2 + $0x78] sm:$0xff] %v3310
        %3319 = vrot.lane.b32.xlu0 %v3291, 16
        %v3320 = vpop.permute.xlu0 %3319
        %3321 = vrot.lane.b32.xlu0 %v3292, 16
        %v3322 = vpop.permute.xlu0 %3321
        %3323 = vrot.lane.b32.xlu0 %v3293, 16
        %v3324 = vpop.permute.xlu0 %3323
        %3325 = vrot.lane.b32.xlu0 %v3294, 16
        %v3326 = vpop.permute.xlu0 %3325
        %v3327 = vsel %vm1988, %v1979, %v3320
        %v3328 = vsel %vm1988, %v3320, %v3322
        %v3329 = vsel %vm1988, %v1979, %v3324
        %v3330 = vsel %vm1988, %v3324, %v3326
        %3335 = vst [vmem:[#allocation2 + $0x100] sm:$0xff] %v3327
        %3336 = vst [vmem:[#allocation2 + $0x108] sm:$0xff] %v3328
        %3337 = vst [vmem:[#allocation2 + $0x110] sm:$0xff] %v3329
        %3338 = vst [vmem:[#allocation2 + $0x118] sm:$0xff] %v3330
        %3339 = vst [vmem:[#allocation2 + $0x1a0] sm:$0xff] %v3291
        %3340 = vst [vmem:[#allocation2 + $0x1a8] sm:$0xff] %v3292
        %3341 = vst [vmem:[#allocation2 + $0x1b0] sm:$0xff] %v3293
        %3342 = vst [vmem:[#allocation2 + $0x1b8] sm:$0xff] %v3294
        %3343 = vrot.lane.b32.xlu0 %v3291, 112
        %v3344 = vpop.permute.xlu0 %3343
        %3345 = vrot.lane.b32.xlu0 %v3292, 112
        %v3346 = vpop.permute.xlu0 %3345
        %3347 = vrot.lane.b32.xlu0 %v3293, 112
        %v3348 = vpop.permute.xlu0 %3347
        %3349 = vrot.lane.b32.xlu0 %v3294, 112
        %v3350 = vpop.permute.xlu0 %3349
        %v3351 = vsel %vm2015, %v3344, %v3346
        %v3352 = vsel %vm2015, %v3346, %v2010
        %v3353 = vsel %vm2015, %v3348, %v3350
        %v3354 = vsel %vm2015, %v3350, %v2010
        %3359 = vst [vmem:[#allocation2 + $0x240] sm:$0xff] %v3351
        %3360 = vst [vmem:[#allocation2 + $0x248] sm:$0xff] %v3352
        %3361 = vst [vmem:[#allocation2 + $0x250] sm:$0xff] %v3353
        %3362 = vst [vmem:[#allocation2 + $0x258] sm:$0xff] %v3354
        %3363 = vrot.lane.b32.xlu0 %v3291, 96
        %v3364 = vpop.permute.xlu0 %3363
        %3365 = vrot.lane.b32.xlu0 %v3292, 96
        %v3366 = vpop.permute.xlu0 %3365
        %3367 = vrot.lane.b32.xlu0 %v3293, 96
        %v3368 = vpop.permute.xlu0 %3367
        %3369 = vrot.lane.b32.xlu0 %v3294, 96
        %v3370 = vpop.permute.xlu0 %3369
        %v3371 = vsel %vm2038, %v3364, %v3366
        %v3372 = vsel %vm2038, %v3366, %v2033
        %v3373 = vsel %vm2038, %v3368, %v3370
        %v3374 = vsel %vm2038, %v3370, %v2033
        %3379 = vst [vmem:[#allocation2 + $0x2e0] sm:$0xff] %v3371
        %3380 = vst [vmem:[#allocation2 + $0x2e8] sm:$0xff] %v3372
        %3381 = vst [vmem:[#allocation2 + $0x2f0] sm:$0xff] %v3373
        %3382 = vst [vmem:[#allocation2 + $0x2f8] sm:$0xff] %v3374
        %v3383 = vmul.bf16 %v2963, %v2392
        %v3384 = vmul.bf16 %v2964, %v2395
        %v3385 = vmul.bf16 %v2965, %v2392
        %v3386 = vmul.bf16 %v2966, %v2395
        %3391 = vrot.lane.b32.xlu0 %v3383, 126
        %v3392 = vpop.permute.xlu0 %3391
        %3393 = vrot.lane.b32.xlu0 %v3384, 126
        %v3394 = vpop.permute.xlu0 %3393
        %3395 = vrot.lane.b32.xlu0 %v3385, 126
        %v3396 = vpop.permute.xlu0 %3395
        %3397 = vrot.lane.b32.xlu0 %v3386, 126
        %v3398 = vpop.permute.xlu0 %3397
        %v3399 = vsel %vm1920, %v3392, %v3394
        %v3400 = vsel %vm1920, %v3394, %v2414
        %v3401 = vsel %vm1920, %v3396, %v3398
        %v3402 = vsel %vm1920, %v3398, %v2414
        %3407 = vrot.lane.b32.xlu0 %v3399, 32
        %v3408 = vpop.permute.xlu0 %3407
        %3409 = vrot.lane.b32.xlu0 %v3400, 32
        %v3410 = vpop.permute.xlu0 %3409
        %3411 = vrot.lane.b32.xlu0 %v3401, 32
        %v3412 = vpop.permute.xlu0 %3411
        %3413 = vrot.lane.b32.xlu0 %v3402, 32
        %v3414 = vpop.permute.xlu0 %3413
        %v3415 = vsel %vm1965, %v1956, %v3408
        %v3416 = vsel %vm1965, %v3408, %v3410
        %v3417 = vsel %vm1965, %v1956, %v3412
        %v3418 = vsel %vm1965, %v3412, %v3414
        %3423 = vst [vmem:[#allocation2 + $0x80] sm:$0xff] %v3415
        %3424 = vst [vmem:[#allocation2 + $0x88] sm:$0xff] %v3416
        %3425 = vst [vmem:[#allocation2 + $0x90] sm:$0xff] %v3417
        %3426 = vst [vmem:[#allocation2 + $0x98] sm:$0xff] %v3418
        %3427 = vrot.lane.b32.xlu0 %v3399, 16
        %v3428 = vpop.permute.xlu0 %3427
        %3429 = vrot.lane.b32.xlu0 %v3400, 16
        %v3430 = vpop.permute.xlu0 %3429
        %3431 = vrot.lane.b32.xlu0 %v3401, 16
        %v3432 = vpop.permute.xlu0 %3431
        %3433 = vrot.lane.b32.xlu0 %v3402, 16
        %v3434 = vpop.permute.xlu0 %3433
        %v3435 = vsel %vm1988, %v1979, %v3428
        %v3436 = vsel %vm1988, %v3428, %v3430
        %v3437 = vsel %vm1988, %v1979, %v3432
        %v3438 = vsel %vm1988, %v3432, %v3434
        %3443 = vst [vmem:[#allocation2 + $0x120] sm:$0xff] %v3435
        %3444 = vst [vmem:[#allocation2 + $0x128] sm:$0xff] %v3436
        %3445 = vst [vmem:[#allocation2 + $0x130] sm:$0xff] %v3437
        %3446 = vst [vmem:[#allocation2 + $0x138] sm:$0xff] %v3438
        %3447 = vst [vmem:[#allocation2 + $0x1c0] sm:$0xff] %v3399
        %3448 = vst [vmem:[#allocation2 + $0x1c8] sm:$0xff] %v3400
        %3449 = vst [vmem:[#allocation2 + $0x1d0] sm:$0xff] %v3401
        %3450 = vst [vmem:[#allocation2 + $0x1d8] sm:$0xff] %v3402
        %3451 = vrot.lane.b32.xlu0 %v3399, 112
        %v3452 = vpop.permute.xlu0 %3451
        %3453 = vrot.lane.b32.xlu0 %v3400, 112
        %v3454 = vpop.permute.xlu0 %3453
        %3455 = vrot.lane.b32.xlu0 %v3401, 112
        %v3456 = vpop.permute.xlu0 %3455
        %3457 = vrot.lane.b32.xlu0 %v3402, 112
        %v3458 = vpop.permute.xlu0 %3457
        %v3459 = vsel %vm2015, %v3452, %v3454
        %v3460 = vsel %vm2015, %v3454, %v2010
        %v3461 = vsel %vm2015, %v3456, %v3458
        %v3462 = vsel %vm2015, %v3458, %v2010
        %3467 = vst [vmem:[#allocation2 + $0x260] sm:$0xff] %v3459
        %3468 = vst [vmem:[#allocation2 + $0x268] sm:$0xff] %v3460
        %3469 = vst [vmem:[#allocation2 + $0x270] sm:$0xff] %v3461
        %3470 = vst [vmem:[#allocation2 + $0x278] sm:$0xff] %v3462
        %3471 = vrot.lane.b32.xlu0 %v3399, 96
        %v3472 = vpop.permute.xlu0 %3471
        %3473 = vrot.lane.b32.xlu0 %v3400, 96
        %v3474 = vpop.permute.xlu0 %3473
        %3475 = vrot.lane.b32.xlu0 %v3401, 96
        %v3476 = vpop.permute.xlu0 %3475
        %3477 = vrot.lane.b32.xlu0 %v3402, 96
        %v3478 = vpop.permute.xlu0 %3477
        %v3479 = vsel %vm2038, %v3472, %v3474
        %v3480 = vsel %vm2038, %v3474, %v2033
        %v3481 = vsel %vm2038, %v3476, %v3478
        %v3482 = vsel %vm2038, %v3478, %v2033
        %3487 = vst [vmem:[#allocation2 + $0x300] sm:$0xff] %v3479
        %3488 = vst [vmem:[#allocation2 + $0x308] sm:$0xff] %v3480
        %3489 = vst [vmem:[#allocation2 + $0x310] sm:$0xff] %v3481
        %3490 = vst [vmem:[#allocation2 + $0x318] sm:$0xff] %v3482
        %v3491 = vld [vmem:[%s43] sm:$0xff]
        %v3492 = vld [vmem:[%s43 + $0x8] sm:$0xff]
        %v3493 = vld [vmem:[%s43 + $0x10] sm:$0xff]
        %v3494 = vld [vmem:[%s43 + $0x18] sm:$0xf]
        %v3495 = vld [vmem:[%s43 + $0x1c] sm:$0xff]
        %v3496 = vld [vmem:[%s43 + $0x24] sm:$0xff]
        %v3497 = vld [vmem:[%s43 + $0x2c] sm:$0xff]
        %v3498 = vld [vmem:[%s43 + $0x34] sm:$0xf]
        %v3499 = vld [vmem:[%s43 + $0x38] sm:$0xff]
        %v3500 = vld [vmem:[%s43 + $0x40] sm:$0xff]
        %v3501 = vld [vmem:[%s43 + $0x48] sm:$0xff]
        %v3502 = vld [vmem:[%s43 + $0x50] sm:$0xf]
        %v3503 = vld [vmem:[%s43 + $0x54] sm:$0xff]
        %v3504 = vld [vmem:[%s43 + $0x5c] sm:$0xff]
        %v3505 = vld [vmem:[%s43 + $0x64] sm:$0xff]
        %v3506 = vld [vmem:[%s43 + $0x6c] sm:$0xf]
        %v3507 = vld [vmem:[#allocation2] sm:$0xff]
        %v3508 = vld [vmem:[#allocation2 + $0x8] sm:$0xff]
        %v3509 = vld [vmem:[#allocation2 + $0x10] sm:$0xff]
        %v3510 = vld [vmem:[#allocation2 + $0x18] sm:$0xff]
        %v3511 = vld [vmem:[#allocation2 + $0x20] sm:$0xff]
        %v3512 = vld [vmem:[#allocation2 + $0x28] sm:$0xff]
        %v3513 = vld [vmem:[#allocation2 + $0x30] sm:$0xff]
        %v3514 = vld [vmem:[#allocation2 + $0x38] sm:$0xff]
        %v3515 = vld [vmem:[#allocation2 + $0x40] sm:$0xff]
        %v3516 = vld [vmem:[#allocation2 + $0x48] sm:$0xff]
        %v3517 = vld [vmem:[#allocation2 + $0x50] sm:$0xff]
        %v3518 = vld [vmem:[#allocation2 + $0x58] sm:$0xff]
        %v3519 = vld [vmem:[#allocation2 + $0x60] sm:$0xff]
        %v3520 = vld [vmem:[#allocation2 + $0x68] sm:$0xff]
        %v3521 = vld [vmem:[#allocation2 + $0x70] sm:$0xff]
        %v3522 = vld [vmem:[#allocation2 + $0x78] sm:$0xff]
        %v3523 = vld [vmem:[#allocation2 + $0x80] sm:$0xff]
        %v3524 = vld [vmem:[#allocation2 + $0x88] sm:$0xff]
        %v3525 = vld [vmem:[#allocation2 + $0x90] sm:$0xff]
        %v3526 = vld [vmem:[#allocation2 + $0x98] sm:$0xff]
        %v3527 = vld [vmem:[#allocation2 + $0xa0] sm:$0xff]
        %v3528 = vld [vmem:[#allocation2 + $0xa8] sm:$0xff]
        %v3529 = vld [vmem:[#allocation2 + $0xb0] sm:$0xff]
        %v3530 = vld [vmem:[#allocation2 + $0xb8] sm:$0xff]
        %v3531 = vld [vmem:[#allocation2 + $0xc0] sm:$0xff]
        %v3532 = vld [vmem:[#allocation2 + $0xc8] sm:$0xff]
        %v3533 = vld [vmem:[#allocation2 + $0xd0] sm:$0xff]
        %v3534 = vld [vmem:[#allocation2 + $0xd8] sm:$0xff]
        %v3535 = vld [vmem:[#allocation2 + $0xe0] sm:$0xff]
        %v3536 = vld [vmem:[#allocation2 + $0xe8] sm:$0xff]
        %v3537 = vld [vmem:[#allocation2 + $0xf0] sm:$0xff]
        %v3538 = vld [vmem:[#allocation2 + $0xf8] sm:$0xff]
        %v3539 = vld [vmem:[#allocation2 + $0x100] sm:$0xff]
        %v3540 = vld [vmem:[#allocation2 + $0x108] sm:$0xff]
        %v3541 = vld [vmem:[#allocation2 + $0x110] sm:$0xff]
        %v3542 = vld [vmem:[#allocation2 + $0x118] sm:$0xff]
        %v3543 = vld [vmem:[#allocation2 + $0x120] sm:$0xff]
        %v3544 = vld [vmem:[#allocation2 + $0x128] sm:$0xff]
        %v3545 = vld [vmem:[#allocation2 + $0x130] sm:$0xff]
        %v3546 = vld [vmem:[#allocation2 + $0x138] sm:$0xff]
        %v3547 = vld [vmem:[#allocation2 + $0x140] sm:$0xff]
        %v3548 = vld [vmem:[#allocation2 + $0x148] sm:$0xff]
        %v3549 = vld [vmem:[#allocation2 + $0x150] sm:$0xff]
        %v3550 = vld [vmem:[#allocation2 + $0x158] sm:$0xff]
        %v3551 = vld [vmem:[#allocation2 + $0x160] sm:$0xff]
        %v3552 = vld [vmem:[#allocation2 + $0x168] sm:$0xff]
        %v3553 = vld [vmem:[#allocation2 + $0x170] sm:$0xff]
        %v3554 = vld [vmem:[#allocation2 + $0x178] sm:$0xff]
        %v3555 = vld [vmem:[#allocation2 + $0x180] sm:$0xff]
        %v3556 = vld [vmem:[#allocation2 + $0x188] sm:$0xff]
        %v3557 = vld [vmem:[#allocation2 + $0x190] sm:$0xff]
        %v3558 = vld [vmem:[#allocation2 + $0x198] sm:$0xff]
        %v3559 = vld [vmem:[#allocation2 + $0x1a0] sm:$0xff]
        %v3560 = vld [vmem:[#allocation2 + $0x1a8] sm:$0xff]
        %v3561 = vld [vmem:[#allocation2 + $0x1b0] sm:$0xff]
        %v3562 = vld [vmem:[#allocation2 + $0x1b8] sm:$0xff]
        %v3563 = vld [vmem:[#allocation2 + $0x1c0] sm:$0xff]
        %v3564 = vld [vmem:[#allocation2 + $0x1c8] sm:$0xff]
        %v3565 = vld [vmem:[#allocation2 + $0x1d0] sm:$0xff]
        %v3566 = vld [vmem:[#allocation2 + $0x1d8] sm:$0xff]
        %v3567 = vld [vmem:[#allocation2 + $0x1e0] sm:$0xff]
        %v3568 = vld [vmem:[#allocation2 + $0x1e8] sm:$0xff]
        %v3569 = vld [vmem:[#allocation2 + $0x1f0] sm:$0xff]
        %v3570 = vld [vmem:[#allocation2 + $0x1f8] sm:$0xff]
        %v3571 = vld [vmem:[#allocation2 + $0x200] sm:$0xff]
        %v3572 = vld [vmem:[#allocation2 + $0x208] sm:$0xff]
        %v3573 = vld [vmem:[#allocation2 + $0x210] sm:$0xff]
        %v3574 = vld [vmem:[#allocation2 + $0x218] sm:$0xff]
        %v3575 = vld [vmem:[#allocation2 + $0x220] sm:$0xff]
        %v3576 = vld [vmem:[#allocation2 + $0x228] sm:$0xff]
        %v3577 = vld [vmem:[#allocation2 + $0x230] sm:$0xff]
        %v3578 = vld [vmem:[#allocation2 + $0x238] sm:$0xff]
        %v3579 = vld [vmem:[#allocation2 + $0x240] sm:$0xff]
        %v3580 = vld [vmem:[#allocation2 + $0x248] sm:$0xff]
        %v3581 = vld [vmem:[#allocation2 + $0x250] sm:$0xff]
        %v3582 = vld [vmem:[#allocation2 + $0x258] sm:$0xff]
        %v3583 = vld [vmem:[#allocation2 + $0x260] sm:$0xff]
        %v3584 = vld [vmem:[#allocation2 + $0x268] sm:$0xff]
        %v3585 = vld [vmem:[#allocation2 + $0x270] sm:$0xff]
        %v3586 = vld [vmem:[#allocation2 + $0x278] sm:$0xff]
        %v3587 = vld [vmem:[#allocation2 + $0x280] sm:$0xff]
        %v3588 = vld [vmem:[#allocation2 + $0x288] sm:$0xff]
        %v3589 = vld [vmem:[#allocation2 + $0x290] sm:$0xff]
        %v3590 = vld [vmem:[#allocation2 + $0x298] sm:$0xff]
        %v3591 = vld [vmem:[#allocation2 + $0x2a0] sm:$0xff]
        %v3592 = vld [vmem:[#allocation2 + $0x2a8] sm:$0xff]
        %v3593 = vld [vmem:[#allocation2 + $0x2b0] sm:$0xff]
        %v3594 = vld [vmem:[#allocation2 + $0x2b8] sm:$0xff]
        %v3595 = vld [vmem:[#allocation2 + $0x2c0] sm:$0xff]
        %v3596 = vld [vmem:[#allocation2 + $0x2c8] sm:$0xff]
        %v3597 = vld [vmem:[#allocation2 + $0x2d0] sm:$0xff]
        %v3598 = vld [vmem:[#allocation2 + $0x2d8] sm:$0xff]
        %v3599 = vld [vmem:[#allocation2 + $0x2e0] sm:$0xff]
        %v3600 = vld [vmem:[#allocation2 + $0x2e8] sm:$0xff]
        %v3601 = vld [vmem:[#allocation2 + $0x2f0] sm:$0xff]
        %v3602 = vld [vmem:[#allocation2 + $0x2f8] sm:$0xff]
        %v3603 = vld [vmem:[#allocation2 + $0x300] sm:$0xff]
        %v3604 = vld [vmem:[#allocation2 + $0x308] sm:$0xff]
        %v3605 = vld [vmem:[#allocation2 + $0x310] sm:$0xff]
        %v3606 = vld [vmem:[#allocation2 + $0x318] sm:$0xff]
        %3608 = vset.pattern.permute.xlu0 0
        %3609 = vperm.xlu0 %3608, %v2959
        %v3610 = vpop.permute.xlu0 %3609
        %3613 = vset.pattern.permute.xlu0 0
        %3614 = vperm.xlu0 %3613, %v2960
        %v3615 = vpop.permute.xlu0 %3614
        %3618 = vset.pattern.permute.xlu0 0
        %3619 = vperm.xlu0 %3618, %v2961
        %v3620 = vpop.permute.xlu0 %3619
        %3623 = vset.pattern.permute.xlu0 0
        %3624 = vperm.xlu0 %3623, %v2962
        %v3625 = vpop.permute.xlu0 %3624
        %v3643 = vunpack.c.l.b16 %v3491
        %v3644 = vunpack.c.h.b16 %v3491
        %v3645 = vunpack.c.l.b16 %v3492
        %v3646 = vunpack.c.h.b16 %v3492
        %v3647 = vunpack.c.l.b16 %v3493
        %v3648 = vunpack.c.h.b16 %v3493
        %v3649 = vunpack.c.l.b16 %v3494
        %v3650 = vunpack.c.l.b16 %v3495
        %v3651 = vunpack.c.h.b16 %v3495
        %v3652 = vunpack.c.l.b16 %v3496
        %v3653 = vunpack.c.h.b16 %v3496
        %v3654 = vunpack.c.l.b16 %v3497
        %v3655 = vunpack.c.h.b16 %v3497
        %v3656 = vunpack.c.l.b16 %v3498
        %v3657 = vunpack.c.l.b16 %v3499
        %v3658 = vunpack.c.h.b16 %v3499
        %v3659 = vunpack.c.l.b16 %v3500
        %v3660 = vunpack.c.h.b16 %v3500
        %v3661 = vunpack.c.l.b16 %v3501
        %v3662 = vunpack.c.h.b16 %v3501
        %v3663 = vunpack.c.l.b16 %v3502
        %v3664 = vunpack.c.l.b16 %v3503
        %v3665 = vunpack.c.h.b16 %v3503
        %v3666 = vunpack.c.l.b16 %v3504
        %v3667 = vunpack.c.h.b16 %v3504
        %v3668 = vunpack.c.l.b16 %v3505
        %v3669 = vunpack.c.h.b16 %v3505
        %v3670 = vunpack.c.l.b16 %v3506
        %v3671 = vpack.c.b16 %v3650, %v3643
        %v3672 = vpack.c.b16 %v3651, %v3644
        %v3673 = vpack.c.b16 %v3652, %v3645
        %v3674 = vpack.c.b16 %v3653, %v3646
        %v3675 = vpack.c.b16 %v3654, %v3647
        %v3676 = vpack.c.b16 %v3655, %v3648
        %v3677 = vpack.c.b16 %v3656, %v3649
        %v3678 = vpack.c.b16 %v3664, %v3657
        %v3679 = vpack.c.b16 %v3665, %v3658
        %v3680 = vpack.c.b16 %v3666, %v3659
        %v3681 = vpack.c.b16 %v3667, %v3660
        %v3682 = vpack.c.b16 %v3668, %v3661
        %v3683 = vpack.c.b16 %v3669, %v3662
        %v3684 = vpack.c.b16 %v3670, %v3663
        %v3698 = vsel %vm1780, %v3677, 0
        %v3701 = vsel %vm1780, %v3684, 0
        %3703 = vmatprep.subr.bf16.mxu0 %v3508
        %3704 = vmatpush1.bf16.msra.mxu0 %v3507
        %3705 = vmatprep.subr.bf16.mxu0 %v3510
        %3706 = vmatpush1.bf16.msra.mxu0 %v3509
        %3707 = vmatprep.subr.bf16.mxu0 %v3512
        %3708 = vmatpush1.bf16.msra.mxu0 %v3511
        %3709 = vmatprep.subr.bf16.mxu0 %v3514
        %3710 = vmatpush1.bf16.msra.mxu0 %v3513
        %3711 = vmatprep.subr.bf16.mxu0 %v3516
        %3712 = vmatpush1.bf16.msra.mxu0 %v3515
        %3713 = vmatprep.subr.bf16.mxu0 %v3518
        %3714 = vmatpush1.bf16.msra.mxu0 %v3517
        %3715 = vmatprep.subr.bf16.mxu0 %v3520
        %3716 = vmatpush1.bf16.msra.mxu0 %v3519
        %3717 = vmatprep.subr.bf16.mxu0 %v3522
        %3718 = vmatpush1.bf16.msra.mxu0 %v3521
        %3719 = vmatprep.subr.bf16.mxu0 %v3524
        %3720 = vmatpush1.bf16.msra.mxu0 %v3523
        %3721 = vmatprep.subr.bf16.mxu0 %v3526
        %3722 = vmatpush1.bf16.msra.mxu0 %v3525
        %3723 = vmatprep.subr.bf16.mxu0 %v3528
        %3724 = vmatpush1.bf16.msra.mxu0 %v3527
        %3725 = vmatprep.subr.bf16.mxu0 %v3530
        %3726 = vmatpush1.bf16.msra.mxu0 %v3529
        %3727 = vmatprep.subr.bf16.mxu0 %v3532
        %3728 = vmatpush1.bf16.msra.mxu0 %v3531
        %3729 = vmatprep.subr.bf16.mxu0 %v3534
        %3730 = vmatpush1.bf16.msra.mxu0 %v3533
        %3731 = vmatprep.subr.bf16.mxu0 %v3536
        %3732 = vmatpush1.bf16.msra.mxu0 %v3535
        %3733 = vmatprep.subr.bf16.mxu0 %v3538
        %3734 = vmatpush1.bf16.msra.mxu0 %v3537
        %3735 = vmatprep.mubr.bf16.mxu0 %v3672
        %3736 = vmatmul.mubr.bf16.gmra.mrb[0].mxu0 %v3671
        %v3737 = vpop.f32.mrb[0].mxu0
        %v3738 = vadd.f32 %v3610, %v3737
        %v3739 = vpop.f32.mrb[0].mxu0
        %v3740 = vadd.f32 %v3610, %v3739
        %v3741 = vpop.f32.mrb[0].mxu0
        %v3742 = vadd.f32 %v3615, %v3741
        %v3743 = vpop.f32.mrb[0].mxu0
        %v3744 = vadd.f32 %v3615, %v3743
        %3745 = vmatprep.mubr.bf16.mxu0 %v3679
        %3746 = vmatmul.mubr.bf16.gmra.mrb[0].mxu0 %v3678
        %v3747 = vpop.f32.mrb[0].mxu0
        %v3748 = vadd.f32 %v3620, %v3747
        %v3749 = vpop.f32.mrb[0].mxu0
        %v3750 = vadd.f32 %v3620, %v3749
        %v3751 = vpop.f32.mrb[0].mxu0
        %v3752 = vadd.f32 %v3625, %v3751
        %v3753 = vpop.f32.mrb[0].mxu0
        %v3754 = vadd.f32 %v3625, %v3753
        %3755 = vdwg.mxu0
        %3756 = vmatprep.subr.bf16.mxu0 %v3540
        %3757 = vmatpush1.bf16.msra.mxu0 %v3539
        %3758 = vmatprep.subr.bf16.mxu0 %v3542
        %3759 = vmatpush1.bf16.msra.mxu0 %v3541
        %3760 = vmatprep.subr.bf16.mxu0 %v3544
        %3761 = vmatpush1.bf16.msra.mxu0 %v3543
        %3762 = vmatprep.subr.bf16.mxu0 %v3546
        %3763 = vmatpush1.bf16.msra.mxu0 %v3545
        %3764 = vmatprep.subr.bf16.mxu0 %v3548
        %3765 = vmatpush1.bf16.msra.mxu0 %v3547
        %3766 = vmatprep.subr.bf16.mxu0 %v3550
        %3767 = vmatpush1.bf16.msra.mxu0 %v3549
        %3768 = vmatprep.subr.bf16.mxu0 %v3552
        %3769 = vmatpush1.bf16.msra.mxu0 %v3551
        %3770 = vmatprep.subr.bf16.mxu0 %v3554
        %3771 = vmatpush1.bf16.msra.mxu0 %v3553
        %3772 = vmatprep.subr.bf16.mxu0 %v3556
        %3773 = vmatpush1.bf16.msra.mxu0 %v3555
        %3774 = vmatprep.subr.bf16.mxu0 %v3558
        %3775 = vmatpush1.bf16.msra.mxu0 %v3557
        %3776 = vmatprep.subr.bf16.mxu0 %v3560
        %3777 = vmatpush1.bf16.msra.mxu0 %v3559
        %3778 = vmatprep.subr.bf16.mxu0 %v3562
        %3779 = vmatpush1.bf16.msra.mxu0 %v3561
        %3780 = vmatprep.subr.bf16.mxu0 %v3564
        %3781 = vmatpush1.bf16.msra.mxu0 %v3563
        %3782 = vmatprep.subr.bf16.mxu0 %v3566
        %3783 = vmatpush1.bf16.msra.mxu0 %v3565
        %3784 = vmatprep.subr.bf16.mxu0 %v3568
        %3785 = vmatpush1.bf16.msra.mxu0 %v3567
        %3786 = vmatprep.subr.bf16.mxu0 %v3570
        %3787 = vmatpush1.bf16.msra.mxu0 %v3569
        %3788 = vmatprep.mubr.bf16.mxu0 %v3674
        %3789 = vmatmul.mubr.bf16.gmra.mrb[0].mxu0 %v3673
        %v3790 = vpop.f32.mrb[0].mxu0
        %v3791 = vadd.f32 %v3738, %v3790
        %v3792 = vpop.f32.mrb[0].mxu0
        %v3793 = vadd.f32 %v3740, %v3792
        %v3794 = vpop.f32.mrb[0].mxu0
        %v3795 = vadd.f32 %v3742, %v3794
        %v3796 = vpop.f32.mrb[0].mxu0
        %v3797 = vadd.f32 %v3744, %v3796
        %3798 = vmatprep.mubr.bf16.mxu0 %v3681
        %3799 = vmatmul.mubr.bf16.gmra.mrb[0].mxu0 %v3680
        %v3800 = vpop.f32.mrb[0].mxu0
        %v3801 = vadd.f32 %v3748, %v3800
        %v3802 = vpop.f32.mrb[0].mxu0
        %v3803 = vadd.f32 %v3750, %v3802
        %v3804 = vpop.f32.mrb[0].mxu0
        %v3805 = vadd.f32 %v3752, %v3804
        %v3806 = vpop.f32.mrb[0].mxu0
        %v3807 = vadd.f32 %v3754, %v3806
        %3808 = vdwg.mxu0
        %3809 = vmatprep.subr.bf16.mxu0 %v3572
        %3810 = vmatpush1.bf16.msra.mxu0 %v3571
        %3811 = vmatprep.subr.bf16.mxu0 %v3574
        %3812 = vmatpush1.bf16.msra.mxu0 %v3573
        %3813 = vmatprep.subr.bf16.mxu0 %v3576
        %3814 = vmatpush1.bf16.msra.mxu0 %v3575
        %3815 = vmatprep.subr.bf16.mxu0 %v3578
        %3816 = vmatpush1.bf16.msra.mxu0 %v3577
        %3817 = vmatprep.subr.bf16.mxu0 %v3580
        %3818 = vmatpush1.bf16.msra.mxu0 %v3579
        %3819 = vmatprep.subr.bf16.mxu0 %v3582
        %3820 = vmatpush1.bf16.msra.mxu0 %v3581
        %3821 = vmatprep.subr.bf16.mxu0 %v3584
        %3822 = vmatpush1.bf16.msra.mxu0 %v3583
        %3823 = vmatprep.subr.bf16.mxu0 %v3586
        %3824 = vmatpush1.bf16.msra.mxu0 %v3585
        %3825 = vmatprep.subr.bf16.mxu0 %v3588
        %3826 = vmatpush1.bf16.msra.mxu0 %v3587
        %3827 = vmatprep.subr.bf16.mxu0 %v3590
        %3828 = vmatpush1.bf16.msra.mxu0 %v3589
        %3829 = vmatprep.subr.bf16.mxu0 %v3592
        %3830 = vmatpush1.bf16.msra.mxu0 %v3591
        %3831 = vmatprep.subr.bf16.mxu0 %v3594
        %3832 = vmatpush1.bf16.msra.mxu0 %v3593
        %3833 = vmatprep.subr.bf16.mxu0 %v3596
        %3834 = vmatpush1.bf16.msra.mxu0 %v3595
        %3835 = vmatprep.subr.bf16.mxu0 %v3598
        %3836 = vmatpush1.bf16.msra.mxu0 %v3597
        %3837 = vmatprep.subr.bf16.mxu0 %v3600
        %3838 = vmatpush1.bf16.msra.mxu0 %v3599
        %3839 = vmatprep.subr.bf16.mxu0 %v3602
        %3840 = vmatpush1.bf16.msra.mxu0 %v3601
        %3841 = vmatprep.mubr.bf16.mxu0 %v3676
        %3842 = vmatmul.mubr.bf16.gmra.mrb[0].mxu0 %v3675
        %v3843 = vpop.f32.mrb[0].mxu0
        %v3844 = vadd.f32 %v3791, %v3843
        %v3845 = vpop.f32.mrb[0].mxu0
        %v3846 = vadd.f32 %v3793, %v3845
        %v3847 = vpop.f32.mrb[0].mxu0
        %v3848 = vadd.f32 %v3795, %v3847
        %v3849 = vpop.f32.mrb[0].mxu0
        %v3850 = vadd.f32 %v3797, %v3849
        %3851 = vmatprep.mubr.bf16.mxu0 %v3683
        %3852 = vmatmul.mubr.bf16.gmra.mrb[0].mxu0 %v3682
        %v3853 = vpop.f32.mrb[0].mxu0
        %v3854 = vadd.f32 %v3801, %v3853
        %v3855 = vpop.f32.mrb[0].mxu0
        %v3856 = vadd.f32 %v3803, %v3855
        %v3857 = vpop.f32.mrb[0].mxu0
        %v3858 = vadd.f32 %v3805, %v3857
        %v3859 = vpop.f32.mrb[0].mxu0
        %v3860 = vadd.f32 %v3807, %v3859
        %3861 = vdwg.mxu0
        %3862 = vmatprep.subr.bf16.mxu0 %v3604
        %3863 = vmatpush1.bf16.msra.mxu0 %v3603
        %3864 = vmatprep.subr.bf16.mxu0 %v3606
        %3865 = vmatpush1.bf16.msra.mxu0 %v3605
        %3866 = vmatprep.subr.bf16.mxu0 0
        %3867 = vmatpush1.bf16.msra.mxu0 0
        %3868 = vmatprep.subr.bf16.mxu0 0
        %3869 = vmatpush1.bf16.msra.mxu0 0
        %3870 = vmatprep.subr.bf16.mxu0 0
        %3871 = vmatpush1.bf16.msra.mxu0 0
        %3872 = vmatprep.subr.bf16.mxu0 0
        %3873 = vmatpush1.bf16.msra.mxu0 0
        %3874 = vmatprep.subr.bf16.mxu0 0
        %3875 = vmatpush1.bf16.msra.mxu0 0
        %3876 = vmatprep.subr.bf16.mxu0 0
        %3877 = vmatpush1.bf16.msra.mxu0 0
        %3878 = vmatprep.subr.bf16.mxu0 0
        %3879 = vmatpush1.bf16.msra.mxu0 0
        %3880 = vmatprep.subr.bf16.mxu0 0
        %3881 = vmatpush1.bf16.msra.mxu0 0
        %3882 = vmatprep.subr.bf16.mxu0 0
        %3883 = vmatpush1.bf16.msra.mxu0 0
        %3884 = vmatprep.subr.bf16.mxu0 0
        %3885 = vmatpush1.bf16.msra.mxu0 0
        %3886 = vmatprep.subr.bf16.mxu0 0
        %3887 = vmatpush1.bf16.msra.mxu0 0
        %3888 = vmatprep.subr.bf16.mxu0 0
        %3889 = vmatpush1.bf16.msra.mxu0 0
        %3890 = vmatprep.subr.bf16.mxu0 0
        %3891 = vmatpush1.bf16.msra.mxu0 0
        %3892 = vmatprep.subr.bf16.mxu0 0
        %3893 = vmatpush1.bf16.msra.mxu0 0
        %3894 = vmatprep.mubr.bf16.mxu0 0
        %3895 = vmatmul.mubr.bf16.gmra.mrb[0].mxu0 %v3698
        %v3896 = vpop.f32.mrb[0].mxu0
        %v3897 = vadd.f32 %v3844, %v3896
        %v3898 = vpop.f32.mrb[0].mxu0
        %v3899 = vadd.f32 %v3846, %v3898
        %v3900 = vpop.f32.mrb[0].mxu0
        %v3901 = vadd.f32 %v3848, %v3900
        %v3902 = vpop.f32.mrb[0].mxu0
        %v3903 = vadd.f32 %v3850, %v3902
        %3904 = vmatprep.mubr.bf16.mxu0 0
        %3905 = vmatmul.mubr.bf16.gmra.mrb[0].mxu0 %v3701
        %v3906 = vpop.f32.mrb[0].mxu0
        %v3907 = vadd.f32 %v3854, %v3906
        %v3908 = vpop.f32.mrb[0].mxu0
        %v3909 = vadd.f32 %v3856, %v3908
        %v3910 = vpop.f32.mrb[0].mxu0
        %v3911 = vadd.f32 %v3858, %v3910
        %v3912 = vpop.f32.mrb[0].mxu0
        %v3913 = vadd.f32 %v3860, %v3912
        %3914 = vdwg.mxu0
        %vm3915 = vcmp.gt.f32.partialorder %v3897, 0.0
        %vm3916 = vcmp.gt.f32.partialorder %v3899, 0.0
        %vm3917 = vcmp.gt.f32.partialorder %v3901, 0.0
        %vm3918 = vcmp.gt.f32.partialorder %v3903, 0.0
        %vm3919 = vcmp.gt.f32.partialorder %v3907, 0.0
        %vm3920 = vcmp.gt.f32.partialorder %v3909, 0.0
        %vm3921 = vcmp.gt.f32.partialorder %v3911, 0.0
        %vm3922 = vcmp.gt.f32.partialorder %v3913, 0.0
        %v3923 = vmul.f32 %v3897, 0.01
        %v3924 = vmul.f32 %v3899, 0.01
        %v3925 = vmul.f32 %v3901, 0.01
        %v3926 = vmul.f32 %v3903, 0.01
        %v3927 = vmul.f32 %v3907, 0.01
        %v3928 = vmul.f32 %v3909, 0.01
        %v3929 = vmul.f32 %v3911, 0.01
        %v3930 = vmul.f32 %v3913, 0.01
        %v3931 = vsel %vm3915, %v3897, %v3923
        %v3932 = vsel %vm3916, %v3899, %v3924
        %v3933 = vsel %vm3917, %v3901, %v3925
        %v3934 = vsel %vm3918, %v3903, %v3926
        %v3935 = vsel %vm3919, %v3907, %v3927
        %v3936 = vsel %vm3920, %v3909, %v3928
        %v3937 = vsel %vm3921, %v3911, %v3929
        %v3938 = vsel %vm3922, %v3913, %v3930
        %v3939 = vadd.f32 %v3931, %v3932
        %3940 = vadd.xlane.f32.xlu0 %v3939
        %v3941 = vpop.xlane.xlu0 %3940
        %v3942 = vadd.f32 %v3933, %v3934
        %3943 = vadd.xlane.f32.xlu0 %v3942
        %v3944 = vpop.xlane.xlu0 %3943
        %v3945 = vadd.f32 %v3935, %v3936
        %3946 = vadd.xlane.f32.xlu0 %v3945
        %v3947 = vpop.xlane.xlu0 %3946
        %v3948 = vadd.f32 %v3937, %v3938
        %3949 = vadd.xlane.f32.xlu0 %v3948
        %v3950 = vpop.xlane.xlu0 %3949
        %v3951 = vrcp.pop 256.0
        %v3952 = vmul.f32 %v3941, %v3951
        %v3953 = vmul.f32 %v3944, %v3951
        %v3954 = vmul.f32 %v3947, %v3951
        %v3955 = vmul.f32 %v3950, %v3951
        %v3956 = vld [vmem:[%s47] sm:$0xff]
        %v3957 = vld [vmem:[%s47 + $0x8] sm:$0xff]
        %v3958 = vld [vmem:[%s47 + $0x10] sm:$0xff]
        %v3959 = vld [vmem:[%s47 + $0x18] sm:$0xff]
        %v3960 = vmul.f32 %v3956, %v3952
        %v3961 = vmul.f32 %v3957, %v3953
        %v3962 = vmul.f32 %v3958, %v3954
        %v3963 = vmul.f32 %v3959, %v3955
        %vm3964 = vcmask 15360
        %v3965 = vsel %vm3964, %v3960, 0.0
        %v3966 = vsel %vm3964, %v3961, 0.0
        %v3967 = vadd.f32 %v3965, %v3966
        %v3968 = vsel %vm3964, %v3962, 0.0
        %v3969 = vadd.f32 %v3967, %v3968
        %v3970 = vsel %vm3964, %v3963, 0.0
        %v3971 = vadd.f32 %v3969, %v3970
        %v3972 = vrot.slane %v3971, 4
        %v3973 = vadd.f32 %v3971, %v3972
        %v3974 = vrot.slane %v3973, 2
        %v3975 = vadd.f32 %v3973, %v3974
        %v3976 = vrot.slane %v3975, 1
        %v3977 = vadd.f32 %v3975, %v3976
        %v3978 = vld [vmem:[%s49] sm:$0x1]
        %v3979 = vadd.f32 %v3977, %v3978
        %v3980 = vmax.f32 %v3979, 0.0
        %v3981 = vld [vmem:[%s51] sm:$0xff]
        %v3982 = vld [vmem:[%s51 + $0x8] sm:$0xff]
        %v3983 = vld [vmem:[%s51 + $0x10] sm:$0xff]
        %v3984 = vld [vmem:[%s51 + $0x18] sm:$0xff]
        %v3985 = vlaneseq
        %v3986 = vshrl.u32 %v3985, 7
        %v3987 = vsub.s32 0, %v3986
        %v3988 = vrot.slane %v3980, %v3987
        %v3989 = vmul.f32 %v3981, %v3988
        %v3990 = vmul.f32 %v3982, %v3988
        %v3991 = vmul.f32 %v3983, %v3988
        %v3992 = vmul.f32 %v3984, %v3988
        %v3993 = vsel %vm3964, %v3989, 0.0
        %3994 = vadd.xlane.f32.xlu0 %v3993
        %v3995 = vpop.xlane.xlu0 %3994
        %v3996 = vsel %vm3964, %v3990, 0.0
        %3997 = vadd.xlane.f32.xlu0 %v3996
        %v3998 = vpop.xlane.xlu0 %3997
        %v3999 = vsel %vm3964, %v3991, 0.0
        %4000 = vadd.xlane.f32.xlu0 %v3999
        %v4001 = vpop.xlane.xlu0 %4000
        %v4002 = vsel %vm3964, %v3992, 0.0
        %4003 = vadd.xlane.f32.xlu0 %v4002
        %v4004 = vpop.xlane.xlu0 %4003
        %v4005 = vld [vmem:[%s53] sm:$0xff]
        %v4006 = vld [vmem:[%s53 + $0x8] sm:$0xff]
        %v4007 = vld [vmem:[%s53 + $0x10] sm:$0xff]
        %v4008 = vld [vmem:[%s53 + $0x18] sm:$0xff]
        %v4009 = vadd.f32 %v3995, %v4005
        %v4010 = vadd.f32 %v3998, %v4006
        %v4011 = vadd.f32 %v4001, %v4007
        %v4012 = vadd.f32 %v4004, %v4008
        %v4013 = vxor.u32 %v4009, 2147483648
        %v4014 = vxor.u32 %v4010, 2147483648
        %v4015 = vxor.u32 %v4011, 2147483648
        %v4016 = vxor.u32 %v4012, 2147483648
        %v4017 = vmul.f32 %v4013, 1.442695
        %v4018 = vpow.pop %v4017
        %v4019 = vmul.f32 %v4014, 1.442695
        %v4020 = vpow.pop %v4019
        %v4021 = vmul.f32 %v4015, 1.442695
        %v4022 = vpow.pop %v4021
        %v4023 = vmul.f32 %v4016, 1.442695
        %v4024 = vpow.pop %v4023
        %v4025 = vadd.f32 %v4018, 1.0
        %v4026 = vadd.f32 %v4020, 1.0
        %v4027 = vadd.f32 %v4022, 1.0
        %v4028 = vadd.f32 %v4024, 1.0
        %v4029 = vrcp.pop %v4025
        %v4030 = vmul.f32 1.0, %v4029
        %v4031 = vrcp.pop %v4026
        %v4032 = vmul.f32 1.0, %v4031
        %v4033 = vrcp.pop %v4027
        %v4034 = vmul.f32 1.0, %v4033
        %v4035 = vrcp.pop %v4028
        %v4036 = vmul.f32 1.0, %v4035
        %4038 = vset.pattern.permute.xlu0 0
        %4039 = vperm.xlu0 %4038, %v4030
        %v4040 = vpop.permute.xlu0 %4039
        %4043 = vset.pattern.permute.xlu0 0
        %4044 = vperm.xlu0 %4043, %v4032
        %v4045 = vpop.permute.xlu0 %4044
        %4048 = vset.pattern.permute.xlu0 0
        %4049 = vperm.xlu0 %4048, %v4034
        %v4050 = vpop.permute.xlu0 %4049
        %4053 = vset.pattern.permute.xlu0 0
        %4054 = vperm.xlu0 %4053, %v4036
        %v4055 = vpop.permute.xlu0 %4054
        %v4057 = vmul.f32 %v3931, %v4040
        %v4058 = vmul.f32 %v3932, %v4040
        %v4059 = vmul.f32 %v3933, %v4045
        %v4060 = vmul.f32 %v3934, %v4045
        %v4061 = vmul.f32 %v3935, %v4050
        %v4062 = vmul.f32 %v3936, %v4050
        %v4063 = vmul.f32 %v3937, %v4055
        %v4064 = vmul.f32 %v3938, %v4055
        %v4065 = vadd.f32 %v4057, %v1898
        %v4066 = vadd.f32 %v4058, %v1899
        %v4067 = vadd.f32 %v4059, %v1900
        %v4068 = vadd.f32 %v4060, %v1901
        %v4069 = vadd.f32 %v4061, %v1902
        %v4070 = vadd.f32 %v4062, %v1903
        %v4071 = vadd.f32 %v4063, %v1904
        %v4072 = vadd.f32 %v4064, %v1905
        %vm4073 = vcmp.gt.f32.partialorder %v4065, 0.0
        %vm4074 = vcmp.gt.f32.partialorder %v4066, 0.0
        %vm4075 = vcmp.gt.f32.partialorder %v4067, 0.0
        %vm4076 = vcmp.gt.f32.partialorder %v4068, 0.0
        %vm4077 = vcmp.gt.f32.partialorder %v4069, 0.0
        %vm4078 = vcmp.gt.f32.partialorder %v4070, 0.0
        %vm4079 = vcmp.gt.f32.partialorder %v4071, 0.0
        %vm4080 = vcmp.gt.f32.partialorder %v4072, 0.0
        %v4081 = vmul.f32 %v4065, 0.01
        %v4082 = vmul.f32 %v4066, 0.01
        %v4083 = vmul.f32 %v4067, 0.01
        %v4084 = vmul.f32 %v4068, 0.01
        %v4085 = vmul.f32 %v4069, 0.01
        %v4086 = vmul.f32 %v4070, 0.01
        %v4087 = vmul.f32 %v4071, 0.01
        %v4088 = vmul.f32 %v4072, 0.01
        %v4089 = vsel %vm4073, %v4065, %v4081
        %v4090 = vsel %vm4074, %v4066, %v4082
        %v4091 = vsel %vm4075, %v4067, %v4083
        %v4092 = vsel %vm4076, %v4068, %v4084
        %v4093 = vsel %vm4077, %v4069, %v4085
        %v4094 = vsel %vm4078, %v4070, %v4086
        %v4095 = vsel %vm4079, %v4071, %v4087
        %v4096 = vsel %vm4080, %v4072, %v4088
        %s4097 = scalar_lea.vmem %s41, 32
        %v4098 = vld [vmem:[%s4097] sm:$0xff]
        %v4099 = vld [vmem:[%s4097 + $0x8] sm:$0xff]
        %v4100 = vld [vmem:[%s4097 + $0x10] sm:$0xff]
        %v4101 = vld [vmem:[%s4097 + $0x18] sm:$0xff]
        %v4102 = vpack.c.bf16 %v4091, %v4089
        %v4103 = vpack.c.bf16 %v4092, %v4090
        %v4104 = vpack.c.bf16 %v4095, %v4093
        %v4105 = vpack.c.bf16 %v4096, %v4094
        %v4106 = vmul.bf16 %v4102, %v1921
        %v4107 = vmul.bf16 %v4103, %v1919
        %v4108 = vmul.bf16 %v4104, %v1921
        %v4109 = vmul.bf16 %v4105, %v1919
        %4114 = vrot.lane.b32.xlu0 %v4106, 2
        %v4115 = vpop.permute.xlu0 %4114
        %4116 = vrot.lane.b32.xlu0 %v4107, 2
        %v4117 = vpop.permute.xlu0 %4116
        %4118 = vrot.lane.b32.xlu0 %v4108, 2
        %v4119 = vpop.permute.xlu0 %4118
        %4120 = vrot.lane.b32.xlu0 %v4109, 2
        %v4121 = vpop.permute.xlu0 %4120
        %v4122 = vsel %vm1945, %v1936, %v4115
        %v4123 = vsel %vm1945, %v4115, %v4117
        %v4124 = vsel %vm1945, %v1936, %v4119
        %v4125 = vsel %vm1945, %v4119, %v4121
        %4130 = vrot.lane.b32.xlu0 %v4122, 32
        %v4131 = vpop.permute.xlu0 %4130
        %4132 = vrot.lane.b32.xlu0 %v4123, 32
        %v4133 = vpop.permute.xlu0 %4132
        %4134 = vrot.lane.b32.xlu0 %v4124, 32
        %v4135 = vpop.permute.xlu0 %4134
        %4136 = vrot.lane.b32.xlu0 %v4125, 32
        %v4137 = vpop.permute.xlu0 %4136
        %v4138 = vsel %vm1965, %v1956, %v4131
        %v4139 = vsel %vm1965, %v4131, %v4133
        %v4140 = vsel %vm1965, %v1956, %v4135
        %v4141 = vsel %vm1965, %v4135, %v4137
        %4146 = vst [vmem:[#allocation2] sm:$0xff] %v4138
        %4147 = vst [vmem:[#allocation2 + $0x8] sm:$0xff] %v4139
        %4148 = vst [vmem:[#allocation2 + $0x10] sm:$0xff] %v4140
        %4149 = vst [vmem:[#allocation2 + $0x18] sm:$0xff] %v4141
        %4150 = vrot.lane.b32.xlu0 %v4122, 16
        %v4151 = vpop.permute.xlu0 %4150
        %4152 = vrot.lane.b32.xlu0 %v4123, 16
        %v4153 = vpop.permute.xlu0 %4152
        %4154 = vrot.lane.b32.xlu0 %v4124, 16
        %v4155 = vpop.permute.xlu0 %4154
        %4156 = vrot.lane.b32.xlu0 %v4125, 16
        %v4157 = vpop.permute.xlu0 %4156
        %v4158 = vsel %vm1988, %v1979, %v4151
        %v4159 = vsel %vm1988, %v4151, %v4153
        %v4160 = vsel %vm1988, %v1979, %v4155
        %v4161 = vsel %vm1988, %v4155, %v4157
        %4166 = vst [vmem:[#allocation2 + $0xa0] sm:$0xff] %v4158
        %4167 = vst [vmem:[#allocation2 + $0xa8] sm:$0xff] %v4159
        %4168 = vst [vmem:[#allocation2 + $0xb0] sm:$0xff] %v4160
        %4169 = vst [vmem:[#allocation2 + $0xb8] sm:$0xff] %v4161
        %4170 = vst [vmem:[#allocation2 + $0x140] sm:$0xff] %v4122
        %4171 = vst [vmem:[#allocation2 + $0x148] sm:$0xff] %v4123
        %4172 = vst [vmem:[#allocation2 + $0x150] sm:$0xff] %v4124
        %4173 = vst [vmem:[#allocation2 + $0x158] sm:$0xff] %v4125
        %4174 = vrot.lane.b32.xlu0 %v4122, 112
        %v4175 = vpop.permute.xlu0 %4174
        %4176 = vrot.lane.b32.xlu0 %v4123, 112
        %v4177 = vpop.permute.xlu0 %4176
        %4178 = vrot.lane.b32.xlu0 %v4124, 112
        %v4179 = vpop.permute.xlu0 %4178
        %4180 = vrot.lane.b32.xlu0 %v4125, 112
        %v4181 = vpop.permute.xlu0 %4180
        %v4182 = vsel %vm2015, %v4175, %v4177
        %v4183 = vsel %vm2015, %v4177, %v2010
        %v4184 = vsel %vm2015, %v4179, %v4181
        %v4185 = vsel %vm2015, %v4181, %v2010
        %4190 = vst [vmem:[#allocation2 + $0x1e0] sm:$0xff] %v4182
        %4191 = vst [vmem:[#allocation2 + $0x1e8] sm:$0xff] %v4183
        %4192 = vst [vmem:[#allocation2 + $0x1f0] sm:$0xff] %v4184
        %4193 = vst [vmem:[#allocation2 + $0x1f8] sm:$0xff] %v4185
        %4194 = vrot.lane.b32.xlu0 %v4122, 96
        %v4195 = vpop.permute.xlu0 %4194
        %4196 = vrot.lane.b32.xlu0 %v4123, 96
        %v4197 = vpop.permute.xlu0 %4196
        %4198 = vrot.lane.b32.xlu0 %v4124, 96
        %v4199 = vpop.permute.xlu0 %4198
        %4200 = vrot.lane.b32.xlu0 %v4125, 96
        %v4201 = vpop.permute.xlu0 %4200
        %v4202 = vsel %vm2038, %v4195, %v4197
        %v4203 = vsel %vm2038, %v4197, %v2033
        %v4204 = vsel %vm2038, %v4199, %v4201
        %v4205 = vsel %vm2038, %v4201, %v2033
        %4210 = vst [vmem:[#allocation2 + $0x280] sm:$0xff] %v4202
        %4211 = vst [vmem:[#allocation2 + $0x288] sm:$0xff] %v4203
        %4212 = vst [vmem:[#allocation2 + $0x290] sm:$0xff] %v4204
        %4213 = vst [vmem:[#allocation2 + $0x298] sm:$0xff] %v4205
        %v4214 = vmul.bf16 %v4102, %v2058
        %v4215 = vmul.bf16 %v4103, %v2056
        %v4216 = vmul.bf16 %v4104, %v2058
        %v4217 = vmul.bf16 %v4105, %v2056
        %4222 = vrot.lane.b32.xlu0 %v4214, 1
        %v4223 = vpop.permute.xlu0 %4222
        %4224 = vrot.lane.b32.xlu0 %v4215, 1
        %v4225 = vpop.permute.xlu0 %4224
        %4226 = vrot.lane.b32.xlu0 %v4216, 1
        %v4227 = vpop.permute.xlu0 %4226
        %4228 = vrot.lane.b32.xlu0 %v4217, 1
        %v4229 = vpop.permute.xlu0 %4228
        %v4230 = vsel %vm2082, %v2073, %v4223
        %v4231 = vsel %vm2082, %v4223, %v4225
        %v4232 = vsel %vm2082, %v2073, %v4227
        %v4233 = vsel %vm2082, %v4227, %v4229
        %4238 = vrot.lane.b32.xlu0 %v4230, 32
        %v4239 = vpop.permute.xlu0 %4238
        %4240 = vrot.lane.b32.xlu0 %v4231, 32
        %v4241 = vpop.permute.xlu0 %4240
        %4242 = vrot.lane.b32.xlu0 %v4232, 32
        %v4243 = vpop.permute.xlu0 %4242
        %4244 = vrot.lane.b32.xlu0 %v4233, 32
        %v4245 = vpop.permute.xlu0 %4244
        %v4246 = vsel %vm1965, %v1956, %v4239
        %v4247 = vsel %vm1965, %v4239, %v4241
        %v4248 = vsel %vm1965, %v1956, %v4243
        %v4249 = vsel %vm1965, %v4243, %v4245
        %4254 = vst [vmem:[#allocation2 + $0x20] sm:$0xff] %v4246
        %4255 = vst [vmem:[#allocation2 + $0x28] sm:$0xff] %v4247
        %4256 = vst [vmem:[#allocation2 + $0x30] sm:$0xff] %v4248
        %4257 = vst [vmem:[#allocation2 + $0x38] sm:$0xff] %v4249
        %4258 = vrot.lane.b32.xlu0 %v4230, 16
        %v4259 = vpop.permute.xlu0 %4258
        %4260 = vrot.lane.b32.xlu0 %v4231, 16
        %v4261 = vpop.permute.xlu0 %4260
        %4262 = vrot.lane.b32.xlu0 %v4232, 16
        %v4263 = vpop.permute.xlu0 %4262
        %4264 = vrot.lane.b32.xlu0 %v4233, 16
        %v4265 = vpop.permute.xlu0 %4264
        %v4266 = vsel %vm1988, %v1979, %v4259
        %v4267 = vsel %vm1988, %v4259, %v4261
        %v4268 = vsel %vm1988, %v1979, %v4263
        %v4269 = vsel %vm1988, %v4263, %v4265
        %4274 = vst [vmem:[#allocation2 + $0xc0] sm:$0xff] %v4266
        %4275 = vst [vmem:[#allocation2 + $0xc8] sm:$0xff] %v4267
        %4276 = vst [vmem:[#allocation2 + $0xd0] sm:$0xff] %v4268
        %4277 = vst [vmem:[#allocation2 + $0xd8] sm:$0xff] %v4269
        %4278 = vst [vmem:[#allocation2 + $0x160] sm:$0xff] %v4230
        %4279 = vst [vmem:[#allocation2 + $0x168] sm:$0xff] %v4231
        %4280 = vst [vmem:[#allocation2 + $0x170] sm:$0xff] %v4232
        %4281 = vst [vmem:[#allocation2 + $0x178] sm:$0xff] %v4233
        %4282 = vrot.lane.b32.xlu0 %v4230, 112
        %v4283 = vpop.permute.xlu0 %4282
        %4284 = vrot.lane.b32.xlu0 %v4231, 112
        %v4285 = vpop.permute.xlu0 %4284
        %4286 = vrot.lane.b32.xlu0 %v4232, 112
        %v4287 = vpop.permute.xlu0 %4286
        %4288 = vrot.lane.b32.xlu0 %v4233, 112
        %v4289 = vpop.permute.xlu0 %4288
        %v4290 = vsel %vm2015, %v4283, %v4285
        %v4291 = vsel %vm2015, %v4285, %v2010
        %v4292 = vsel %vm2015, %v4287, %v4289
        %v4293 = vsel %vm2015, %v4289, %v2010
        %4298 = vst [vmem:[#allocation2 + $0x200] sm:$0xff] %v4290
        %4299 = vst [vmem:[#allocation2 + $0x208] sm:$0xff] %v4291
        %4300 = vst [vmem:[#allocation2 + $0x210] sm:$0xff] %v4292
        %4301 = vst [vmem:[#allocation2 + $0x218] sm:$0xff] %v4293
        %4302 = vrot.lane.b32.xlu0 %v4230, 96
        %v4303 = vpop.permute.xlu0 %4302
        %4304 = vrot.lane.b32.xlu0 %v4231, 96
        %v4305 = vpop.permute.xlu0 %4304
        %4306 = vrot.lane.b32.xlu0 %v4232, 96
        %v4307 = vpop.permute.xlu0 %4306
        %4308 = vrot.lane.b32.xlu0 %v4233, 96
        %v4309 = vpop.permute.xlu0 %4308
        %v4310 = vsel %vm2038, %v4303, %v4305
        %v4311 = vsel %vm2038, %v4305, %v2033
        %v4312 = vsel %vm2038, %v4307, %v4309
        %v4313 = vsel %vm2038, %v4309, %v2033
        %4318 = vst [vmem:[#allocation2 + $0x2a0] sm:$0xff] %v4310
        %4319 = vst [vmem:[#allocation2 + $0x2a8] sm:$0xff] %v4311
        %4320 = vst [vmem:[#allocation2 + $0x2b0] sm:$0xff] %v4312
        %4321 = vst [vmem:[#allocation2 + $0x2b8] sm:$0xff] %v4313
        %v4322 = vmul.bf16 %v4102, %v1229
        %v4323 = vmul.bf16 %v4103, %v1230
        %v4324 = vmul.bf16 %v4104, %v1229
        %v4325 = vmul.bf16 %v4105, %v1230
        %4330 = vrot.lane.b32.xlu0 %v4322, 32
        %v4331 = vpop.permute.xlu0 %4330
        %4332 = vrot.lane.b32.xlu0 %v4323, 32
        %v4333 = vpop.permute.xlu0 %4332
        %4334 = vrot.lane.b32.xlu0 %v4324, 32
        %v4335 = vpop.permute.xlu0 %4334
        %4336 = vrot.lane.b32.xlu0 %v4325, 32
        %v4337 = vpop.permute.xlu0 %4336
        %v4338 = vsel %vm1965, %v1956, %v4331
        %v4339 = vsel %vm1965, %v4331, %v4333
        %v4340 = vsel %vm1965, %v1956, %v4335
        %v4341 = vsel %vm1965, %v4335, %v4337
        %4346 = vst [vmem:[#allocation2 + $0x40] sm:$0xff] %v4338
        %4347 = vst [vmem:[#allocation2 + $0x48] sm:$0xff] %v4339
        %4348 = vst [vmem:[#allocation2 + $0x50] sm:$0xff] %v4340
        %4349 = vst [vmem:[#allocation2 + $0x58] sm:$0xff] %v4341
        %4350 = vrot.lane.b32.xlu0 %v4322, 16
        %v4351 = vpop.permute.xlu0 %4350
        %4352 = vrot.lane.b32.xlu0 %v4323, 16
        %v4353 = vpop.permute.xlu0 %4352
        %4354 = vrot.lane.b32.xlu0 %v4324, 16
        %v4355 = vpop.permute.xlu0 %4354
        %4356 = vrot.lane.b32.xlu0 %v4325, 16
        %v4357 = vpop.permute.xlu0 %4356
        %v4358 = vsel %vm1988, %v1979, %v4351
        %v4359 = vsel %vm1988, %v4351, %v4353
        %v4360 = vsel %vm1988, %v1979, %v4355
        %v4361 = vsel %vm1988, %v4355, %v4357
        %4366 = vst [vmem:[#allocation2 + $0xe0] sm:$0xff] %v4358
        %4367 = vst [vmem:[#allocation2 + $0xe8] sm:$0xff] %v4359
        %4368 = vst [vmem:[#allocation2 + $0xf0] sm:$0xff] %v4360
        %4369 = vst [vmem:[#allocation2 + $0xf8] sm:$0xff] %v4361
        %4370 = vst [vmem:[#allocation2 + $0x180] sm:$0xff] %v4322
        %4371 = vst [vmem:[#allocation2 + $0x188] sm:$0xff] %v4323
        %4372 = vst [vmem:[#allocation2 + $0x190] sm:$0xff] %v4324
        %4373 = vst [vmem:[#allocation2 + $0x198] sm:$0xff] %v4325
        %4374 = vrot.lane.b32.xlu0 %v4322, 112
        %v4375 = vpop.permute.xlu0 %4374
        %4376 = vrot.lane.b32.xlu0 %v4323, 112
        %v4377 = vpop.permute.xlu0 %4376
        %4378 = vrot.lane.b32.xlu0 %v4324, 112
        %v4379 = vpop.permute.xlu0 %4378
        %4380 = vrot.lane.b32.xlu0 %v4325, 112
        %v4381 = vpop.permute.xlu0 %4380
        %v4382 = vsel %vm2015, %v4375, %v4377
        %v4383 = vsel %vm2015, %v4377, %v2010
        %v4384 = vsel %vm2015, %v4379, %v4381
        %v4385 = vsel %vm2015, %v4381, %v2010
        %4390 = vst [vmem:[#allocation2 + $0x220] sm:$0xff] %v4382
        %4391 = vst [vmem:[#allocation2 + $0x228] sm:$0xff] %v4383
        %4392 = vst [vmem:[#allocation2 + $0x230] sm:$0xff] %v4384
        %4393 = vst [vmem:[#allocation2 + $0x238] sm:$0xff] %v4385
        %4394 = vrot.lane.b32.xlu0 %v4322, 96
        %v4395 = vpop.permute.xlu0 %4394
        %4396 = vrot.lane.b32.xlu0 %v4323, 96
        %v4397 = vpop.permute.xlu0 %4396
        %4398 = vrot.lane.b32.xlu0 %v4324, 96
        %v4399 = vpop.permute.xlu0 %4398
        %4400 = vrot.lane.b32.xlu0 %v4325, 96
        %v4401 = vpop.permute.xlu0 %4400
        %v4402 = vsel %vm2038, %v4395, %v4397
        %v4403 = vsel %vm2038, %v4397, %v2033
        %v4404 = vsel %vm2038, %v4399, %v4401
        %v4405 = vsel %vm2038, %v4401, %v2033
        %4410 = vst [vmem:[#allocation2 + $0x2c0] sm:$0xff] %v4402
        %4411 = vst [vmem:[#allocation2 + $0x2c8] sm:$0xff] %v4403
        %4412 = vst [vmem:[#allocation2 + $0x2d0] sm:$0xff] %v4404
        %4413 = vst [vmem:[#allocation2 + $0x2d8] sm:$0xff] %v4405
        %v4414 = vmul.bf16 %v4102, %v2270
        %v4415 = vmul.bf16 %v4103, %v2273
        %v4416 = vmul.bf16 %v4104, %v2270
        %v4417 = vmul.bf16 %v4105, %v2273
        %4422 = vrot.lane.b32.xlu0 %v4414, 127
        %v4423 = vpop.permute.xlu0 %4422
        %4424 = vrot.lane.b32.xlu0 %v4415, 127
        %v4425 = vpop.permute.xlu0 %4424
        %4426 = vrot.lane.b32.xlu0 %v4416, 127
        %v4427 = vpop.permute.xlu0 %4426
        %4428 = vrot.lane.b32.xlu0 %v4417, 127
        %v4429 = vpop.permute.xlu0 %4428
        %v4430 = vsel %vm2057, %v4423, %v4425
        %v4431 = vsel %vm2057, %v4425, %v2292
        %v4432 = vsel %vm2057, %v4427, %v4429
        %v4433 = vsel %vm2057, %v4429, %v2292
        %4438 = vrot.lane.b32.xlu0 %v4430, 32
        %v4439 = vpop.permute.xlu0 %4438
        %4440 = vrot.lane.b32.xlu0 %v4431, 32
        %v4441 = vpop.permute.xlu0 %4440
        %4442 = vrot.lane.b32.xlu0 %v4432, 32
        %v4443 = vpop.permute.xlu0 %4442
        %4444 = vrot.lane.b32.xlu0 %v4433, 32
        %v4445 = vpop.permute.xlu0 %4444
        %v4446 = vsel %vm1965, %v1956, %v4439
        %v4447 = vsel %vm1965, %v4439, %v4441
        %v4448 = vsel %vm1965, %v1956, %v4443
        %v4449 = vsel %vm1965, %v4443, %v4445
        %4454 = vst [vmem:[#allocation2 + $0x60] sm:$0xff] %v4446
        %4455 = vst [vmem:[#allocation2 + $0x68] sm:$0xff] %v4447
        %4456 = vst [vmem:[#allocation2 + $0x70] sm:$0xff] %v4448
        %4457 = vst [vmem:[#allocation2 + $0x78] sm:$0xff] %v4449
        %4458 = vrot.lane.b32.xlu0 %v4430, 16
        %v4459 = vpop.permute.xlu0 %4458
        %4460 = vrot.lane.b32.xlu0 %v4431, 16
        %v4461 = vpop.permute.xlu0 %4460
        %4462 = vrot.lane.b32.xlu0 %v4432, 16
        %v4463 = vpop.permute.xlu0 %4462
        %4464 = vrot.lane.b32.xlu0 %v4433, 16
        %v4465 = vpop.permute.xlu0 %4464
        %v4466 = vsel %vm1988, %v1979, %v4459
        %v4467 = vsel %vm1988, %v4459, %v4461
        %v4468 = vsel %vm1988, %v1979, %v4463
        %v4469 = vsel %vm1988, %v4463, %v4465
        %4474 = vst [vmem:[#allocation2 + $0x100] sm:$0xff] %v4466
        %4475 = vst [vmem:[#allocation2 + $0x108] sm:$0xff] %v4467
        %4476 = vst [vmem:[#allocation2 + $0x110] sm:$0xff] %v4468
        %4477 = vst [vmem:[#allocation2 + $0x118] sm:$0xff] %v4469
        %4478 = vst [vmem:[#allocation2 + $0x1a0] sm:$0xff] %v4430
        %4479 = vst [vmem:[#allocation2 + $0x1a8] sm:$0xff] %v4431
        %4480 = vst [vmem:[#allocation2 + $0x1b0] sm:$0xff] %v4432
        %4481 = vst [vmem:[#allocation2 + $0x1b8] sm:$0xff] %v4433
        %4482 = vrot.lane.b32.xlu0 %v4430, 112
        %v4483 = vpop.permute.xlu0 %4482
        %4484 = vrot.lane.b32.xlu0 %v4431, 112
        %v4485 = vpop.permute.xlu0 %4484
        %4486 = vrot.lane.b32.xlu0 %v4432, 112
        %v4487 = vpop.permute.xlu0 %4486
        %4488 = vrot.lane.b32.xlu0 %v4433, 112
        %v4489 = vpop.permute.xlu0 %4488
        %v4490 = vsel %vm2015, %v4483, %v4485
        %v4491 = vsel %vm2015, %v4485, %v2010
        %v4492 = vsel %vm2015, %v4487, %v4489
        %v4493 = vsel %vm2015, %v4489, %v2010
        %4498 = vst [vmem:[#allocation2 + $0x240] sm:$0xff] %v4490
        %4499 = vst [vmem:[#allocation2 + $0x248] sm:$0xff] %v4491
        %4500 = vst [vmem:[#allocation2 + $0x250] sm:$0xff] %v4492
        %4501 = vst [vmem:[#allocation2 + $0x258] sm:$0xff] %v4493
        %4502 = vrot.lane.b32.xlu0 %v4430, 96
        %v4503 = vpop.permute.xlu0 %4502
        %4504 = vrot.lane.b32.xlu0 %v4431, 96
        %v4505 = vpop.permute.xlu0 %4504
        %4506 = vrot.lane.b32.xlu0 %v4432, 96
        %v4507 = vpop.permute.xlu0 %4506
        %4508 = vrot.lane.b32.xlu0 %v4433, 96
        %v4509 = vpop.permute.xlu0 %4508
        %v4510 = vsel %vm2038, %v4503, %v4505
        %v4511 = vsel %vm2038, %v4505, %v2033
        %v4512 = vsel %vm2038, %v4507, %v4509
        %v4513 = vsel %vm2038, %v4509, %v2033
        %4518 = vst [vmem:[#allocation2 + $0x2e0] sm:$0xff] %v4510
        %4519 = vst [vmem:[#allocation2 + $0x2e8] sm:$0xff] %v4511
        %4520 = vst [vmem:[#allocation2 + $0x2f0] sm:$0xff] %v4512
        %4521 = vst [vmem:[#allocation2 + $0x2f8] sm:$0xff] %v4513
        %v4522 = vmul.bf16 %v4102, %v2392
        %v4523 = vmul.bf16 %v4103, %v2395
        %v4524 = vmul.bf16 %v4104, %v2392
        %v4525 = vmul.bf16 %v4105, %v2395
        %4530 = vrot.lane.b32.xlu0 %v4522, 126
        %v4531 = vpop.permute.xlu0 %4530
        %4532 = vrot.lane.b32.xlu0 %v4523, 126
        %v4533 = vpop.permute.xlu0 %4532
        %4534 = vrot.lane.b32.xlu0 %v4524, 126
        %v4535 = vpop.permute.xlu0 %4534
        %4536 = vrot.lane.b32.xlu0 %v4525, 126
        %v4537 = vpop.permute.xlu0 %4536
        %v4538 = vsel %vm1920, %v4531, %v4533
        %v4539 = vsel %vm1920, %v4533, %v2414
        %v4540 = vsel %vm1920, %v4535, %v4537
        %v4541 = vsel %vm1920, %v4537, %v2414
        %4546 = vrot.lane.b32.xlu0 %v4538, 32
        %v4547 = vpop.permute.xlu0 %4546
        %4548 = vrot.lane.b32.xlu0 %v4539, 32
        %v4549 = vpop.permute.xlu0 %4548
        %4550 = vrot.lane.b32.xlu0 %v4540, 32
        %v4551 = vpop.permute.xlu0 %4550
        %4552 = vrot.lane.b32.xlu0 %v4541, 32
        %v4553 = vpop.permute.xlu0 %4552
        %v4554 = vsel %vm1965, %v1956, %v4547
        %v4555 = vsel %vm1965, %v4547, %v4549
        %v4556 = vsel %vm1965, %v1956, %v4551
        %v4557 = vsel %vm1965, %v4551, %v4553
        %4562 = vst [vmem:[#allocation2 + $0x80] sm:$0xff] %v4554
        %4563 = vst [vmem:[#allocation2 + $0x88] sm:$0xff] %v4555
        %4564 = vst [vmem:[#allocation2 + $0x90] sm:$0xff] %v4556
        %4565 = vst [vmem:[#allocation2 + $0x98] sm:$0xff] %v4557
        %4566 = vrot.lane.b32.xlu0 %v4538, 16
        %v4567 = vpop.permute.xlu0 %4566
        %4568 = vrot.lane.b32.xlu0 %v4539, 16
        %v4569 = vpop.permute.xlu0 %4568
        %4570 = vrot.lane.b32.xlu0 %v4540, 16
        %v4571 = vpop.permute.xlu0 %4570
        %4572 = vrot.lane.b32.xlu0 %v4541, 16
        %v4573 = vpop.permute.xlu0 %4572
        %v4574 = vsel %vm1988, %v1979, %v4567
        %v4575 = vsel %vm1988, %v4567, %v4569
        %v4576 = vsel %vm1988, %v1979, %v4571
        %v4577 = vsel %vm1988, %v4571, %v4573
        %4582 = vst [vmem:[#allocation2 + $0x120] sm:$0xff] %v4574
        %4583 = vst [vmem:[#allocation2 + $0x128] sm:$0xff] %v4575
        %4584 = vst [vmem:[#allocation2 + $0x130] sm:$0xff] %v4576
        %4585 = vst [vmem:[#allocation2 + $0x138] sm:$0xff] %v4577
        %4586 = vst [vmem:[#allocation2 + $0x1c0] sm:$0xff] %v4538
        %4587 = vst [vmem:[#allocation2 + $0x1c8] sm:$0xff] %v4539
        %4588 = vst [vmem:[#allocation2 + $0x1d0] sm:$0xff] %v4540
        %4589 = vst [vmem:[#allocation2 + $0x1d8] sm:$0xff] %v4541
        %4590 = vrot.lane.b32.xlu0 %v4538, 112
        %v4591 = vpop.permute.xlu0 %4590
        %4592 = vrot.lane.b32.xlu0 %v4539, 112
        %v4593 = vpop.permute.xlu0 %4592
        %4594 = vrot.lane.b32.xlu0 %v4540, 112
        %v4595 = vpop.permute.xlu0 %4594
        %4596 = vrot.lane.b32.xlu0 %v4541, 112
        %v4597 = vpop.permute.xlu0 %4596
        %v4598 = vsel %vm2015, %v4591, %v4593
        %v4599 = vsel %vm2015, %v4593, %v2010
        %v4600 = vsel %vm2015, %v4595, %v4597
        %v4601 = vsel %vm2015, %v4597, %v2010
        %4606 = vst [vmem:[#allocation2 + $0x260] sm:$0xff] %v4598
        %4607 = vst [vmem:[#allocation2 + $0x268] sm:$0xff] %v4599
        %4608 = vst [vmem:[#allocation2 + $0x270] sm:$0xff] %v4600
        %4609 = vst [vmem:[#allocation2 + $0x278] sm:$0xff] %v4601
        %4610 = vrot.lane.b32.xlu0 %v4538, 96
        %v4611 = vpop.permute.xlu0 %4610
        %4612 = vrot.lane.b32.xlu0 %v4539, 96
        %v4613 = vpop.permute.xlu0 %4612
        %4614 = vrot.lane.b32.xlu0 %v4540, 96
        %v4615 = vpop.permute.xlu0 %4614
        %4616 = vrot.lane.b32.xlu0 %v4541, 96
        %v4617 = vpop.permute.xlu0 %4616
        %v4618 = vsel %vm2038, %v4611, %v4613
        %v4619 = vsel %vm2038, %v4613, %v2033
        %v4620 = vsel %vm2038, %v4615, %v4617
        %v4621 = vsel %vm2038, %v4617, %v2033
        %4626 = vst [vmem:[#allocation2 + $0x300] sm:$0xff] %v4618
        %4627 = vst [vmem:[#allocation2 + $0x308] sm:$0xff] %v4619
        %4628 = vst [vmem:[#allocation2 + $0x310] sm:$0xff] %v4620
        %4629 = vst [vmem:[#allocation2 + $0x318] sm:$0xff] %v4621
        %s4630 = scalar_lea.vmem %s39, 112
        %v4631 = vld [vmem:[%s4630] sm:$0xff]
        %v4632 = vld [vmem:[%s4630 + $0x8] sm:$0xff]
        %v4633 = vld [vmem:[%s4630 + $0x10] sm:$0xff]
        %v4634 = vld [vmem:[%s4630 + $0x18] sm:$0xf]
        %v4635 = vld [vmem:[%s4630 + $0x1c] sm:$0xff]
        %v4636 = vld [vmem:[%s4630 + $0x24] sm:$0xff]
        %v4637 = vld [vmem:[%s4630 + $0x2c] sm:$0xff]
        %v4638 = vld [vmem:[%s4630 + $0x34] sm:$0xf]
        %v4639 = vld [vmem:[%s4630 + $0x38] sm:$0xff]
        %v4640 = vld [vmem:[%s4630 + $0x40] sm:$0xff]
        %v4641 = vld [vmem:[%s4630 + $0x48] sm:$0xff]
        %v4642 = vld [vmem:[%s4630 + $0x50] sm:$0xf]
        %v4643 = vld [vmem:[%s4630 + $0x54] sm:$0xff]
        %v4644 = vld [vmem:[%s4630 + $0x5c] sm:$0xff]
        %v4645 = vld [vmem:[%s4630 + $0x64] sm:$0xff]
        %v4646 = vld [vmem:[%s4630 + $0x6c] sm:$0xf]
        %v4647 = vld [vmem:[#allocation2] sm:$0xff]
        %v4648 = vld [vmem:[#allocation2 + $0x8] sm:$0xff]
        %v4649 = vld [vmem:[#allocation2 + $0x10] sm:$0xff]
        %v4650 = vld [vmem:[#allocation2 + $0x18] sm:$0xff]
        %v4651 = vld [vmem:[#allocation2 + $0x20] sm:$0xff]
        %v4652 = vld [vmem:[#allocation2 + $0x28] sm:$0xff]
        %v4653 = vld [vmem:[#allocation2 + $0x30] sm:$0xff]
        %v4654 = vld [vmem:[#allocation2 + $0x38] sm:$0xff]
        %v4655 = vld [vmem:[#allocation2 + $0x40] sm:$0xff]
        %v4656 = vld [vmem:[#allocation2 + $0x48] sm:$0xff]
        %v4657 = vld [vmem:[#allocation2 + $0x50] sm:$0xff]
        %v4658 = vld [vmem:[#allocation2 + $0x58] sm:$0xff]
        %v4659 = vld [vmem:[#allocation2 + $0x60] sm:$0xff]
        %v4660 = vld [vmem:[#allocation2 + $0x68] sm:$0xff]
        %v4661 = vld [vmem:[#allocation2 + $0x70] sm:$0xff]
        %v4662 = vld [vmem:[#allocation2 + $0x78] sm:$0xff]
        %v4663 = vld [vmem:[#allocation2 + $0x80] sm:$0xff]
        %v4664 = vld [vmem:[#allocation2 + $0x88] sm:$0xff]
        %v4665 = vld [vmem:[#allocation2 + $0x90] sm:$0xff]
        %v4666 = vld [vmem:[#allocation2 + $0x98] sm:$0xff]
        %v4667 = vld [vmem:[#allocation2 + $0xa0] sm:$0xff]
        %v4668 = vld [vmem:[#allocation2 + $0xa8] sm:$0xff]
        %v4669 = vld [vmem:[#allocation2 + $0xb0] sm:$0xff]
        %v4670 = vld [vmem:[#allocation2 + $0xb8] sm:$0xff]
        %v4671 = vld [vmem:[#allocation2 + $0xc0] sm:$0xff]
        %v4672 = vld [vmem:[#allocation2 + $0xc8] sm:$0xff]
        %v4673 = vld [vmem:[#allocation2 + $0xd0] sm:$0xff]
        %v4674 = vld [vmem:[#allocation2 + $0xd8] sm:$0xff]
        %v4675 = vld [vmem:[#allocation2 + $0xe0] sm:$0xff]
        %v4676 = vld [vmem:[#allocation2 + $0xe8] sm:$0xff]
        %v4677 = vld [vmem:[#allocation2 + $0xf0] sm:$0xff]
        %v4678 = vld [vmem:[#allocation2 + $0xf8] sm:$0xff]
        %v4679 = vld [vmem:[#allocation2 + $0x100] sm:$0xff]
        %v4680 = vld [vmem:[#allocation2 + $0x108] sm:$0xff]
        %v4681 = vld [vmem:[#allocation2 + $0x110] sm:$0xff]
        %v4682 = vld [vmem:[#allocation2 + $0x118] sm:$0xff]
        %v4683 = vld [vmem:[#allocation2 + $0x120] sm:$0xff]
        %v4684 = vld [vmem:[#allocation2 + $0x128] sm:$0xff]
        %v4685 = vld [vmem:[#allocation2 + $0x130] sm:$0xff]
        %v4686 = vld [vmem:[#allocation2 + $0x138] sm:$0xff]
        %v4687 = vld [vmem:[#allocation2 + $0x140] sm:$0xff]
        %v4688 = vld [vmem:[#allocation2 + $0x148] sm:$0xff]
        %v4689 = vld [vmem:[#allocation2 + $0x150] sm:$0xff]
        %v4690 = vld [vmem:[#allocation2 + $0x158] sm:$0xff]
        %v4691 = vld [vmem:[#allocation2 + $0x160] sm:$0xff]
        %v4692 = vld [vmem:[#allocation2 + $0x168] sm:$0xff]
        %v4693 = vld [vmem:[#allocation2 + $0x170] sm:$0xff]
        %v4694 = vld [vmem:[#allocation2 + $0x178] sm:$0xff]
        %v4695 = vld [vmem:[#allocation2 + $0x180] sm:$0xff]
        %v4696 = vld [vmem:[#allocation2 + $0x188] sm:$0xff]
        %v4697 = vld [vmem:[#allocation2 + $0x190] sm:$0xff]
        %v4698 = vld [vmem:[#allocation2 + $0x198] sm:$0xff]
        %v4699 = vld [vmem:[#allocation2 + $0x1a0] sm:$0xff]
        %v4700 = vld [vmem:[#allocation2 + $0x1a8] sm:$0xff]
        %v4701 = vld [vmem:[#allocation2 + $0x1b0] sm:$0xff]
        %v4702 = vld [vmem:[#allocation2 + $0x1b8] sm:$0xff]
        %v4703 = vld [vmem:[#allocation2 + $0x1c0] sm:$0xff]
        %v4704 = vld [vmem:[#allocation2 + $0x1c8] sm:$0xff]
        %v4705 = vld [vmem:[#allocation2 + $0x1d0] sm:$0xff]
        %v4706 = vld [vmem:[#allocation2 + $0x1d8] sm:$0xff]
        %v4707 = vld [vmem:[#allocation2 + $0x1e0] sm:$0xff]
        %v4708 = vld [vmem:[#allocation2 + $0x1e8] sm:$0xff]
        %v4709 = vld [vmem:[#allocation2 + $0x1f0] sm:$0xff]
        %v4710 = vld [vmem:[#allocation2 + $0x1f8] sm:$0xff]
        %v4711 = vld [vmem:[#allocation2 + $0x200] sm:$0xff]
        %v4712 = vld [vmem:[#allocation2 + $0x208] sm:$0xff]
        %v4713 = vld [vmem:[#allocation2 + $0x210] sm:$0xff]
        %v4714 = vld [vmem:[#allocation2 + $0x218] sm:$0xff]
        %v4715 = vld [vmem:[#allocation2 + $0x220] sm:$0xff]
        %v4716 = vld [vmem:[#allocation2 + $0x228] sm:$0xff]
        %v4717 = vld [vmem:[#allocation2 + $0x230] sm:$0xff]
        %v4718 = vld [vmem:[#allocation2 + $0x238] sm:$0xff]
        %v4719 = vld [vmem:[#allocation2 + $0x240] sm:$0xff]
        %v4720 = vld [vmem:[#allocation2 + $0x248] sm:$0xff]
        %v4721 = vld [vmem:[#allocation2 + $0x250] sm:$0xff]
        %v4722 = vld [vmem:[#allocation2 + $0x258] sm:$0xff]
        %v4723 = vld [vmem:[#allocation2 + $0x260] sm:$0xff]
        %v4724 = vld [vmem:[#allocation2 + $0x268] sm:$0xff]
        %v4725 = vld [vmem:[#allocation2 + $0x270] sm:$0xff]
        %v4726 = vld [vmem:[#allocation2 + $0x278] sm:$0xff]
        %v4727 = vld [vmem:[#allocation2 + $0x280] sm:$0xff]
        %v4728 = vld [vmem:[#allocation2 + $0x288] sm:$0xff]
        %v4729 = vld [vmem:[#allocation2 + $0x290] sm:$0xff]
        %v4730 = vld [vmem:[#allocation2 + $0x298] sm:$0xff]
        %v4731 = vld [vmem:[#allocation2 + $0x2a0] sm:$0xff]
        %v4732 = vld [vmem:[#allocation2 + $0x2a8] sm:$0xff]
        %v4733 = vld [vmem:[#allocation2 + $0x2b0] sm:$0xff]
        %v4734 = vld [vmem:[#allocation2 + $0x2b8] sm:$0xff]
        %v4735 = vld [vmem:[#allocation2 + $0x2c0] sm:$0xff]
        %v4736 = vld [vmem:[#allocation2 + $0x2c8] sm:$0xff]
        %v4737 = vld [vmem:[#allocation2 + $0x2d0] sm:$0xff]
        %v4738 = vld [vmem:[#allocation2 + $0x2d8] sm:$0xff]
        %v4739 = vld [vmem:[#allocation2 + $0x2e0] sm:$0xff]
        %v4740 = vld [vmem:[#allocation2 + $0x2e8] sm:$0xff]
        %v4741 = vld [vmem:[#allocation2 + $0x2f0] sm:$0xff]
        %v4742 = vld [vmem:[#allocation2 + $0x2f8] sm:$0xff]
        %v4743 = vld [vmem:[#allocation2 + $0x300] sm:$0xff]
        %v4744 = vld [vmem:[#allocation2 + $0x308] sm:$0xff]
        %v4745 = vld [vmem:[#allocation2 + $0x310] sm:$0xff]
        %v4746 = vld [vmem:[#allocation2 + $0x318] sm:$0xff]
        %4748 = vset.pattern.permute.xlu0 0
        %4749 = vperm.xlu0 %4748, %v4098
        %v4750 = vpop.permute.xlu0 %4749
        %4753 = vset.pattern.permute.xlu0 0
        %4754 = vperm.xlu0 %4753, %v4099
        %v4755 = vpop.permute.xlu0 %4754
        %4758 = vset.pattern.permute.xlu0 0
        %4759 = vperm.xlu0 %4758, %v4100
        %v4760 = vpop.permute.xlu0 %4759
        %4763 = vset.pattern.permute.xlu0 0
        %4764 = vperm.xlu0 %4763, %v4101
        %v4765 = vpop.permute.xlu0 %4764
        %v4783 = vunpack.c.l.b16 %v4631
        %v4784 = vunpack.c.h.b16 %v4631
        %v4785 = vunpack.c.l.b16 %v4632
        %v4786 = vunpack.c.h.b16 %v4632
        %v4787 = vunpack.c.l.b16 %v4633
        %v4788 = vunpack.c.h.b16 %v4633
        %v4789 = vunpack.c.l.b16 %v4634
        %v4790 = vunpack.c.l.b16 %v4635
        %v4791 = vunpack.c.h.b16 %v4635
        %v4792 = vunpack.c.l.b16 %v4636
        %v4793 = vunpack.c.h.b16 %v4636
        %v4794 = vunpack.c.l.b16 %v4637
        %v4795 = vunpack.c.h.b16 %v4637
        %v4796 = vunpack.c.l.b16 %v4638
        %v4797 = vunpack.c.l.b16 %v4639
        %v4798 = vunpack.c.h.b16 %v4639
        %v4799 = vunpack.c.l.b16 %v4640
        %v4800 = vunpack.c.h.b16 %v4640
        %v4801 = vunpack.c.l.b16 %v4641
        %v4802 = vunpack.c.h.b16 %v4641
        %v4803 = vunpack.c.l.b16 %v4642
        %v4804 = vunpack.c.l.b16 %v4643
        %v4805 = vunpack.c.h.b16 %v4643
        %v4806 = vunpack.c.l.b16 %v4644
        %v4807 = vunpack.c.h.b16 %v4644
        %v4808 = vunpack.c.l.b16 %v4645
        %v4809 = vunpack.c.h.b16 %v4645
        %v4810 = vunpack.c.l.b16 %v4646
        %v4811 = vpack.c.b16 %v4790, %v4783
        %v4812 = vpack.c.b16 %v4791, %v4784
        %v4813 = vpack.c.b16 %v4792, %v4785
        %v4814 = vpack.c.b16 %v4793, %v4786
        %v4815 = vpack.c.b16 %v4794, %v4787
        %v4816 = vpack.c.b16 %v4795, %v4788
        %v4817 = vpack.c.b16 %v4796, %v4789
        %v4818 = vpack.c.b16 %v4804, %v4797
        %v4819 = vpack.c.b16 %v4805, %v4798
        %v4820 = vpack.c.b16 %v4806, %v4799
        %v4821 = vpack.c.b16 %v4807, %v4800
        %v4822 = vpack.c.b16 %v4808, %v4801
        %v4823 = vpack.c.b16 %v4809, %v4802
        %v4824 = vpack.c.b16 %v4810, %v4803
        %v4838 = vsel %vm1780, %v4817, 0
        %v4841 = vsel %vm1780, %v4824, 0
        %4843 = vmatprep.subr.bf16.mxu0 %v4648
        %4844 = vmatpush1.bf16.msra.mxu0 %v4647
        %4845 = vmatprep.subr.bf16.mxu0 %v4650
        %4846 = vmatpush1.bf16.msra.mxu0 %v4649
        %4847 = vmatprep.subr.bf16.mxu0 %v4652
        %4848 = vmatpush1.bf16.msra.mxu0 %v4651
        %4849 = vmatprep.subr.bf16.mxu0 %v4654
        %4850 = vmatpush1.bf16.msra.mxu0 %v4653
        %4851 = vmatprep.subr.bf16.mxu0 %v4656
        %4852 = vmatpush1.bf16.msra.mxu0 %v4655
        %4853 = vmatprep.subr.bf16.mxu0 %v4658
        %4854 = vmatpush1.bf16.msra.mxu0 %v4657
        %4855 = vmatprep.subr.bf16.mxu0 %v4660
        %4856 = vmatpush1.bf16.msra.mxu0 %v4659
        %4857 = vmatprep.subr.bf16.mxu0 %v4662
        %4858 = vmatpush1.bf16.msra.mxu0 %v4661
        %4859 = vmatprep.subr.bf16.mxu0 %v4664
        %4860 = vmatpush1.bf16.msra.mxu0 %v4663
        %4861 = vmatprep.subr.bf16.mxu0 %v4666
        %4862 = vmatpush1.bf16.msra.mxu0 %v4665
        %4863 = vmatprep.subr.bf16.mxu0 %v4668
        %4864 = vmatpush1.bf16.msra.mxu0 %v4667
        %4865 = vmatprep.subr.bf16.mxu0 %v4670
        %4866 = vmatpush1.bf16.msra.mxu0 %v4669
        %4867 = vmatprep.subr.bf16.mxu0 %v4672
        %4868 = vmatpush1.bf16.msra.mxu0 %v4671
        %4869 = vmatprep.subr.bf16.mxu0 %v4674
        %4870 = vmatpush1.bf16.msra.mxu0 %v4673
        %4871 = vmatprep.subr.bf16.mxu0 %v4676
        %4872 = vmatpush1.bf16.msra.mxu0 %v4675
        %4873 = vmatprep.subr.bf16.mxu0 %v4678
        %4874 = vmatpush1.bf16.msra.mxu0 %v4677
        %4875 = vmatprep.mubr.bf16.mxu0 %v4812
        %4876 = vmatmul.mubr.bf16.gmra.mrb[0].mxu0 %v4811
        %v4877 = vpop.f32.mrb[0].mxu0
        %v4878 = vadd.f32 %v4750, %v4877
        %v4879 = vpop.f32.mrb[0].mxu0
        %v4880 = vadd.f32 %v4750, %v4879
        %v4881 = vpop.f32.mrb[0].mxu0
        %v4882 = vadd.f32 %v4755, %v4881
        %v4883 = vpop.f32.mrb[0].mxu0
        %v4884 = vadd.f32 %v4755, %v4883
        %4885 = vmatprep.mubr.bf16.mxu0 %v4819
        %4886 = vmatmul.mubr.bf16.gmra.mrb[0].mxu0 %v4818
        %v4887 = vpop.f32.mrb[0].mxu0
        %v4888 = vadd.f32 %v4760, %v4887
        %v4889 = vpop.f32.mrb[0].mxu0
        %v4890 = vadd.f32 %v4760, %v4889
        %v4891 = vpop.f32.mrb[0].mxu0
        %v4892 = vadd.f32 %v4765, %v4891
        %v4893 = vpop.f32.mrb[0].mxu0
        %v4894 = vadd.f32 %v4765, %v4893
        %4895 = vdwg.mxu0
        %4896 = vmatprep.subr.bf16.mxu0 %v4680
        %4897 = vmatpush1.bf16.msra.mxu0 %v4679
        %4898 = vmatprep.subr.bf16.mxu0 %v4682
        %4899 = vmatpush1.bf16.msra.mxu0 %v4681
        %4900 = vmatprep.subr.bf16.mxu0 %v4684
        %4901 = vmatpush1.bf16.msra.mxu0 %v4683
        %4902 = vmatprep.subr.bf16.mxu0 %v4686
        %4903 = vmatpush1.bf16.msra.mxu0 %v4685
        %4904 = vmatprep.subr.bf16.mxu0 %v4688
        %4905 = vmatpush1.bf16.msra.mxu0 %v4687
        %4906 = vmatprep.subr.bf16.mxu0 %v4690
        %4907 = vmatpush1.bf16.msra.mxu0 %v4689
        %4908 = vmatprep.subr.bf16.mxu0 %v4692
        %4909 = vmatpush1.bf16.msra.mxu0 %v4691
        %4910 = vmatprep.subr.bf16.mxu0 %v4694
        %4911 = vmatpush1.bf16.msra.mxu0 %v4693
        %4912 = vmatprep.subr.bf16.mxu0 %v4696
        %4913 = vmatpush1.bf16.msra.mxu0 %v4695
        %4914 = vmatprep.subr.bf16.mxu0 %v4698
        %4915 = vmatpush1.bf16.msra.mxu0 %v4697
        %4916 = vmatprep.subr.bf16.mxu0 %v4700
        %4917 = vmatpush1.bf16.msra.mxu0 %v4699
        %4918 = vmatprep.subr.bf16.mxu0 %v4702
        %4919 = vmatpush1.bf16.msra.mxu0 %v4701
        %4920 = vmatprep.subr.bf16.mxu0 %v4704
        %4921 = vmatpush1.bf16.msra.mxu0 %v4703
        %4922 = vmatprep.subr.bf16.mxu0 %v4706
        %4923 = vmatpush1.bf16.msra.mxu0 %v4705
        %4924 = vmatprep.subr.bf16.mxu0 %v4708
        %4925 = vmatpush1.bf16.msra.mxu0 %v4707
        %4926 = vmatprep.subr.bf16.mxu0 %v4710
        %4927 = vmatpush1.bf16.msra.mxu0 %v4709
        %4928 = vmatprep.mubr.bf16.mxu0 %v4814
        %4929 = vmatmul.mubr.bf16.gmra.mrb[0].mxu0 %v4813
        %v4930 = vpop.f32.mrb[0].mxu0
        %v4931 = vadd.f32 %v4878, %v4930
        %v4932 = vpop.f32.mrb[0].mxu0
        %v4933 = vadd.f32 %v4880, %v4932
        %v4934 = vpop.f32.mrb[0].mxu0
        %v4935 = vadd.f32 %v4882, %v4934
        %v4936 = vpop.f32.mrb[0].mxu0
        %v4937 = vadd.f32 %v4884, %v4936
        %4938 = vmatprep.mubr.bf16.mxu0 %v4821
        %4939 = vmatmul.mubr.bf16.gmra.mrb[0].mxu0 %v4820
        %v4940 = vpop.f32.mrb[0].mxu0
        %v4941 = vadd.f32 %v4888, %v4940
        %v4942 = vpop.f32.mrb[0].mxu0
        %v4943 = vadd.f32 %v4890, %v4942
        %v4944 = vpop.f32.mrb[0].mxu0
        %v4945 = vadd.f32 %v4892, %v4944
        %v4946 = vpop.f32.mrb[0].mxu0
        %v4947 = vadd.f32 %v4894, %v4946
        %4948 = vdwg.mxu0
        %4949 = vmatprep.subr.bf16.mxu0 %v4712
        %4950 = vmatpush1.bf16.msra.mxu0 %v4711
        %4951 = vmatprep.subr.bf16.mxu0 %v4714
        %4952 = vmatpush1.bf16.msra.mxu0 %v4713
        %4953 = vmatprep.subr.bf16.mxu0 %v4716
        %4954 = vmatpush1.bf16.msra.mxu0 %v4715
        %4955 = vmatprep.subr.bf16.mxu0 %v4718
        %4956 = vmatpush1.bf16.msra.mxu0 %v4717
        %4957 = vmatprep.subr.bf16.mxu0 %v4720
        %4958 = vmatpush1.bf16.msra.mxu0 %v4719
        %4959 = vmatprep.subr.bf16.mxu0 %v4722
        %4960 = vmatpush1.bf16.msra.mxu0 %v4721
        %4961 = vmatprep.subr.bf16.mxu0 %v4724
        %4962 = vmatpush1.bf16.msra.mxu0 %v4723
        %4963 = vmatprep.subr.bf16.mxu0 %v4726
        %4964 = vmatpush1.bf16.msra.mxu0 %v4725
        %4965 = vmatprep.subr.bf16.mxu0 %v4728
        %4966 = vmatpush1.bf16.msra.mxu0 %v4727
        %4967 = vmatprep.subr.bf16.mxu0 %v4730
        %4968 = vmatpush1.bf16.msra.mxu0 %v4729
        %4969 = vmatprep.subr.bf16.mxu0 %v4732
        %4970 = vmatpush1.bf16.msra.mxu0 %v4731
        %4971 = vmatprep.subr.bf16.mxu0 %v4734
        %4972 = vmatpush1.bf16.msra.mxu0 %v4733
        %4973 = vmatprep.subr.bf16.mxu0 %v4736
        %4974 = vmatpush1.bf16.msra.mxu0 %v4735
        %4975 = vmatprep.subr.bf16.mxu0 %v4738
        %4976 = vmatpush1.bf16.msra.mxu0 %v4737
        %4977 = vmatprep.subr.bf16.mxu0 %v4740
        %4978 = vmatpush1.bf16.msra.mxu0 %v4739
        %4979 = vmatprep.subr.bf16.mxu0 %v4742
        %4980 = vmatpush1.bf16.msra.mxu0 %v4741
        %4981 = vmatprep.mubr.bf16.mxu0 %v4816
        %4982 = vmatmul.mubr.bf16.gmra.mrb[0].mxu0 %v4815
        %v4983 = vpop.f32.mrb[0].mxu0
        %v4984 = vadd.f32 %v4931, %v4983
        %v4985 = vpop.f32.mrb[0].mxu0
        %v4986 = vadd.f32 %v4933, %v4985
        %v4987 = vpop.f32.mrb[0].mxu0
        %v4988 = vadd.f32 %v4935, %v4987
        %v4989 = vpop.f32.mrb[0].mxu0
        %v4990 = vadd.f32 %v4937, %v4989
        %4991 = vmatprep.mubr.bf16.mxu0 %v4823
        %4992 = vmatmul.mubr.bf16.gmra.mrb[0].mxu0 %v4822
        %v4993 = vpop.f32.mrb[0].mxu0
        %v4994 = vadd.f32 %v4941, %v4993
        %v4995 = vpop.f32.mrb[0].mxu0
        %v4996 = vadd.f32 %v4943, %v4995
        %v4997 = vpop.f32.mrb[0].mxu0
        %v4998 = vadd.f32 %v4945, %v4997
        %v4999 = vpop.f32.mrb[0].mxu0
        %v5000 = vadd.f32 %v4947, %v4999
        %5001 = vdwg.mxu0
        %5002 = vmatprep.subr.bf16.mxu0 %v4744
        %5003 = vmatpush1.bf16.msra.mxu0 %v4743
        %5004 = vmatprep.subr.bf16.mxu0 %v4746
        %5005 = vmatpush1.bf16.msra.mxu0 %v4745
        %5006 = vmatprep.subr.bf16.mxu0 0
        %5007 = vmatpush1.bf16.msra.mxu0 0
        %5008 = vmatprep.subr.bf16.mxu0 0
        %5009 = vmatpush1.bf16.msra.mxu0 0
        %5010 = vmatprep.subr.bf16.mxu0 0
        %5011 = vmatpush1.bf16.msra.mxu0 0
        %5012 = vmatprep.subr.bf16.mxu0 0
        %5013 = vmatpush1.bf16.msra.mxu0 0
        %5014 = vmatprep.subr.bf16.mxu0 0
        %5015 = vmatpush1.bf16.msra.mxu0 0
        %5016 = vmatprep.subr.bf16.mxu0 0
        %5017 = vmatpush1.bf16.msra.mxu0 0
        %5018 = vmatprep.subr.bf16.mxu0 0
        %5019 = vmatpush1.bf16.msra.mxu0 0
        %5020 = vmatprep.subr.bf16.mxu0 0
        %5021 = vmatpush1.bf16.msra.mxu0 0
        %5022 = vmatprep.subr.bf16.mxu0 0
        %5023 = vmatpush1.bf16.msra.mxu0 0
        %5024 = vmatprep.subr.bf16.mxu0 0
        %5025 = vmatpush1.bf16.msra.mxu0 0
        %5026 = vmatprep.subr.bf16.mxu0 0
        %5027 = vmatpush1.bf16.msra.mxu0 0
        %5028 = vmatprep.subr.bf16.mxu0 0
        %5029 = vmatpush1.bf16.msra.mxu0 0
        %5030 = vmatprep.subr.bf16.mxu0 0
        %5031 = vmatpush1.bf16.msra.mxu0 0
        %5032 = vmatprep.subr.bf16.mxu0 0
        %5033 = vmatpush1.bf16.msra.mxu0 0
        %5034 = vmatprep.mubr.bf16.mxu0 0
        %5035 = vmatmul.mubr.bf16.gmra.mrb[0].mxu0 %v4838
        %v5036 = vpop.f32.mrb[0].mxu0
        %v5037 = vadd.f32 %v4984, %v5036
        %v5038 = vpop.f32.mrb[0].mxu0
        %v5039 = vadd.f32 %v4986, %v5038
        %v5040 = vpop.f32.mrb[0].mxu0
        %v5041 = vadd.f32 %v4988, %v5040
        %v5042 = vpop.f32.mrb[0].mxu0
        %v5043 = vadd.f32 %v4990, %v5042
        %5044 = vmatprep.mubr.bf16.mxu0 0
        %5045 = vmatmul.mubr.bf16.gmra.mrb[0].mxu0 %v4841
        %v5046 = vpop.f32.mrb[0].mxu0
        %v5047 = vadd.f32 %v4994, %v5046
        %v5048 = vpop.f32.mrb[0].mxu0
        %v5049 = vadd.f32 %v4996, %v5048
        %v5050 = vpop.f32.mrb[0].mxu0
        %v5051 = vadd.f32 %v4998, %v5050
        %v5052 = vpop.f32.mrb[0].mxu0
        %v5053 = vadd.f32 %v5000, %v5052
        %5054 = vdwg.mxu0
        %vm5055 = vcmp.gt.f32.partialorder %v5037, 0.0
        %vm5056 = vcmp.gt.f32.partialorder %v5039, 0.0
        %vm5057 = vcmp.gt.f32.partialorder %v5041, 0.0
        %vm5058 = vcmp.gt.f32.partialorder %v5043, 0.0
        %vm5059 = vcmp.gt.f32.partialorder %v5047, 0.0
        %vm5060 = vcmp.gt.f32.partialorder %v5049, 0.0
        %vm5061 = vcmp.gt.f32.partialorder %v5051, 0.0
        %vm5062 = vcmp.gt.f32.partialorder %v5053, 0.0
        %v5063 = vmul.f32 %v5037, 0.01
        %v5064 = vmul.f32 %v5039, 0.01
        %v5065 = vmul.f32 %v5041, 0.01
        %v5066 = vmul.f32 %v5043, 0.01
        %v5067 = vmul.f32 %v5047, 0.01
        %v5068 = vmul.f32 %v5049, 0.01
        %v5069 = vmul.f32 %v5051, 0.01
        %v5070 = vmul.f32 %v5053, 0.01
        %v5071 = vsel %vm5055, %v5037, %v5063
        %v5072 = vsel %vm5056, %v5039, %v5064
        %v5073 = vsel %vm5057, %v5041, %v5065
        %v5074 = vsel %vm5058, %v5043, %v5066
        %v5075 = vsel %vm5059, %v5047, %v5067
        %v5076 = vsel %vm5060, %v5049, %v5068
        %v5077 = vsel %vm5061, %v5051, %v5069
        %v5078 = vsel %vm5062, %v5053, %v5070
        %s5079 = scalar_lea.vmem %s45, 32
        %v5080 = vld [vmem:[%s5079] sm:$0xff]
        %v5081 = vld [vmem:[%s5079 + $0x8] sm:$0xff]
        %v5082 = vld [vmem:[%s5079 + $0x10] sm:$0xff]
        %v5083 = vld [vmem:[%s5079 + $0x18] sm:$0xff]
        %v5084 = vpack.c.bf16 %v5073, %v5071
        %v5085 = vpack.c.bf16 %v5074, %v5072
        %v5086 = vpack.c.bf16 %v5077, %v5075
        %v5087 = vpack.c.bf16 %v5078, %v5076
        %v5088 = vmul.bf16 %v5084, %v1921
        %v5089 = vmul.bf16 %v5085, %v1919
        %v5090 = vmul.bf16 %v5086, %v1921
        %v5091 = vmul.bf16 %v5087, %v1919
        %5096 = vrot.lane.b32.xlu0 %v5088, 2
        %v5097 = vpop.permute.xlu0 %5096
        %5098 = vrot.lane.b32.xlu0 %v5089, 2
        %v5099 = vpop.permute.xlu0 %5098
        %5100 = vrot.lane.b32.xlu0 %v5090, 2
        %v5101 = vpop.permute.xlu0 %5100
        %5102 = vrot.lane.b32.xlu0 %v5091, 2
        %v5103 = vpop.permute.xlu0 %5102
        %v5104 = vsel %vm1945, %v1936, %v5097
        %v5105 = vsel %vm1945, %v5097, %v5099
        %v5106 = vsel %vm1945, %v1936, %v5101
        %v5107 = vsel %vm1945, %v5101, %v5103
        %5112 = vrot.lane.b32.xlu0 %v5104, 32
        %v5113 = vpop.permute.xlu0 %5112
        %5114 = vrot.lane.b32.xlu0 %v5105, 32
        %v5115 = vpop.permute.xlu0 %5114
        %5116 = vrot.lane.b32.xlu0 %v5106, 32
        %v5117 = vpop.permute.xlu0 %5116
        %5118 = vrot.lane.b32.xlu0 %v5107, 32
        %v5119 = vpop.permute.xlu0 %5118
        %v5120 = vsel %vm1965, %v1956, %v5113
        %v5121 = vsel %vm1965, %v5113, %v5115
        %v5122 = vsel %vm1965, %v1956, %v5117
        %v5123 = vsel %vm1965, %v5117, %v5119
        %5128 = vst [vmem:[#allocation2] sm:$0xff] %v5120
        %5129 = vst [vmem:[#allocation2 + $0x8] sm:$0xff] %v5121
        %5130 = vst [vmem:[#allocation2 + $0x10] sm:$0xff] %v5122
        %5131 = vst [vmem:[#allocation2 + $0x18] sm:$0xff] %v5123
        %5132 = vrot.lane.b32.xlu0 %v5104, 16
        %v5133 = vpop.permute.xlu0 %5132
        %5134 = vrot.lane.b32.xlu0 %v5105, 16
        %v5135 = vpop.permute.xlu0 %5134
        %5136 = vrot.lane.b32.xlu0 %v5106, 16
        %v5137 = vpop.permute.xlu0 %5136
        %5138 = vrot.lane.b32.xlu0 %v5107, 16
        %v5139 = vpop.permute.xlu0 %5138
        %v5140 = vsel %vm1988, %v1979, %v5133
        %v5141 = vsel %vm1988, %v5133, %v5135
        %v5142 = vsel %vm1988, %v1979, %v5137
        %v5143 = vsel %vm1988, %v5137, %v5139
        %5148 = vst [vmem:[#allocation2 + $0xa0] sm:$0xff] %v5140
        %5149 = vst [vmem:[#allocation2 + $0xa8] sm:$0xff] %v5141
        %5150 = vst [vmem:[#allocation2 + $0xb0] sm:$0xff] %v5142
        %5151 = vst [vmem:[#allocation2 + $0xb8] sm:$0xff] %v5143
        %5152 = vst [vmem:[#allocation2 + $0x140] sm:$0xff] %v5104
        %5153 = vst [vmem:[#allocation2 + $0x148] sm:$0xff] %v5105
        %5154 = vst [vmem:[#allocation2 + $0x150] sm:$0xff] %v5106
        %5155 = vst [vmem:[#allocation2 + $0x158] sm:$0xff] %v5107
        %5156 = vrot.lane.b32.xlu0 %v5104, 112
        %v5157 = vpop.permute.xlu0 %5156
        %5158 = vrot.lane.b32.xlu0 %v5105, 112
        %v5159 = vpop.permute.xlu0 %5158
        %5160 = vrot.lane.b32.xlu0 %v5106, 112
        %v5161 = vpop.permute.xlu0 %5160
        %5162 = vrot.lane.b32.xlu0 %v5107, 112
        %v5163 = vpop.permute.xlu0 %5162
        %v5164 = vsel %vm2015, %v5157, %v5159
        %v5165 = vsel %vm2015, %v5159, %v2010
        %v5166 = vsel %vm2015, %v5161, %v5163
        %v5167 = vsel %vm2015, %v5163, %v2010
        %5172 = vst [vmem:[#allocation2 + $0x1e0] sm:$0xff] %v5164
        %5173 = vst [vmem:[#allocation2 + $0x1e8] sm:$0xff] %v5165
        %5174 = vst [vmem:[#allocation2 + $0x1f0] sm:$0xff] %v5166
        %5175 = vst [vmem:[#allocation2 + $0x1f8] sm:$0xff] %v5167
        %5176 = vrot.lane.b32.xlu0 %v5104, 96
        %v5177 = vpop.permute.xlu0 %5176
        %5178 = vrot.lane.b32.xlu0 %v5105, 96
        %v5179 = vpop.permute.xlu0 %5178
        %5180 = vrot.lane.b32.xlu0 %v5106, 96
        %v5181 = vpop.permute.xlu0 %5180
        %5182 = vrot.lane.b32.xlu0 %v5107, 96
        %v5183 = vpop.permute.xlu0 %5182
        %v5184 = vsel %vm2038, %v5177, %v5179
        %v5185 = vsel %vm2038, %v5179, %v2033
        %v5186 = vsel %vm2038, %v5181, %v5183
        %v5187 = vsel %vm2038, %v5183, %v2033
        %5192 = vst [vmem:[#allocation2 + $0x280] sm:$0xff] %v5184
        %5193 = vst [vmem:[#allocation2 + $0x288] sm:$0xff] %v5185
        %5194 = vst [vmem:[#allocation2 + $0x290] sm:$0xff] %v5186
        %5195 = vst [vmem:[#allocation2 + $0x298] sm:$0xff] %v5187
        %v5196 = vmul.bf16 %v5084, %v2058
        %v5197 = vmul.bf16 %v5085, %v2056
        %v5198 = vmul.bf16 %v5086, %v2058
        %v5199 = vmul.bf16 %v5087, %v2056
        %5204 = vrot.lane.b32.xlu0 %v5196, 1
        %v5205 = vpop.permute.xlu0 %5204
        %5206 = vrot.lane.b32.xlu0 %v5197, 1
        %v5207 = vpop.permute.xlu0 %5206
        %5208 = vrot.lane.b32.xlu0 %v5198, 1
        %v5209 = vpop.permute.xlu0 %5208
        %5210 = vrot.lane.b32.xlu0 %v5199, 1
        %v5211 = vpop.permute.xlu0 %5210
        %v5212 = vsel %vm2082, %v2073, %v5205
        %v5213 = vsel %vm2082, %v5205, %v5207
        %v5214 = vsel %vm2082, %v2073, %v5209
        %v5215 = vsel %vm2082, %v5209, %v5211
        %5220 = vrot.lane.b32.xlu0 %v5212, 32
        %v5221 = vpop.permute.xlu0 %5220
        %5222 = vrot.lane.b32.xlu0 %v5213, 32
        %v5223 = vpop.permute.xlu0 %5222
        %5224 = vrot.lane.b32.xlu0 %v5214, 32
        %v5225 = vpop.permute.xlu0 %5224
        %5226 = vrot.lane.b32.xlu0 %v5215, 32
        %v5227 = vpop.permute.xlu0 %5226
        %v5228 = vsel %vm1965, %v1956, %v5221
        %v5229 = vsel %vm1965, %v5221, %v5223
        %v5230 = vsel %vm1965, %v1956, %v5225
        %v5231 = vsel %vm1965, %v5225, %v5227
        %5236 = vst [vmem:[#allocation2 + $0x20] sm:$0xff] %v5228
        %5237 = vst [vmem:[#allocation2 + $0x28] sm:$0xff] %v5229
        %5238 = vst [vmem:[#allocation2 + $0x30] sm:$0xff] %v5230
        %5239 = vst [vmem:[#allocation2 + $0x38] sm:$0xff] %v5231
        %5240 = vrot.lane.b32.xlu0 %v5212, 16
        %v5241 = vpop.permute.xlu0 %5240
        %5242 = vrot.lane.b32.xlu0 %v5213, 16
        %v5243 = vpop.permute.xlu0 %5242
        %5244 = vrot.lane.b32.xlu0 %v5214, 16
        %v5245 = vpop.permute.xlu0 %5244
        %5246 = vrot.lane.b32.xlu0 %v5215, 16
        %v5247 = vpop.permute.xlu0 %5246
        %v5248 = vsel %vm1988, %v1979, %v5241
        %v5249 = vsel %vm1988, %v5241, %v5243
        %v5250 = vsel %vm1988, %v1979, %v5245
        %v5251 = vsel %vm1988, %v5245, %v5247
        %5256 = vst [vmem:[#allocation2 + $0xc0] sm:$0xff] %v5248
        %5257 = vst [vmem:[#allocation2 + $0xc8] sm:$0xff] %v5249
        %5258 = vst [vmem:[#allocation2 + $0xd0] sm:$0xff] %v5250
        %5259 = vst [vmem:[#allocation2 + $0xd8] sm:$0xff] %v5251
        %5260 = vst [vmem:[#allocation2 + $0x160] sm:$0xff] %v5212
        %5261 = vst [vmem:[#allocation2 + $0x168] sm:$0xff] %v5213
        %5262 = vst [vmem:[#allocation2 + $0x170] sm:$0xff] %v5214
        %5263 = vst [vmem:[#allocation2 + $0x178] sm:$0xff] %v5215
        %5264 = vrot.lane.b32.xlu0 %v5212, 112
        %v5265 = vpop.permute.xlu0 %5264
        %5266 = vrot.lane.b32.xlu0 %v5213, 112
        %v5267 = vpop.permute.xlu0 %5266
        %5268 = vrot.lane.b32.xlu0 %v5214, 112
        %v5269 = vpop.permute.xlu0 %5268
        %5270 = vrot.lane.b32.xlu0 %v5215, 112
        %v5271 = vpop.permute.xlu0 %5270
        %v5272 = vsel %vm2015, %v5265, %v5267
        %v5273 = vsel %vm2015, %v5267, %v2010
        %v5274 = vsel %vm2015, %v5269, %v5271
        %v5275 = vsel %vm2015, %v5271, %v2010
        %5280 = vst [vmem:[#allocation2 + $0x200] sm:$0xff] %v5272
        %5281 = vst [vmem:[#allocation2 + $0x208] sm:$0xff] %v5273
        %5282 = vst [vmem:[#allocation2 + $0x210] sm:$0xff] %v5274
        %5283 = vst [vmem:[#allocation2 + $0x218] sm:$0xff] %v5275
        %5284 = vrot.lane.b32.xlu0 %v5212, 96
        %v5285 = vpop.permute.xlu0 %5284
        %5286 = vrot.lane.b32.xlu0 %v5213, 96
        %v5287 = vpop.permute.xlu0 %5286
        %5288 = vrot.lane.b32.xlu0 %v5214, 96
        %v5289 = vpop.permute.xlu0 %5288
        %5290 = vrot.lane.b32.xlu0 %v5215, 96
        %v5291 = vpop.permute.xlu0 %5290
        %v5292 = vsel %vm2038, %v5285, %v5287
        %v5293 = vsel %vm2038, %v5287, %v2033
        %v5294 = vsel %vm2038, %v5289, %v5291
        %v5295 = vsel %vm2038, %v5291, %v2033
        %5300 = vst [vmem:[#allocation2 + $0x2a0] sm:$0xff] %v5292
        %5301 = vst [vmem:[#allocation2 + $0x2a8] sm:$0xff] %v5293
        %5302 = vst [vmem:[#allocation2 + $0x2b0] sm:$0xff] %v5294
        %5303 = vst [vmem:[#allocation2 + $0x2b8] sm:$0xff] %v5295
        %v5304 = vmul.bf16 %v5084, %v1229
        %v5305 = vmul.bf16 %v5085, %v1230
        %v5306 = vmul.bf16 %v5086, %v1229
        %v5307 = vmul.bf16 %v5087, %v1230
        %5312 = vrot.lane.b32.xlu0 %v5304, 32
        %v5313 = vpop.permute.xlu0 %5312
        %5314 = vrot.lane.b32.xlu0 %v5305, 32
        %v5315 = vpop.permute.xlu0 %5314
        %5316 = vrot.lane.b32.xlu0 %v5306, 32
        %v5317 = vpop.permute.xlu0 %5316
        %5318 = vrot.lane.b32.xlu0 %v5307, 32
        %v5319 = vpop.permute.xlu0 %5318
        %v5320 = vsel %vm1965, %v1956, %v5313
        %v5321 = vsel %vm1965, %v5313, %v5315
        %v5322 = vsel %vm1965, %v1956, %v5317
        %v5323 = vsel %vm1965, %v5317, %v5319
        %5328 = vst [vmem:[#allocation2 + $0x40] sm:$0xff] %v5320
        %5329 = vst [vmem:[#allocation2 + $0x48] sm:$0xff] %v5321
        %5330 = vst [vmem:[#allocation2 + $0x50] sm:$0xff] %v5322
        %5331 = vst [vmem:[#allocation2 + $0x58] sm:$0xff] %v5323
        %5332 = vrot.lane.b32.xlu0 %v5304, 16
        %v5333 = vpop.permute.xlu0 %5332
        %5334 = vrot.lane.b32.xlu0 %v5305, 16
        %v5335 = vpop.permute.xlu0 %5334
        %5336 = vrot.lane.b32.xlu0 %v5306, 16
        %v5337 = vpop.permute.xlu0 %5336
        %5338 = vrot.lane.b32.xlu0 %v5307, 16
        %v5339 = vpop.permute.xlu0 %5338
        %v5340 = vsel %vm1988, %v1979, %v5333
        %v5341 = vsel %vm1988, %v5333, %v5335
        %v5342 = vsel %vm1988, %v1979, %v5337
        %v5343 = vsel %vm1988, %v5337, %v5339
        %5348 = vst [vmem:[#allocation2 + $0xe0] sm:$0xff] %v5340
        %5349 = vst [vmem:[#allocation2 + $0xe8] sm:$0xff] %v5341
        %5350 = vst [vmem:[#allocation2 + $0xf0] sm:$0xff] %v5342
        %5351 = vst [vmem:[#allocation2 + $0xf8] sm:$0xff] %v5343
        %5352 = vst [vmem:[#allocation2 + $0x180] sm:$0xff] %v5304
        %5353 = vst [vmem:[#allocation2 + $0x188] sm:$0xff] %v5305
        %5354 = vst [vmem:[#allocation2 + $0x190] sm:$0xff] %v5306
        %5355 = vst [vmem:[#allocation2 + $0x198] sm:$0xff] %v5307
        %5356 = vrot.lane.b32.xlu0 %v5304, 112
        %v5357 = vpop.permute.xlu0 %5356
        %5358 = vrot.lane.b32.xlu0 %v5305, 112
        %v5359 = vpop.permute.xlu0 %5358
        %5360 = vrot.lane.b32.xlu0 %v5306, 112
        %v5361 = vpop.permute.xlu0 %5360
        %5362 = vrot.lane.b32.xlu0 %v5307, 112
        %v5363 = vpop.permute.xlu0 %5362
        %v5364 = vsel %vm2015, %v5357, %v5359
        %v5365 = vsel %vm2015, %v5359, %v2010
        %v5366 = vsel %vm2015, %v5361, %v5363
        %v5367 = vsel %vm2015, %v5363, %v2010
        %5372 = vst [vmem:[#allocation2 + $0x220] sm:$0xff] %v5364
        %5373 = vst [vmem:[#allocation2 + $0x228] sm:$0xff] %v5365
        %5374 = vst [vmem:[#allocation2 + $0x230] sm:$0xff] %v5366
        %5375 = vst [vmem:[#allocation2 + $0x238] sm:$0xff] %v5367
        %5376 = vrot.lane.b32.xlu0 %v5304, 96
        %v5377 = vpop.permute.xlu0 %5376
        %5378 = vrot.lane.b32.xlu0 %v5305, 96
        %v5379 = vpop.permute.xlu0 %5378
        %5380 = vrot.lane.b32.xlu0 %v5306, 96
        %v5381 = vpop.permute.xlu0 %5380
        %5382 = vrot.lane.b32.xlu0 %v5307, 96
        %v5383 = vpop.permute.xlu0 %5382
        %v5384 = vsel %vm2038, %v5377, %v5379
        %v5385 = vsel %vm2038, %v5379, %v2033
        %v5386 = vsel %vm2038, %v5381, %v5383
        %v5387 = vsel %vm2038, %v5383, %v2033
        %5392 = vst [vmem:[#allocation2 + $0x2c0] sm:$0xff] %v5384
        %5393 = vst [vmem:[#allocation2 + $0x2c8] sm:$0xff] %v5385
        %5394 = vst [vmem:[#allocation2 + $0x2d0] sm:$0xff] %v5386
        %5395 = vst [vmem:[#allocation2 + $0x2d8] sm:$0xff] %v5387
        %v5396 = vmul.bf16 %v5084, %v2270
        %v5397 = vmul.bf16 %v5085, %v2273
        %v5398 = vmul.bf16 %v5086, %v2270
        %v5399 = vmul.bf16 %v5087, %v2273
        %5404 = vrot.lane.b32.xlu0 %v5396, 127
        %v5405 = vpop.permute.xlu0 %5404
        %5406 = vrot.lane.b32.xlu0 %v5397, 127
        %v5407 = vpop.permute.xlu0 %5406
        %5408 = vrot.lane.b32.xlu0 %v5398, 127
        %v5409 = vpop.permute.xlu0 %5408
        %5410 = vrot.lane.b32.xlu0 %v5399, 127
        %v5411 = vpop.permute.xlu0 %5410
        %v5412 = vsel %vm2057, %v5405, %v5407
        %v5413 = vsel %vm2057, %v5407, %v2292
        %v5414 = vsel %vm2057, %v5409, %v5411
        %v5415 = vsel %vm2057, %v5411, %v2292
        %5420 = vrot.lane.b32.xlu0 %v5412, 32
        %v5421 = vpop.permute.xlu0 %5420
        %5422 = vrot.lane.b32.xlu0 %v5413, 32
        %v5423 = vpop.permute.xlu0 %5422
        %5424 = vrot.lane.b32.xlu0 %v5414, 32
        %v5425 = vpop.permute.xlu0 %5424
        %5426 = vrot.lane.b32.xlu0 %v5415, 32
        %v5427 = vpop.permute.xlu0 %5426
        %v5428 = vsel %vm1965, %v1956, %v5421
        %v5429 = vsel %vm1965, %v5421, %v5423
        %v5430 = vsel %vm1965, %v1956, %v5425
        %v5431 = vsel %vm1965, %v5425, %v5427
        %5436 = vst [vmem:[#allocation2 + $0x60] sm:$0xff] %v5428
        %5437 = vst [vmem:[#allocation2 + $0x68] sm:$0xff] %v5429
        %5438 = vst [vmem:[#allocation2 + $0x70] sm:$0xff] %v5430
        %5439 = vst [vmem:[#allocation2 + $0x78] sm:$0xff] %v5431
        %5440 = vrot.lane.b32.xlu0 %v5412, 16
        %v5441 = vpop.permute.xlu0 %5440
        %5442 = vrot.lane.b32.xlu0 %v5413, 16
        %v5443 = vpop.permute.xlu0 %5442
        %5444 = vrot.lane.b32.xlu0 %v5414, 16
        %v5445 = vpop.permute.xlu0 %5444
        %5446 = vrot.lane.b32.xlu0 %v5415, 16
        %v5447 = vpop.permute.xlu0 %5446
        %v5448 = vsel %vm1988, %v1979, %v5441
        %v5449 = vsel %vm1988, %v5441, %v5443
        %v5450 = vsel %vm1988, %v1979, %v5445
        %v5451 = vsel %vm1988, %v5445, %v5447
        %5456 = vst [vmem:[#allocation2 + $0x100] sm:$0xff] %v5448
        %5457 = vst [vmem:[#allocation2 + $0x108] sm:$0xff] %v5449
        %5458 = vst [vmem:[#allocation2 + $0x110] sm:$0xff] %v5450
        %5459 = vst [vmem:[#allocation2 + $0x118] sm:$0xff] %v5451
        %5460 = vst [vmem:[#allocation2 + $0x1a0] sm:$0xff] %v5412
        %5461 = vst [vmem:[#allocation2 + $0x1a8] sm:$0xff] %v5413
        %5462 = vst [vmem:[#allocation2 + $0x1b0] sm:$0xff] %v5414
        %5463 = vst [vmem:[#allocation2 + $0x1b8] sm:$0xff] %v5415
        %5464 = vrot.lane.b32.xlu0 %v5412, 112
        %v5465 = vpop.permute.xlu0 %5464
        %5466 = vrot.lane.b32.xlu0 %v5413, 112
        %v5467 = vpop.permute.xlu0 %5466
        %5468 = vrot.lane.b32.xlu0 %v5414, 112
        %v5469 = vpop.permute.xlu0 %5468
        %5470 = vrot.lane.b32.xlu0 %v5415, 112
        %v5471 = vpop.permute.xlu0 %5470
        %v5472 = vsel %vm2015, %v5465, %v5467
        %v5473 = vsel %vm2015, %v5467, %v2010
        %v5474 = vsel %vm2015, %v5469, %v5471
        %v5475 = vsel %vm2015, %v5471, %v2010
        %5480 = vst [vmem:[#allocation2 + $0x240] sm:$0xff] %v5472
        %5481 = vst [vmem:[#allocation2 + $0x248] sm:$0xff] %v5473
        %5482 = vst [vmem:[#allocation2 + $0x250] sm:$0xff] %v5474
        %5483 = vst [vmem:[#allocation2 + $0x258] sm:$0xff] %v5475
        %5484 = vrot.lane.b32.xlu0 %v5412, 96
        %v5485 = vpop.permute.xlu0 %5484
        %5486 = vrot.lane.b32.xlu0 %v5413, 96
        %v5487 = vpop.permute.xlu0 %5486
        %5488 = vrot.lane.b32.xlu0 %v5414, 96
        %v5489 = vpop.permute.xlu0 %5488
        %5490 = vrot.lane.b32.xlu0 %v5415, 96
        %v5491 = vpop.permute.xlu0 %5490
        %v5492 = vsel %vm2038, %v5485, %v5487
        %v5493 = vsel %vm2038, %v5487, %v2033
        %v5494 = vsel %vm2038, %v5489, %v5491
        %v5495 = vsel %vm2038, %v5491, %v2033
        %5500 = vst [vmem:[#allocation2 + $0x2e0] sm:$0xff] %v5492
        %5501 = vst [vmem:[#allocation2 + $0x2e8] sm:$0xff] %v5493
        %5502 = vst [vmem:[#allocation2 + $0x2f0] sm:$0xff] %v5494
        %5503 = vst [vmem:[#allocation2 + $0x2f8] sm:$0xff] %v5495
        %v5504 = vmul.bf16 %v5084, %v2392
        %v5505 = vmul.bf16 %v5085, %v2395
        %v5506 = vmul.bf16 %v5086, %v2392
        %v5507 = vmul.bf16 %v5087, %v2395
        %5512 = vrot.lane.b32.xlu0 %v5504, 126
        %v5513 = vpop.permute.xlu0 %5512
        %5514 = vrot.lane.b32.xlu0 %v5505, 126
        %v5515 = vpop.permute.xlu0 %5514
        %5516 = vrot.lane.b32.xlu0 %v5506, 126
        %v5517 = vpop.permute.xlu0 %5516
        %5518 = vrot.lane.b32.xlu0 %v5507, 126
        %v5519 = vpop.permute.xlu0 %5518
        %v5520 = vsel %vm1920, %v5513, %v5515
        %v5521 = vsel %vm1920, %v5515, %v2414
        %v5522 = vsel %vm1920, %v5517, %v5519
        %v5523 = vsel %vm1920, %v5519, %v2414
        %5528 = vrot.lane.b32.xlu0 %v5520, 32
        %v5529 = vpop.permute.xlu0 %5528
        %5530 = vrot.lane.b32.xlu0 %v5521, 32
        %v5531 = vpop.permute.xlu0 %5530
        %5532 = vrot.lane.b32.xlu0 %v5522, 32
        %v5533 = vpop.permute.xlu0 %5532
        %5534 = vrot.lane.b32.xlu0 %v5523, 32
        %v5535 = vpop.permute.xlu0 %5534
        %v5536 = vsel %vm1965, %v1956, %v5529
        %v5537 = vsel %vm1965, %v5529, %v5531
        %v5538 = vsel %vm1965, %v1956, %v5533
        %v5539 = vsel %vm1965, %v5533, %v5535
        %5544 = vst [vmem:[#allocation2 + $0x80] sm:$0xff] %v5536
        %5545 = vst [vmem:[#allocation2 + $0x88] sm:$0xff] %v5537
        %5546 = vst [vmem:[#allocation2 + $0x90] sm:$0xff] %v5538
        %5547 = vst [vmem:[#allocation2 + $0x98] sm:$0xff] %v5539
        %5548 = vrot.lane.b32.xlu0 %v5520, 16
        %v5549 = vpop.permute.xlu0 %5548
        %5550 = vrot.lane.b32.xlu0 %v5521, 16
        %v5551 = vpop.permute.xlu0 %5550
        %5552 = vrot.lane.b32.xlu0 %v5522, 16
        %v5553 = vpop.permute.xlu0 %5552
        %5554 = vrot.lane.b32.xlu0 %v5523, 16
        %v5555 = vpop.permute.xlu0 %5554
        %v5556 = vsel %vm1988, %v1979, %v5549
        %v5557 = vsel %vm1988, %v5549, %v5551
        %v5558 = vsel %vm1988, %v1979, %v5553
        %v5559 = vsel %vm1988, %v5553, %v5555
        %5564 = vst [vmem:[#allocation2 + $0x120] sm:$0xff] %v5556
        %5565 = vst [vmem:[#allocation2 + $0x128] sm:$0xff] %v5557
        %5566 = vst [vmem:[#allocation2 + $0x130] sm:$0xff] %v5558
        %5567 = vst [vmem:[#allocation2 + $0x138] sm:$0xff] %v5559
        %5568 = vst [vmem:[#allocation2 + $0x1c0] sm:$0xff] %v5520
        %5569 = vst [vmem:[#allocation2 + $0x1c8] sm:$0xff] %v5521
        %5570 = vst [vmem:[#allocation2 + $0x1d0] sm:$0xff] %v5522
        %5571 = vst [vmem:[#allocation2 + $0x1d8] sm:$0xff] %v5523
        %5572 = vrot.lane.b32.xlu0 %v5520, 112
        %v5573 = vpop.permute.xlu0 %5572
        %5574 = vrot.lane.b32.xlu0 %v5521, 112
        %v5575 = vpop.permute.xlu0 %5574
        %5576 = vrot.lane.b32.xlu0 %v5522, 112
        %v5577 = vpop.permute.xlu0 %5576
        %5578 = vrot.lane.b32.xlu0 %v5523, 112
        %v5579 = vpop.permute.xlu0 %5578
        %v5580 = vsel %vm2015, %v5573, %v5575
        %v5581 = vsel %vm2015, %v5575, %v2010
        %v5582 = vsel %vm2015, %v5577, %v5579
        %v5583 = vsel %vm2015, %v5579, %v2010
        %5588 = vst [vmem:[#allocation2 + $0x260] sm:$0xff] %v5580
        %5589 = vst [vmem:[#allocation2 + $0x268] sm:$0xff] %v5581
        %5590 = vst [vmem:[#allocation2 + $0x270] sm:$0xff] %v5582
        %5591 = vst [vmem:[#allocation2 + $0x278] sm:$0xff] %v5583
        %5592 = vrot.lane.b32.xlu0 %v5520, 96
        %v5593 = vpop.permute.xlu0 %5592
        %5594 = vrot.lane.b32.xlu0 %v5521, 96
        %v5595 = vpop.permute.xlu0 %5594
        %5596 = vrot.lane.b32.xlu0 %v5522, 96
        %v5597 = vpop.permute.xlu0 %5596
        %5598 = vrot.lane.b32.xlu0 %v5523, 96
        %v5599 = vpop.permute.xlu0 %5598
        %v5600 = vsel %vm2038, %v5593, %v5595
        %v5601 = vsel %vm2038, %v5595, %v2033
        %v5602 = vsel %vm2038, %v5597, %v5599
        %v5603 = vsel %vm2038, %v5599, %v2033
        %5608 = vst [vmem:[#allocation2 + $0x300] sm:$0xff] %v5600
        %5609 = vst [vmem:[#allocation2 + $0x308] sm:$0xff] %v5601
        %5610 = vst [vmem:[#allocation2 + $0x310] sm:$0xff] %v5602
        %5611 = vst [vmem:[#allocation2 + $0x318] sm:$0xff] %v5603
        %s5612 = scalar_lea.vmem %s43, 112
        %v5613 = vld [vmem:[%s5612] sm:$0xff]
        %v5614 = vld [vmem:[%s5612 + $0x8] sm:$0xff]
        %v5615 = vld [vmem:[%s5612 + $0x10] sm:$0xff]
        %v5616 = vld [vmem:[%s5612 + $0x18] sm:$0xf]
        %v5617 = vld [vmem:[%s5612 + $0x1c] sm:$0xff]
        %v5618 = vld [vmem:[%s5612 + $0x24] sm:$0xff]
        %v5619 = vld [vmem:[%s5612 + $0x2c] sm:$0xff]
        %v5620 = vld [vmem:[%s5612 + $0x34] sm:$0xf]
        %v5621 = vld [vmem:[%s5612 + $0x38] sm:$0xff]
        %v5622 = vld [vmem:[%s5612 + $0x40] sm:$0xff]
        %v5623 = vld [vmem:[%s5612 + $0x48] sm:$0xff]
        %v5624 = vld [vmem:[%s5612 + $0x50] sm:$0xf]
        %v5625 = vld [vmem:[%s5612 + $0x54] sm:$0xff]
        %v5626 = vld [vmem:[%s5612 + $0x5c] sm:$0xff]
        %v5627 = vld [vmem:[%s5612 + $0x64] sm:$0xff]
        %v5628 = vld [vmem:[%s5612 + $0x6c] sm:$0xf]
        %v5629 = vld [vmem:[#allocation2] sm:$0xff]
        %v5630 = vld [vmem:[#allocation2 + $0x8] sm:$0xff]
        %v5631 = vld [vmem:[#allocation2 + $0x10] sm:$0xff]
        %v5632 = vld [vmem:[#allocation2 + $0x18] sm:$0xff]
        %v5633 = vld [vmem:[#allocation2 + $0x20] sm:$0xff]
        %v5634 = vld [vmem:[#allocation2 + $0x28] sm:$0xff]
        %v5635 = vld [vmem:[#allocation2 + $0x30] sm:$0xff]
        %v5636 = vld [vmem:[#allocation2 + $0x38] sm:$0xff]
        %v5637 = vld [vmem:[#allocation2 + $0x40] sm:$0xff]
        %v5638 = vld [vmem:[#allocation2 + $0x48] sm:$0xff]
        %v5639 = vld [vmem:[#allocation2 + $0x50] sm:$0xff]
        %v5640 = vld [vmem:[#allocation2 + $0x58] sm:$0xff]
        %v5641 = vld [vmem:[#allocation2 + $0x60] sm:$0xff]
        %v5642 = vld [vmem:[#allocation2 + $0x68] sm:$0xff]
        %v5643 = vld [vmem:[#allocation2 + $0x70] sm:$0xff]
        %v5644 = vld [vmem:[#allocation2 + $0x78] sm:$0xff]
        %v5645 = vld [vmem:[#allocation2 + $0x80] sm:$0xff]
        %v5646 = vld [vmem:[#allocation2 + $0x88] sm:$0xff]
        %v5647 = vld [vmem:[#allocation2 + $0x90] sm:$0xff]
        %v5648 = vld [vmem:[#allocation2 + $0x98] sm:$0xff]
        %v5649 = vld [vmem:[#allocation2 + $0xa0] sm:$0xff]
        %v5650 = vld [vmem:[#allocation2 + $0xa8] sm:$0xff]
        %v5651 = vld [vmem:[#allocation2 + $0xb0] sm:$0xff]
        %v5652 = vld [vmem:[#allocation2 + $0xb8] sm:$0xff]
        %v5653 = vld [vmem:[#allocation2 + $0xc0] sm:$0xff]
        %v5654 = vld [vmem:[#allocation2 + $0xc8] sm:$0xff]
        %v5655 = vld [vmem:[#allocation2 + $0xd0] sm:$0xff]
        %v5656 = vld [vmem:[#allocation2 + $0xd8] sm:$0xff]
        %v5657 = vld [vmem:[#allocation2 + $0xe0] sm:$0xff]
        %v5658 = vld [vmem:[#allocation2 + $0xe8] sm:$0xff]
        %v5659 = vld [vmem:[#allocation2 + $0xf0] sm:$0xff]
        %v5660 = vld [vmem:[#allocation2 + $0xf8] sm:$0xff]
        %v5661 = vld [vmem:[#allocation2 + $0x100] sm:$0xff]
        %v5662 = vld [vmem:[#allocation2 + $0x108] sm:$0xff]
        %v5663 = vld [vmem:[#allocation2 + $0x110] sm:$0xff]
        %v5664 = vld [vmem:[#allocation2 + $0x118] sm:$0xff]
        %v5665 = vld [vmem:[#allocation2 + $0x120] sm:$0xff]
        %v5666 = vld [vmem:[#allocation2 + $0x128] sm:$0xff]
        %v5667 = vld [vmem:[#allocation2 + $0x130] sm:$0xff]
        %v5668 = vld [vmem:[#allocation2 + $0x138] sm:$0xff]
        %v5669 = vld [vmem:[#allocation2 + $0x140] sm:$0xff]
        %v5670 = vld [vmem:[#allocation2 + $0x148] sm:$0xff]
        %v5671 = vld [vmem:[#allocation2 + $0x150] sm:$0xff]
        %v5672 = vld [vmem:[#allocation2 + $0x158] sm:$0xff]
        %v5673 = vld [vmem:[#allocation2 + $0x160] sm:$0xff]
        %v5674 = vld [vmem:[#allocation2 + $0x168] sm:$0xff]
        %v5675 = vld [vmem:[#allocation2 + $0x170] sm:$0xff]
        %v5676 = vld [vmem:[#allocation2 + $0x178] sm:$0xff]
        %v5677 = vld [vmem:[#allocation2 + $0x180] sm:$0xff]
        %v5678 = vld [vmem:[#allocation2 + $0x188] sm:$0xff]
        %v5679 = vld [vmem:[#allocation2 + $0x190] sm:$0xff]
        %v5680 = vld [vmem:[#allocation2 + $0x198] sm:$0xff]
        %v5681 = vld [vmem:[#allocation2 + $0x1a0] sm:$0xff]
        %v5682 = vld [vmem:[#allocation2 + $0x1a8] sm:$0xff]
        %v5683 = vld [vmem:[#allocation2 + $0x1b0] sm:$0xff]
        %v5684 = vld [vmem:[#allocation2 + $0x1b8] sm:$0xff]
        %v5685 = vld [vmem:[#allocation2 + $0x1c0] sm:$0xff]
        %v5686 = vld [vmem:[#allocation2 + $0x1c8] sm:$0xff]
        %v5687 = vld [vmem:[#allocation2 + $0x1d0] sm:$0xff]
        %v5688 = vld [vmem:[#allocation2 + $0x1d8] sm:$0xff]
        %v5689 = vld [vmem:[#allocation2 + $0x1e0] sm:$0xff]
        %v5690 = vld [vmem:[#allocation2 + $0x1e8] sm:$0xff]
        %v5691 = vld [vmem:[#allocation2 + $0x1f0] sm:$0xff]
        %v5692 = vld [vmem:[#allocation2 + $0x1f8] sm:$0xff]
        %v5693 = vld [vmem:[#allocation2 + $0x200] sm:$0xff]
        %v5694 = vld [vmem:[#allocation2 + $0x208] sm:$0xff]
        %v5695 = vld [vmem:[#allocation2 + $0x210] sm:$0xff]
        %v5696 = vld [vmem:[#allocation2 + $0x218] sm:$0xff]
        %v5697 = vld [vmem:[#allocation2 + $0x220] sm:$0xff]
        %v5698 = vld [vmem:[#allocation2 + $0x228] sm:$0xff]
        %v5699 = vld [vmem:[#allocation2 + $0x230] sm:$0xff]
        %v5700 = vld [vmem:[#allocation2 + $0x238] sm:$0xff]
        %v5701 = vld [vmem:[#allocation2 + $0x240] sm:$0xff]
        %v5702 = vld [vmem:[#allocation2 + $0x248] sm:$0xff]
        %v5703 = vld [vmem:[#allocation2 + $0x250] sm:$0xff]
        %v5704 = vld [vmem:[#allocation2 + $0x258] sm:$0xff]
        %v5705 = vld [vmem:[#allocation2 + $0x260] sm:$0xff]
        %v5706 = vld [vmem:[#allocation2 + $0x268] sm:$0xff]
        %v5707 = vld [vmem:[#allocation2 + $0x270] sm:$0xff]
        %v5708 = vld [vmem:[#allocation2 + $0x278] sm:$0xff]
        %v5709 = vld [vmem:[#allocation2 + $0x280] sm:$0xff]
        %v5710 = vld [vmem:[#allocation2 + $0x288] sm:$0xff]
        %v5711 = vld [vmem:[#allocation2 + $0x290] sm:$0xff]
        %v5712 = vld [vmem:[#allocation2 + $0x298] sm:$0xff]
        %v5713 = vld [vmem:[#allocation2 + $0x2a0] sm:$0xff]
        %v5714 = vld [vmem:[#allocation2 + $0x2a8] sm:$0xff]
        %v5715 = vld [vmem:[#allocation2 + $0x2b0] sm:$0xff]
        %v5716 = vld [vmem:[#allocation2 + $0x2b8] sm:$0xff]
        %v5717 = vld [vmem:[#allocation2 + $0x2c0] sm:$0xff]
        %v5718 = vld [vmem:[#allocation2 + $0x2c8] sm:$0xff]
        %v5719 = vld [vmem:[#allocation2 + $0x2d0] sm:$0xff]
        %v5720 = vld [vmem:[#allocation2 + $0x2d8] sm:$0xff]
        %v5721 = vld [vmem:[#allocation2 + $0x2e0] sm:$0xff]
        %v5722 = vld [vmem:[#allocation2 + $0x2e8] sm:$0xff]
        %v5723 = vld [vmem:[#allocation2 + $0x2f0] sm:$0xff]
        %v5724 = vld [vmem:[#allocation2 + $0x2f8] sm:$0xff]
        %v5725 = vld [vmem:[#allocation2 + $0x300] sm:$0xff]
        %v5726 = vld [vmem:[#allocation2 + $0x308] sm:$0xff]
        %v5727 = vld [vmem:[#allocation2 + $0x310] sm:$0xff]
        %v5728 = vld [vmem:[#allocation2 + $0x318] sm:$0xff]
        %5730 = vset.pattern.permute.xlu0 0
        %5731 = vperm.xlu0 %5730, %v5080
        %v5732 = vpop.permute.xlu0 %5731
        %5735 = vset.pattern.permute.xlu0 0
        %5736 = vperm.xlu0 %5735, %v5081
        %v5737 = vpop.permute.xlu0 %5736
        %5740 = vset.pattern.permute.xlu0 0
        %5741 = vperm.xlu0 %5740, %v5082
        %v5742 = vpop.permute.xlu0 %5741
        %5745 = vset.pattern.permute.xlu0 0
        %5746 = vperm.xlu0 %5745, %v5083
        %v5747 = vpop.permute.xlu0 %5746
        %v5765 = vunpack.c.l.b16 %v5613
        %v5766 = vunpack.c.h.b16 %v5613
        %v5767 = vunpack.c.l.b16 %v5614
        %v5768 = vunpack.c.h.b16 %v5614
        %v5769 = vunpack.c.l.b16 %v5615
        %v5770 = vunpack.c.h.b16 %v5615
        %v5771 = vunpack.c.l.b16 %v5616
        %v5772 = vunpack.c.l.b16 %v5617
        %v5773 = vunpack.c.h.b16 %v5617
        %v5774 = vunpack.c.l.b16 %v5618
        %v5775 = vunpack.c.h.b16 %v5618
        %v5776 = vunpack.c.l.b16 %v5619
        %v5777 = vunpack.c.h.b16 %v5619
        %v5778 = vunpack.c.l.b16 %v5620
        %v5779 = vunpack.c.l.b16 %v5621
        %v5780 = vunpack.c.h.b16 %v5621
        %v5781 = vunpack.c.l.b16 %v5622
        %v5782 = vunpack.c.h.b16 %v5622
        %v5783 = vunpack.c.l.b16 %v5623
        %v5784 = vunpack.c.h.b16 %v5623
        %v5785 = vunpack.c.l.b16 %v5624
        %v5786 = vunpack.c.l.b16 %v5625
        %v5787 = vunpack.c.h.b16 %v5625
        %v5788 = vunpack.c.l.b16 %v5626
        %v5789 = vunpack.c.h.b16 %v5626
        %v5790 = vunpack.c.l.b16 %v5627
        %v5791 = vunpack.c.h.b16 %v5627
        %v5792 = vunpack.c.l.b16 %v5628
        %v5793 = vpack.c.b16 %v5772, %v5765
        %v5794 = vpack.c.b16 %v5773, %v5766
        %v5795 = vpack.c.b16 %v5774, %v5767
        %v5796 = vpack.c.b16 %v5775, %v5768
        %v5797 = vpack.c.b16 %v5776, %v5769
        %v5798 = vpack.c.b16 %v5777, %v5770
        %v5799 = vpack.c.b16 %v5778, %v5771
        %v5800 = vpack.c.b16 %v5786, %v5779
        %v5801 = vpack.c.b16 %v5787, %v5780
        %v5802 = vpack.c.b16 %v5788, %v5781
        %v5803 = vpack.c.b16 %v5789, %v5782
        %v5804 = vpack.c.b16 %v5790, %v5783
        %v5805 = vpack.c.b16 %v5791, %v5784
        %v5806 = vpack.c.b16 %v5792, %v5785
        %v5820 = vsel %vm1780, %v5799, 0
        %v5823 = vsel %vm1780, %v5806, 0
        %5825 = vmatprep.subr.bf16.mxu0 %v5630
        %5826 = vmatpush1.bf16.msra.mxu0 %v5629
        %5827 = vmatprep.subr.bf16.mxu0 %v5632
        %5828 = vmatpush1.bf16.msra.mxu0 %v5631
        %5829 = vmatprep.subr.bf16.mxu0 %v5634
        %5830 = vmatpush1.bf16.msra.mxu0 %v5633
        %5831 = vmatprep.subr.bf16.mxu0 %v5636
        %5832 = vmatpush1.bf16.msra.mxu0 %v5635
        %5833 = vmatprep.subr.bf16.mxu0 %v5638
        %5834 = vmatpush1.bf16.msra.mxu0 %v5637
        %5835 = vmatprep.subr.bf16.mxu0 %v5640
        %5836 = vmatpush1.bf16.msra.mxu0 %v5639
        %5837 = vmatprep.subr.bf16.mxu0 %v5642
        %5838 = vmatpush1.bf16.msra.mxu0 %v5641
        %5839 = vmatprep.subr.bf16.mxu0 %v5644
        %5840 = vmatpush1.bf16.msra.mxu0 %v5643
        %5841 = vmatprep.subr.bf16.mxu0 %v5646
        %5842 = vmatpush1.bf16.msra.mxu0 %v5645
        %5843 = vmatprep.subr.bf16.mxu0 %v5648
        %5844 = vmatpush1.bf16.msra.mxu0 %v5647
        %5845 = vmatprep.subr.bf16.mxu0 %v5650
        %5846 = vmatpush1.bf16.msra.mxu0 %v5649
        %5847 = vmatprep.subr.bf16.mxu0 %v5652
        %5848 = vmatpush1.bf16.msra.mxu0 %v5651
        %5849 = vmatprep.subr.bf16.mxu0 %v5654
        %5850 = vmatpush1.bf16.msra.mxu0 %v5653
        %5851 = vmatprep.subr.bf16.mxu0 %v5656
        %5852 = vmatpush1.bf16.msra.mxu0 %v5655
        %5853 = vmatprep.subr.bf16.mxu0 %v5658
        %5854 = vmatpush1.bf16.msra.mxu0 %v5657
        %5855 = vmatprep.subr.bf16.mxu0 %v5660
        %5856 = vmatpush1.bf16.msra.mxu0 %v5659
        %5857 = vmatprep.mubr.bf16.mxu0 %v5794
        %5858 = vmatmul.mubr.bf16.gmra.mrb[0].mxu0 %v5793
        %v5859 = vpop.f32.mrb[0].mxu0
        %v5860 = vadd.f32 %v5732, %v5859
        %v5861 = vpop.f32.mrb[0].mxu0
        %v5862 = vadd.f32 %v5732, %v5861
        %v5863 = vpop.f32.mrb[0].mxu0
        %v5864 = vadd.f32 %v5737, %v5863
        %v5865 = vpop.f32.mrb[0].mxu0
        %v5866 = vadd.f32 %v5737, %v5865
        %5867 = vmatprep.mubr.bf16.mxu0 %v5801
        %5868 = vmatmul.mubr.bf16.gmra.mrb[0].mxu0 %v5800
        %v5869 = vpop.f32.mrb[0].mxu0
        %v5870 = vadd.f32 %v5742, %v5869
        %v5871 = vpop.f32.mrb[0].mxu0
        %v5872 = vadd.f32 %v5742, %v5871
        %v5873 = vpop.f32.mrb[0].mxu0
        %v5874 = vadd.f32 %v5747, %v5873
        %v5875 = vpop.f32.mrb[0].mxu0
        %v5876 = vadd.f32 %v5747, %v5875
        %5877 = vdwg.mxu0
        %5878 = vmatprep.subr.bf16.mxu0 %v5662
        %5879 = vmatpush1.bf16.msra.mxu0 %v5661
        %5880 = vmatprep.subr.bf16.mxu0 %v5664
        %5881 = vmatpush1.bf16.msra.mxu0 %v5663
        %5882 = vmatprep.subr.bf16.mxu0 %v5666
        %5883 = vmatpush1.bf16.msra.mxu0 %v5665
        %5884 = vmatprep.subr.bf16.mxu0 %v5668
        %5885 = vmatpush1.bf16.msra.mxu0 %v5667
        %5886 = vmatprep.subr.bf16.mxu0 %v5670
        %5887 = vmatpush1.bf16.msra.mxu0 %v5669
        %5888 = vmatprep.subr.bf16.mxu0 %v5672
        %5889 = vmatpush1.bf16.msra.mxu0 %v5671
        %5890 = vmatprep.subr.bf16.mxu0 %v5674
        %5891 = vmatpush1.bf16.msra.mxu0 %v5673
        %5892 = vmatprep.subr.bf16.mxu0 %v5676
        %5893 = vmatpush1.bf16.msra.mxu0 %v5675
        %5894 = vmatprep.subr.bf16.mxu0 %v5678
        %5895 = vmatpush1.bf16.msra.mxu0 %v5677
        %5896 = vmatprep.subr.bf16.mxu0 %v5680
        %5897 = vmatpush1.bf16.msra.mxu0 %v5679
        %5898 = vmatprep.subr.bf16.mxu0 %v5682
        %5899 = vmatpush1.bf16.msra.mxu0 %v5681
        %5900 = vmatprep.subr.bf16.mxu0 %v5684
        %5901 = vmatpush1.bf16.msra.mxu0 %v5683
        %5902 = vmatprep.subr.bf16.mxu0 %v5686
        %5903 = vmatpush1.bf16.msra.mxu0 %v5685
        %5904 = vmatprep.subr.bf16.mxu0 %v5688
        %5905 = vmatpush1.bf16.msra.mxu0 %v5687
        %5906 = vmatprep.subr.bf16.mxu0 %v5690
        %5907 = vmatpush1.bf16.msra.mxu0 %v5689
        %5908 = vmatprep.subr.bf16.mxu0 %v5692
        %5909 = vmatpush1.bf16.msra.mxu0 %v5691
        %5910 = vmatprep.mubr.bf16.mxu0 %v5796
        %5911 = vmatmul.mubr.bf16.gmra.mrb[0].mxu0 %v5795
        %v5912 = vpop.f32.mrb[0].mxu0
        %v5913 = vadd.f32 %v5860, %v5912
        %v5914 = vpop.f32.mrb[0].mxu0
        %v5915 = vadd.f32 %v5862, %v5914
        %v5916 = vpop.f32.mrb[0].mxu0
        %v5917 = vadd.f32 %v5864, %v5916
        %v5918 = vpop.f32.mrb[0].mxu0
        %v5919 = vadd.f32 %v5866, %v5918
        %5920 = vmatprep.mubr.bf16.mxu0 %v5803
        %5921 = vmatmul.mubr.bf16.gmra.mrb[0].mxu0 %v5802
        %v5922 = vpop.f32.mrb[0].mxu0
        %v5923 = vadd.f32 %v5870, %v5922
        %v5924 = vpop.f32.mrb[0].mxu0
        %v5925 = vadd.f32 %v5872, %v5924
        %v5926 = vpop.f32.mrb[0].mxu0
        %v5927 = vadd.f32 %v5874, %v5926
        %v5928 = vpop.f32.mrb[0].mxu0
        %v5929 = vadd.f32 %v5876, %v5928
        %5930 = vdwg.mxu0
        %5931 = vmatprep.subr.bf16.mxu0 %v5694
        %5932 = vmatpush1.bf16.msra.mxu0 %v5693
        %5933 = vmatprep.subr.bf16.mxu0 %v5696
        %5934 = vmatpush1.bf16.msra.mxu0 %v5695
        %5935 = vmatprep.subr.bf16.mxu0 %v5698
        %5936 = vmatpush1.bf16.msra.mxu0 %v5697
        %5937 = vmatprep.subr.bf16.mxu0 %v5700
        %5938 = vmatpush1.bf16.msra.mxu0 %v5699
        %5939 = vmatprep.subr.bf16.mxu0 %v5702
        %5940 = vmatpush1.bf16.msra.mxu0 %v5701
        %5941 = vmatprep.subr.bf16.mxu0 %v5704
        %5942 = vmatpush1.bf16.msra.mxu0 %v5703
        %5943 = vmatprep.subr.bf16.mxu0 %v5706
        %5944 = vmatpush1.bf16.msra.mxu0 %v5705
        %5945 = vmatprep.subr.bf16.mxu0 %v5708
        %5946 = vmatpush1.bf16.msra.mxu0 %v5707
        %5947 = vmatprep.subr.bf16.mxu0 %v5710
        %5948 = vmatpush1.bf16.msra.mxu0 %v5709
        %5949 = vmatprep.subr.bf16.mxu0 %v5712
        %5950 = vmatpush1.bf16.msra.mxu0 %v5711
        %5951 = vmatprep.subr.bf16.mxu0 %v5714
        %5952 = vmatpush1.bf16.msra.mxu0 %v5713
        %5953 = vmatprep.subr.bf16.mxu0 %v5716
        %5954 = vmatpush1.bf16.msra.mxu0 %v5715
        %5955 = vmatprep.subr.bf16.mxu0 %v5718
        %5956 = vmatpush1.bf16.msra.mxu0 %v5717
        %5957 = vmatprep.subr.bf16.mxu0 %v5720
        %5958 = vmatpush1.bf16.msra.mxu0 %v5719
        %5959 = vmatprep.subr.bf16.mxu0 %v5722
        %5960 = vmatpush1.bf16.msra.mxu0 %v5721
        %5961 = vmatprep.subr.bf16.mxu0 %v5724
        %5962 = vmatpush1.bf16.msra.mxu0 %v5723
        %5963 = vmatprep.mubr.bf16.mxu0 %v5798
        %5964 = vmatmul.mubr.bf16.gmra.mrb[0].mxu0 %v5797
        %v5965 = vpop.f32.mrb[0].mxu0
        %v5966 = vadd.f32 %v5913, %v5965
        %v5967 = vpop.f32.mrb[0].mxu0
        %v5968 = vadd.f32 %v5915, %v5967
        %v5969 = vpop.f32.mrb[0].mxu0
        %v5970 = vadd.f32 %v5917, %v5969
        %v5971 = vpop.f32.mrb[0].mxu0
        %v5972 = vadd.f32 %v5919, %v5971
        %5973 = vmatprep.mubr.bf16.mxu0 %v5805
        %5974 = vmatmul.mubr.bf16.gmra.mrb[0].mxu0 %v5804
        %v5975 = vpop.f32.mrb[0].mxu0
        %v5976 = vadd.f32 %v5923, %v5975
        %v5977 = vpop.f32.mrb[0].mxu0
        %v5978 = vadd.f32 %v5925, %v5977
        %v5979 = vpop.f32.mrb[0].mxu0
        %v5980 = vadd.f32 %v5927, %v5979
        %v5981 = vpop.f32.mrb[0].mxu0
        %v5982 = vadd.f32 %v5929, %v5981
        %5983 = vdwg.mxu0
        %5984 = vmatprep.subr.bf16.mxu0 %v5726
        %5985 = vmatpush1.bf16.msra.mxu0 %v5725
        %5986 = vmatprep.subr.bf16.mxu0 %v5728
        %5987 = vmatpush1.bf16.msra.mxu0 %v5727
        %5988 = vmatprep.subr.bf16.mxu0 0
        %5989 = vmatpush1.bf16.msra.mxu0 0
        %5990 = vmatprep.subr.bf16.mxu0 0
        %5991 = vmatpush1.bf16.msra.mxu0 0
        %5992 = vmatprep.subr.bf16.mxu0 0
        %5993 = vmatpush1.bf16.msra.mxu0 0
        %5994 = vmatprep.subr.bf16.mxu0 0
        %5995 = vmatpush1.bf16.msra.mxu0 0
        %5996 = vmatprep.subr.bf16.mxu0 0
        %5997 = vmatpush1.bf16.msra.mxu0 0
        %5998 = vmatprep.subr.bf16.mxu0 0
        %5999 = vmatpush1.bf16.msra.mxu0 0
        %6000 = vmatprep.subr.bf16.mxu0 0
        %6001 = vmatpush1.bf16.msra.mxu0 0
        %6002 = vmatprep.subr.bf16.mxu0 0
        %6003 = vmatpush1.bf16.msra.mxu0 0
        %6004 = vmatprep.subr.bf16.mxu0 0
        %6005 = vmatpush1.bf16.msra.mxu0 0
        %6006 = vmatprep.subr.bf16.mxu0 0
        %6007 = vmatpush1.bf16.msra.mxu0 0
        %6008 = vmatprep.subr.bf16.mxu0 0
        %6009 = vmatpush1.bf16.msra.mxu0 0
        %6010 = vmatprep.subr.bf16.mxu0 0
        %6011 = vmatpush1.bf16.msra.mxu0 0
        %6012 = vmatprep.subr.bf16.mxu0 0
        %6013 = vmatpush1.bf16.msra.mxu0 0
        %6014 = vmatprep.subr.bf16.mxu0 0
        %6015 = vmatpush1.bf16.msra.mxu0 0
        %6016 = vmatprep.mubr.bf16.mxu0 0
        %6017 = vmatmul.mubr.bf16.gmra.mrb[0].mxu0 %v5820
        %v6018 = vpop.f32.mrb[0].mxu0
        %v6019 = vadd.f32 %v5966, %v6018
        %v6020 = vpop.f32.mrb[0].mxu0
        %v6021 = vadd.f32 %v5968, %v6020
        %v6022 = vpop.f32.mrb[0].mxu0
        %v6023 = vadd.f32 %v5970, %v6022
        %v6024 = vpop.f32.mrb[0].mxu0
        %v6025 = vadd.f32 %v5972, %v6024
        %6026 = vmatprep.mubr.bf16.mxu0 0
        %6027 = vmatmul.mubr.bf16.gmra.mrb[0].mxu0 %v5823
        %v6028 = vpop.f32.mrb[0].mxu0
        %v6029 = vadd.f32 %v5976, %v6028
        %v6030 = vpop.f32.mrb[0].mxu0
        %v6031 = vadd.f32 %v5978, %v6030
        %v6032 = vpop.f32.mrb[0].mxu0
        %v6033 = vadd.f32 %v5980, %v6032
        %v6034 = vpop.f32.mrb[0].mxu0
        %v6035 = vadd.f32 %v5982, %v6034
        %6036 = vdwg.mxu0
        %vm6037 = vcmp.gt.f32.partialorder %v6019, 0.0
        %vm6038 = vcmp.gt.f32.partialorder %v6021, 0.0
        %vm6039 = vcmp.gt.f32.partialorder %v6023, 0.0
        %vm6040 = vcmp.gt.f32.partialorder %v6025, 0.0
        %vm6041 = vcmp.gt.f32.partialorder %v6029, 0.0
        %vm6042 = vcmp.gt.f32.partialorder %v6031, 0.0
        %vm6043 = vcmp.gt.f32.partialorder %v6033, 0.0
        %vm6044 = vcmp.gt.f32.partialorder %v6035, 0.0
        %v6045 = vmul.f32 %v6019, 0.01
        %v6046 = vmul.f32 %v6021, 0.01
        %v6047 = vmul.f32 %v6023, 0.01
        %v6048 = vmul.f32 %v6025, 0.01
        %v6049 = vmul.f32 %v6029, 0.01
        %v6050 = vmul.f32 %v6031, 0.01
        %v6051 = vmul.f32 %v6033, 0.01
        %v6052 = vmul.f32 %v6035, 0.01
        %v6053 = vsel %vm6037, %v6019, %v6045
        %v6054 = vsel %vm6038, %v6021, %v6046
        %v6055 = vsel %vm6039, %v6023, %v6047
        %v6056 = vsel %vm6040, %v6025, %v6048
        %v6057 = vsel %vm6041, %v6029, %v6049
        %v6058 = vsel %vm6042, %v6031, %v6050
        %v6059 = vsel %vm6043, %v6033, %v6051
        %v6060 = vsel %vm6044, %v6035, %v6052
        %v6061 = vadd.f32 %v6053, %v6054
        %6062 = vadd.xlane.f32.xlu0 %v6061
        %v6063 = vpop.xlane.xlu0 %6062
        %v6064 = vadd.f32 %v6055, %v6056
        %6065 = vadd.xlane.f32.xlu0 %v6064
        %v6066 = vpop.xlane.xlu0 %6065
        %v6067 = vadd.f32 %v6057, %v6058
        %6068 = vadd.xlane.f32.xlu0 %v6067
        %v6069 = vpop.xlane.xlu0 %6068
        %v6070 = vadd.f32 %v6059, %v6060
        %6071 = vadd.xlane.f32.xlu0 %v6070
        %v6072 = vpop.xlane.xlu0 %6071
        %v6073 = vmul.f32 %v6063, %v3951
        %v6074 = vmul.f32 %v6066, %v3951
        %v6075 = vmul.f32 %v6069, %v3951
        %v6076 = vmul.f32 %v6072, %v3951
        %s6077 = scalar_lea.vmem %s47, 32
        %v6078 = vld [vmem:[%s6077] sm:$0xff]
        %v6079 = vld [vmem:[%s6077 + $0x8] sm:$0xff]
        %v6080 = vld [vmem:[%s6077 + $0x10] sm:$0xff]
        %v6081 = vld [vmem:[%s6077 + $0x18] sm:$0xff]
        %v6082 = vmul.f32 %v6078, %v6073
        %v6083 = vmul.f32 %v6079, %v6074
        %v6084 = vmul.f32 %v6080, %v6075
        %v6085 = vmul.f32 %v6081, %v6076
        %v6086 = vsel %vm3964, %v6082, 0.0
        %v6087 = vsel %vm3964, %v6083, 0.0
        %v6088 = vadd.f32 %v6086, %v6087
        %v6089 = vsel %vm3964, %v6084, 0.0
        %v6090 = vadd.f32 %v6088, %v6089
        %v6091 = vsel %vm3964, %v6085, 0.0
        %v6092 = vadd.f32 %v6090, %v6091
        %v6093 = vrot.slane %v6092, 4
        %v6094 = vadd.f32 %v6092, %v6093
        %v6095 = vrot.slane %v6094, 2
        %v6096 = vadd.f32 %v6094, %v6095
        %v6097 = vrot.slane %v6096, 1
        %v6098 = vadd.f32 %v6096, %v6097
        %s6099 = scalar_lea.vmem %s49, 1
        %v6100 = vld [vmem:[%s6099] sm:$0x1]
        %v6101 = vadd.f32 %v6098, %v6100
        %v6102 = vmax.f32 %v6101, 0.0
        %s6103 = scalar_lea.vmem %s51, 32
        %v6104 = vld [vmem:[%s6103] sm:$0xff]
        %v6105 = vld [vmem:[%s6103 + $0x8] sm:$0xff]
        %v6106 = vld [vmem:[%s6103 + $0x10] sm:$0xff]
        %v6107 = vld [vmem:[%s6103 + $0x18] sm:$0xff]
        %v6108 = vlaneseq
        %v6109 = vshrl.u32 %v6108, 7
        %v6110 = vsub.s32 0, %v6109
        %v6111 = vrot.slane %v6102, %v6110
        %v6112 = vmul.f32 %v6104, %v6111
        %v6113 = vmul.f32 %v6105, %v6111
        %v6114 = vmul.f32 %v6106, %v6111
        %v6115 = vmul.f32 %v6107, %v6111
        %v6116 = vsel %vm3964, %v6112, 0.0
        %6117 = vadd.xlane.f32.xlu0 %v6116
        %v6118 = vpop.xlane.xlu0 %6117
        %v6119 = vsel %vm3964, %v6113, 0.0
        %6120 = vadd.xlane.f32.xlu0 %v6119
        %v6121 = vpop.xlane.xlu0 %6120
        %v6122 = vsel %vm3964, %v6114, 0.0
        %6123 = vadd.xlane.f32.xlu0 %v6122
        %v6124 = vpop.xlane.xlu0 %6123
        %v6125 = vsel %vm3964, %v6115, 0.0
        %6126 = vadd.xlane.f32.xlu0 %v6125
        %v6127 = vpop.xlane.xlu0 %6126
        %s6128 = scalar_lea.vmem %s53, 32
        %v6129 = vld [vmem:[%s6128] sm:$0xff]
        %v6130 = vld [vmem:[%s6128 + $0x8] sm:$0xff]
        %v6131 = vld [vmem:[%s6128 + $0x10] sm:$0xff]
        %v6132 = vld [vmem:[%s6128 + $0x18] sm:$0xff]
        %v6133 = vadd.f32 %v6118, %v6129
        %v6134 = vadd.f32 %v6121, %v6130
        %v6135 = vadd.f32 %v6124, %v6131
        %v6136 = vadd.f32 %v6127, %v6132
        %v6137 = vxor.u32 %v6133, 2147483648
        %v6138 = vxor.u32 %v6134, 2147483648
        %v6139 = vxor.u32 %v6135, 2147483648
        %v6140 = vxor.u32 %v6136, 2147483648
        %v6141 = vmul.f32 %v6137, 1.442695
        %v6142 = vpow.pop %v6141
        %v6143 = vmul.f32 %v6138, 1.442695
        %v6144 = vpow.pop %v6143
        %v6145 = vmul.f32 %v6139, 1.442695
        %v6146 = vpow.pop %v6145
        %v6147 = vmul.f32 %v6140, 1.442695
        %v6148 = vpow.pop %v6147
        %v6149 = vadd.f32 %v6142, 1.0
        %v6150 = vadd.f32 %v6144, 1.0
        %v6151 = vadd.f32 %v6146, 1.0
        %v6152 = vadd.f32 %v6148, 1.0
        %v6153 = vrcp.pop %v6149
        %v6154 = vmul.f32 1.0, %v6153
        %v6155 = vrcp.pop %v6150
        %v6156 = vmul.f32 1.0, %v6155
        %v6157 = vrcp.pop %v6151
        %v6158 = vmul.f32 1.0, %v6157
        %v6159 = vrcp.pop %v6152
        %v6160 = vmul.f32 1.0, %v6159
        %6162 = vset.pattern.permute.xlu0 0
        %6163 = vperm.xlu0 %6162, %v6154
        %v6164 = vpop.permute.xlu0 %6163
        %6167 = vset.pattern.permute.xlu0 0
        %6168 = vperm.xlu0 %6167, %v6156
        %v6169 = vpop.permute.xlu0 %6168
        %6172 = vset.pattern.permute.xlu0 0
        %6173 = vperm.xlu0 %6172, %v6158
        %v6174 = vpop.permute.xlu0 %6173
        %6177 = vset.pattern.permute.xlu0 0
        %6178 = vperm.xlu0 %6177, %v6160
        %v6179 = vpop.permute.xlu0 %6178
        %v6181 = vmul.f32 %v6053, %v6164
        %v6182 = vmul.f32 %v6054, %v6164
        %v6183 = vmul.f32 %v6055, %v6169
        %v6184 = vmul.f32 %v6056, %v6169
        %v6185 = vmul.f32 %v6057, %v6174
        %v6186 = vmul.f32 %v6058, %v6174
        %v6187 = vmul.f32 %v6059, %v6179
        %v6188 = vmul.f32 %v6060, %v6179
        %v6189 = vadd.f32 %v6181, %v4089
        %v6190 = vadd.f32 %v6182, %v4090
        %v6191 = vadd.f32 %v6183, %v4091
        %v6192 = vadd.f32 %v6184, %v4092
        %v6193 = vadd.f32 %v6185, %v4093
        %v6194 = vadd.f32 %v6186, %v4094
        %v6195 = vadd.f32 %v6187, %v4095
        %v6196 = vadd.f32 %v6188, %v4096
        %vm6197 = vcmp.gt.f32.partialorder %v6189, 0.0
        %vm6198 = vcmp.gt.f32.partialorder %v6190, 0.0
        %vm6199 = vcmp.gt.f32.partialorder %v6191, 0.0
        %vm6200 = vcmp.gt.f32.partialorder %v6192, 0.0
        %vm6201 = vcmp.gt.f32.partialorder %v6193, 0.0
        %vm6202 = vcmp.gt.f32.partialorder %v6194, 0.0
        %vm6203 = vcmp.gt.f32.partialorder %v6195, 0.0
        %vm6204 = vcmp.gt.f32.partialorder %v6196, 0.0
        %v6205 = vmul.f32 %v6189, 0.01
        %v6206 = vmul.f32 %v6190, 0.01
        %v6207 = vmul.f32 %v6191, 0.01
        %v6208 = vmul.f32 %v6192, 0.01
        %v6209 = vmul.f32 %v6193, 0.01
        %v6210 = vmul.f32 %v6194, 0.01
        %v6211 = vmul.f32 %v6195, 0.01
        %v6212 = vmul.f32 %v6196, 0.01
        %v6213 = vsel %vm6197, %v6189, %v6205
        %v6214 = vsel %vm6198, %v6190, %v6206
        %v6215 = vsel %vm6199, %v6191, %v6207
        %v6216 = vsel %vm6200, %v6192, %v6208
        %v6217 = vsel %vm6201, %v6193, %v6209
        %v6218 = vsel %vm6202, %v6194, %v6210
        %v6219 = vsel %vm6203, %v6195, %v6211
        %v6220 = vsel %vm6204, %v6196, %v6212
        %v6221 = vld [vmem:[%s55] sm:$0xff]
        %v6222 = vld [vmem:[%s55 + $0x8] sm:$0xff]
        %v6223 = vld [vmem:[%s55 + $0x10] sm:$0xff]
        %v6224 = vld [vmem:[%s55 + $0x18] sm:$0xff]
        %v6225 = vld [vmem:[%s57] sm:$0xff]
        %v6226 = vld [vmem:[%s57 + $0x8] sm:$0xff]
        %v6227 = vld [vmem:[%s57 + $0x10] sm:$0xff]
        %v6228 = vld [vmem:[%s57 + $0x18] sm:$0xff]
        %6230 = vset.pattern.permute.xlu0 0
        %6231 = vperm.xlu0 %6230, %v6225
        %v6232 = vpop.permute.xlu0 %6231
        %6235 = vset.pattern.permute.xlu0 0
        %6236 = vperm.xlu0 %6235, %v6226
        %v6237 = vpop.permute.xlu0 %6236
        %6240 = vset.pattern.permute.xlu0 0
        %6241 = vperm.xlu0 %6240, %v6227
        %v6242 = vpop.permute.xlu0 %6241
        %6245 = vset.pattern.permute.xlu0 0
        %6246 = vperm.xlu0 %6245, %v6228
        %v6247 = vpop.permute.xlu0 %6246
        %v6250 = vsel %vm1780, %v6221, 0
        %v6253 = vsel %vm1780, %v6222, 0
        %v6256 = vsel %vm1780, %v6223, 0
        %v6259 = vsel %vm1780, %v6224, 0
        %6261 = vmatprep.subr.mxu0 %v6214
        %6262 = vmatpush1.msra.mxu0 %v6213
        %6263 = vmatprep.subr.mxu0 %v6216
        %6264 = vmatpush1.msra.mxu0 %v6215
        %6265 = vmatprep.subr.mxu0 %v6218
        %6266 = vmatpush1.msra.mxu0 %v6217
        %6267 = vmatprep.subr.mxu0 %v6220
        %6268 = vmatpush1.msra.mxu0 %v6219
        %6269 = vmatprep.subr.mxu0 0.0
        %6270 = vmatpush1.msra.mxu0 0.0
        %6271 = vmatprep.subr.mxu0 0.0
        %6272 = vmatpush1.msra.mxu0 0.0
        %6273 = vmatprep.subr.mxu0 0.0
        %6274 = vmatpush1.msra.mxu0 0.0
        %6275 = vmatprep.subr.mxu0 0.0
        %6276 = vmatpush1.msra.mxu0 0.0
        %6277 = vmatprep.subr.mxu0 0.0
        %6278 = vmatpush1.msra.mxu0 0.0
        %6279 = vmatprep.subr.mxu0 0.0
        %6280 = vmatpush1.msra.mxu0 0.0
        %6281 = vmatprep.subr.mxu0 0.0
        %6282 = vmatpush1.msra.mxu0 0.0
        %6283 = vmatprep.subr.mxu0 0.0
        %6284 = vmatpush1.msra.mxu0 0.0
        %6285 = vmatprep.subr.mxu0 0.0
        %6286 = vmatpush1.msra.mxu0 0.0
        %6287 = vmatprep.subr.mxu0 0.0
        %6288 = vmatpush1.msra.mxu0 0.0
        %6289 = vmatprep.subr.mxu0 0.0
        %6290 = vmatpush1.msra.mxu0 0.0
        %6291 = vmatprep.subr.mxu0 0.0
        %6292 = vmatpush1.msra.mxu0 0.0
        %6293 = vmatprep.subr.mxu0 0.0
        %6294 = vmatpush1.msra.mxu0 0.0
        %6295 = vmatprep.subr.mxu0 0.0
        %6296 = vmatpush1.msra.mxu0 0.0
        %6297 = vmatprep.subr.mxu0 0.0
        %6298 = vmatpush1.msra.mxu0 0.0
        %6299 = vmatprep.subr.mxu0 0.0
        %6300 = vmatpush1.msra.mxu0 0.0
        %6301 = vmatprep.subr.mxu0 0.0
        %6302 = vmatpush1.msra.mxu0 0.0
        %6303 = vmatprep.subr.mxu0 0.0
        %6304 = vmatpush1.msra.mxu0 0.0
        %6305 = vmatprep.subr.mxu0 0.0
        %6306 = vmatpush1.msra.mxu0 0.0
        %6307 = vmatprep.subr.mxu0 0.0
        %6308 = vmatpush1.msra.mxu0 0.0
        %6309 = vmatprep.subr.mxu0 0.0
        %6310 = vmatpush1.msra.mxu0 0.0
        %6311 = vmatprep.subr.mxu0 0.0
        %6312 = vmatpush1.msra.mxu0 0.0
        %6313 = vmatprep.subr.mxu0 0.0
        %6314 = vmatpush1.msra.mxu0 0.0
        %6315 = vmatprep.subr.mxu0 0.0
        %6316 = vmatpush1.msra.mxu0 0.0
        %6317 = vmatprep.subr.mxu0 0.0
        %6318 = vmatpush1.msra.mxu0 0.0
        %6319 = vmatprep.subr.mxu0 0.0
        %6320 = vmatpush1.msra.mxu0 0.0
        %6321 = vmatprep.subr.mxu0 0.0
        %6322 = vmatpush1.msra.mxu0 0.0
        %6323 = vmatprep.subr.mxu0 0.0
        %6324 = vmatpush1.msra.mxu0 0.0
        %6325 = vmatprep.mubr.f32.mxu0 0.0
        %6326 = vmatmul.mubr.f32.gmra.mrb[0].mxu0 %v6250
        %v6327 = vpop.f32.mrb[0].mxu0
        %v6328 = vadd.f32 %v6232, %v6327
        %v6329 = vpop.f32.mrb[0].mxu0
        %v6330 = vadd.f32 %v6232, %v6329
        %6331 = vmatprep.mubr.f32.mxu0 0.0
        %6332 = vmatmul.mubr.f32.gmra.mrb[0].mxu0 %v6253
        %v6333 = vpop.f32.mrb[0].mxu0
        %v6334 = vadd.f32 %v6237, %v6333
        %v6335 = vpop.f32.mrb[0].mxu0
        %v6336 = vadd.f32 %v6237, %v6335
        %6337 = vmatprep.mubr.f32.mxu0 0.0
        %6338 = vmatmul.mubr.f32.gmra.mrb[0].mxu0 %v6256
        %v6339 = vpop.f32.mrb[0].mxu0
        %v6340 = vadd.f32 %v6242, %v6339
        %v6341 = vpop.f32.mrb[0].mxu0
        %v6342 = vadd.f32 %v6242, %v6341
        %6343 = vmatprep.mubr.f32.mxu0 0.0
        %6344 = vmatmul.mubr.f32.gmra.mrb[0].mxu0 %v6259
        %v6345 = vpop.f32.mrb[0].mxu0
        %v6346 = vadd.f32 %v6247, %v6345
        %v6347 = vpop.f32.mrb[0].mxu0
        %v6348 = vadd.f32 %v6247, %v6347
        %6349 = vdwg.mxu0
        %v6350 = vld [vmem:[%s59] sm:$0xff]
        %v6351 = vld [vmem:[%s59 + $0x8] sm:$0xff]
        %v6352 = vld [vmem:[%s59 + $0x10] sm:$0xff]
        %v6353 = vld [vmem:[%s59 + $0x18] sm:$0xff]
        %v6354 = vld [vmem:[%s61] sm:$0xff]
        %v6355 = vld [vmem:[%s61 + $0x8] sm:$0xff]
        %v6356 = vld [vmem:[%s61 + $0x10] sm:$0xff]
        %v6357 = vld [vmem:[%s61 + $0x18] sm:$0xff]
        %6359 = vset.pattern.permute.xlu0 0
        %6360 = vperm.xlu0 %6359, %v6354
        %v6361 = vpop.permute.xlu0 %6360
        %6364 = vset.pattern.permute.xlu0 0
        %6365 = vperm.xlu0 %6364, %v6355
        %v6366 = vpop.permute.xlu0 %6365
        %6369 = vset.pattern.permute.xlu0 0
        %6370 = vperm.xlu0 %6369, %v6356
        %v6371 = vpop.permute.xlu0 %6370
        %6374 = vset.pattern.permute.xlu0 0
        %6375 = vperm.xlu0 %6374, %v6357
        %v6376 = vpop.permute.xlu0 %6375
        %v6379 = vsel %vm1780, %v6350, 0
        %v6382 = vsel %vm1780, %v6351, 0
        %v6385 = vsel %vm1780, %v6352, 0
        %v6388 = vsel %vm1780, %v6353, 0
        %6390 = vmatprep.subr.mxu0 %v6330
        %6391 = vmatpush1.msra.mxu0 %v6328
        %6392 = vmatprep.subr.mxu0 %v6336
        %6393 = vmatpush1.msra.mxu0 %v6334
        %6394 = vmatprep.subr.mxu0 %v6342
        %6395 = vmatpush1.msra.mxu0 %v6340
        %6396 = vmatprep.subr.mxu0 %v6348
        %6397 = vmatpush1.msra.mxu0 %v6346
        %6398 = vmatprep.subr.mxu0 0.0
        %6399 = vmatpush1.msra.mxu0 0.0
        %6400 = vmatprep.subr.mxu0 0.0
        %6401 = vmatpush1.msra.mxu0 0.0
        %6402 = vmatprep.subr.mxu0 0.0
        %6403 = vmatpush1.msra.mxu0 0.0
        %6404 = vmatprep.subr.mxu0 0.0
        %6405 = vmatpush1.msra.mxu0 0.0
        %6406 = vmatprep.subr.mxu0 0.0
        %6407 = vmatpush1.msra.mxu0 0.0
        %6408 = vmatprep.subr.mxu0 0.0
        %6409 = vmatpush1.msra.mxu0 0.0
        %6410 = vmatprep.subr.mxu0 0.0
        %6411 = vmatpush1.msra.mxu0 0.0
        %6412 = vmatprep.subr.mxu0 0.0
        %6413 = vmatpush1.msra.mxu0 0.0
        %6414 = vmatprep.subr.mxu0 0.0
        %6415 = vmatpush1.msra.mxu0 0.0
        %6416 = vmatprep.subr.mxu0 0.0
        %6417 = vmatpush1.msra.mxu0 0.0
        %6418 = vmatprep.subr.mxu0 0.0
        %6419 = vmatpush1.msra.mxu0 0.0
        %6420 = vmatprep.subr.mxu0 0.0
        %6421 = vmatpush1.msra.mxu0 0.0
        %6422 = vmatprep.subr.mxu0 0.0
        %6423 = vmatpush1.msra.mxu0 0.0
        %6424 = vmatprep.subr.mxu0 0.0
        %6425 = vmatpush1.msra.mxu0 0.0
        %6426 = vmatprep.subr.mxu0 0.0
        %6427 = vmatpush1.msra.mxu0 0.0
        %6428 = vmatprep.subr.mxu0 0.0
        %6429 = vmatpush1.msra.mxu0 0.0
        %6430 = vmatprep.subr.mxu0 0.0
        %6431 = vmatpush1.msra.mxu0 0.0
        %6432 = vmatprep.subr.mxu0 0.0
        %6433 = vmatpush1.msra.mxu0 0.0
        %6434 = vmatprep.subr.mxu0 0.0
        %6435 = vmatpush1.msra.mxu0 0.0
        %6436 = vmatprep.subr.mxu0 0.0
        %6437 = vmatpush1.msra.mxu0 0.0
        %6438 = vmatprep.subr.mxu0 0.0
        %6439 = vmatpush1.msra.mxu0 0.0
        %6440 = vmatprep.subr.mxu0 0.0
        %6441 = vmatpush1.msra.mxu0 0.0
        %6442 = vmatprep.subr.mxu0 0.0
        %6443 = vmatpush1.msra.mxu0 0.0
        %6444 = vmatprep.subr.mxu0 0.0
        %6445 = vmatpush1.msra.mxu0 0.0
        %6446 = vmatprep.subr.mxu0 0.0
        %6447 = vmatpush1.msra.mxu0 0.0
        %6448 = vmatprep.subr.mxu0 0.0
        %6449 = vmatpush1.msra.mxu0 0.0
        %6450 = vmatprep.subr.mxu0 0.0
        %6451 = vmatpush1.msra.mxu0 0.0
        %6452 = vmatprep.subr.mxu0 0.0
        %6453 = vmatpush1.msra.mxu0 0.0
        %6454 = vmatprep.mubr.f32.mxu0 0.0
        %6455 = vmatmul.mubr.f32.gmra.mrb[0].mxu0 %v6379
        %v6456 = vpop.f32.mrb[0].mxu0
        %v6457 = vadd.f32 %v6361, %v6456
        %v6458 = vpop.f32.mrb[0].mxu0
        %v6459 = vadd.f32 %v6361, %v6458
        %6460 = vmatprep.mubr.f32.mxu0 0.0
        %6461 = vmatmul.mubr.f32.gmra.mrb[0].mxu0 %v6382
        %v6462 = vpop.f32.mrb[0].mxu0
        %v6463 = vadd.f32 %v6366, %v6462
        %v6464 = vpop.f32.mrb[0].mxu0
        %v6465 = vadd.f32 %v6366, %v6464
        %6466 = vmatprep.mubr.f32.mxu0 0.0
        %6467 = vmatmul.mubr.f32.gmra.mrb[0].mxu0 %v6385
        %v6468 = vpop.f32.mrb[0].mxu0
        %v6469 = vadd.f32 %v6371, %v6468
        %v6470 = vpop.f32.mrb[0].mxu0
        %v6471 = vadd.f32 %v6371, %v6470
        %6472 = vmatprep.mubr.f32.mxu0 0.0
        %6473 = vmatmul.mubr.f32.gmra.mrb[0].mxu0 %v6388
        %v6474 = vpop.f32.mrb[0].mxu0
        %v6475 = vadd.f32 %v6376, %v6474
        %v6476 = vpop.f32.mrb[0].mxu0
        %v6477 = vadd.f32 %v6376, %v6476
        %6478 = vdwg.mxu0
        %vm6479 = vcmp.gt.f32.partialorder %v6457, 0.0
        %vm6480 = vcmp.gt.f32.partialorder %v6459, 0.0
        %vm6481 = vcmp.gt.f32.partialorder %v6463, 0.0
        %vm6482 = vcmp.gt.f32.partialorder %v6465, 0.0
        %vm6483 = vcmp.gt.f32.partialorder %v6469, 0.0
        %vm6484 = vcmp.gt.f32.partialorder %v6471, 0.0
        %vm6485 = vcmp.gt.f32.partialorder %v6475, 0.0
        %vm6486 = vcmp.gt.f32.partialorder %v6477, 0.0
        %v6487 = vmul.f32 %v6457, 0.01
        %v6488 = vmul.f32 %v6459, 0.01
        %v6489 = vmul.f32 %v6463, 0.01
        %v6490 = vmul.f32 %v6465, 0.01
        %v6491 = vmul.f32 %v6469, 0.01
        %v6492 = vmul.f32 %v6471, 0.01
        %v6493 = vmul.f32 %v6475, 0.01
        %v6494 = vmul.f32 %v6477, 0.01
        %v6495 = vsel %vm6479, %v6457, %v6487
        %v6496 = vsel %vm6480, %v6459, %v6488
        %v6497 = vsel %vm6481, %v6463, %v6489
        %v6498 = vsel %vm6482, %v6465, %v6490
        %v6499 = vsel %vm6483, %v6469, %v6491
        %v6500 = vsel %vm6484, %v6471, %v6492
        %v6501 = vsel %vm6485, %v6475, %v6493
        %v6502 = vsel %vm6486, %v6477, %v6494
        %v6503 = vadd.f32 %v6495, %v6496
        %6504 = vadd.xlane.f32.xlu0 %v6503
        %v6505 = vpop.xlane.xlu0 %6504
        %v6506 = vadd.f32 %v6497, %v6498
        %6507 = vadd.xlane.f32.xlu0 %v6506
        %v6508 = vpop.xlane.xlu0 %6507
        %v6509 = vadd.f32 %v6499, %v6500
        %6510 = vadd.xlane.f32.xlu0 %v6509
        %v6511 = vpop.xlane.xlu0 %6510
        %v6512 = vadd.f32 %v6501, %v6502
        %6513 = vadd.xlane.f32.xlu0 %v6512
        %v6514 = vpop.xlane.xlu0 %6513
        %v6515 = vmul.f32 %v6505, %v3951
        %v6516 = vmul.f32 %v6508, %v3951
        %v6517 = vmul.f32 %v6511, %v3951
        %v6518 = vmul.f32 %v6514, %v3951
        %v6519 = vld [vmem:[%s63] sm:$0xff]
        %v6520 = vld [vmem:[%s63 + $0x8] sm:$0xff]
        %v6521 = vld [vmem:[%s63 + $0x10] sm:$0xff]
        %v6522 = vld [vmem:[%s63 + $0x18] sm:$0xff]
        %v6523 = vmul.f32 %v6519, %v6515
        %v6524 = vmul.f32 %v6520, %v6516
        %v6525 = vmul.f32 %v6521, %v6517
        %v6526 = vmul.f32 %v6522, %v6518
        %vm6527 = vcmask 7168
        %v6528 = vsel %vm6527, %v6523, 0.0
        %v6529 = vsel %vm6527, %v6524, 0.0
        %v6530 = vadd.f32 %v6528, %v6529
        %v6531 = vsel %vm6527, %v6525, 0.0
        %v6532 = vadd.f32 %v6530, %v6531
        %v6533 = vsel %vm6527, %v6526, 0.0
        %v6534 = vadd.f32 %v6532, %v6533
        %6535 = vadd.xlane.f32.xlu0 %v6534
        %v6536 = vpop.xlane.xlu0 %6535
        %v6537 = vrot.slane %v6536, 4
        %v6538 = vadd.f32 %v6536, %v6537
        %v6539 = vrot.slane %v6538, 2
        %v6540 = vadd.f32 %v6538, %v6539
        %v6541 = vrot.slane %v6540, 1
        %v6542 = vadd.f32 %v6540, %v6541
        %s6543 = vtos %v6542
        %s6544 = sld [smem:[#allocation4]]
        %s6545 = sadd.f32 %s6543, %s6544
        %v6546 = vstv %s6545
        %6547 = vst [vmem:[%s1162] sm:$0x1] %v6546
        %p6548 = scmp.lt.s32.totalorder %s80, 1
        %s6549 = scalar_select %p6548, %s80, 1
        %s6550 = scalar_lea.vmem %s65, %s6549
        // Predicated region
        $region157: #{_lambda_.1} parent=147 // pred_check
          %p6551 = pneg %p815
        $region158: #{_lambda_.1} parent=147 // pred_check_branch
          %6553 = sbr.rel (%p6551) target = $region160
        $region159: #{_lambda_.1} parent=147 // pred_region
          _
        $region160: #{_lambda_.1} parent=147 // pred_fallthru
          _
      $region148: #{_lambda_.1} parent=5 // pred_fallthru
        _
      %p6554 = scmp.le.s32.totalorder 2, %s75
      // Predicated region
      $region161: #{_lambda_.1} parent=5 // pred_check
        %p6555 = pneg %p6554
      $region162: #{_lambda_.1} parent=5 // pred_check_branch
        %6557 = sbr.rel (%p6555) target = $region164
      $region163: #{_lambda_.1} parent=5 // pred_region
        %s6558 = ssub.s32 %s75, 2
        // Predicated region
        $region165: #{_lambda_.1} parent=163 // pred_check
          %p6559 = pneg %p821
        $region166: #{_lambda_.1} parent=163 // pred_check_branch
          %6561 = sbr.rel (%p6559) target = $region168
        $region167: #{_lambda_.1} parent=163 // pred_region
          %p6562 = scmp.lt.s32.totalorder %s81, 1
          %s6563 = scalar_select %p6562, %s81, 1
          %s6564 = scalar_lea.vmem %s65, %s6563
        $region168: #{_lambda_.1} parent=163 // pred_fallthru
          _
      $region164: #{_lambda_.1} parent=5 // pred_fallthru
        _
    $region6: #{_lambda_.1} parent=1 // loop_footer
      %s79 = sadd.s32 1, %s75
    $region7: #{_lambda_.1} parent=1 // loop_footer_branch
      %74 = sbr.rel target = $region3
    $region8: #{_lambda_.1} parent=1 // loop_exit
      _
    %6565 = vsyncpa [#allocation6], 1
    %s6566 = scalar_lea.sflag [#allocation6], 1
    %6567 = vsyncpa %s6566, 1
    %6568 = vsyncpa [#allocation8], 1

</llo_original>
